<compile_context>
chip_gen: v7x
topology: tpu7x:2x2x1
jax: 0.10.0
libtpu: 0.0.40
codegen_flags: <defaults>
</compile_context>

<pallas_src>
import math
import functools

import jax
import jax.numpy as jnp
from jax import lax
from jax.experimental import pallas as pl
from jax.experimental.pallas import tpu as pltpu

EPS = 1e-5
LANE = 128
VMEM_LIMIT = 32 * 1024 * 1024          # safe on v5e/v6e/v7x; plenty for these blocks
HIGHEST = jax.lax.Precision.HIGHEST    # reference only


def _round_up(x, m):
    return (x + m - 1) // m * m


def _pick_tm(M, max_tm=1024):
    """Largest M-tile that divides M, is a multiple of 8, <= max_tm, and (when
    possible) leaves >= 2 grid steps so both TensorCores get work on v7x."""
    cands = [t for t in range(8, min(max_tm, M) + 1, 8) if M % t == 0]
    if not cands:
        # TODO(synk): ragged M (no 8-aligned divisor) would need cdiv + masking.
        assert M <= max_tm, M
        return M
    two_step = [t for t in cands if M // t >= 2]
    return max(two_step) if two_step else max(cands)


# ---------------------------------------------------------------------------
# Kernel 1: fused  relu(bn1(segments)) @ (w1 * s2) + b2 -> relu
# (norm1, relu1, conv1(1x1x1), norm2, relu2 -- bn2 scale folded into w1)
# ---------------------------------------------------------------------------
def _make_bottleneck_kernel(n_seg, segw, cmid_pad):
    def kernel(*refs):
        x_refs = refs[:n_seg]
        s1_ref, b1_ref, w1_ref, b2_ref, o_ref = refs[n_seg:]
        tm = x_refs[0].shape[0]
        acc = jnp.zeros((tm, cmid_pad), jnp.float32)
        for j in range(n_seg):
            lo, hi = j * segw, (j + 1) * segw
            x = x_refs[j][...]                                     # (tm, segw) f32
            h = jnp.maximum(x * s1_ref[:, lo:hi] + b1_ref[:, lo:hi], 0.0)
            acc = acc + jnp.dot(h.astype(jnp.bfloat16), w1_ref[lo:hi, :],
                                preferred_element_type=jnp.float32)
        o_ref[...] = jnp.maximum(acc + b2_ref[...], 0.0).astype(o_ref.dtype)
    return kernel


def fused_bottleneck(segments, s1, b1, w1, b2, *, cmid_pad, max_tm=1024):
    n_seg = len(segments)
    M, segw = segments[0].shape
    K = n_seg * segw
    tm = _pick_tm(M, max_tm)
    in_specs = [pl.BlockSpec((tm, segw), lambda i: (i, 0)) for _ in range(n_seg)]
    in_specs += [
        pl.BlockSpec((1, K), lambda i: (0, 0)),          # bn1 scale (padded layout)
        pl.BlockSpec((1, K), lambda i: (0, 0)),          # bn1 shift
        pl.BlockSpec((K, cmid_pad), lambda i: (0, 0)),   # w1 * s2 (bf16)
        pl.BlockSpec((1, cmid_pad), lambda i: (0, 0)),   # bn2 shift
    ]
    return pl.pallas_call(
        _make_bottleneck_kernel(n_seg, segw, cmid_pad),
        out_shape=jax.ShapeDtypeStruct((M, cmid_pad), jnp.float32),
        grid=(M // tm,),
        in_specs=in_specs,
        out_specs=pl.BlockSpec((tm, cmid_pad), lambda i: (i, 0)),
        compiler_params=pltpu.CompilerParams(
            dimension_semantics=("parallel",),
            vmem_limit_bytes=VMEM_LIMIT),
    )(*segments, s1, b1, w1, b2)


# ---------------------------------------------------------------------------
# Kernel 2: 3x3x3 conv (stride 1, pad 1, no bias) as 27 shifted matmuls in VMEM.
# Input is the spatially padded bottleneck with (H+2, W+2) flattened; tap (kh, kw)
# is a contiguous row-window at offset kh*(W+2)+kw, so no im2col is materialized.
# Output channels are padded to a multiple of 128 -> lane-dense stores.
# ---------------------------------------------------------------------------
def _conv3x3x3_kernel(x0_ref, x1_ref, x2_ref, w_ref, o_ref, acc_ref, *, H, W):
    Wp = W + 2
    L = (H - 1) * Wp + W                      # rows needed so all taps stay in-bounds
    Gp = o_ref.shape[-1]
    acc = jnp.zeros((L, Gp), jnp.float32)
    for kd, xr in enumerate((x0_ref, x1_ref, x2_ref)):
        for kh in range(3):
            for kw in range(3):
                off = kh * Wp + kw
                patch = xr[off:off + L, :].astype(jnp.bfloat16)
                acc = acc + jnp.dot(patch, w_ref[kd * 9 + kh * 3 + kw],
                                    preferred_element_type=jnp.float32)
    acc_ref[...] = acc
    for h in range(H):                         # drop the (W+2-W) wrap columns per row
        o_ref[h, :, :] = acc_ref[h * Wp:h * Wp + W, :]


def conv3x3x3(bott, w_taps, *, N, D, H, W):
    M, C = bott.shape
    Gp = w_taps.shape[-1]
    Hp, Wp = H + 2, W + 2
    L = (H - 1) * Wp + W
    b_pad = jnp.pad(bott.reshape(N, D, H, W, C),
                    ((0, 0), (1, 1), (1, 1), (1, 1), (0, 0)))
    xflat = b_pad.reshape(N, D + 2, Hp * Wp, C)

    def xspec(kd):   # three depth-shifted streams of the same padded activation
        return pl.BlockSpec((None, None, Hp * Wp, C),
                            lambda n, d, kd=kd: (n, d + kd, 0, 0))

    out = pl.pallas_call(
        functools.partial(_conv3x3x3_kernel, H=H, W=W),
        out_shape=jax.ShapeDtypeStruct((N, D, H, W, Gp), jnp.float32),
        grid=(N, D),
        in_specs=[xspec(0), xspec(1), xspec(2),
                  pl.BlockSpec((27, C, Gp), lambda n, d: (0, 0, 0))],
        out_specs=pl.BlockSpec((None, None, H, W, Gp),
                               lambda n, d: (n, d, 0, 0, 0)),
        scratch_shapes=[pltpu.VMEM((L, Gp), jnp.float32)],
        compiler_params=pltpu.CompilerParams(
            dimension_semantics=("parallel", "parallel"),
            vmem_limit_bytes=VMEM_LIMIT),
    )(xflat, xflat, xflat, w_taps)
    return out.reshape(M, Gp)


# ---------------------------------------------------------------------------
# DenseBlock forward.  Features are kept as a list of 128-lane-padded segments
# (no per-layer concatenation through HBM).
# ---------------------------------------------------------------------------
def dense_block_forward(x_ncdhw, layers, *, growth, segw, cmid_pad):
    N, C0, D, H, W = x_ncdhw.shape
    M = N * D * H * W
    x = jnp.transpose(x_ncdhw, (0, 2, 3, 4, 1)).reshape(M, C0)   # NCDHW -> [M, C]
    segments = [jnp.pad(x, ((0, 0), (0, segw - C0)))]            # segment 0, lane-padded
    for L in layers:
        bott = fused_bottleneck(segments, L["s1"], L["b1"], L["w1"], L["b2"],
                                cmid_pad=cmid_pad)
        new_seg = conv3x3x3(bott, L["w2"], N=N, D=D, H=H, W=W)    # [M, segw], pad lanes = 0
        segments.append(new_seg)
    reals = [segments[0][:, :C0]] + [s[:, :growth] for s in segments[1:]]
    out = jnp.concatenate(reals, axis=-1)                         # torch.cat(features, 1)
    cout = out.shape[-1]
    return jnp.transpose(out.reshape(N, D, H, W, cout), (0, 4, 1, 2, 3))


# ---------------------------------------------------------------------------
# Deterministic parameter init (shapes per _DenseLayer.__init__) + kernel packing.
# ---------------------------------------------------------------------------
def _slab_cols(layer_idx, c0, growth, segw):
    """Column indices of the real channels inside the lane-padded segment layout."""
    cols = list(range(c0))
    for j in range(1, layer_idx + 1):
        cols += list(range(j * segw, j * segw + growth))
    return jnp.asarray(cols, dtype=jnp.int32)


def init_params(key, num_layers, c0, bn_size, growth, segw, cmid_pad):
    cmid = bn_size * growth
    layers = []
    for i in range(num_layers):
        cin = c0 + i * growth
        key, *ks = jax.random.split(key, 11)
        g1 = jax.random.uniform(ks[0], (cin,), jnp.float32, 0.5, 1.5)
        be1 = 0.1 * jax.random.normal(ks[1], (cin,), jnp.float32)
        m1 = 0.1 * jax.random.normal(ks[2], (cin,), jnp.float32)
        v1 = jax.random.uniform(ks[3], (cin,), jnp.float32, 0.5, 1.5)
        w1 = jax.random.normal(ks[4], (cmid, cin, 1, 1, 1), jnp.float32) / math.sqrt(cin)
        g2 = jax.random.uniform(ks[5], (cmid,), jnp.float32, 0.5, 1.5)
        be2 = 0.1 * jax.random.normal(ks[6], (cmid,), jnp.float32)
        m2 = 0.1 * jax.random.normal(ks[7], (cmid,), jnp.float32)
        v2 = jax.random.uniform(ks[8], (cmid,), jnp.float32, 0.5, 1.5)
        w2 = jax.random.normal(ks[9], (growth, cmid, 3, 3, 3), jnp.float32) / math.sqrt(27 * cmid)

        # eval-mode BN fold
        s1 = g1 / jnp.sqrt(v1 + EPS); b1 = be1 - m1 * s1
        s2 = g2 / jnp.sqrt(v2 + EPS); b2 = be2 - m2 * s2
        w1_mat = jnp.transpose(w1[:, :, 0, 0, 0], (1, 0))          # (cin, cmid)
        w2_dhwio = jnp.transpose(w2, (2, 3, 4, 1, 0))              # (3,3,3,cmid,growth)

        # pack into the lane-padded segment layout used by the kernels
        cols = _slab_cols(i, c0, growth, segw)
        K = (i + 1) * segw
        s1_pad = jnp.zeros((K,), jnp.float32).at[cols].set(s1).reshape(1, K)
        b1_pad = jnp.zeros((K,), jnp.float32).at[cols].set(b1).reshape(1, K)
        w1_scaled = w1_mat * s2[None, :]                           # fold bn2 scale into conv1
        w1_pad = jnp.zeros((K, cmid_pad), jnp.float32).at[cols, :cmid].set(w1_scaled)
        b2_pad = jnp.zeros((1, cmid_pad), jnp.float32).at[0, :cmid].set(b2)
        w2_pad = jnp.zeros((3, 3, 3, cmid_pad, segw), jnp.float32)
        w2_pad = w2_pad.at[:, :, :, :cmid, :growth].set(w2_dhwio)
        w2_taps = w2_pad.reshape(27, cmid_pad, segw)

        layers.append(dict(
            # kernel params (padded, bf16 weights)
            s1=s1_pad, b1=b1_pad, w1=w1_pad.astype(jnp.bfloat16),
            b2=b2_pad, w2=w2_taps.astype(jnp.bfloat16),
            # raw params for the pure-JAX reference
            s1_raw=s1, b1_raw=b1, w1_raw=w1_mat, s2_raw=s2, b2_raw=b2,
            w2_dhwio=w2_dhwio))
    return layers


# ---------------------------------------------------------------------------
# Pure-JAX reference (correctness check only; f32 HIGHEST precision)
# ---------------------------------------------------------------------------
def reference_forward(x_ncdhw, layers):
    x = jnp.transpose(x_ncdhw, (0, 2, 3, 4, 1))
    feats = [x]
    for L in layers:
        cat = jnp.concatenate(feats, axis=-1)
        h = jnp.maximum(cat * L["s1_raw"] + L["b1_raw"], 0.0)
        bott = jnp.einsum("ndhwc,ck->ndhwk", h, L["w1_raw"], precision=HIGHEST)
        h2 = jnp.maximum(bott * L["s2_raw"] + L["b2_raw"], 0.0)
        new = lax.conv_general_dilated(
            h2, L["w2_dhwio"], window_strides=(1, 1, 1), padding="SAME",
            dimension_numbers=("NDHWC", "DHWIO", "NDHWC"), precision=HIGHEST)
        feats.append(new)
    out = jnp.concatenate(feats, axis=-1)
    return jnp.transpose(out, (0, 4, 1, 2, 3))


if __name__ == "__main__":
    # Small config: num_layers=2, num_input_features=8, bn_size=2, growth_rate=4, drop_rate=0
    NUM_LAYERS, C0, BN_SIZE, GROWTH = 2, 8, 2, 4
    N, D, H, W = 2, 4, 8, 8
    SEGW = _round_up(max(C0, GROWTH), LANE)        # per-feature-segment lane width (128)
    CMID_PAD = _round_up(BN_SIZE * GROWTH, LANE)   # bottleneck channel pad (128)

    key = jax.random.PRNGKey(0)
    key, kx = jax.random.split(key)
    x = jax.random.normal(kx, (N, C0, D, H, W), jnp.float32)   # PyTorch NCDHW input

    layers = init_params(key, NUM_LAYERS, C0, BN_SIZE, GROWTH, SEGW, CMID_PAD)

    fwd = jax.jit(functools.partial(dense_block_forward, layers=layers,
                                    growth=GROWTH, segw=SEGW, cmid_pad=CMID_PAD))
    out = jax.block_until_ready(fwd(x))
    assert out.shape == (N, C0 + NUM_LAYERS * GROWTH, D, H, W), out.shape

    ref = jax.block_until_ready(reference_forward(x, layers))
    err = float(jnp.max(jnp.abs(out - ref)))
    # bf16 MXU matmuls vs f32 HIGHEST reference -> loosened tolerance
    if not jnp.allclose(out, ref, atol=3e-2, rtol=3e-2):
        raise AssertionError(f"Pallas output does not match reference (max abs err {err})")
    print("KERNEL_OK")
</pallas_src>

<mosaic_0001>
module attributes {stable_mosaic.version = 11 : i64} {
  func.func @kernel(%arg0: i32, %arg1: memref<256x128xf32, #tpu.memory_space<vmem>>, %arg2: memref<1x128xf32, #tpu.memory_space<vmem>>, %arg3: memref<1x128xf32, #tpu.memory_space<vmem>>, %arg4: memref<128x128xbf16, #tpu.memory_space<vmem>>, %arg5: memref<1x128xf32, #tpu.memory_space<vmem>>, %arg6: memref<256x128xf32, #tpu.memory_space<vmem>>) attributes {dimension_semantics = [#tpu.dimension_semantics<parallel>], iteration_bounds = array<i64: 2>, scalar_prefetch = 0 : i64, scratch_operands = 0 : i64, tpu.core_type = #tpu.core_type<tc>, window_params = [{transform_indices = @transform_0, window_bounds = array<i64: 256, 128>}, {pipeline_mode = #tpu.pipeline_mode<synchronous>, transform_indices = @transform_1, window_bounds = array<i64: 1, 128>}, {pipeline_mode = #tpu.pipeline_mode<synchronous>, transform_indices = @transform_2, window_bounds = array<i64: 1, 128>}, {pipeline_mode = #tpu.pipeline_mode<synchronous>, transform_indices = @transform_3, window_bounds = array<i64: 128, 128>}, {pipeline_mode = #tpu.pipeline_mode<synchronous>, transform_indices = @transform_4, window_bounds = array<i64: 1, 128>}, {transform_indices = @transform_5, window_bounds = array<i64: 256, 128>}]} {
    %cst = arith.constant 0.000000e+00 : f32
    %0 = vector.broadcast %cst : f32 to vector<256x128xf32>
    %c0 = arith.constant 0 : index
    %c0_0 = arith.constant 0 : index
    %1 = vector.load %arg1[%c0, %c0_0] : memref<256x128xf32, #tpu.memory_space<vmem>>, vector<256x128xf32>
    %c0_1 = arith.constant 0 : index
    %c0_2 = arith.constant 0 : index
    %2 = vector.load %arg2[%c0_1, %c0_2] : memref<1x128xf32, #tpu.memory_space<vmem>>, vector<1x128xf32>
    %3 = vector.broadcast %2 : vector<1x128xf32> to vector<256x128xf32>
    %4 = arith.mulf %1, %3 : vector<256x128xf32>
    %c0_3 = arith.constant 0 : index
    %c0_4 = arith.constant 0 : index
    %5 = vector.load %arg3[%c0_3, %c0_4] : memref<1x128xf32, #tpu.memory_space<vmem>>, vector<1x128xf32>
    %6 = vector.broadcast %5 : vector<1x128xf32> to vector<256x128xf32>
    %7 = arith.addf %4, %6 : vector<256x128xf32>
    %cst_5 = arith.constant 0.000000e+00 : f32
    %8 = vector.broadcast %cst_5 : f32 to vector<256x128xf32>
    %9 = arith.maximumf %7, %8 : vector<256x128xf32>
    %10 = arith.truncf %9 : vector<256x128xf32> to vector<256x128xbf16>
    %c0_6 = arith.constant 0 : index
    %c0_7 = arith.constant 0 : index
    %11 = vector.load %arg4[%c0_6, %c0_7] : memref<128x128xbf16, #tpu.memory_space<vmem>>, vector<128x128xbf16>
    %cst_8 = arith.constant dense<0.000000e+00> : vector<256x128xf32>
    %12 = tpu.matmul %10, %11, %cst_8 {dimension_numbers = #tpu.dot_dimension_numbers<[1], [0], [0], [1], [0, 0, 1, 1], [], []>} : vector<256x128xbf16>, vector<128x128xbf16>, vector<256x128xf32> -> vector<256x128xf32>
    %13 = arith.addf %0, %12 : vector<256x128xf32>
    %c0_9 = arith.constant 0 : index
    %c0_10 = arith.constant 0 : index
    %14 = vector.load %arg5[%c0_9, %c0_10] : memref<1x128xf32, #tpu.memory_space<vmem>>, vector<1x128xf32>
    %15 = vector.broadcast %14 : vector<1x128xf32> to vector<256x128xf32>
    %16 = arith.addf %13, %15 : vector<256x128xf32>
    %cst_11 = arith.constant 0.000000e+00 : f32
    %17 = vector.broadcast %cst_11 : f32 to vector<256x128xf32>
    %18 = arith.maximumf %16, %17 : vector<256x128xf32>
    %c0_12 = arith.constant 0 : index
    %c0_13 = arith.constant 0 : index
    %19 = vector.load %arg6[%c0_12, %c0_13] : memref<256x128xf32, #tpu.memory_space<vmem>>, vector<256x128xf32>
    tpu.vector_store %arg6[%c0_12, %c0_13], %18 {strides = array<i32>} : memref<256x128xf32, #tpu.memory_space<vmem>>, vector<256x128xf32>,
    return
  }
  func.func @transform_0(%arg0: i32) -> (i32, i32) {
    %c0_i32 = arith.constant 0 : i32
    %c0_i32_0 = arith.constant 0 : i32
    return %arg0, %c0_i32 : i32, i32
  }
  func.func @transform_1(%arg0: i32) -> (i32, i32) {
    %c0_i32 = arith.constant 0 : i32
    %c0_i32_0 = arith.constant 0 : i32
    %c0_i32_1 = arith.constant 0 : i32
    return %c0_i32, %c0_i32_0 : i32, i32
  }
  func.func @transform_2(%arg0: i32) -> (i32, i32) {
    %c0_i32 = arith.constant 0 : i32
    %c0_i32_0 = arith.constant 0 : i32
    %c0_i32_1 = arith.constant 0 : i32
    return %c0_i32, %c0_i32_0 : i32, i32
  }
  func.func @transform_3(%arg0: i32) -> (i32, i32) {
    %c0_i32 = arith.constant 0 : i32
    %c0_i32_0 = arith.constant 0 : i32
    %c0_i32_1 = arith.constant 0 : i32
    return %c0_i32, %c0_i32_0 : i32, i32
  }
  func.func @transform_4(%arg0: i32) -> (i32, i32) {
    %c0_i32 = arith.constant 0 : i32
    %c0_i32_0 = arith.constant 0 : i32
    %c0_i32_1 = arith.constant 0 : i32
    return %c0_i32, %c0_i32_0 : i32, i32
  }
  func.func @transform_5(%arg0: i32) -> (i32, i32) {
    %c0_i32 = arith.constant 0 : i32
    %c0_i32_0 = arith.constant 0 : i32
    return %arg0, %c0_i32 : i32, i32
  }
}

module attributes {stable_mosaic.version = 11 : i64} {
  func.func @_conv3x3x3_kernel(%arg0: i32, %arg1: i32, %arg2: memref<1x1x100x128xf32, #tpu.memory_space<vmem>>, %arg3: memref<1x1x100x128xf32, #tpu.memory_space<vmem>>, %arg4: memref<1x1x100x128xf32, #tpu.memory_space<vmem>>, %arg5: memref<27x128x128xbf16, #tpu.memory_space<vmem>>, %arg6: memref<1x1x8x8x128xf32, #tpu.memory_space<vmem>>, %arg7: memref<78x128xf32, #tpu.memory_space<vmem>>) attributes {dimension_semantics = [#tpu.dimension_semantics<parallel>, #tpu.dimension_semantics<parallel>], iteration_bounds = array<i64: 2, 4>, scalar_prefetch = 0 : i64, scratch_operands = 1 : i64, tpu.core_type = #tpu.core_type<tc>, window_params = [{transform_indices = @transform_0, window_bounds = array<i64: 1, 1, 100, 128>}, {transform_indices = @transform_1, window_bounds = array<i64: 1, 1, 100, 128>}, {transform_indices = @transform_2, window_bounds = array<i64: 1, 1, 100, 128>}, {pipeline_mode = #tpu.pipeline_mode<synchronous>, transform_indices = @transform_3, window_bounds = array<i64: 27, 128, 128>}, {transform_indices = @transform_4, window_bounds = array<i64: 1, 1, 8, 8, 128>}]} {
    %cst = arith.constant 0.000000e+00 : f32
    %0 = vector.broadcast %cst : f32 to vector<78x128xf32>
    %c0 = arith.constant 0 : index
    %c0_0 = arith.constant 0 : index
    %c0_1 = arith.constant 0 : index
    %c0_2 = arith.constant 0 : index
    %1 = vector.load %arg2[%c0, %c0_0, %c0_1, %c0_2] : memref<1x1x100x128xf32, #tpu.memory_space<vmem>>, vector<1x1x78x128xf32>
    %2 = vector.shape_cast %1 : vector<1x1x78x128xf32> to vector<78x128xf32>
    %3 = arith.truncf %2 : vector<78x128xf32> to vector<78x128xbf16>
    %c0_3 = arith.constant 0 : index
    %c0_4 = arith.constant 0 : index
    %c0_5 = arith.constant 0 : index
    %4 = vector.load %arg5[%c0_3, %c0_4, %c0_5] : memref<27x128x128xbf16, #tpu.memory_space<vmem>>, vector<1x128x128xbf16>
    %5 = vector.shape_cast %4 : vector<1x128x128xbf16> to vector<128x128xbf16>
    %cst_6 = arith.constant dense<0.000000e+00> : vector<78x128xf32>
    %6 = tpu.matmul %3, %5, %cst_6 {dimension_numbers = #tpu.dot_dimension_numbers<[1], [0], [0], [1], [0, 0, 1, 1], [], []>} : vector<78x128xbf16>, vector<128x128xbf16>, vector<78x128xf32> -> vector<78x128xf32>
    %7 = arith.addf %0, %6 : vector<78x128xf32>
    %c0_7 = arith.constant 0 : index
    %c0_8 = arith.constant 0 : index
    %c1 = arith.constant 1 : index
    %c0_9 = arith.constant 0 : index
    %8 = vector.load %arg2[%c0_7, %c0_8, %c1, %c0_9] : memref<1x1x100x128xf32, #tpu.memory_space<vmem>>, vector<1x1x78x128xf32>
    %9 = vector.shape_cast %8 : vector<1x1x78x128xf32> to vector<78x128xf32>
    %10 = arith.truncf %9 : vector<78x128xf32> to vector<78x128xbf16>
    %c1_10 = arith.constant 1 : index
    %c0_11 = arith.constant 0 : index
    %c0_12 = arith.constant 0 : index
    %11 = vector.load %arg5[%c1_10, %c0_11, %c0_12] : memref<27x128x128xbf16, #tpu.memory_space<vmem>>, vector<1x128x128xbf16>
    %12 = vector.shape_cast %11 : vector<1x128x128xbf16> to vector<128x128xbf16>
    %cst_13 = arith.constant dense<0.000000e+00> : vector<78x128xf32>
    %13 = tpu.matmul %10, %12, %cst_13 {dimension_numbers = #tpu.dot_dimension_numbers<[1], [0], [0], [1], [0, 0, 1, 1], [], []>} : vector<78x128xbf16>, vector<128x128xbf16>, vector<78x128xf32> -> vector<78x128xf32>
    %14 = arith.addf %7, %13 : vector<78x128xf32>
    %c0_14 = arith.constant 0 : index
    %c0_15 = arith.constant 0 : index
    %c2 = arith.constant 2 : index
    %c0_16 = arith.constant 0 : index
    %15 = vector.load %arg2[%c0_14, %c0_15, %c2, %c0_16] : memref<1x1x100x128xf32, #tpu.memory_space<vmem>>, vector<1x1x78x128xf32>
    %16 = vector.shape_cast %15 : vector<1x1x78x128xf32> to vector<78x128xf32>
    %17 = arith.truncf %16 : vector<78x128xf32> to vector<78x128xbf16>
    %c2_17 = arith.constant 2 : index
    %c0_18 = arith.constant 0 : index
    %c0_19 = arith.constant 0 : index
    %18 = vector.load %arg5[%c2_17, %c0_18, %c0_19] : memref<27x128x128xbf16, #tpu.memory_space<vmem>>, vector<1x128x128xbf16>
    %19 = vector.shape_cast %18 : vector<1x128x128xbf16> to vector<128x128xbf16>
    %cst_20 = arith.constant dense<0.000000e+00> : vector<78x128xf32>
    %20 = tpu.matmul %17, %19, %cst_20 {dimension_numbers = #tpu.dot_dimension_numbers<[1], [0], [0], [1], [0, 0, 1, 1], [], []>} : vector<78x128xbf16>, vector<128x128xbf16>, vector<78x128xf32> -> vector<78x128xf32>
    %21 = arith.addf %14, %20 : vector<78x128xf32>
    %c0_21 = arith.constant 0 : index
    %c0_22 = arith.constant 0 : index
    %c10 = arith.constant 10 : index
    %c0_23 = arith.constant 0 : index
    %22 = vector.load %arg2[%c0_21, %c0_22, %c10, %c0_23] : memref<1x1x100x128xf32, #tpu.memory_space<vmem>>, vector<1x1x78x128xf32>
    %23 = vector.shape_cast %22 : vector<1x1x78x128xf32> to vector<78x128xf32>
    %24 = arith.truncf %23 : vector<78x128xf32> to vector<78x128xbf16>
    %c3 = arith.constant 3 : index
    %c0_24 = arith.constant 0 : index
    %c0_25 = arith.constant 0 : index
    %25 = vector.load %arg5[%c3, %c0_24, %c0_25] : memref<27x128x128xbf16, #tpu.memory_space<vmem>>, vector<1x128x128xbf16>
    %26 = vector.shape_cast %25 : vector<1x128x128xbf16> to vector<128x128xbf16>
    %cst_26 = arith.constant dense<0.000000e+00> : vector<78x128xf32>
    %27 = tpu.matmul %24, %26, %cst_26 {dimension_numbers = #tpu.dot_dimension_numbers<[1], [0], [0], [1], [0, 0, 1, 1], [], []>} : vector<78x128xbf16>, vector<128x128xbf16>, vector<78x128xf32> -> vector<78x128xf32>
    %28 = arith.addf %21, %27 : vector<78x128xf32>
    %c0_27 = arith.constant 0 : index
    %c0_28 = arith.constant 0 : index
    %c11 = arith.constant 11 : index
    %c0_29 = arith.constant 0 : index
    %29 = vector.load %arg2[%c0_27, %c0_28, %c11, %c0_29] : memref<1x1x100x128xf32, #tpu.memory_space<vmem>>, vector<1x1x78x128xf32>
    %30 = vector.shape_cast %29 : vector<1x1x78x128xf32> to vector<78x128xf32>
    %31 = arith.truncf %30 : vector<78x128xf32> to vector<78x128xbf16>
    %c4 = arith.constant 4 : index
    %c0_30 = arith.constant 0 : index
    %c0_31 = arith.constant 0 : index
    %32 = vector.load %arg5[%c4, %c0_30, %c0_31] : memref<27x128x128xbf16, #tpu.memory_space<vmem>>, vector<1x128x128xbf16>
    %33 = vector.shape_cast %32 : vector<1x128x128xbf16> to vector<128x128xbf16>
    %cst_32 = arith.constant dense<0.000000e+00> : vector<78x128xf32>
    %34 = tpu.matmul %31, %33, %cst_32 {dimension_numbers = #tpu.dot_dimension_numbers<[1], [0], [0], [1], [0, 0, 1, 1], [], []>} : vector<78x128xbf16>, vector<128x128xbf16>, vector<78x128xf32> -> vector<78x128xf32>
    %35 = arith.addf %28, %34 : vector<78x128xf32>
    %c0_33 = arith.constant 0 : index
    %c0_34 = arith.constant 0 : index
    %c12 = arith.constant 12 : index
    %c0_35 = arith.constant 0 : index
    %36 = vector.load %arg2[%c0_33, %c0_34, %c12, %c0_35] : memref<1x1x100x128xf32, #tpu.memory_space<vmem>>, vector<1x1x78x128xf32>
    %37 = vector.shape_cast %36 : vector<1x1x78x128xf32> to vector<78x128xf32>
    %38 = arith.truncf %37 : vector<78x128xf32> to vector<78x128xbf16>
    %c5 = arith.constant 5 : index
    %c0_36 = arith.constant 0 : index
    %c0_37 = arith.constant 0 : index
    %39 = vector.load %arg5[%c5, %c0_36, %c0_37] : memref<27x128x128xbf16, #tpu.memory_space<vmem>>, vector<1x128x128xbf16>
    %40 = vector.shape_cast %39 : vector<1x128x128xbf16> to vector<128x128xbf16>
    %cst_38 = arith.constant dense<0.000000e+00> : vector<78x128xf32>
    %41 = tpu.matmul %38, %40, %cst_38 {dimension_numbers = #tpu.dot_dimension_numbers<[1], [0], [0], [1], [0, 0, 1, 1], [], []>} : vector<78x128xbf16>, vector<128x128xbf16>, vector<78x128xf32> -> vector<78x128xf32>
    %42 = arith.addf %35, %41 : vector<78x128xf32>
    %c0_39 = arith.constant 0 : index
    %c0_40 = arith.constant 0 : index
    %c20 = arith.constant 20 : index
    %c0_41 = arith.constant 0 : index
    %43 = vector.load %arg2[%c0_39, %c0_40, %c20, %c0_41] : memref<1x1x100x128xf32, #tpu.memory_space<vmem>>, vector<1x1x78x128xf32>
    %44 = vector.shape_cast %43 : vector<1x1x78x128xf32> to vector<78x128xf32>
    %45 = arith.truncf %44 : vector<78x128xf32> to vector<78x128xbf16>
    %c6 = arith.constant 6 : index
    %c0_42 = arith.constant 0 : index
    %c0_43 = arith.constant 0 : index
    %46 = vector.load %arg5[%c6, %c0_42, %c0_43] : memref<27x128x128xbf16, #tpu.memory_space<vmem>>, vector<1x128x128xbf16>
    %47 = vector.shape_cast %46 : vector<1x128x128xbf16> to vector<128x128xbf16>
    %cst_44 = arith.constant dense<0.000000e+00> : vector<78x128xf32>
    %48 = tpu.matmul %45, %47, %cst_44 {dimension_numbers = #tpu.dot_dimension_numbers<[1], [0], [0], [1], [0, 0, 1, 1], [], []>} : vector<78x128xbf16>, vector<128x128xbf16>, vector<78x128xf32> -> vector<78x128xf32>
    %49 = arith.addf %42, %48 : vector<78x128xf32>
    %c0_45 = arith.constant 0 : index
    %c0_46 = arith.constant 0 : index
    %c21 = arith.constant 21 : index
    %c0_47 = arith.constant 0 : index
    %50 = vector.load %arg2[%c0_45, %c0_46, %c21, %c0_47] : memref<1x1x100x128xf32, #tpu.memory_space<vmem>>, vector<1x1x78x128xf32>
    %51 = vector.shape_cast %50 : vector<1x1x78x128xf32> to vector<78x128xf32>
    %52 = arith.truncf %51 : vector<78x128xf32> to vector<78x128xbf16>
    %c7 = arith.constant 7 : index
    %c0_48 = arith.constant 0 : index
    %c0_49 = arith.constant 0 : index
    %53 = vector.load %arg5[%c7, %c0_48, %c0_49] : memref<27x128x128xbf16, #tpu.memory_space<vmem>>, vector<1x128x128xbf16>
    %54 = vector.shape_cast %53 : vector<1x128x128xbf16> to vector<128x128xbf16>
    %cst_50 = arith.constant dense<0.000000e+00> : vector<78x128xf32>
    %55 = tpu.matmul %52, %54, %cst_50 {dimension_numbers = #tpu.dot_dimension_numbers<[1], [0], [0], [1], [0, 0, 1, 1], [], []>} : vector<78x128xbf16>, vector<128x128xbf16>, vector<78x128xf32> -> vector<78x128xf32>
    %56 = arith.addf %49, %55 : vector<78x128xf32>
    %c0_51 = arith.constant 0 : index
    %c0_52 = arith.constant 0 : index
    %c22 = arith.constant 22 : index
    %c0_53 = arith.constant 0 : index
    %57 = vector.load %arg2[%c0_51, %c0_52, %c22, %c0_53] : memref<1x1x100x128xf32, #tpu.memory_space<vmem>>, vector<1x1x78x128xf32>
    %58 = vector.shape_cast %57 : vector<1x1x78x128xf32> to vector<78x128xf32>
    %59 = arith.truncf %58 : vector<78x128xf32> to vector<78x128xbf16>
    %c8 = arith.constant 8 : index
    %c0_54 = arith.constant 0 : index
    %c0_55 = arith.constant 0 : index
    %60 = vector.load %arg5[%c8, %c0_54, %c0_55] : memref<27x128x128xbf16, #tpu.memory_space<vmem>>, vector<1x128x128xbf16>
    %61 = vector.shape_cast %60 : vector<1x128x128xbf16> to vector<128x128xbf16>
    %cst_56 = arith.constant dense<0.000000e+00> : vector<78x128xf32>
    %62 = tpu.matmul %59, %61, %cst_56 {dimension_numbers = #tpu.dot_dimension_numbers<[1], [0], [0], [1], [0, 0, 1, 1], [], []>} : vector<78x128xbf16>, vector<128x128xbf16>, vector<78x128xf32> -> vector<78x128xf32>
    %63 = arith.addf %56, %62 : vector<78x128xf32>
    %c0_57 = arith.constant 0 : index
    %c0_58 = arith.constant 0 : index
    %c0_59 = arith.constant 0 : index
    %c0_60 = arith.constant 0 : index
    %64 = vector.load %arg3[%c0_57, %c0_58, %c0_59, %c0_60] : memref<1x1x100x128xf32, #tpu.memory_space<vmem>>, vector<1x1x78x128xf32>
    %65 = vector.shape_cast %64 : vector<1x1x78x128xf32> to vector<78x128xf32>
    %66 = arith.truncf %65 : vector<78x128xf32> to vector<78x128xbf16>
    %c9 = arith.constant 9 : index
    %c0_61 = arith.constant 0 : index
    %c0_62 = arith.constant 0 : index
    %67 = vector.load %arg5[%c9, %c0_61, %c0_62] : memref<27x128x128xbf16, #tpu.memory_space<vmem>>, vector<1x128x128xbf16>
    %68 = vector.shape_cast %67 : vector<1x128x128xbf16> to vector<128x128xbf16>
    %cst_63 = arith.constant dense<0.000000e+00> : vector<78x128xf32>
    %69 = tpu.matmul %66, %68, %cst_63 {dimension_numbers = #tpu.dot_dimension_numbers<[1], [0], [0], [1], [0, 0, 1, 1], [], []>} : vector<78x128xbf16>, vector<128x128xbf16>, vector<78x128xf32> -> vector<78x128xf32>
    %70 = arith.addf %63, %69 : vector<78x128xf32>
    %c0_64 = arith.constant 0 : index
    %c0_65 = arith.constant 0 : index
    %c1_66 = arith.constant 1 : index
    %c0_67 = arith.constant 0 : index
    %71 = vector.load %arg3[%c0_64, %c0_65, %c1_66, %c0_67] : memref<1x1x100x128xf32, #tpu.memory_space<vmem>>, vector<1x1x78x128xf32>
    %72 = vector.shape_cast %71 : vector<1x1x78x128xf32> to vector<78x128xf32>
    %73 = arith.truncf %72 : vector<78x128xf32> to vector<78x128xbf16>
    %c10_68 = arith.constant 10 : index
    %c0_69 = arith.constant 0 : index
    %c0_70 = arith.constant 0 : index
    %74 = vector.load %arg5[%c10_68, %c0_69, %c0_70] : memref<27x128x128xbf16, #tpu.memory_space<vmem>>, vector<1x128x128xbf16>
    %75 = vector.shape_cast %74 : vector<1x128x128xbf16> to vector<128x128xbf16>
    %cst_71 = arith.constant dense<0.000000e+00> : vector<78x128xf32>
    %76 = tpu.matmul %73, %75, %cst_71 {dimension_numbers = #tpu.dot_dimension_numbers<[1], [0], [0], [1], [0, 0, 1, 1], [], []>} : vector<78x128xbf16>, vector<128x128xbf16>, vector<78x128xf32> -> vector<78x128xf32>
    %77 = arith.addf %70, %76 : vector<78x128xf32>
    %c0_72 = arith.constant 0 : index
    %c0_73 = arith.constant 0 : index
    %c2_74 = arith.constant 2 : index
    %c0_75 = arith.constant 0 : index
    %78 = vector.load %arg3[%c0_72, %c0_73, %c2_74, %c0_75] : memref<1x1x100x128xf32, #tpu.memory_space<vmem>>, vector<1x1x78x128xf32>
    %79 = vector.shape_cast %78 : vector<1x1x78x128xf32> to vector<78x128xf32>
    %80 = arith.truncf %79 : vector<78x128xf32> to vector<78x128xbf16>
    %c11_76 = arith.constant 11 : index
    %c0_77 = arith.constant 0 : index
    %c0_78 = arith.constant 0 : index
    %81 = vector.load %arg5[%c11_76, %c0_77, %c0_78] : memref<27x128x128xbf16, #tpu.memory_space<vmem>>, vector<1x128x128xbf16>
    %82 = vector.shape_cast %81 : vector<1x128x128xbf16> to vector<128x128xbf16>
    %cst_79 = arith.constant dense<0.000000e+00> : vector<78x128xf32>
    %83 = tpu.matmul %80, %82, %cst_79 {dimension_numbers = #tpu.dot_dimension_numbers<[1], [0], [0], [1], [0, 0, 1, 1], [], []>} : vector<78x128xbf16>, vector<128x128xbf16>, vector<78x128xf32> -> vector<78x128xf32>
    %84 = arith.addf %77, %83 : vector<78x128xf32>
    %c0_80 = arith.constant 0 : index
    %c0_81 = arith.constant 0 : index
    %c10_82 = arith.constant 10 : index
    %c0_83 = arith.constant 0 : index
    %85 = vector.load %arg3[%c0_80, %c0_81, %c10_82, %c0_83] : memref<1x1x100x128xf32, #tpu.memory_space<vmem>>, vector<1x1x78x128xf32>
    %86 = vector.shape_cast %85 : vector<1x1x78x128xf32> to vector<78x128xf32>
    %87 = arith.truncf %86 : vector<78x128xf32> to vector<78x128xbf16>
    %c12_84 = arith.constant 12 : index
    %c0_85 = arith.constant 0 : index
    %c0_86 = arith.constant 0 : index
    %88 = vector.load %arg5[%c12_84, %c0_85, %c0_86] : memref<27x128x128xbf16, #tpu.memory_space<vmem>>, vector<1x128x128xbf16>
    %89 = vector.shape_cast %88 : vector<1x128x128xbf16> to vector<128x128xbf16>
    %cst_87 = arith.constant dense<0.000000e+00> : vector<78x128xf32>
    %90 = tpu.matmul %87, %89, %cst_87 {dimension_numbers = #tpu.dot_dimension_numbers<[1], [0], [0], [1], [0, 0, 1, 1], [], []>} : vector<78x128xbf16>, vector<128x128xbf16>, vector<78x128xf32> -> vector<78x128xf32>
    %91 = arith.addf %84, %90 : vector<78x128xf32>
    %c0_88 = arith.constant 0 : index
    %c0_89 = arith.constant 0 : index
    %c11_90 = arith.constant 11 : index
    %c0_91 = arith.constant 0 : index
    %92 = vector.load %arg3[%c0_88, %c0_89, %c11_90, %c0_91] : memref<1x1x100x128xf32, #tpu.memory_space<vmem>>, vector<1x1x78x128xf32>
    %93 = vector.shape_cast %92 : vector<1x1x78x128xf32> to vector<78x128xf32>
    %94 = arith.truncf %93 : vector<78x128xf32> to vector<78x128xbf16>
    %c13 = arith.constant 13 : index
    %c0_92 = arith.constant 0 : index
    %c0_93 = arith.constant 0 : index
    %95 = vector.load %arg5[%c13, %c0_92, %c0_93] : memref<27x128x128xbf16, #tpu.memory_space<vmem>>, vector<1x128x128xbf16>
    %96 = vector.shape_cast %95 : vector<1x128x128xbf16> to vector<128x128xbf16>
    %cst_94 = arith.constant dense<0.000000e+00> : vector<78x128xf32>
    %97 = tpu.matmul %94, %96, %cst_94 {dimension_numbers = #tpu.dot_dimension_numbers<[1], [0], [0], [1], [0, 0, 1, 1], [], []>} : vector<78x128xbf16>, vector<128x128xbf16>, vector<78x128xf32> -> vector<78x128xf32>
    %98 = arith.addf %91, %97 : vector<78x128xf32>
    %c0_95 = arith.constant 0 : index
    %c0_96 = arith.constant 0 : index
    %c12_97 = arith.constant 12 : index
    %c0_98 = arith.constant 0 : index
    %99 = vector.load %arg3[%c0_95, %c0_96, %c12_97, %c0_98] : memref<1x1x100x128xf32, #tpu.memory_space<vmem>>, vector<1x1x78x128xf32>
    %100 = vector.shape_cast %99 : vector<1x1x78x128xf32> to vector<78x128xf32>
    %101 = arith.truncf %100 : vector<78x128xf32> to vector<78x128xbf16>
    %c14 = arith.constant 14 : index
    %c0_99 = arith.constant 0 : index
    %c0_100 = arith.constant 0 : index
    %102 = vector.load %arg5[%c14, %c0_99, %c0_100] : memref<27x128x128xbf16, #tpu.memory_space<vmem>>, vector<1x128x128xbf16>
    %103 = vector.shape_cast %102 : vector<1x128x128xbf16> to vector<128x128xbf16>
    %cst_101 = arith.constant dense<0.000000e+00> : vector<78x128xf32>
    %104 = tpu.matmul %101, %103, %cst_101 {dimension_numbers = #tpu.dot_dimension_numbers<[1], [0], [0], [1], [0, 0, 1, 1], [], []>} : vector<78x128xbf16>, vector<128x128xbf16>, vector<78x128xf32> -> vector<78x128xf32>
    %105 = arith.addf %98, %104 : vector<78x128xf32>
    %c0_102 = arith.constant 0 : index
    %c0_103 = arith.constant 0 : index
    %c20_104 = arith.constant 20 : index
    %c0_105 = arith.constant 0 : index
    %106 = vector.load %arg3[%c0_102, %c0_103, %c20_104, %c0_105] : memref<1x1x100x128xf32, #tpu.memory_space<vmem>>, vector<1x1x78x128xf32>
    %107 = vector.shape_cast %106 : vector<1x1x78x128xf32> to vector<78x128xf32>
    %108 = arith.truncf %107 : vector<78x128xf32> to vector<78x128xbf16>
    %c15 = arith.constant 15 : index
    %c0_106 = arith.constant 0 : index
    %c0_107 = arith.constant 0 : index
    %109 = vector.load %arg5[%c15, %c0_106, %c0_107] : memref<27x128x128xbf16, #tpu.memory_space<vmem>>, vector<1x128x128xbf16>
    %110 = vector.shape_cast %109 : vector<1x128x128xbf16> to vector<128x128xbf16>
    %cst_108 = arith.constant dense<0.000000e+00> : vector<78x128xf32>
    %111 = tpu.matmul %108, %110, %cst_108 {dimension_numbers = #tpu.dot_dimension_numbers<[1], [0], [0], [1], [0, 0, 1, 1], [], []>} : vector<78x128xbf16>, vector<128x128xbf16>, vector<78x128xf32> -> vector<78x128xf32>
    %112 = arith.addf %105, %111 : vector<78x128xf32>
    %c0_109 = arith.constant 0 : index
    %c0_110 = arith.constant 0 : index
    %c21_111 = arith.constant 21 : index
    %c0_112 = arith.constant 0 : index
    %113 = vector.load %arg3[%c0_109, %c0_110, %c21_111, %c0_112] : memref<1x1x100x128xf32, #tpu.memory_space<vmem>>, vector<1x1x78x128xf32>
    %114 = vector.shape_cast %113 : vector<1x1x78x128xf32> to vector<78x128xf32>
    %115 = arith.truncf %114 : vector<78x128xf32> to vector<78x128xbf16>
    %c16 = arith.constant 16 : index
    %c0_113 = arith.constant 0 : index
    %c0_114 = arith.constant 0 : index
    %116 = vector.load %arg5[%c16, %c0_113, %c0_114] : memref<27x128x128xbf16, #tpu.memory_space<vmem>>, vector<1x128x128xbf16>
    %117 = vector.shape_cast %116 : vector<1x128x128xbf16> to vector<128x128xbf16>
    %cst_115 = arith.constant dense<0.000000e+00> : vector<78x128xf32>
    %118 = tpu.matmul %115, %117, %cst_115 {dimension_numbers = #tpu.dot_dimension_numbers<[1], [0], [0], [1], [0, 0, 1, 1], [], []>} : vector<78x128xbf16>, vector<128x128xbf16>, vector<78x128xf32> -> vector<78x128xf32>
    %119 = arith.addf %112, %118 : vector<78x128xf32>
    %c0_116 = arith.constant 0 : index
    %c0_117 = arith.constant 0 : index
    %c22_118 = arith.constant 22 : index
    %c0_119 = arith.constant 0 : index
    %120 = vector.load %arg3[%c0_116, %c0_117, %c22_118, %c0_119] : memref<1x1x100x128xf32, #tpu.memory_space<vmem>>, vector<1x1x78x128xf32>
    %121 = vector.shape_cast %120 : vector<1x1x78x128xf32> to vector<78x128xf32>
    %122 = arith.truncf %121 : vector<78x128xf32> to vector<78x128xbf16>
    %c17 = arith.constant 17 : index
    %c0_120 = arith.constant 0 : index
    %c0_121 = arith.constant 0 : index
    %123 = vector.load %arg5[%c17, %c0_120, %c0_121] : memref<27x128x128xbf16, #tpu.memory_space<vmem>>, vector<1x128x128xbf16>
    %124 = vector.shape_cast %123 : vector<1x128x128xbf16> to vector<128x128xbf16>
    %cst_122 = arith.constant dense<0.000000e+00> : vector<78x128xf32>
    %125 = tpu.matmul %122, %124, %cst_122 {dimension_numbers = #tpu.dot_dimension_numbers<[1], [0], [0], [1], [0, 0, 1, 1], [], []>} : vector<78x128xbf16>, vector<128x128xbf16>, vector<78x128xf32> -> vector<78x128xf32>
    %126 = arith.addf %119, %125 : vector<78x128xf32>
    %c0_123 = arith.constant 0 : index
    %c0_124 = arith.constant 0 : index
    %c0_125 = arith.constant 0 : index
    %c0_126 = arith.constant 0 : index
    %127 = vector.load %arg4[%c0_123, %c0_124, %c0_125, %c0_126] : memref<1x1x100x128xf32, #tpu.memory_space<vmem>>, vector<1x1x78x128xf32>
    %128 = vector.shape_cast %127 : vector<1x1x78x128xf32> to vector<78x128xf32>
    %129 = arith.truncf %128 : vector<78x128xf32> to vector<78x128xbf16>
    %c18 = arith.constant 18 : index
    %c0_127 = arith.constant 0 : index
    %c0_128 = arith.constant 0 : index
    %130 = vector.load %arg5[%c18, %c0_127, %c0_128] : memref<27x128x128xbf16, #tpu.memory_space<vmem>>, vector<1x128x128xbf16>
    %131 = vector.shape_cast %130 : vector<1x128x128xbf16> to vector<128x128xbf16>
    %cst_129 = arith.constant dense<0.000000e+00> : vector<78x128xf32>
    %132 = tpu.matmul %129, %131, %cst_129 {dimension_numbers = #tpu.dot_dimension_numbers<[1], [0], [0], [1], [0, 0, 1, 1], [], []>} : vector<78x128xbf16>, vector<128x128xbf16>, vector<78x128xf32> -> vector<78x128xf32>
    %133 = arith.addf %126, %132 : vector<78x128xf32>
    %c0_130 = arith.constant 0 : index
    %c0_131 = arith.constant 0 : index
    %c1_132 = arith.constant 1 : index
    %c0_133 = arith.constant 0 : index
    %134 = vector.load %arg4[%c0_130, %c0_131, %c1_132, %c0_133] : memref<1x1x100x128xf32, #tpu.memory_space<vmem>>, vector<1x1x78x128xf32>
    %135 = vector.shape_cast %134 : vector<1x1x78x128xf32> to vector<78x128xf32>
    %136 = arith.truncf %135 : vector<78x128xf32> to vector<78x128xbf16>
    %c19 = arith.constant 19 : index
    %c0_134 = arith.constant 0 : index
    %c0_135 = arith.constant 0 : index
    %137 = vector.load %arg5[%c19, %c0_134, %c0_135] : memref<27x128x128xbf16, #tpu.memory_space<vmem>>, vector<1x128x128xbf16>
    %138 = vector.shape_cast %137 : vector<1x128x128xbf16> to vector<128x128xbf16>
    %cst_136 = arith.constant dense<0.000000e+00> : vector<78x128xf32>
    %139 = tpu.matmul %136, %138, %cst_136 {dimension_numbers = #tpu.dot_dimension_numbers<[1], [0], [0], [1], [0, 0, 1, 1], [], []>} : vector<78x128xbf16>, vector<128x128xbf16>, vector<78x128xf32> -> vector<78x128xf32>
    %140 = arith.addf %133, %139 : vector<78x128xf32>
    %c0_137 = arith.constant 0 : index
    %c0_138 = arith.constant 0 : index
    %c2_139 = arith.constant 2 : index
    %c0_140 = arith.constant 0 : index
    %141 = vector.load %arg4[%c0_137, %c0_138, %c2_139, %c0_140] : memref<1x1x100x128xf32, #tpu.memory_space<vmem>>, vector<1x1x78x128xf32>
    %142 = vector.shape_cast %141 : vector<1x1x78x128xf32> to vector<78x128xf32>
    %143 = arith.truncf %142 : vector<78x128xf32> to vector<78x128xbf16>
    %c20_141 = arith.constant 20 : index
    %c0_142 = arith.constant 0 : index
    %c0_143 = arith.constant 0 : index
    %144 = vector.load %arg5[%c20_141, %c0_142, %c0_143] : memref<27x128x128xbf16, #tpu.memory_space<vmem>>, vector<1x128x128xbf16>
    %145 = vector.shape_cast %144 : vector<1x128x128xbf16> to vector<128x128xbf16>
    %cst_144 = arith.constant dense<0.000000e+00> : vector<78x128xf32>
    %146 = tpu.matmul %143, %145, %cst_144 {dimension_numbers = #tpu.dot_dimension_numbers<[1], [0], [0], [1], [0, 0, 1, 1], [], []>} : vector<78x128xbf16>, vector<128x128xbf16>, vector<78x128xf32> -> vector<78x128xf32>
    %147 = arith.addf %140, %146 : vector<78x128xf32>
    %c0_145 = arith.constant 0 : index
    %c0_146 = arith.constant 0 : index
    %c10_147 = arith.constant 10 : index
    %c0_148 = arith.constant 0 : index
    %148 = vector.load %arg4[%c0_145, %c0_146, %c10_147, %c0_148] : memref<1x1x100x128xf32, #tpu.memory_space<vmem>>, vector<1x1x78x128xf32>
    %149 = vector.shape_cast %148 : vector<1x1x78x128xf32> to vector<78x128xf32>
    %150 = arith.truncf %149 : vector<78x128xf32> to vector<78x128xbf16>
    %c21_149 = arith.constant 21 : index
    %c0_150 = arith.constant 0 : index
    %c0_151 = arith.constant 0 : index
    %151 = vector.load %arg5[%c21_149, %c0_150, %c0_151] : memref<27x128x128xbf16, #tpu.memory_space<vmem>>, vector<1x128x128xbf16>
    %152 = vector.shape_cast %151 : vector<1x128x128xbf16> to vector<128x128xbf16>
    %cst_152 = arith.constant dense<0.000000e+00> : vector<78x128xf32>
    %153 = tpu.matmul %150, %152, %cst_152 {dimension_numbers = #tpu.dot_dimension_numbers<[1], [0], [0], [1], [0, 0, 1, 1], [], []>} : vector<78x128xbf16>, vector<128x128xbf16>, vector<78x128xf32> -> vector<78x128xf32>
    %154 = arith.addf %147, %153 : vector<78x128xf32>
    %c0_153 = arith.constant 0 : index
    %c0_154 = arith.constant 0 : index
    %c11_155 = arith.constant 11 : index
    %c0_156 = arith.constant 0 : index
    %155 = vector.load %arg4[%c0_153, %c0_154, %c11_155, %c0_156] : memref<1x1x100x128xf32, #tpu.memory_space<vmem>>, vector<1x1x78x128xf32>
    %156 = vector.shape_cast %155 : vector<1x1x78x128xf32> to vector<78x128xf32>
    %157 = arith.truncf %156 : vector<78x128xf32> to vector<78x128xbf16>
    %c22_157 = arith.constant 22 : index
    %c0_158 = arith.constant 0 : index
    %c0_159 = arith.constant 0 : index
    %158 = vector.load %arg5[%c22_157, %c0_158, %c0_159] : memref<27x128x128xbf16, #tpu.memory_space<vmem>>, vector<1x128x128xbf16>
    %159 = vector.shape_cast %158 : vector<1x128x128xbf16> to vector<128x128xbf16>
    %cst_160 = arith.constant dense<0.000000e+00> : vector<78x128xf32>
    %160 = tpu.matmul %157, %159, %cst_160 {dimension_numbers = #tpu.dot_dimension_numbers<[1], [0], [0], [1], [0, 0, 1, 1], [], []>} : vector<78x128xbf16>, vector<128x128xbf16>, vector<78x128xf32> -> vector<78x128xf32>
    %161 = arith.addf %154, %160 : vector<78x128xf32>
    %c0_161 = arith.constant 0 : index
    %c0_162 = arith.constant 0 : index
    %c12_163 = arith.constant 12 : index
    %c0_164 = arith.constant 0 : index
    %162 = vector.load %arg4[%c0_161, %c0_162, %c12_163, %c0_164] : memref<1x1x100x128xf32, #tpu.memory_space<vmem>>, vector<1x1x78x128xf32>
    %163 = vector.shape_cast %162 : vector<1x1x78x128xf32> to vector<78x128xf32>
    %164 = arith.truncf %163 : vector<78x128xf32> to vector<78x128xbf16>
    %c23 = arith.constant 23 : index
    %c0_165 = arith.constant 0 : index
    %c0_166 = arith.constant 0 : index
    %165 = vector.load %arg5[%c23, %c0_165, %c0_166] : memref<27x128x128xbf16, #tpu.memory_space<vmem>>, vector<1x128x128xbf16>
    %166 = vector.shape_cast %165 : vector<1x128x128xbf16> to vector<128x128xbf16>
    %cst_167 = arith.constant dense<0.000000e+00> : vector<78x128xf32>
    %167 = tpu.matmul %164, %166, %cst_167 {dimension_numbers = #tpu.dot_dimension_numbers<[1], [0], [0], [1], [0, 0, 1, 1], [], []>} : vector<78x128xbf16>, vector<128x128xbf16>, vector<78x128xf32> -> vector<78x128xf32>
    %168 = arith.addf %161, %167 : vector<78x128xf32>
    %c0_168 = arith.constant 0 : index
    %c0_169 = arith.constant 0 : index
    %c20_170 = arith.constant 20 : index
    %c0_171 = arith.constant 0 : index
    %169 = vector.load %arg4[%c0_168, %c0_169, %c20_170, %c0_171] : memref<1x1x100x128xf32, #tpu.memory_space<vmem>>, vector<1x1x78x128xf32>
    %170 = vector.shape_cast %169 : vector<1x1x78x128xf32> to vector<78x128xf32>
    %171 = arith.truncf %170 : vector<78x128xf32> to vector<78x128xbf16>
    %c24 = arith.constant 24 : index
    %c0_172 = arith.constant 0 : index
    %c0_173 = arith.constant 0 : index
    %172 = vector.load %arg5[%c24, %c0_172, %c0_173] : memref<27x128x128xbf16, #tpu.memory_space<vmem>>, vector<1x128x128xbf16>
    %173 = vector.shape_cast %172 : vector<1x128x128xbf16> to vector<128x128xbf16>
    %cst_174 = arith.constant dense<0.000000e+00> : vector<78x128xf32>
    %174 = tpu.matmul %171, %173, %cst_174 {dimension_numbers = #tpu.dot_dimension_numbers<[1], [0], [0], [1], [0, 0, 1, 1], [], []>} : vector<78x128xbf16>, vector<128x128xbf16>, vector<78x128xf32> -> vector<78x128xf32>
    %175 = arith.addf %168, %174 : vector<78x128xf32>
    %c0_175 = arith.constant 0 : index
    %c0_176 = arith.constant 0 : index
    %c21_177 = arith.constant 21 : index
    %c0_178 = arith.constant 0 : index
    %176 = vector.load %arg4[%c0_175, %c0_176, %c21_177, %c0_178] : memref<1x1x100x128xf32, #tpu.memory_space<vmem>>, vector<1x1x78x128xf32>
    %177 = vector.shape_cast %176 : vector<1x1x78x128xf32> to vector<78x128xf32>
    %178 = arith.truncf %177 : vector<78x128xf32> to vector<78x128xbf16>
    %c25 = arith.constant 25 : index
    %c0_179 = arith.constant 0 : index
    %c0_180 = arith.constant 0 : index
    %179 = vector.load %arg5[%c25, %c0_179, %c0_180] : memref<27x128x128xbf16, #tpu.memory_space<vmem>>, vector<1x128x128xbf16>
    %180 = vector.shape_cast %179 : vector<1x128x128xbf16> to vector<128x128xbf16>
    %cst_181 = arith.constant dense<0.000000e+00> : vector<78x128xf32>
    %181 = tpu.matmul %178, %180, %cst_181 {dimension_numbers = #tpu.dot_dimension_numbers<[1], [0], [0], [1], [0, 0, 1, 1], [], []>} : vector<78x128xbf16>, vector<128x128xbf16>, vector<78x128xf32> -> vector<78x128xf32>
    %182 = arith.addf %175, %181 : vector<78x128xf32>
    %c0_182 = arith.constant 0 : index
    %c0_183 = arith.constant 0 : index
    %c22_184 = arith.constant 22 : index
    %c0_185 = arith.constant 0 : index
    %183 = vector.load %arg4[%c0_182, %c0_183, %c22_184, %c0_185] : memref<1x1x100x128xf32, #tpu.memory_space<vmem>>, vector<1x1x78x128xf32>
    %184 = vector.shape_cast %183 : vector<1x1x78x128xf32> to vector<78x128xf32>
    %185 = arith.truncf %184 : vector<78x128xf32> to vector<78x128xbf16>
    %c26 = arith.constant 26 : index
    %c0_186 = arith.constant 0 : index
    %c0_187 = arith.constant 0 : index
    %186 = vector.load %arg5[%c26, %c0_186, %c0_187] : memref<27x128x128xbf16, #tpu.memory_space<vmem>>, vector<1x128x128xbf16>
    %187 = vector.shape_cast %186 : vector<1x128x128xbf16> to vector<128x128xbf16>
    %cst_188 = arith.constant dense<0.000000e+00> : vector<78x128xf32>
    %188 = tpu.matmul %185, %187, %cst_188 {dimension_numbers = #tpu.dot_dimension_numbers<[1], [0], [0], [1], [0, 0, 1, 1], [], []>} : vector<78x128xbf16>, vector<128x128xbf16>, vector<78x128xf32> -> vector<78x128xf32>
    %189 = arith.addf %182, %188 : vector<78x128xf32>
    %c0_189 = arith.constant 0 : index
    %c0_190 = arith.constant 0 : index
    %190 = vector.load %arg7[%c0_189, %c0_190] : memref<78x128xf32, #tpu.memory_space<vmem>>, vector<78x128xf32>
    tpu.vector_store %arg7[%c0_189, %c0_190], %189 {strides = array<i32>} : memref<78x128xf32, #tpu.memory_space<vmem>>, vector<78x128xf32>,
    %c0_191 = arith.constant 0 : index
    %c0_192 = arith.constant 0 : index
    %191 = vector.load %arg7[%c0_191, %c0_192] : memref<78x128xf32, #tpu.memory_space<vmem>>, vector<8x128xf32>
    %c0_193 = arith.constant 0 : index
    %c0_194 = arith.constant 0 : index
    %c0_195 = arith.constant 0 : index
    %c0_196 = arith.constant 0 : index
    %c0_197 = arith.constant 0 : index
    %192 = vector.load %arg6[%c0_193, %c0_194, %c0_195, %c0_196, %c0_197] : memref<1x1x8x8x128xf32, #tpu.memory_space<vmem>>, vector<1x1x1x8x128xf32>
    %193 = vector.shape_cast %192 : vector<1x1x1x8x128xf32> to vector<8x128xf32>
    %194 = vector.shape_cast %191 : vector<8x128xf32> to vector<1x1x1x8x128xf32>
    tpu.vector_store %arg6[%c0_193, %c0_194, %c0_195, %c0_196, %c0_197], %194 {strides = array<i32>} : memref<1x1x8x8x128xf32, #tpu.memory_space<vmem>>, vector<1x1x1x8x128xf32>,
    %c10_198 = arith.constant 10 : index
    %c0_199 = arith.constant 0 : index
    %195 = vector.load %arg7[%c10_198, %c0_199] : memref<78x128xf32, #tpu.memory_space<vmem>>, vector<8x128xf32>
    %c0_200 = arith.constant 0 : index
    %c0_201 = arith.constant 0 : index
    %c1_202 = arith.constant 1 : index
    %c0_203 = arith.constant 0 : index
    %c0_204 = arith.constant 0 : index
    %196 = vector.load %arg6[%c0_200, %c0_201, %c1_202, %c0_203, %c0_204] : memref<1x1x8x8x128xf32, #tpu.memory_space<vmem>>, vector<1x1x1x8x128xf32>
    %197 = vector.shape_cast %196 : vector<1x1x1x8x128xf32> to vector<8x128xf32>
    %198 = vector.shape_cast %195 : vector<8x128xf32> to vector<1x1x1x8x128xf32>
    tpu.vector_store %arg6[%c0_200, %c0_201, %c1_202, %c0_203, %c0_204], %198 {strides = array<i32>} : memref<1x1x8x8x128xf32, #tpu.memory_space<vmem>>, vector<1x1x1x8x128xf32>,
    %c20_205 = arith.constant 20 : index
    %c0_206 = arith.constant 0 : index
    %199 = vector.load %arg7[%c20_205, %c0_206] : memref<78x128xf32, #tpu.memory_space<vmem>>, vector<8x128xf32>
    %c0_207 = arith.constant 0 : index
    %c0_208 = arith.constant 0 : index
    %c2_209 = arith.constant 2 : index
    %c0_210 = arith.constant 0 : index
    %c0_211 = arith.constant 0 : index
    %200 = vector.load %arg6[%c0_207, %c0_208, %c2_209, %c0_210, %c0_211] : memref<1x1x8x8x128xf32, #tpu.memory_space<vmem>>, vector<1x1x1x8x128xf32>
    %201 = vector.shape_cast %200 : vector<1x1x1x8x128xf32> to vector<8x128xf32>
    %202 = vector.shape_cast %199 : vector<8x128xf32> to vector<1x1x1x8x128xf32>
    tpu.vector_store %arg6[%c0_207, %c0_208, %c2_209, %c0_210, %c0_211], %202 {strides = array<i32>} : memref<1x1x8x8x128xf32, #tpu.memory_space<vmem>>, vector<1x1x1x8x128xf32>,
    %c30 = arith.constant 30 : index
    %c0_212 = arith.constant 0 : index
    %203 = vector.load %arg7[%c30, %c0_212] : memref<78x128xf32, #tpu.memory_space<vmem>>, vector<8x128xf32>
    %c0_213 = arith.constant 0 : index
    %c0_214 = arith.constant 0 : index
    %c3_215 = arith.constant 3 : index
    %c0_216 = arith.constant 0 : index
    %c0_217 = arith.constant 0 : index
    %204 = vector.load %arg6[%c0_213, %c0_214, %c3_215, %c0_216, %c0_217] : memref<1x1x8x8x128xf32, #tpu.memory_space<vmem>>, vector<1x1x1x8x128xf32>
    %205 = vector.shape_cast %204 : vector<1x1x1x8x128xf32> to vector<8x128xf32>
    %206 = vector.shape_cast %203 : vector<8x128xf32> to vector<1x1x1x8x128xf32>
    tpu.vector_store %arg6[%c0_213, %c0_214, %c3_215, %c0_216, %c0_217], %206 {strides = array<i32>} : memref<1x1x8x8x128xf32, #tpu.memory_space<vmem>>, vector<1x1x1x8x128xf32>,
    %c40 = arith.constant 40 : index
    %c0_218 = arith.constant 0 : index
    %207 = vector.load %arg7[%c40, %c0_218] : memref<78x128xf32, #tpu.memory_space<vmem>>, vector<8x128xf32>
    %c0_219 = arith.constant 0 : index
    %c0_220 = arith.constant 0 : index
    %c4_221 = arith.constant 4 : index
    %c0_222 = arith.constant 0 : index
    %c0_223 = arith.constant 0 : index
    %208 = vector.load %arg6[%c0_219, %c0_220, %c4_221, %c0_222, %c0_223] : memref<1x1x8x8x128xf32, #tpu.memory_space<vmem>>, vector<1x1x1x8x128xf32>
    %209 = vector.shape_cast %208 : vector<1x1x1x8x128xf32> to vector<8x128xf32>
    %210 = vector.shape_cast %207 : vector<8x128xf32> to vector<1x1x1x8x128xf32>
    tpu.vector_store %arg6[%c0_219, %c0_220, %c4_221, %c0_222, %c0_223], %210 {strides = array<i32>} : memref<1x1x8x8x128xf32, #tpu.memory_space<vmem>>, vector<1x1x1x8x128xf32>,
    %c50 = arith.constant 50 : index
    %c0_224 = arith.constant 0 : index
    %211 = vector.load %arg7[%c50, %c0_224] : memref<78x128xf32, #tpu.memory_space<vmem>>, vector<8x128xf32>
    %c0_225 = arith.constant 0 : index
    %c0_226 = arith.constant 0 : index
    %c5_227 = arith.constant 5 : index
    %c0_228 = arith.constant 0 : index
    %c0_229 = arith.constant 0 : index
    %212 = vector.load %arg6[%c0_225, %c0_226, %c5_227, %c0_228, %c0_229] : memref<1x1x8x8x128xf32, #tpu.memory_space<vmem>>, vector<1x1x1x8x128xf32>
    %213 = vector.shape_cast %212 : vector<1x1x1x8x128xf32> to vector<8x128xf32>
    %214 = vector.shape_cast %211 : vector<8x128xf32> to vector<1x1x1x8x128xf32>
    tpu.vector_store %arg6[%c0_225, %c0_226, %c5_227, %c0_228, %c0_229], %214 {strides = array<i32>} : memref<1x1x8x8x128xf32, #tpu.memory_space<vmem>>, vector<1x1x1x8x128xf32>,
    %c60 = arith.constant 60 : index
    %c0_230 = arith.constant 0 : index
    %215 = vector.load %arg7[%c60, %c0_230] : memref<78x128xf32, #tpu.memory_space<vmem>>, vector<8x128xf32>
    %c0_231 = arith.constant 0 : index
    %c0_232 = arith.constant 0 : index
    %c6_233 = arith.constant 6 : index
    %c0_234 = arith.constant 0 : index
    %c0_235 = arith.constant 0 : index
    %216 = vector.load %arg6[%c0_231, %c0_232, %c6_233, %c0_234, %c0_235] : memref<1x1x8x8x128xf32, #tpu.memory_space<vmem>>, vector<1x1x1x8x128xf32>
    %217 = vector.shape_cast %216 : vector<1x1x1x8x128xf32> to vector<8x128xf32>
    %218 = vector.shape_cast %215 : vector<8x128xf32> to vector<1x1x1x8x128xf32>
    tpu.vector_store %arg6[%c0_231, %c0_232, %c6_233, %c0_234, %c0_235], %218 {strides = array<i32>} : memref<1x1x8x8x128xf32, #tpu.memory_space<vmem>>, vector<1x1x1x8x128xf32>,
    %c70 = arith.constant 70 : index
    %c0_236 = arith.constant 0 : index
    %219 = vector.load %arg7[%c70, %c0_236] : memref<78x128xf32, #tpu.memory_space<vmem>>, vector<8x128xf32>
    %c0_237 = arith.constant 0 : index
    %c0_238 = arith.constant 0 : index
    %c7_239 = arith.constant 7 : index
    %c0_240 = arith.constant 0 : index
    %c0_241 = arith.constant 0 : index
    %220 = vector.load %arg6[%c0_237, %c0_238, %c7_239, %c0_240, %c0_241] : memref<1x1x8x8x128xf32, #tpu.memory_space<vmem>>, vector<1x1x1x8x128xf32>
    %221 = vector.shape_cast %220 : vector<1x1x1x8x128xf32> to vector<8x128xf32>
    %222 = vector.shape_cast %219 : vector<8x128xf32> to vector<1x1x1x8x128xf32>
    tpu.vector_store %arg6[%c0_237, %c0_238, %c7_239, %c0_240, %c0_241], %222 {strides = array<i32>} : memref<1x1x8x8x128xf32, #tpu.memory_space<vmem>>, vector<1x1x1x8x128xf32>,
    return
  }
  func.func @transform_0(%arg0: i32, %arg1: i32) -> (i32, i32, i32, i32) {
    %c0_i32 = arith.constant 0 : i32
    %0 = arith.addi %arg1, %c0_i32 : i32
    %c0_i32_0 = arith.constant 0 : i32
    %c0_i32_1 = arith.constant 0 : i32
    %c0_i32_2 = arith.constant 0 : i32
    return %arg0, %0, %c0_i32_0, %c0_i32_1 : i32, i32, i32, i32
  }
  func.func @transform_1(%arg0: i32, %arg1: i32) -> (i32, i32, i32, i32) {
    %c1_i32 = arith.constant 1 : i32
    %0 = arith.addi %arg1, %c1_i32 : i32
    %c0_i32 = arith.constant 0 : i32
    %c0_i32_0 = arith.constant 0 : i32
    %c0_i32_1 = arith.constant 0 : i32
    return %arg0, %0, %c0_i32, %c0_i32_0 : i32, i32, i32, i32
  }
  func.func @transform_2(%arg0: i32, %arg1: i32) -> (i32, i32, i32, i32) {
    %c2_i32 = arith.constant 2 : i32
    %0 = arith.addi %arg1, %c2_i32 : i32
    %c0_i32 = arith.constant 0 : i32
    %c0_i32_0 = arith.constant 0 : i32
    %c0_i32_1 = arith.constant 0 : i32
    return %arg0, %0, %c0_i32, %c0_i32_0 : i32, i32, i32, i32
  }
  func.func @transform_3(%arg0: i32, %arg1: i32) -> (i32, i32, i32) {
    %c0_i32 = arith.constant 0 : i32
    %c0_i32_0 = arith.constant 0 : i32
    %c0_i32_1 = arith.constant 0 : i32
    %c0_i32_2 = arith.constant 0 : i32
    return %c0_i32, %c0_i32_0, %c0_i32_1 : i32, i32, i32
  }
  func.func @transform_4(%arg0: i32, %arg1: i32) -> (i32, i32, i32, i32, i32) {
    %c0_i32 = arith.constant 0 : i32
    %c0_i32_0 = arith.constant 0 : i32
    %c0_i32_1 = arith.constant 0 : i32
    %c0_i32_2 = arith.constant 0 : i32
    return %arg0, %arg1, %c0_i32, %c0_i32_0, %c0_i32_1 : i32, i32, i32, i32, i32
  }
}

module attributes {stable_mosaic.version = 11 : i64} {
  func.func @kernel(%arg0: i32, %arg1: memref<256x128xf32, #tpu.memory_space<vmem>>, %arg2: memref<256x128xf32, #tpu.memory_space<vmem>>, %arg3: memref<1x256xf32, #tpu.memory_space<vmem>>, %arg4: memref<1x256xf32, #tpu.memory_space<vmem>>, %arg5: memref<256x128xbf16, #tpu.memory_space<vmem>>, %arg6: memref<1x128xf32, #tpu.memory_space<vmem>>, %arg7: memref<256x128xf32, #tpu.memory_space<vmem>>) attributes {dimension_semantics = [#tpu.dimension_semantics<parallel>], iteration_bounds = array<i64: 2>, scalar_prefetch = 0 : i64, scratch_operands = 0 : i64, tpu.core_type = #tpu.core_type<tc>, window_params = [{transform_indices = @transform_0, window_bounds = array<i64: 256, 128>}, {transform_indices = @transform_1, window_bounds = array<i64: 256, 128>}, {pipeline_mode = #tpu.pipeline_mode<synchronous>, transform_indices = @transform_2, window_bounds = array<i64: 1, 256>}, {pipeline_mode = #tpu.pipeline_mode<synchronous>, transform_indices = @transform_3, window_bounds = array<i64: 1, 256>}, {pipeline_mode = #tpu.pipeline_mode<synchronous>, transform_indices = @transform_4, window_bounds = array<i64: 256, 128>}, {pipeline_mode = #tpu.pipeline_mode<synchronous>, transform_indices = @transform_5, window_bounds = array<i64: 1, 128>}, {transform_indices = @transform_6, window_bounds = array<i64: 256, 128>}]} {
    %cst = arith.constant 0.000000e+00 : f32
    %0 = vector.broadcast %cst : f32 to vector<256x128xf32>
    %c0 = arith.constant 0 : index
    %c0_0 = arith.constant 0 : index
    %1 = vector.load %arg1[%c0, %c0_0] : memref<256x128xf32, #tpu.memory_space<vmem>>, vector<256x128xf32>
    %c0_1 = arith.constant 0 : index
    %c0_2 = arith.constant 0 : index
    %2 = vector.load %arg3[%c0_1, %c0_2] : memref<1x256xf32, #tpu.memory_space<vmem>>, vector<1x128xf32>
    %3 = vector.broadcast %2 : vector<1x128xf32> to vector<256x128xf32>
    %4 = arith.mulf %1, %3 : vector<256x128xf32>
    %c0_3 = arith.constant 0 : index
    %c0_4 = arith.constant 0 : index
    %5 = vector.load %arg4[%c0_3, %c0_4] : memref<1x256xf32, #tpu.memory_space<vmem>>, vector<1x128xf32>
    %6 = vector.broadcast %5 : vector<1x128xf32> to vector<256x128xf32>
    %7 = arith.addf %4, %6 : vector<256x128xf32>
    %cst_5 = arith.constant 0.000000e+00 : f32
    %8 = vector.broadcast %cst_5 : f32 to vector<256x128xf32>
    %9 = arith.maximumf %7, %8 : vector<256x128xf32>
    %10 = arith.truncf %9 : vector<256x128xf32> to vector<256x128xbf16>
    %c0_6 = arith.constant 0 : index
    %c0_7 = arith.constant 0 : index
    %11 = vector.load %arg5[%c0_6, %c0_7] : memref<256x128xbf16, #tpu.memory_space<vmem>>, vector<128x128xbf16>
    %cst_8 = arith.constant dense<0.000000e+00> : vector<256x128xf32>
    %12 = tpu.matmul %10, %11, %cst_8 {dimension_numbers = #tpu.dot_dimension_numbers<[1], [0], [0], [1], [0, 0, 1, 1], [], []>} : vector<256x128xbf16>, vector<128x128xbf16>, vector<256x128xf32> -> vector<256x128xf32>
    %13 = arith.addf %0, %12 : vector<256x128xf32>
    %c0_9 = arith.constant 0 : index
    %c0_10 = arith.constant 0 : index
    %14 = vector.load %arg2[%c0_9, %c0_10] : memref<256x128xf32, #tpu.memory_space<vmem>>, vector<256x128xf32>
    %c0_11 = arith.constant 0 : index
    %c128 = arith.constant 128 : index
    %15 = vector.load %arg3[%c0_11, %c128] : memref<1x256xf32, #tpu.memory_space<vmem>>, vector<1x128xf32>
    %16 = vector.broadcast %15 : vector<1x128xf32> to vector<256x128xf32>
    %17 = arith.mulf %14, %16 : vector<256x128xf32>
    %c0_12 = arith.constant 0 : index
    %c128_13 = arith.constant 128 : index
    %18 = vector.load %arg4[%c0_12, %c128_13] : memref<1x256xf32, #tpu.memory_space<vmem>>, vector<1x128xf32>
    %19 = vector.broadcast %18 : vector<1x128xf32> to vector<256x128xf32>
    %20 = arith.addf %17, %19 : vector<256x128xf32>
    %cst_14 = arith.constant 0.000000e+00 : f32
    %21 = vector.broadcast %cst_14 : f32 to vector<256x128xf32>
    %22 = arith.maximumf %20, %21 : vector<256x128xf32>
    %23 = arith.truncf %22 : vector<256x128xf32> to vector<256x128xbf16>
    %c128_15 = arith.constant 128 : index
    %c0_16 = arith.constant 0 : index
    %24 = vector.load %arg5[%c128_15, %c0_16] : memref<256x128xbf16, #tpu.memory_space<vmem>>, vector<128x128xbf16>
    %cst_17 = arith.constant dense<0.000000e+00> : vector<256x128xf32>
    %25 = tpu.matmul %23, %24, %cst_17 {dimension_numbers = #tpu.dot_dimension_numbers<[1], [0], [0], [1], [0, 0, 1, 1], [], []>} : vector<256x128xbf16>, vector<128x128xbf16>, vector<256x128xf32> -> vector<256x128xf32>
    %26 = arith.addf %13, %25 : vector<256x128xf32>
    %c0_18 = arith.constant 0 : index
    %c0_19 = arith.constant 0 : index
    %27 = vector.load %arg6[%c0_18, %c0_19] : memref<1x128xf32, #tpu.memory_space<vmem>>, vector<1x128xf32>
    %28 = vector.broadcast %27 : vector<1x128xf32> to vector<256x128xf32>
    %29 = arith.addf %26, %28 : vector<256x128xf32>
    %cst_20 = arith.constant 0.000000e+00 : f32
    %30 = vector.broadcast %cst_20 : f32 to vector<256x128xf32>
    %31 = arith.maximumf %29, %30 : vector<256x128xf32>
    %c0_21 = arith.constant 0 : index
    %c0_22 = arith.constant 0 : index
    %32 = vector.load %arg7[%c0_21, %c0_22] : memref<256x128xf32, #tpu.memory_space<vmem>>, vector<256x128xf32>
    tpu.vector_store %arg7[%c0_21, %c0_22], %31 {strides = array<i32>} : memref<256x128xf32, #tpu.memory_space<vmem>>, vector<256x128xf32>,
    return
  }
  func.func @transform_0(%arg0: i32) -> (i32, i32) {
    %c0_i32 = arith.constant 0 : i32
    %c0_i32_0 = arith.constant 0 : i32
    return %arg0, %c0_i32 : i32, i32
  }
  func.func @transform_1(%arg0: i32) -> (i32, i32) {
    %c0_i32 = arith.constant 0 : i32
    %c0_i32_0 = arith.constant 0 : i32
    return %arg0, %c0_i32 : i32, i32
  }
  func.func @transform_2(%arg0: i32) -> (i32, i32) {
    %c0_i32 = arith.constant 0 : i32
    %c0_i32_0 = arith.constant 0 : i32
    %c0_i32_1 = arith.constant 0 : i32
    return %c0_i32, %c0_i32_0 : i32, i32
  }
  func.func @transform_3(%arg0: i32) -> (i32, i32) {
    %c0_i32 = arith.constant 0 : i32
    %c0_i32_0 = arith.constant 0 : i32
    %c0_i32_1 = arith.constant 0 : i32
    return %c0_i32, %c0_i32_0 : i32, i32
  }
  func.func @transform_4(%arg0: i32) -> (i32, i32) {
    %c0_i32 = arith.constant 0 : i32
    %c0_i32_0 = arith.constant 0 : i32
    %c0_i32_1 = arith.constant 0 : i32
    return %c0_i32, %c0_i32_0 : i32, i32
  }
  func.func @transform_5(%arg0: i32) -> (i32, i32) {
    %c0_i32 = arith.constant 0 : i32
    %c0_i32_0 = arith.constant 0 : i32
    %c0_i32_1 = arith.constant 0 : i32
    return %c0_i32, %c0_i32_0 : i32, i32
  }
  func.func @transform_6(%arg0: i32) -> (i32, i32) {
    %c0_i32 = arith.constant 0 : i32
    %c0_i32_0 = arith.constant 0 : i32
    return %arg0, %c0_i32 : i32, i32
  }
}

</mosaic_0001>

<llo_original>
// kernel: dense_block_forward.4
$region0: #{dense_block_forward.4}
  #allocation0 [shape = 'u32[]', space=smem, size = 0x4, offset = 0x4, fixed_abs, tag = 'smem constant byte address 0x4 - core index']
  #allocation1 [shape = 'u32[144,128]{1,0:T(1,128)}', space=vmem, size = 0x12000, scoped, tag = 'internal scratch']
  %s0 = inlined_call_operand.vmem [shape: f32[512,128], index: 0, kind: input, shape index: {}]
  %s1 = inlined_call_operand.vmem [shape: f32[1,128], index: 1, kind: input, shape index: {}]
  %s2 = inlined_call_operand.vmem [shape: f32[1,128], index: 2, kind: input, shape index: {}]
  %s3 = inlined_call_operand.vmem [shape: bf16[128,128], index: 3, kind: input, shape index: {}]
  %s4 = inlined_call_operand.vmem [shape: f32[1,128], index: 4, kind: input, shape index: {}]
  %s5 = inlined_call_operand.vmem [shape: f32[512,128], index: 5, kind: output, shape index: {}]
  %s6 = sld [smem:[#allocation0]]
  $region53: #{dense_block_forward.4} parent=0
    _
  %s8 = ssub.s32 1, %s6
  %s9 = scalar_select 0, %s8, %s6
  loop: start=0, step=1, limit=4
  $region2: #{dense_block_forward.4} parent=0 // loop_pre_header
    _
  $region3: #{dense_block_forward.4} parent=0 // loop_header
    %s11 = sphi 0, %s15
    %p12 = scmp.ge.s32.totalorder %s11, 4
    %s21 = sphi 0, %s23
    %s24 = sphi 0, %s21
    %s25 = sphi 0, %s24
    %s41 = sphi 0, %s25
    %s45 = sphi 0, %s45
    %s47 = sphi 0, %s45
    %s48 = sphi 0, %s47
    %s62 = sphi 0, %s48
    %s66 = sphi 0, %s66
    %s68 = sphi 0, %s66
    %s69 = sphi 0, %s68
    %s83 = sphi 0, %s69
    %s87 = sphi 0, %s87
    %s89 = sphi 0, %s87
    %s90 = sphi 0, %s89
    %s104 = sphi 0, %s90
    %s108 = sphi 0, %s108
    %s110 = sphi 0, %s108
    %s111 = sphi 0, %s110
    %s125 = sphi 0, %s111
    %s131 = sphi 0, %s133
    %s134 = sphi 0, %s131
    %s135 = sphi 0, %s134
    %s151 = sphi 0, %s135
  $region4: #{dense_block_forward.4} parent=0 // loop_header_branch
    %14 = sbr.rel (%p12) target = $region8
  $region5: #{dense_block_forward.4} parent=0 // loop_body
    %s16 = ssub.s32 %s11, 1
    %s17 = ssub.s32 %s11, 2
    %s18 = sadd.s32 %s11, 1
    %s19 = ssub.s32 %s11, %s18
    %p20 = scmp.eq.s32.totalorder %s19, 0
    %s22 = sadd.s32 %s21, 1
    %s23 = scalar_select %p20, %s21, %s22
    %p26 = pneg %p20
    %p27 = scmp.eq.s32.totalorder %s11, 1
    %p28 = por %p26, %p27
    %p29 = scmp.ne.s32.totalorder %s21, %s24
    %p30 = scmp.eq.s32.totalorder %s11, 0
    %p31 = por %p29, %p30
    %p32 = scmp.ne.s32.totalorder %s21, %s24
    %p33 = scmp.eq.s32.totalorder %s16, 1
    %p34 = por %p32, %p33
    %p35 = scmp.ne.s32.totalorder %s24, %s25
    %p36 = scmp.eq.s32.totalorder %s16, 0
    %p37 = por %p35, %p36
    %p38 = scmp.ne.s32.totalorder %s24, %s25
    %p39 = scmp.eq.s32.totalorder %s17, 1
    %p40 = por %p38, %p39
    %p42 = scmp.ne.s32.totalorder %s25, %s41
    %p43 = scmp.eq.s32.totalorder %s17, 0
    %p44 = por %p42, %p43
    %s46 = sadd.s32 %s45, 1
    %p49 = scmp.eq.s32.totalorder %s11, 1
    %p50 = scmp.ne.s32.totalorder %s45, %s47
    %p51 = scmp.eq.s32.totalorder %s11, 0
    %p52 = por %p50, %p51
    %p53 = scmp.ne.s32.totalorder %s45, %s47
    %p54 = scmp.eq.s32.totalorder %s16, 1
    %p55 = por %p53, %p54
    %p56 = scmp.ne.s32.totalorder %s47, %s48
    %p57 = scmp.eq.s32.totalorder %s16, 0
    %p58 = por %p56, %p57
    %p59 = scmp.ne.s32.totalorder %s47, %s48
    %p60 = scmp.eq.s32.totalorder %s17, 1
    %p61 = por %p59, %p60
    %p63 = scmp.ne.s32.totalorder %s48, %s62
    %p64 = scmp.eq.s32.totalorder %s17, 0
    %p65 = por %p63, %p64
    %s67 = sadd.s32 %s66, 1
    %p70 = scmp.eq.s32.totalorder %s11, 1
    %p71 = scmp.ne.s32.totalorder %s66, %s68
    %p72 = scmp.eq.s32.totalorder %s11, 0
    %p73 = por %p71, %p72
    %p74 = scmp.ne.s32.totalorder %s66, %s68
    %p75 = scmp.eq.s32.totalorder %s16, 1
    %p76 = por %p74, %p75
    %p77 = scmp.ne.s32.totalorder %s68, %s69
    %p78 = scmp.eq.s32.totalorder %s16, 0
    %p79 = por %p77, %p78
    %p80 = scmp.ne.s32.totalorder %s68, %s69
    %p81 = scmp.eq.s32.totalorder %s17, 1
    %p82 = por %p80, %p81
    %p84 = scmp.ne.s32.totalorder %s69, %s83
    %p85 = scmp.eq.s32.totalorder %s17, 0
    %p86 = por %p84, %p85
    %s88 = sadd.s32 %s87, 1
    %p91 = scmp.eq.s32.totalorder %s11, 1
    %p92 = scmp.ne.s32.totalorder %s87, %s89
    %p93 = scmp.eq.s32.totalorder %s11, 0
    %p94 = por %p92, %p93
    %p95 = scmp.ne.s32.totalorder %s87, %s89
    %p96 = scmp.eq.s32.totalorder %s16, 1
    %p97 = por %p95, %p96
    %p98 = scmp.ne.s32.totalorder %s89, %s90
    %p99 = scmp.eq.s32.totalorder %s16, 0
    %p100 = por %p98, %p99
    %p101 = scmp.ne.s32.totalorder %s89, %s90
    %p102 = scmp.eq.s32.totalorder %s17, 1
    %p103 = por %p101, %p102
    %p105 = scmp.ne.s32.totalorder %s90, %s104
    %p106 = scmp.eq.s32.totalorder %s17, 0
    %p107 = por %p105, %p106
    %s109 = sadd.s32 %s108, 1
    %p112 = scmp.eq.s32.totalorder %s11, 1
    %p113 = scmp.ne.s32.totalorder %s108, %s110
    %p114 = scmp.eq.s32.totalorder %s11, 0
    %p115 = por %p113, %p114
    %p116 = scmp.ne.s32.totalorder %s108, %s110
    %p117 = scmp.eq.s32.totalorder %s16, 1
    %p118 = por %p116, %p117
    %p119 = scmp.ne.s32.totalorder %s110, %s111
    %p120 = scmp.eq.s32.totalorder %s16, 0
    %p121 = por %p119, %p120
    %p122 = scmp.ne.s32.totalorder %s110, %s111
    %p123 = scmp.eq.s32.totalorder %s17, 1
    %p124 = por %p122, %p123
    %p126 = scmp.ne.s32.totalorder %s111, %s125
    %p127 = scmp.eq.s32.totalorder %s17, 0
    %p128 = por %p126, %p127
    %s129 = ssub.s32 %s11, %s18
    %p130 = scmp.eq.s32.totalorder %s129, 0
    %s132 = sadd.s32 %s131, 1
    %s133 = scalar_select %p130, %s131, %s132
    %p136 = pneg %p130
    %p137 = scmp.eq.s32.totalorder %s11, 1
    %p138 = por %p136, %p137
    %p139 = scmp.ne.s32.totalorder %s131, %s134
    %p140 = scmp.eq.s32.totalorder %s11, 0
    %p141 = por %p139, %p140
    %p142 = scmp.ne.s32.totalorder %s131, %s134
    %p143 = scmp.eq.s32.totalorder %s16, 1
    %p144 = por %p142, %p143
    %p145 = scmp.ne.s32.totalorder %s134, %s135
    %p146 = scmp.eq.s32.totalorder %s16, 0
    %p147 = por %p145, %p146
    %p148 = scmp.ne.s32.totalorder %s134, %s135
    %p149 = scmp.eq.s32.totalorder %s17, 1
    %p150 = por %p148, %p149
    %p152 = scmp.ne.s32.totalorder %s135, %s151
    %p153 = scmp.eq.s32.totalorder %s17, 0
    %p154 = por %p152, %p153
    %p155 = scmp.le.s32.totalorder 1, %s11
    %p156 = scmp.lt.s32.totalorder %s11, 3
    %p157 = pnand %p155, %p156
    %p158 = pneg %p157
    // Predicated region
    $region9: #{dense_block_forward.4} parent=5 // pred_check
      _
    $region10: #{dense_block_forward.4} parent=5 // pred_check_branch
      %160 = sbr.rel (%p157) target = $region12
    $region11: #{dense_block_forward.4} parent=5 // pred_region
      %s161 = ssub.s32 %s11, 1
      // Predicated region
      $region13: #{dense_block_forward.4} parent=11 // pred_check
        %p162 = pneg %p58
      $region14: #{dense_block_forward.4} parent=11 // pred_check_branch
        %164 = sbr.rel (%p162) target = $region16
      $region15: #{dense_block_forward.4} parent=11 // pred_region
        _
      $region16: #{dense_block_forward.4} parent=11 // pred_fallthru
        _
      // Predicated region
      $region17: #{dense_block_forward.4} parent=11 // pred_check
        %p165 = pneg %p79
      $region18: #{dense_block_forward.4} parent=11 // pred_check_branch
        %167 = sbr.rel (%p165) target = $region20
      $region19: #{dense_block_forward.4} parent=11 // pred_region
        _
      $region20: #{dense_block_forward.4} parent=11 // pred_fallthru
        _
      // Predicated region
      $region21: #{dense_block_forward.4} parent=11 // pred_check
        %p168 = pneg %p100
      $region22: #{dense_block_forward.4} parent=11 // pred_check_branch
        %170 = sbr.rel (%p168) target = $region24
      $region23: #{dense_block_forward.4} parent=11 // pred_region
        _
      $region24: #{dense_block_forward.4} parent=11 // pred_fallthru
        _
      // Predicated region
      $region25: #{dense_block_forward.4} parent=11 // pred_check
        %p171 = pneg %p121
      $region26: #{dense_block_forward.4} parent=11 // pred_check_branch
        %173 = sbr.rel (%p171) target = $region28
      $region27: #{dense_block_forward.4} parent=11 // pred_region
        _
      $region28: #{dense_block_forward.4} parent=11 // pred_fallthru
        _
    $region12: #{dense_block_forward.4} parent=5 // pred_fallthru
      _
    %p174 = scmp.lt.s32.totalorder %s11, 2
    // Predicated region
    $region29: #{dense_block_forward.4} parent=5 // pred_check
      %p175 = pneg %p174
    $region30: #{dense_block_forward.4} parent=5 // pred_check_branch
      %177 = sbr.rel (%p175) target = $region32
    $region31: #{dense_block_forward.4} parent=5 // pred_region
      // Predicated region
      $region33: #{dense_block_forward.4} parent=31 // pred_check
        %p178 = pneg %p31
      $region34: #{dense_block_forward.4} parent=31 // pred_check_branch
        %180 = sbr.rel (%p178) target = $region36
      $region35: #{dense_block_forward.4} parent=31 // pred_region
        %s181 = smul.u32 32, %s11
        %p182 = scmp.lt.s32.totalorder %s181, 63
        %s183 = scalar_select %p182, %s181, 63
        %s184 = smul.addr %s183, 8
        %s185 = scalar_lea.vmem %s0, %s184
        %s186 = smul.u32 32, %s11
      $region36: #{dense_block_forward.4} parent=31 // pred_fallthru
        _
    $region32: #{dense_block_forward.4} parent=5 // pred_fallthru
      _
    %p187 = scmp.le.s32.totalorder 1, %s11
    %p188 = scmp.lt.s32.totalorder %s11, 3
    %p189 = pnand %p187, %p188
    %p190 = pneg %p189
    // Predicated region
    $region37: #{dense_block_forward.4} parent=5 // pred_check
      _
    $region38: #{dense_block_forward.4} parent=5 // pred_check_branch
      %192 = sbr.rel (%p189) target = $region40
    $region39: #{dense_block_forward.4} parent=5 // pred_region
      %s193 = ssub.s32 %s11, 1
      %s194 = smul.u32 32, %s16
      %p195 = scmp.lt.s32.totalorder %s194, 63
      %s196 = scalar_select %p195, %s194, 63
      %s197 = smul.addr %s196, 8
      %s198 = scalar_lea.vmem %s0, %s197
      %p199 = pneg %p37
      %p200 = pneg %p34
      %p201 = pneg %p58
      %p202 = pneg %p55
      %p203 = pneg %p79
      %p204 = pneg %p76
      %p205 = pneg %p100
      %p206 = pneg %p97
      %p207 = pneg %p121
      %p208 = pneg %p118
      %p209 = pneg %p147
      %p210 = pneg %p144
      %s211 = smul.u32 32, %s16
      %p212 = scmp.lt.s32.totalorder %s211, 63
      %s213 = scalar_select %p212, %s211, 63
      %s214 = smul.addr %s213, 8
      %s215 = scalar_lea.vmem %s5, %s214
      %s216 = smul.u32 32, %s16
      %p217 = scmp.lt.s32.totalorder %s216, 63
      %s218 = scalar_select %p217, %s216, 63
      %s219 = smul.addr %s218, 8
      %s220 = scalar_lea.vmem %s0, %s219
      %s221 = smul.u32 32, %s16
      %s222 = smul.u32 32, %s16
      %p223 = scmp.lt.s32.totalorder %s222, 63
      %s224 = scalar_select %p223, %s222, 63
      %s225 = smul.addr %s224, 8
      %s226 = scalar_lea.vmem %s5, %s225
      %s227 = smul.u32 32, %s16
      %v229 = vld [vmem:[%s220] sm:$0xff]
      %v230 = vld [vmem:[%s220 + $0x8] sm:$0xff]
      %v231 = vld [vmem:[%s220 + $0x10] sm:$0xff]
      %v232 = vld [vmem:[%s220 + $0x18] sm:$0xff]
      %v233 = vld [vmem:[%s220 + $0x20] sm:$0xff]
      %v234 = vld [vmem:[%s220 + $0x28] sm:$0xff]
      %v235 = vld [vmem:[%s220 + $0x30] sm:$0xff]
      %v236 = vld [vmem:[%s220 + $0x38] sm:$0xff]
      %v237 = vld [vmem:[%s220 + $0x40] sm:$0xff]
      %v238 = vld [vmem:[%s220 + $0x48] sm:$0xff]
      %v239 = vld [vmem:[%s220 + $0x50] sm:$0xff]
      %v240 = vld [vmem:[%s220 + $0x58] sm:$0xff]
      %v241 = vld [vmem:[%s220 + $0x60] sm:$0xff]
      %v242 = vld [vmem:[%s220 + $0x68] sm:$0xff]
      %v243 = vld [vmem:[%s220 + $0x70] sm:$0xff]
      %v244 = vld [vmem:[%s220 + $0x78] sm:$0xff]
      %v245 = vld [vmem:[%s220 + $0x80] sm:$0xff]
      %v246 = vld [vmem:[%s220 + $0x88] sm:$0xff]
      %v247 = vld [vmem:[%s220 + $0x90] sm:$0xff]
      %v248 = vld [vmem:[%s220 + $0x98] sm:$0xff]
      %v249 = vld [vmem:[%s220 + $0xa0] sm:$0xff]
      %v250 = vld [vmem:[%s220 + $0xa8] sm:$0xff]
      %v251 = vld [vmem:[%s220 + $0xb0] sm:$0xff]
      %v252 = vld [vmem:[%s220 + $0xb8] sm:$0xff]
      %v253 = vld [vmem:[%s220 + $0xc0] sm:$0xff]
      %v254 = vld [vmem:[%s220 + $0xc8] sm:$0xff]
      %v255 = vld [vmem:[%s220 + $0xd0] sm:$0xff]
      %v256 = vld [vmem:[%s220 + $0xd8] sm:$0xff]
      %v257 = vld [vmem:[%s220 + $0xe0] sm:$0xff]
      %v258 = vld [vmem:[%s220 + $0xe8] sm:$0xff]
      %v259 = vld [vmem:[%s220 + $0xf0] sm:$0xff]
      %v260 = vld [vmem:[%s220 + $0xf8] sm:$0xff]
      %v261 = vld [vmem:[%s1] sm:$0x1]
      %v263 = vlaneseq
      %v264 = vshrl.u32 %v263, 7
      %v265 = vsub.s32 0, %v264
      %v266 = vrot.slane %v261, %v265
      %v268 = vmul.f32 %v229, %v266
      %v269 = vmul.f32 %v230, %v266
      %v270 = vmul.f32 %v231, %v266
      %v271 = vmul.f32 %v232, %v266
      %v272 = vmul.f32 %v233, %v266
      %v273 = vmul.f32 %v234, %v266
      %v274 = vmul.f32 %v235, %v266
      %v275 = vmul.f32 %v236, %v266
      %v276 = vmul.f32 %v237, %v266
      %v277 = vmul.f32 %v238, %v266
      %v278 = vmul.f32 %v239, %v266
      %v279 = vmul.f32 %v240, %v266
      %v280 = vmul.f32 %v241, %v266
      %v281 = vmul.f32 %v242, %v266
      %v282 = vmul.f32 %v243, %v266
      %v283 = vmul.f32 %v244, %v266
      %v284 = vmul.f32 %v245, %v266
      %v285 = vmul.f32 %v246, %v266
      %v286 = vmul.f32 %v247, %v266
      %v287 = vmul.f32 %v248, %v266
      %v288 = vmul.f32 %v249, %v266
      %v289 = vmul.f32 %v250, %v266
      %v290 = vmul.f32 %v251, %v266
      %v291 = vmul.f32 %v252, %v266
      %v292 = vmul.f32 %v253, %v266
      %v293 = vmul.f32 %v254, %v266
      %v294 = vmul.f32 %v255, %v266
      %v295 = vmul.f32 %v256, %v266
      %v296 = vmul.f32 %v257, %v266
      %v297 = vmul.f32 %v258, %v266
      %v298 = vmul.f32 %v259, %v266
      %v299 = vmul.f32 %v260, %v266
      %v300 = vld [vmem:[%s2] sm:$0x1]
      %v302 = vlaneseq
      %v303 = vshrl.u32 %v302, 7
      %v304 = vsub.s32 0, %v303
      %v305 = vrot.slane %v300, %v304
      %v307 = vadd.f32 %v268, %v305
      %v308 = vadd.f32 %v269, %v305
      %v309 = vadd.f32 %v270, %v305
      %v310 = vadd.f32 %v271, %v305
      %v311 = vadd.f32 %v272, %v305
      %v312 = vadd.f32 %v273, %v305
      %v313 = vadd.f32 %v274, %v305
      %v314 = vadd.f32 %v275, %v305
      %v315 = vadd.f32 %v276, %v305
      %v316 = vadd.f32 %v277, %v305
      %v317 = vadd.f32 %v278, %v305
      %v318 = vadd.f32 %v279, %v305
      %v319 = vadd.f32 %v280, %v305
      %v320 = vadd.f32 %v281, %v305
      %v321 = vadd.f32 %v282, %v305
      %v322 = vadd.f32 %v283, %v305
      %v323 = vadd.f32 %v284, %v305
      %v324 = vadd.f32 %v285, %v305
      %v325 = vadd.f32 %v286, %v305
      %v326 = vadd.f32 %v287, %v305
      %v327 = vadd.f32 %v288, %v305
      %v328 = vadd.f32 %v289, %v305
      %v329 = vadd.f32 %v290, %v305
      %v330 = vadd.f32 %v291, %v305
      %v331 = vadd.f32 %v292, %v305
      %v332 = vadd.f32 %v293, %v305
      %v333 = vadd.f32 %v294, %v305
      %v334 = vadd.f32 %v295, %v305
      %v335 = vadd.f32 %v296, %v305
      %v336 = vadd.f32 %v297, %v305
      %v337 = vadd.f32 %v298, %v305
      %v338 = vadd.f32 %v299, %v305
      %v339 = vmax.f32 %v307, 0.0
      %v340 = vmax.f32 %v308, 0.0
      %v341 = vmax.f32 %v309, 0.0
      %v342 = vmax.f32 %v310, 0.0
      %v343 = vmax.f32 %v311, 0.0
      %v344 = vmax.f32 %v312, 0.0
      %v345 = vmax.f32 %v313, 0.0
      %v346 = vmax.f32 %v314, 0.0
      %v347 = vmax.f32 %v315, 0.0
      %v348 = vmax.f32 %v316, 0.0
      %v349 = vmax.f32 %v317, 0.0
      %v350 = vmax.f32 %v318, 0.0
      %v351 = vmax.f32 %v319, 0.0
      %v352 = vmax.f32 %v320, 0.0
      %v353 = vmax.f32 %v321, 0.0
      %v354 = vmax.f32 %v322, 0.0
      %v355 = vmax.f32 %v323, 0.0
      %v356 = vmax.f32 %v324, 0.0
      %v357 = vmax.f32 %v325, 0.0
      %v358 = vmax.f32 %v326, 0.0
      %v359 = vmax.f32 %v327, 0.0
      %v360 = vmax.f32 %v328, 0.0
      %v361 = vmax.f32 %v329, 0.0
      %v362 = vmax.f32 %v330, 0.0
      %v363 = vmax.f32 %v331, 0.0
      %v364 = vmax.f32 %v332, 0.0
      %v365 = vmax.f32 %v333, 0.0
      %v366 = vmax.f32 %v334, 0.0
      %v367 = vmax.f32 %v335, 0.0
      %v368 = vmax.f32 %v336, 0.0
      %v369 = vmax.f32 %v337, 0.0
      %v370 = vmax.f32 %v338, 0.0
      %v371 = vpack.c.bf16 %v340, %v339
      %v372 = vpack.c.bf16 %v342, %v341
      %v373 = vpack.c.bf16 %v344, %v343
      %v374 = vpack.c.bf16 %v346, %v345
      %v375 = vpack.c.bf16 %v348, %v347
      %v376 = vpack.c.bf16 %v350, %v349
      %v377 = vpack.c.bf16 %v352, %v351
      %v378 = vpack.c.bf16 %v354, %v353
      %v379 = vpack.c.bf16 %v356, %v355
      %v380 = vpack.c.bf16 %v358, %v357
      %v381 = vpack.c.bf16 %v360, %v359
      %v382 = vpack.c.bf16 %v362, %v361
      %v383 = vpack.c.bf16 %v364, %v363
      %v384 = vpack.c.bf16 %v366, %v365
      %v385 = vpack.c.bf16 %v368, %v367
      %v386 = vpack.c.bf16 %v370, %v369
      %v387 = vld [vmem:[%s3] sm:$0xf]
      %v388 = vld [vmem:[%s3 + $0x4] sm:$0xf]
      %v389 = vld [vmem:[%s3 + $0x8] sm:$0xf]
      %v390 = vld [vmem:[%s3 + $0xc] sm:$0xf]
      %v391 = vld [vmem:[%s3 + $0x10] sm:$0xf]
      %v392 = vld [vmem:[%s3 + $0x14] sm:$0xf]
      %v393 = vld [vmem:[%s3 + $0x18] sm:$0xf]
      %v394 = vld [vmem:[%s3 + $0x1c] sm:$0xf]
      %v395 = vld [vmem:[%s3 + $0x20] sm:$0xf]
      %v396 = vld [vmem:[%s3 + $0x24] sm:$0xf]
      %v397 = vld [vmem:[%s3 + $0x28] sm:$0xf]
      %v398 = vld [vmem:[%s3 + $0x2c] sm:$0xf]
      %v399 = vld [vmem:[%s3 + $0x30] sm:$0xf]
      %v400 = vld [vmem:[%s3 + $0x34] sm:$0xf]
      %v401 = vld [vmem:[%s3 + $0x38] sm:$0xf]
      %v402 = vld [vmem:[%s3 + $0x3c] sm:$0xf]
      %v403 = vld [vmem:[%s4] sm:$0x1]
      %v405 = vlaneseq
      %v406 = vshrl.u32 %v405, 7
      %v407 = vsub.s32 0, %v406
      %v408 = vrot.slane %v403, %v407
      %v426 = vunpack.c.l.b16 %v387
      %v427 = vunpack.c.l.b16 %v388
      %v428 = vunpack.c.l.b16 %v389
      %v429 = vunpack.c.l.b16 %v390
      %v430 = vunpack.c.l.b16 %v391
      %v431 = vunpack.c.l.b16 %v392
      %v432 = vunpack.c.l.b16 %v393
      %v433 = vunpack.c.l.b16 %v394
      %v434 = vunpack.c.l.b16 %v395
      %v435 = vunpack.c.l.b16 %v396
      %v436 = vunpack.c.l.b16 %v397
      %v437 = vunpack.c.l.b16 %v398
      %v438 = vunpack.c.l.b16 %v399
      %v439 = vunpack.c.l.b16 %v400
      %v440 = vunpack.c.l.b16 %v401
      %v441 = vunpack.c.l.b16 %v402
      %v442 = vpack.c.b16 %v427, %v426
      %v443 = vpack.c.b16 %v429, %v428
      %v444 = vpack.c.b16 %v431, %v430
      %v445 = vpack.c.b16 %v433, %v432
      %v446 = vpack.c.b16 %v435, %v434
      %v447 = vpack.c.b16 %v437, %v436
      %v448 = vpack.c.b16 %v439, %v438
      %v449 = vpack.c.b16 %v441, %v440
      %458 = vmatprep.subr.bf16.mxu0 0
      %459 = vmatpush1.bf16.msra.mxu0 %v442
      %460 = vmatprep.subr.bf16.mxu0 0
      %461 = vmatpush1.bf16.msra.mxu0 %v443
      %462 = vmatprep.subr.bf16.mxu0 0
      %463 = vmatpush1.bf16.msra.mxu0 %v444
      %464 = vmatprep.subr.bf16.mxu0 0
      %465 = vmatpush1.bf16.msra.mxu0 %v445
      %466 = vmatprep.subr.bf16.mxu0 0
      %467 = vmatpush1.bf16.msra.mxu0 %v446
      %468 = vmatprep.subr.bf16.mxu0 0
      %469 = vmatpush1.bf16.msra.mxu0 %v447
      %470 = vmatprep.subr.bf16.mxu0 0
      %471 = vmatpush1.bf16.msra.mxu0 %v448
      %472 = vmatprep.subr.bf16.mxu0 0
      %473 = vmatpush1.bf16.msra.mxu0 %v449
      %474 = vmatprep.subr.bf16.mxu0 0
      %475 = vmatpush1.bf16.msra.mxu0 0
      %476 = vmatprep.subr.bf16.mxu0 0
      %477 = vmatpush1.bf16.msra.mxu0 0
      %478 = vmatprep.subr.bf16.mxu0 0
      %479 = vmatpush1.bf16.msra.mxu0 0
      %480 = vmatprep.subr.bf16.mxu0 0
      %481 = vmatpush1.bf16.msra.mxu0 0
      %482 = vmatprep.subr.bf16.mxu0 0
      %483 = vmatpush1.bf16.msra.mxu0 0
      %484 = vmatprep.subr.bf16.mxu0 0
      %485 = vmatpush1.bf16.msra.mxu0 0
      %486 = vmatprep.subr.bf16.mxu0 0
      %487 = vmatpush1.bf16.msra.mxu0 0
      %488 = vmatprep.subr.bf16.mxu0 0
      %489 = vmatpush1.bf16.msra.mxu0 0
      %490 = vmatprep.mubr.bf16.mxu0 0
      %491 = vmatmul.mubr.bf16.gmra.mrb[0].mxu0 %v371
      %v492 = vpop.f32.mrb[0].mxu0
      %v493 = vadd.f32 %v408, %v492
      %v494 = vpop.f32.mrb[0].mxu0
      %v495 = vpop.f32.mrb[0].mxu0
      %v496 = vadd.f32 %v408, %v495
      %v497 = vpop.f32.mrb[0].mxu0
      %498 = vmatprep.mubr.bf16.mxu0 0
      %499 = vmatmul.mubr.bf16.gmra.mrb[0].mxu0 %v372
      %v500 = vpop.f32.mrb[0].mxu0
      %v501 = vadd.f32 %v408, %v500
      %v502 = vpop.f32.mrb[0].mxu0
      %v503 = vpop.f32.mrb[0].mxu0
      %v504 = vadd.f32 %v408, %v503
      %v505 = vpop.f32.mrb[0].mxu0
      %506 = vmatprep.mubr.bf16.mxu0 0
      %507 = vmatmul.mubr.bf16.gmra.mrb[0].mxu0 %v373
      %v508 = vpop.f32.mrb[0].mxu0
      %v509 = vadd.f32 %v408, %v508
      %v510 = vpop.f32.mrb[0].mxu0
      %v511 = vpop.f32.mrb[0].mxu0
      %v512 = vadd.f32 %v408, %v511
      %v513 = vpop.f32.mrb[0].mxu0
      %514 = vmatprep.mubr.bf16.mxu0 0
      %515 = vmatmul.mubr.bf16.gmra.mrb[0].mxu0 %v374
      %v516 = vpop.f32.mrb[0].mxu0
      %v517 = vadd.f32 %v408, %v516
      %v518 = vpop.f32.mrb[0].mxu0
      %v519 = vpop.f32.mrb[0].mxu0
      %v520 = vadd.f32 %v408, %v519
      %v521 = vpop.f32.mrb[0].mxu0
      %522 = vmatprep.mubr.bf16.mxu0 0
      %523 = vmatmul.mubr.bf16.gmra.mrb[0].mxu0 %v375
      %v524 = vpop.f32.mrb[0].mxu0
      %v525 = vadd.f32 %v408, %v524
      %v526 = vpop.f32.mrb[0].mxu0
      %v527 = vpop.f32.mrb[0].mxu0
      %v528 = vadd.f32 %v408, %v527
      %v529 = vpop.f32.mrb[0].mxu0
      %530 = vmatprep.mubr.bf16.mxu0 0
      %531 = vmatmul.mubr.bf16.gmra.mrb[0].mxu0 %v376
      %v532 = vpop.f32.mrb[0].mxu0
      %v533 = vadd.f32 %v408, %v532
      %v534 = vpop.f32.mrb[0].mxu0
      %v535 = vpop.f32.mrb[0].mxu0
      %v536 = vadd.f32 %v408, %v535
      %v537 = vpop.f32.mrb[0].mxu0
      %538 = vmatprep.mubr.bf16.mxu0 0
      %539 = vmatmul.mubr.bf16.gmra.mrb[0].mxu0 %v377
      %v540 = vpop.f32.mrb[0].mxu0
      %v541 = vadd.f32 %v408, %v540
      %v542 = vpop.f32.mrb[0].mxu0
      %v543 = vpop.f32.mrb[0].mxu0
      %v544 = vadd.f32 %v408, %v543
      %v545 = vpop.f32.mrb[0].mxu0
      %546 = vmatprep.mubr.bf16.mxu0 0
      %547 = vmatmul.mubr.bf16.gmra.mrb[0].mxu0 %v378
      %v548 = vpop.f32.mrb[0].mxu0
      %v549 = vadd.f32 %v408, %v548
      %v550 = vpop.f32.mrb[0].mxu0
      %v551 = vpop.f32.mrb[0].mxu0
      %v552 = vadd.f32 %v408, %v551
      %v553 = vpop.f32.mrb[0].mxu0
      %554 = vmatprep.mubr.bf16.mxu0 0
      %555 = vmatmul.mubr.bf16.gmra.mrb[0].mxu0 %v379
      %v556 = vpop.f32.mrb[0].mxu0
      %v557 = vadd.f32 %v408, %v556
      %v558 = vpop.f32.mrb[0].mxu0
      %v559 = vpop.f32.mrb[0].mxu0
      %v560 = vadd.f32 %v408, %v559
      %v561 = vpop.f32.mrb[0].mxu0
      %562 = vmatprep.mubr.bf16.mxu0 0
      %563 = vmatmul.mubr.bf16.gmra.mrb[0].mxu0 %v380
      %v564 = vpop.f32.mrb[0].mxu0
      %v565 = vadd.f32 %v408, %v564
      %v566 = vpop.f32.mrb[0].mxu0
      %v567 = vpop.f32.mrb[0].mxu0
      %v568 = vadd.f32 %v408, %v567
      %v569 = vpop.f32.mrb[0].mxu0
      %570 = vmatprep.mubr.bf16.mxu0 0
      %571 = vmatmul.mubr.bf16.gmra.mrb[0].mxu0 %v381
      %v572 = vpop.f32.mrb[0].mxu0
      %v573 = vadd.f32 %v408, %v572
      %v574 = vpop.f32.mrb[0].mxu0
      %v575 = vpop.f32.mrb[0].mxu0
      %v576 = vadd.f32 %v408, %v575
      %v577 = vpop.f32.mrb[0].mxu0
      %578 = vmatprep.mubr.bf16.mxu0 0
      %579 = vmatmul.mubr.bf16.gmra.mrb[0].mxu0 %v382
      %v580 = vpop.f32.mrb[0].mxu0
      %v581 = vadd.f32 %v408, %v580
      %v582 = vpop.f32.mrb[0].mxu0
      %v583 = vpop.f32.mrb[0].mxu0
      %v584 = vadd.f32 %v408, %v583
      %v585 = vpop.f32.mrb[0].mxu0
      %586 = vmatprep.mubr.bf16.mxu0 0
      %587 = vmatmul.mubr.bf16.gmra.mrb[0].mxu0 %v383
      %v588 = vpop.f32.mrb[0].mxu0
      %v589 = vadd.f32 %v408, %v588
      %v590 = vpop.f32.mrb[0].mxu0
      %v591 = vpop.f32.mrb[0].mxu0
      %v592 = vadd.f32 %v408, %v591
      %v593 = vpop.f32.mrb[0].mxu0
      %594 = vmatprep.mubr.bf16.mxu0 0
      %595 = vmatmul.mubr.bf16.gmra.mrb[0].mxu0 %v384
      %v596 = vpop.f32.mrb[0].mxu0
      %v597 = vadd.f32 %v408, %v596
      %v598 = vpop.f32.mrb[0].mxu0
      %v599 = vpop.f32.mrb[0].mxu0
      %v600 = vadd.f32 %v408, %v599
      %v601 = vpop.f32.mrb[0].mxu0
      %602 = vmatprep.mubr.bf16.mxu0 0
      %603 = vmatmul.mubr.bf16.gmra.mrb[0].mxu0 %v385
      %v604 = vpop.f32.mrb[0].mxu0
      %v605 = vadd.f32 %v408, %v604
      %v606 = vpop.f32.mrb[0].mxu0
      %v607 = vpop.f32.mrb[0].mxu0
      %v608 = vadd.f32 %v408, %v607
      %v609 = vpop.f32.mrb[0].mxu0
      %610 = vmatprep.mubr.bf16.mxu0 0
      %611 = vmatmul.mubr.bf16.gmra.mrb[0].mxu0 %v386
      %v612 = vpop.f32.mrb[0].mxu0
      %v613 = vadd.f32 %v408, %v612
      %v614 = vpop.f32.mrb[0].mxu0
      %v615 = vpop.f32.mrb[0].mxu0
      %v616 = vadd.f32 %v408, %v615
      %v617 = vpop.f32.mrb[0].mxu0
      %618 = vdwg.mxu0
      %v619 = vmax.f32 %v493, 0.0
      %v620 = vmax.f32 %v496, 0.0
      %v621 = vmax.f32 %v501, 0.0
      %v622 = vmax.f32 %v504, 0.0
      %v623 = vmax.f32 %v509, 0.0
      %v624 = vmax.f32 %v512, 0.0
      %v625 = vmax.f32 %v517, 0.0
      %v626 = vmax.f32 %v520, 0.0
      %v627 = vmax.f32 %v525, 0.0
      %v628 = vmax.f32 %v528, 0.0
      %v629 = vmax.f32 %v533, 0.0
      %v630 = vmax.f32 %v536, 0.0
      %v631 = vmax.f32 %v541, 0.0
      %v632 = vmax.f32 %v544, 0.0
      %v633 = vmax.f32 %v549, 0.0
      %v634 = vmax.f32 %v552, 0.0
      %v635 = vmax.f32 %v557, 0.0
      %v636 = vmax.f32 %v560, 0.0
      %v637 = vmax.f32 %v565, 0.0
      %v638 = vmax.f32 %v568, 0.0
      %v639 = vmax.f32 %v573, 0.0
      %v640 = vmax.f32 %v576, 0.0
      %v641 = vmax.f32 %v581, 0.0
      %v642 = vmax.f32 %v584, 0.0
      %v643 = vmax.f32 %v589, 0.0
      %v644 = vmax.f32 %v592, 0.0
      %v645 = vmax.f32 %v597, 0.0
      %v646 = vmax.f32 %v600, 0.0
      %v647 = vmax.f32 %v605, 0.0
      %v648 = vmax.f32 %v608, 0.0
      %v649 = vmax.f32 %v613, 0.0
      %v650 = vmax.f32 %v616, 0.0
      %651 = vst [vmem:[%s226] sm:$0xff] %v619
      %652 = vst [vmem:[%s226 + $0x8] sm:$0xff] %v620
      %653 = vst [vmem:[%s226 + $0x10] sm:$0xff] %v621
      %654 = vst [vmem:[%s226 + $0x18] sm:$0xff] %v622
      %655 = vst [vmem:[%s226 + $0x20] sm:$0xff] %v623
      %656 = vst [vmem:[%s226 + $0x28] sm:$0xff] %v624
      %657 = vst [vmem:[%s226 + $0x30] sm:$0xff] %v625
      %658 = vst [vmem:[%s226 + $0x38] sm:$0xff] %v626
      %659 = vst [vmem:[%s226 + $0x40] sm:$0xff] %v627
      %660 = vst [vmem:[%s226 + $0x48] sm:$0xff] %v628
      %661 = vst [vmem:[%s226 + $0x50] sm:$0xff] %v629
      %662 = vst [vmem:[%s226 + $0x58] sm:$0xff] %v630
      %663 = vst [vmem:[%s226 + $0x60] sm:$0xff] %v631
      %664 = vst [vmem:[%s226 + $0x68] sm:$0xff] %v632
      %665 = vst [vmem:[%s226 + $0x70] sm:$0xff] %v633
      %666 = vst [vmem:[%s226 + $0x78] sm:$0xff] %v634
      %667 = vst [vmem:[%s226 + $0x80] sm:$0xff] %v635
      %668 = vst [vmem:[%s226 + $0x88] sm:$0xff] %v636
      %669 = vst [vmem:[%s226 + $0x90] sm:$0xff] %v637
      %670 = vst [vmem:[%s226 + $0x98] sm:$0xff] %v638
      %671 = vst [vmem:[%s226 + $0xa0] sm:$0xff] %v639
      %672 = vst [vmem:[%s226 + $0xa8] sm:$0xff] %v640
      %673 = vst [vmem:[%s226 + $0xb0] sm:$0xff] %v641
      %674 = vst [vmem:[%s226 + $0xb8] sm:$0xff] %v642
      %675 = vst [vmem:[%s226 + $0xc0] sm:$0xff] %v643
      %676 = vst [vmem:[%s226 + $0xc8] sm:$0xff] %v644
      %677 = vst [vmem:[%s226 + $0xd0] sm:$0xff] %v645
      %678 = vst [vmem:[%s226 + $0xd8] sm:$0xff] %v646
      %679 = vst [vmem:[%s226 + $0xe0] sm:$0xff] %v647
      %680 = vst [vmem:[%s226 + $0xe8] sm:$0xff] %v648
      %681 = vst [vmem:[%s226 + $0xf0] sm:$0xff] %v649
      %682 = vst [vmem:[%s226 + $0xf8] sm:$0xff] %v650
      %s683 = smul.u32 32, %s16
      %p684 = scmp.lt.s32.totalorder %s683, 63
      %s685 = scalar_select %p684, %s683, 63
      %s686 = smul.addr %s685, 8
      %s687 = scalar_lea.vmem %s5, %s686
      // Predicated region
      $region41: #{dense_block_forward.4} parent=39 // pred_check
        %p688 = pneg %p144
      $region42: #{dense_block_forward.4} parent=39 // pred_check_branch
        %690 = sbr.rel (%p688) target = $region44
      $region43: #{dense_block_forward.4} parent=39 // pred_region
        %s691 = smul.u32 32, %s16
      $region44: #{dense_block_forward.4} parent=39 // pred_fallthru
        _
    $region40: #{dense_block_forward.4} parent=5 // pred_fallthru
      _
    %p692 = scmp.le.s32.totalorder 2, %s11
    // Predicated region
    $region45: #{dense_block_forward.4} parent=5 // pred_check
      %p693 = pneg %p692
    $region46: #{dense_block_forward.4} parent=5 // pred_check_branch
      %695 = sbr.rel (%p693) target = $region48
    $region47: #{dense_block_forward.4} parent=5 // pred_region
      %s696 = ssub.s32 %s11, 2
      // Predicated region
      $region49: #{dense_block_forward.4} parent=47 // pred_check
        %p697 = pneg %p150
      $region50: #{dense_block_forward.4} parent=47 // pred_check_branch
        %699 = sbr.rel (%p697) target = $region52
      $region51: #{dense_block_forward.4} parent=47 // pred_region
        %s700 = smul.u32 32, %s17
        %p701 = scmp.lt.s32.totalorder %s700, 63
        %s702 = scalar_select %p701, %s700, 63
        %s703 = smul.addr %s702, 8
        %s704 = scalar_lea.vmem %s5, %s703
      $region52: #{dense_block_forward.4} parent=47 // pred_fallthru
        _
    $region48: #{dense_block_forward.4} parent=5 // pred_fallthru
      _
  $region6: #{dense_block_forward.4} parent=0 // loop_footer
    %s15 = sadd.s32 1, %s11
  $region7: #{dense_block_forward.4} parent=0 // loop_footer_branch
    %10 = sbr.rel target = $region3
  $region8: #{dense_block_forward.4} parent=0 // loop_exit
    _

// kernel: dense_block_forward.6
$region0: #{dense_block_forward.6}
  #allocation0 [shape = 'u32[]', space=smem, size = 0x4, offset = 0x4, fixed_abs, tag = 'smem constant byte address 0x4 - core index']
  #allocation1 [shape = 'u32[144,128]{1,0:T(1,128)}', space=vmem, size = 0x12000, scoped, tag = 'internal scratch']
  %s0 = inlined_call_operand.vmem [shape: f32[512,128], index: 0, kind: input, shape index: {}]
  %s1 = inlined_call_operand.vmem [shape: f32[512,128], index: 1, kind: input, shape index: {}]
  %s2 = inlined_call_operand.vmem [shape: f32[1,256], index: 2, kind: input, shape index: {}]
  %s3 = inlined_call_operand.vmem [shape: f32[1,256], index: 3, kind: input, shape index: {}]
  %s4 = inlined_call_operand.vmem [shape: bf16[256,128], index: 4, kind: input, shape index: {}]
  %s5 = inlined_call_operand.vmem [shape: f32[1,128], index: 5, kind: input, shape index: {}]
  %s6 = inlined_call_operand.vmem [shape: f32[512,128], index: 6, kind: output, shape index: {}]
  %s7 = sld [smem:[#allocation0]]
  $region57: #{dense_block_forward.6} parent=0
    _
  %s9 = ssub.s32 1, %s7
  %s10 = scalar_select 0, %s9, %s7
  loop: start=0, step=1, limit=4
  $region2: #{dense_block_forward.6} parent=0 // loop_pre_header
    _
  $region3: #{dense_block_forward.6} parent=0 // loop_header
    %s12 = sphi 0, %s16
    %p13 = scmp.ge.s32.totalorder %s12, 4
    %s22 = sphi 0, %s24
    %s25 = sphi 0, %s22
    %s26 = sphi 0, %s25
    %s42 = sphi 0, %s26
    %s48 = sphi 0, %s50
    %s51 = sphi 0, %s48
    %s52 = sphi 0, %s51
    %s68 = sphi 0, %s52
    %s72 = sphi 0, %s72
    %s74 = sphi 0, %s72
    %s75 = sphi 0, %s74
    %s89 = sphi 0, %s75
    %s93 = sphi 0, %s93
    %s95 = sphi 0, %s93
    %s96 = sphi 0, %s95
    %s110 = sphi 0, %s96
    %s114 = sphi 0, %s114
    %s116 = sphi 0, %s114
    %s117 = sphi 0, %s116
    %s131 = sphi 0, %s117
    %s135 = sphi 0, %s135
    %s137 = sphi 0, %s135
    %s138 = sphi 0, %s137
    %s152 = sphi 0, %s138
    %s158 = sphi 0, %s160
    %s161 = sphi 0, %s158
    %s162 = sphi 0, %s161
    %s178 = sphi 0, %s162
  $region4: #{dense_block_forward.6} parent=0 // loop_header_branch
    %15 = sbr.rel (%p13) target = $region8
  $region5: #{dense_block_forward.6} parent=0 // loop_body
    %s17 = ssub.s32 %s12, 1
    %s18 = ssub.s32 %s12, 2
    %s19 = sadd.s32 %s12, 1
    %s20 = ssub.s32 %s12, %s19
    %p21 = scmp.eq.s32.totalorder %s20, 0
    %s23 = sadd.s32 %s22, 1
    %s24 = scalar_select %p21, %s22, %s23
    %p27 = pneg %p21
    %p28 = scmp.eq.s32.totalorder %s12, 1
    %p29 = por %p27, %p28
    %p30 = scmp.ne.s32.totalorder %s22, %s25
    %p31 = scmp.eq.s32.totalorder %s12, 0
    %p32 = por %p30, %p31
    %p33 = scmp.ne.s32.totalorder %s22, %s25
    %p34 = scmp.eq.s32.totalorder %s17, 1
    %p35 = por %p33, %p34
    %p36 = scmp.ne.s32.totalorder %s25, %s26
    %p37 = scmp.eq.s32.totalorder %s17, 0
    %p38 = por %p36, %p37
    %p39 = scmp.ne.s32.totalorder %s25, %s26
    %p40 = scmp.eq.s32.totalorder %s18, 1
    %p41 = por %p39, %p40
    %p43 = scmp.ne.s32.totalorder %s26, %s42
    %p44 = scmp.eq.s32.totalorder %s18, 0
    %p45 = por %p43, %p44
    %s46 = ssub.s32 %s12, %s19
    %p47 = scmp.eq.s32.totalorder %s46, 0
    %s49 = sadd.s32 %s48, 1
    %s50 = scalar_select %p47, %s48, %s49
    %p53 = pneg %p47
    %p54 = scmp.eq.s32.totalorder %s12, 1
    %p55 = por %p53, %p54
    %p56 = scmp.ne.s32.totalorder %s48, %s51
    %p57 = scmp.eq.s32.totalorder %s12, 0
    %p58 = por %p56, %p57
    %p59 = scmp.ne.s32.totalorder %s48, %s51
    %p60 = scmp.eq.s32.totalorder %s17, 1
    %p61 = por %p59, %p60
    %p62 = scmp.ne.s32.totalorder %s51, %s52
    %p63 = scmp.eq.s32.totalorder %s17, 0
    %p64 = por %p62, %p63
    %p65 = scmp.ne.s32.totalorder %s51, %s52
    %p66 = scmp.eq.s32.totalorder %s18, 1
    %p67 = por %p65, %p66
    %p69 = scmp.ne.s32.totalorder %s52, %s68
    %p70 = scmp.eq.s32.totalorder %s18, 0
    %p71 = por %p69, %p70
    %s73 = sadd.s32 %s72, 1
    %p76 = scmp.eq.s32.totalorder %s12, 1
    %p77 = scmp.ne.s32.totalorder %s72, %s74
    %p78 = scmp.eq.s32.totalorder %s12, 0
    %p79 = por %p77, %p78
    %p80 = scmp.ne.s32.totalorder %s72, %s74
    %p81 = scmp.eq.s32.totalorder %s17, 1
    %p82 = por %p80, %p81
    %p83 = scmp.ne.s32.totalorder %s74, %s75
    %p84 = scmp.eq.s32.totalorder %s17, 0
    %p85 = por %p83, %p84
    %p86 = scmp.ne.s32.totalorder %s74, %s75
    %p87 = scmp.eq.s32.totalorder %s18, 1
    %p88 = por %p86, %p87
    %p90 = scmp.ne.s32.totalorder %s75, %s89
    %p91 = scmp.eq.s32.totalorder %s18, 0
    %p92 = por %p90, %p91
    %s94 = sadd.s32 %s93, 1
    %p97 = scmp.eq.s32.totalorder %s12, 1
    %p98 = scmp.ne.s32.totalorder %s93, %s95
    %p99 = scmp.eq.s32.totalorder %s12, 0
    %p100 = por %p98, %p99
    %p101 = scmp.ne.s32.totalorder %s93, %s95
    %p102 = scmp.eq.s32.totalorder %s17, 1
    %p103 = por %p101, %p102
    %p104 = scmp.ne.s32.totalorder %s95, %s96
    %p105 = scmp.eq.s32.totalorder %s17, 0
    %p106 = por %p104, %p105
    %p107 = scmp.ne.s32.totalorder %s95, %s96
    %p108 = scmp.eq.s32.totalorder %s18, 1
    %p109 = por %p107, %p108
    %p111 = scmp.ne.s32.totalorder %s96, %s110
    %p112 = scmp.eq.s32.totalorder %s18, 0
    %p113 = por %p111, %p112
    %s115 = sadd.s32 %s114, 1
    %p118 = scmp.eq.s32.totalorder %s12, 1
    %p119 = scmp.ne.s32.totalorder %s114, %s116
    %p120 = scmp.eq.s32.totalorder %s12, 0
    %p121 = por %p119, %p120
    %p122 = scmp.ne.s32.totalorder %s114, %s116
    %p123 = scmp.eq.s32.totalorder %s17, 1
    %p124 = por %p122, %p123
    %p125 = scmp.ne.s32.totalorder %s116, %s117
    %p126 = scmp.eq.s32.totalorder %s17, 0
    %p127 = por %p125, %p126
    %p128 = scmp.ne.s32.totalorder %s116, %s117
    %p129 = scmp.eq.s32.totalorder %s18, 1
    %p130 = por %p128, %p129
    %p132 = scmp.ne.s32.totalorder %s117, %s131
    %p133 = scmp.eq.s32.totalorder %s18, 0
    %p134 = por %p132, %p133
    %s136 = sadd.s32 %s135, 1
    %p139 = scmp.eq.s32.totalorder %s12, 1
    %p140 = scmp.ne.s32.totalorder %s135, %s137
    %p141 = scmp.eq.s32.totalorder %s12, 0
    %p142 = por %p140, %p141
    %p143 = scmp.ne.s32.totalorder %s135, %s137
    %p144 = scmp.eq.s32.totalorder %s17, 1
    %p145 = por %p143, %p144
    %p146 = scmp.ne.s32.totalorder %s137, %s138
    %p147 = scmp.eq.s32.totalorder %s17, 0
    %p148 = por %p146, %p147
    %p149 = scmp.ne.s32.totalorder %s137, %s138
    %p150 = scmp.eq.s32.totalorder %s18, 1
    %p151 = por %p149, %p150
    %p153 = scmp.ne.s32.totalorder %s138, %s152
    %p154 = scmp.eq.s32.totalorder %s18, 0
    %p155 = por %p153, %p154
    %s156 = ssub.s32 %s12, %s19
    %p157 = scmp.eq.s32.totalorder %s156, 0
    %s159 = sadd.s32 %s158, 1
    %s160 = scalar_select %p157, %s158, %s159
    %p163 = pneg %p157
    %p164 = scmp.eq.s32.totalorder %s12, 1
    %p165 = por %p163, %p164
    %p166 = scmp.ne.s32.totalorder %s158, %s161
    %p167 = scmp.eq.s32.totalorder %s12, 0
    %p168 = por %p166, %p167
    %p169 = scmp.ne.s32.totalorder %s158, %s161
    %p170 = scmp.eq.s32.totalorder %s17, 1
    %p171 = por %p169, %p170
    %p172 = scmp.ne.s32.totalorder %s161, %s162
    %p173 = scmp.eq.s32.totalorder %s17, 0
    %p174 = por %p172, %p173
    %p175 = scmp.ne.s32.totalorder %s161, %s162
    %p176 = scmp.eq.s32.totalorder %s18, 1
    %p177 = por %p175, %p176
    %p179 = scmp.ne.s32.totalorder %s162, %s178
    %p180 = scmp.eq.s32.totalorder %s18, 0
    %p181 = por %p179, %p180
    %p182 = scmp.le.s32.totalorder 1, %s12
    %p183 = scmp.lt.s32.totalorder %s12, 3
    %p184 = pnand %p182, %p183
    %p185 = pneg %p184
    // Predicated region
    $region9: #{dense_block_forward.6} parent=5 // pred_check
      _
    $region10: #{dense_block_forward.6} parent=5 // pred_check_branch
      %187 = sbr.rel (%p184) target = $region12
    $region11: #{dense_block_forward.6} parent=5 // pred_region
      %s188 = ssub.s32 %s12, 1
      // Predicated region
      $region13: #{dense_block_forward.6} parent=11 // pred_check
        %p189 = pneg %p85
      $region14: #{dense_block_forward.6} parent=11 // pred_check_branch
        %191 = sbr.rel (%p189) target = $region16
      $region15: #{dense_block_forward.6} parent=11 // pred_region
        _
      $region16: #{dense_block_forward.6} parent=11 // pred_fallthru
        _
      // Predicated region
      $region17: #{dense_block_forward.6} parent=11 // pred_check
        %p192 = pneg %p106
      $region18: #{dense_block_forward.6} parent=11 // pred_check_branch
        %194 = sbr.rel (%p192) target = $region20
      $region19: #{dense_block_forward.6} parent=11 // pred_region
        _
      $region20: #{dense_block_forward.6} parent=11 // pred_fallthru
        _
      // Predicated region
      $region21: #{dense_block_forward.6} parent=11 // pred_check
        %p195 = pneg %p127
      $region22: #{dense_block_forward.6} parent=11 // pred_check_branch
        %197 = sbr.rel (%p195) target = $region24
      $region23: #{dense_block_forward.6} parent=11 // pred_region
        _
      $region24: #{dense_block_forward.6} parent=11 // pred_fallthru
        _
      // Predicated region
      $region25: #{dense_block_forward.6} parent=11 // pred_check
        %p198 = pneg %p148
      $region26: #{dense_block_forward.6} parent=11 // pred_check_branch
        %200 = sbr.rel (%p198) target = $region28
      $region27: #{dense_block_forward.6} parent=11 // pred_region
        _
      $region28: #{dense_block_forward.6} parent=11 // pred_fallthru
        _
    $region12: #{dense_block_forward.6} parent=5 // pred_fallthru
      _
    %p201 = scmp.lt.s32.totalorder %s12, 2
    // Predicated region
    $region29: #{dense_block_forward.6} parent=5 // pred_check
      %p202 = pneg %p201
    $region30: #{dense_block_forward.6} parent=5 // pred_check_branch
      %204 = sbr.rel (%p202) target = $region32
    $region31: #{dense_block_forward.6} parent=5 // pred_region
      // Predicated region
      $region33: #{dense_block_forward.6} parent=31 // pred_check
        %p205 = pneg %p32
      $region34: #{dense_block_forward.6} parent=31 // pred_check_branch
        %207 = sbr.rel (%p205) target = $region36
      $region35: #{dense_block_forward.6} parent=31 // pred_region
        %s208 = smul.u32 32, %s12
        %p209 = scmp.lt.s32.totalorder %s208, 63
        %s210 = scalar_select %p209, %s208, 63
        %s211 = smul.addr %s210, 8
        %s212 = scalar_lea.vmem %s0, %s211
        %s213 = smul.u32 32, %s12
      $region36: #{dense_block_forward.6} parent=31 // pred_fallthru
        _
      // Predicated region
      $region37: #{dense_block_forward.6} parent=31 // pred_check
        %p214 = pneg %p58
      $region38: #{dense_block_forward.6} parent=31 // pred_check_branch
        %216 = sbr.rel (%p214) target = $region40
      $region39: #{dense_block_forward.6} parent=31 // pred_region
        %s217 = smul.u32 32, %s12
        %p218 = scmp.lt.s32.totalorder %s217, 63
        %s219 = scalar_select %p218, %s217, 63
        %s220 = smul.addr %s219, 8
        %s221 = scalar_lea.vmem %s1, %s220
        %s222 = smul.u32 32, %s12
      $region40: #{dense_block_forward.6} parent=31 // pred_fallthru
        _
    $region32: #{dense_block_forward.6} parent=5 // pred_fallthru
      _
    %p223 = scmp.le.s32.totalorder 1, %s12
    %p224 = scmp.lt.s32.totalorder %s12, 3
    %p225 = pnand %p223, %p224
    %p226 = pneg %p225
    // Predicated region
    $region41: #{dense_block_forward.6} parent=5 // pred_check
      _
    $region42: #{dense_block_forward.6} parent=5 // pred_check_branch
      %228 = sbr.rel (%p225) target = $region44
    $region43: #{dense_block_forward.6} parent=5 // pred_region
      %s229 = ssub.s32 %s12, 1
      %s230 = smul.u32 32, %s17
      %p231 = scmp.lt.s32.totalorder %s230, 63
      %s232 = scalar_select %p231, %s230, 63
      %s233 = smul.addr %s232, 8
      %s234 = scalar_lea.vmem %s0, %s233
      %p235 = pneg %p38
      %p236 = pneg %p35
      %s237 = smul.u32 32, %s17
      %p238 = scmp.lt.s32.totalorder %s237, 63
      %s239 = scalar_select %p238, %s237, 63
      %s240 = smul.addr %s239, 8
      %s241 = scalar_lea.vmem %s1, %s240
      %p242 = pneg %p64
      %p243 = pneg %p61
      %p244 = pneg %p85
      %p245 = pneg %p82
      %p246 = pneg %p106
      %p247 = pneg %p103
      %p248 = pneg %p127
      %p249 = pneg %p124
      %p250 = pneg %p148
      %p251 = pneg %p145
      %p252 = pneg %p174
      %p253 = pneg %p171
      %s254 = smul.u32 32, %s17
      %p255 = scmp.lt.s32.totalorder %s254, 63
      %s256 = scalar_select %p255, %s254, 63
      %s257 = smul.addr %s256, 8
      %s258 = scalar_lea.vmem %s6, %s257
      %s259 = smul.u32 32, %s17
      %p260 = scmp.lt.s32.totalorder %s259, 63
      %s261 = scalar_select %p260, %s259, 63
      %s262 = smul.addr %s261, 8
      %s263 = scalar_lea.vmem %s0, %s262
      %s264 = smul.u32 32, %s17
      %s265 = smul.u32 32, %s17
      %p266 = scmp.lt.s32.totalorder %s265, 63
      %s267 = scalar_select %p266, %s265, 63
      %s268 = smul.addr %s267, 8
      %s269 = scalar_lea.vmem %s1, %s268
      %s270 = smul.u32 32, %s17
      %s271 = smul.u32 32, %s17
      %p272 = scmp.lt.s32.totalorder %s271, 63
      %s273 = scalar_select %p272, %s271, 63
      %s274 = smul.addr %s273, 8
      %s275 = scalar_lea.vmem %s6, %s274
      %s276 = smul.u32 32, %s17
      %v278 = vld [vmem:[%s263] sm:$0xff]
      %v279 = vld [vmem:[%s263 + $0x8] sm:$0xff]
      %v280 = vld [vmem:[%s263 + $0x10] sm:$0xff]
      %v281 = vld [vmem:[%s263 + $0x18] sm:$0xff]
      %v282 = vld [vmem:[%s263 + $0x20] sm:$0xff]
      %v283 = vld [vmem:[%s263 + $0x28] sm:$0xff]
      %v284 = vld [vmem:[%s263 + $0x30] sm:$0xff]
      %v285 = vld [vmem:[%s263 + $0x38] sm:$0xff]
      %v286 = vld [vmem:[%s263 + $0x40] sm:$0xff]
      %v287 = vld [vmem:[%s263 + $0x48] sm:$0xff]
      %v288 = vld [vmem:[%s263 + $0x50] sm:$0xff]
      %v289 = vld [vmem:[%s263 + $0x58] sm:$0xff]
      %v290 = vld [vmem:[%s263 + $0x60] sm:$0xff]
      %v291 = vld [vmem:[%s263 + $0x68] sm:$0xff]
      %v292 = vld [vmem:[%s263 + $0x70] sm:$0xff]
      %v293 = vld [vmem:[%s263 + $0x78] sm:$0xff]
      %v294 = vld [vmem:[%s263 + $0x80] sm:$0xff]
      %v295 = vld [vmem:[%s263 + $0x88] sm:$0xff]
      %v296 = vld [vmem:[%s263 + $0x90] sm:$0xff]
      %v297 = vld [vmem:[%s263 + $0x98] sm:$0xff]
      %v298 = vld [vmem:[%s263 + $0xa0] sm:$0xff]
      %v299 = vld [vmem:[%s263 + $0xa8] sm:$0xff]
      %v300 = vld [vmem:[%s263 + $0xb0] sm:$0xff]
      %v301 = vld [vmem:[%s263 + $0xb8] sm:$0xff]
      %v302 = vld [vmem:[%s263 + $0xc0] sm:$0xff]
      %v303 = vld [vmem:[%s263 + $0xc8] sm:$0xff]
      %v304 = vld [vmem:[%s263 + $0xd0] sm:$0xff]
      %v305 = vld [vmem:[%s263 + $0xd8] sm:$0xff]
      %v306 = vld [vmem:[%s263 + $0xe0] sm:$0xff]
      %v307 = vld [vmem:[%s263 + $0xe8] sm:$0xff]
      %v308 = vld [vmem:[%s263 + $0xf0] sm:$0xff]
      %v309 = vld [vmem:[%s263 + $0xf8] sm:$0xff]
      %v310 = vld [vmem:[%s2] sm:$0x1]
      %v312 = vlaneseq
      %v313 = vshrl.u32 %v312, 7
      %v314 = vsub.s32 0, %v313
      %v315 = vrot.slane %v310, %v314
      %v317 = vmul.f32 %v278, %v315
      %v318 = vmul.f32 %v279, %v315
      %v319 = vmul.f32 %v280, %v315
      %v320 = vmul.f32 %v281, %v315
      %v321 = vmul.f32 %v282, %v315
      %v322 = vmul.f32 %v283, %v315
      %v323 = vmul.f32 %v284, %v315
      %v324 = vmul.f32 %v285, %v315
      %v325 = vmul.f32 %v286, %v315
      %v326 = vmul.f32 %v287, %v315
      %v327 = vmul.f32 %v288, %v315
      %v328 = vmul.f32 %v289, %v315
      %v329 = vmul.f32 %v290, %v315
      %v330 = vmul.f32 %v291, %v315
      %v331 = vmul.f32 %v292, %v315
      %v332 = vmul.f32 %v293, %v315
      %v333 = vmul.f32 %v294, %v315
      %v334 = vmul.f32 %v295, %v315
      %v335 = vmul.f32 %v296, %v315
      %v336 = vmul.f32 %v297, %v315
      %v337 = vmul.f32 %v298, %v315
      %v338 = vmul.f32 %v299, %v315
      %v339 = vmul.f32 %v300, %v315
      %v340 = vmul.f32 %v301, %v315
      %v341 = vmul.f32 %v302, %v315
      %v342 = vmul.f32 %v303, %v315
      %v343 = vmul.f32 %v304, %v315
      %v344 = vmul.f32 %v305, %v315
      %v345 = vmul.f32 %v306, %v315
      %v346 = vmul.f32 %v307, %v315
      %v347 = vmul.f32 %v308, %v315
      %v348 = vmul.f32 %v309, %v315
      %v349 = vld [vmem:[%s3] sm:$0x1]
      %v351 = vlaneseq
      %v352 = vshrl.u32 %v351, 7
      %v353 = vsub.s32 0, %v352
      %v354 = vrot.slane %v349, %v353
      %v356 = vadd.f32 %v317, %v354
      %v357 = vadd.f32 %v318, %v354
      %v358 = vadd.f32 %v319, %v354
      %v359 = vadd.f32 %v320, %v354
      %v360 = vadd.f32 %v321, %v354
      %v361 = vadd.f32 %v322, %v354
      %v362 = vadd.f32 %v323, %v354
      %v363 = vadd.f32 %v324, %v354
      %v364 = vadd.f32 %v325, %v354
      %v365 = vadd.f32 %v326, %v354
      %v366 = vadd.f32 %v327, %v354
      %v367 = vadd.f32 %v328, %v354
      %v368 = vadd.f32 %v329, %v354
      %v369 = vadd.f32 %v330, %v354
      %v370 = vadd.f32 %v331, %v354
      %v371 = vadd.f32 %v332, %v354
      %v372 = vadd.f32 %v333, %v354
      %v373 = vadd.f32 %v334, %v354
      %v374 = vadd.f32 %v335, %v354
      %v375 = vadd.f32 %v336, %v354
      %v376 = vadd.f32 %v337, %v354
      %v377 = vadd.f32 %v338, %v354
      %v378 = vadd.f32 %v339, %v354
      %v379 = vadd.f32 %v340, %v354
      %v380 = vadd.f32 %v341, %v354
      %v381 = vadd.f32 %v342, %v354
      %v382 = vadd.f32 %v343, %v354
      %v383 = vadd.f32 %v344, %v354
      %v384 = vadd.f32 %v345, %v354
      %v385 = vadd.f32 %v346, %v354
      %v386 = vadd.f32 %v347, %v354
      %v387 = vadd.f32 %v348, %v354
      %v388 = vmax.f32 %v356, 0.0
      %v389 = vmax.f32 %v357, 0.0
      %v390 = vmax.f32 %v358, 0.0
      %v391 = vmax.f32 %v359, 0.0
      %v392 = vmax.f32 %v360, 0.0
      %v393 = vmax.f32 %v361, 0.0
      %v394 = vmax.f32 %v362, 0.0
      %v395 = vmax.f32 %v363, 0.0
      %v396 = vmax.f32 %v364, 0.0
      %v397 = vmax.f32 %v365, 0.0
      %v398 = vmax.f32 %v366, 0.0
      %v399 = vmax.f32 %v367, 0.0
      %v400 = vmax.f32 %v368, 0.0
      %v401 = vmax.f32 %v369, 0.0
      %v402 = vmax.f32 %v370, 0.0
      %v403 = vmax.f32 %v371, 0.0
      %v404 = vmax.f32 %v372, 0.0
      %v405 = vmax.f32 %v373, 0.0
      %v406 = vmax.f32 %v374, 0.0
      %v407 = vmax.f32 %v375, 0.0
      %v408 = vmax.f32 %v376, 0.0
      %v409 = vmax.f32 %v377, 0.0
      %v410 = vmax.f32 %v378, 0.0
      %v411 = vmax.f32 %v379, 0.0
      %v412 = vmax.f32 %v380, 0.0
      %v413 = vmax.f32 %v381, 0.0
      %v414 = vmax.f32 %v382, 0.0
      %v415 = vmax.f32 %v383, 0.0
      %v416 = vmax.f32 %v384, 0.0
      %v417 = vmax.f32 %v385, 0.0
      %v418 = vmax.f32 %v386, 0.0
      %v419 = vmax.f32 %v387, 0.0
      %v420 = vpack.c.bf16 %v389, %v388
      %v421 = vpack.c.bf16 %v391, %v390
      %v422 = vpack.c.bf16 %v393, %v392
      %v423 = vpack.c.bf16 %v395, %v394
      %v424 = vpack.c.bf16 %v397, %v396
      %v425 = vpack.c.bf16 %v399, %v398
      %v426 = vpack.c.bf16 %v401, %v400
      %v427 = vpack.c.bf16 %v403, %v402
      %v428 = vpack.c.bf16 %v405, %v404
      %v429 = vpack.c.bf16 %v407, %v406
      %v430 = vpack.c.bf16 %v409, %v408
      %v431 = vpack.c.bf16 %v411, %v410
      %v432 = vpack.c.bf16 %v413, %v412
      %v433 = vpack.c.bf16 %v415, %v414
      %v434 = vpack.c.bf16 %v417, %v416
      %v435 = vpack.c.bf16 %v419, %v418
      %v436 = vld [vmem:[%s4] sm:$0xf]
      %v437 = vld [vmem:[%s4 + $0x4] sm:$0xf]
      %v438 = vld [vmem:[%s4 + $0x8] sm:$0xf]
      %v439 = vld [vmem:[%s4 + $0xc] sm:$0xf]
      %v440 = vld [vmem:[%s4 + $0x10] sm:$0xf]
      %v441 = vld [vmem:[%s4 + $0x14] sm:$0xf]
      %v442 = vld [vmem:[%s4 + $0x18] sm:$0xf]
      %v443 = vld [vmem:[%s4 + $0x1c] sm:$0xf]
      %v444 = vld [vmem:[%s4 + $0x20] sm:$0xf]
      %v445 = vld [vmem:[%s4 + $0x24] sm:$0xf]
      %v446 = vld [vmem:[%s4 + $0x28] sm:$0xf]
      %v447 = vld [vmem:[%s4 + $0x2c] sm:$0xf]
      %v448 = vld [vmem:[%s4 + $0x30] sm:$0xf]
      %v449 = vld [vmem:[%s4 + $0x34] sm:$0xf]
      %v450 = vld [vmem:[%s4 + $0x38] sm:$0xf]
      %v451 = vld [vmem:[%s4 + $0x3c] sm:$0xf]
      %v452 = vld [vmem:[%s269] sm:$0xff]
      %v453 = vld [vmem:[%s269 + $0x8] sm:$0xff]
      %v454 = vld [vmem:[%s269 + $0x10] sm:$0xff]
      %v455 = vld [vmem:[%s269 + $0x18] sm:$0xff]
      %v456 = vld [vmem:[%s269 + $0x20] sm:$0xff]
      %v457 = vld [vmem:[%s269 + $0x28] sm:$0xff]
      %v458 = vld [vmem:[%s269 + $0x30] sm:$0xff]
      %v459 = vld [vmem:[%s269 + $0x38] sm:$0xff]
      %v460 = vld [vmem:[%s269 + $0x40] sm:$0xff]
      %v461 = vld [vmem:[%s269 + $0x48] sm:$0xff]
      %v462 = vld [vmem:[%s269 + $0x50] sm:$0xff]
      %v463 = vld [vmem:[%s269 + $0x58] sm:$0xff]
      %v464 = vld [vmem:[%s269 + $0x60] sm:$0xff]
      %v465 = vld [vmem:[%s269 + $0x68] sm:$0xff]
      %v466 = vld [vmem:[%s269 + $0x70] sm:$0xff]
      %v467 = vld [vmem:[%s269 + $0x78] sm:$0xff]
      %v468 = vld [vmem:[%s269 + $0x80] sm:$0xff]
      %v469 = vld [vmem:[%s269 + $0x88] sm:$0xff]
      %v470 = vld [vmem:[%s269 + $0x90] sm:$0xff]
      %v471 = vld [vmem:[%s269 + $0x98] sm:$0xff]
      %v472 = vld [vmem:[%s269 + $0xa0] sm:$0xff]
      %v473 = vld [vmem:[%s269 + $0xa8] sm:$0xff]
      %v474 = vld [vmem:[%s269 + $0xb0] sm:$0xff]
      %v475 = vld [vmem:[%s269 + $0xb8] sm:$0xff]
      %v476 = vld [vmem:[%s269 + $0xc0] sm:$0xff]
      %v477 = vld [vmem:[%s269 + $0xc8] sm:$0xff]
      %v478 = vld [vmem:[%s269 + $0xd0] sm:$0xff]
      %v479 = vld [vmem:[%s269 + $0xd8] sm:$0xff]
      %v480 = vld [vmem:[%s269 + $0xe0] sm:$0xff]
      %v481 = vld [vmem:[%s269 + $0xe8] sm:$0xff]
      %v482 = vld [vmem:[%s269 + $0xf0] sm:$0xff]
      %v483 = vld [vmem:[%s269 + $0xf8] sm:$0xff]
      %v484 = vld [vmem:[%s2 + $0x1] sm:$0x1]
      %v486 = vlaneseq
      %v487 = vshrl.u32 %v486, 7
      %v488 = vsub.s32 0, %v487
      %v489 = vrot.slane %v484, %v488
      %v491 = vmul.f32 %v452, %v489
      %v492 = vmul.f32 %v453, %v489
      %v493 = vmul.f32 %v454, %v489
      %v494 = vmul.f32 %v455, %v489
      %v495 = vmul.f32 %v456, %v489
      %v496 = vmul.f32 %v457, %v489
      %v497 = vmul.f32 %v458, %v489
      %v498 = vmul.f32 %v459, %v489
      %v499 = vmul.f32 %v460, %v489
      %v500 = vmul.f32 %v461, %v489
      %v501 = vmul.f32 %v462, %v489
      %v502 = vmul.f32 %v463, %v489
      %v503 = vmul.f32 %v464, %v489
      %v504 = vmul.f32 %v465, %v489
      %v505 = vmul.f32 %v466, %v489
      %v506 = vmul.f32 %v467, %v489
      %v507 = vmul.f32 %v468, %v489
      %v508 = vmul.f32 %v469, %v489
      %v509 = vmul.f32 %v470, %v489
      %v510 = vmul.f32 %v471, %v489
      %v511 = vmul.f32 %v472, %v489
      %v512 = vmul.f32 %v473, %v489
      %v513 = vmul.f32 %v474, %v489
      %v514 = vmul.f32 %v475, %v489
      %v515 = vmul.f32 %v476, %v489
      %v516 = vmul.f32 %v477, %v489
      %v517 = vmul.f32 %v478, %v489
      %v518 = vmul.f32 %v479, %v489
      %v519 = vmul.f32 %v480, %v489
      %v520 = vmul.f32 %v481, %v489
      %v521 = vmul.f32 %v482, %v489
      %v522 = vmul.f32 %v483, %v489
      %v523 = vld [vmem:[%s3 + $0x1] sm:$0x1]
      %v525 = vlaneseq
      %v526 = vshrl.u32 %v525, 7
      %v527 = vsub.s32 0, %v526
      %v528 = vrot.slane %v523, %v527
      %v530 = vadd.f32 %v491, %v528
      %v531 = vadd.f32 %v492, %v528
      %v532 = vadd.f32 %v493, %v528
      %v533 = vadd.f32 %v494, %v528
      %v534 = vadd.f32 %v495, %v528
      %v535 = vadd.f32 %v496, %v528
      %v536 = vadd.f32 %v497, %v528
      %v537 = vadd.f32 %v498, %v528
      %v538 = vadd.f32 %v499, %v528
      %v539 = vadd.f32 %v500, %v528
      %v540 = vadd.f32 %v501, %v528
      %v541 = vadd.f32 %v502, %v528
      %v542 = vadd.f32 %v503, %v528
      %v543 = vadd.f32 %v504, %v528
      %v544 = vadd.f32 %v505, %v528
      %v545 = vadd.f32 %v506, %v528
      %v546 = vadd.f32 %v507, %v528
      %v547 = vadd.f32 %v508, %v528
      %v548 = vadd.f32 %v509, %v528
      %v549 = vadd.f32 %v510, %v528
      %v550 = vadd.f32 %v511, %v528
      %v551 = vadd.f32 %v512, %v528
      %v552 = vadd.f32 %v513, %v528
      %v553 = vadd.f32 %v514, %v528
      %v554 = vadd.f32 %v515, %v528
      %v555 = vadd.f32 %v516, %v528
      %v556 = vadd.f32 %v517, %v528
      %v557 = vadd.f32 %v518, %v528
      %v558 = vadd.f32 %v519, %v528
      %v559 = vadd.f32 %v520, %v528
      %v560 = vadd.f32 %v521, %v528
      %v561 = vadd.f32 %v522, %v528
      %v562 = vmax.f32 %v530, 0.0
      %v563 = vmax.f32 %v531, 0.0
      %v564 = vmax.f32 %v532, 0.0
      %v565 = vmax.f32 %v533, 0.0
      %v566 = vmax.f32 %v534, 0.0
      %v567 = vmax.f32 %v535, 0.0
      %v568 = vmax.f32 %v536, 0.0
      %v569 = vmax.f32 %v537, 0.0
      %v570 = vmax.f32 %v538, 0.0
      %v571 = vmax.f32 %v539, 0.0
      %v572 = vmax.f32 %v540, 0.0
      %v573 = vmax.f32 %v541, 0.0
      %v574 = vmax.f32 %v542, 0.0
      %v575 = vmax.f32 %v543, 0.0
      %v576 = vmax.f32 %v544, 0.0
      %v577 = vmax.f32 %v545, 0.0
      %v578 = vmax.f32 %v546, 0.0
      %v579 = vmax.f32 %v547, 0.0
      %v580 = vmax.f32 %v548, 0.0
      %v581 = vmax.f32 %v549, 0.0
      %v582 = vmax.f32 %v550, 0.0
      %v583 = vmax.f32 %v551, 0.0
      %v584 = vmax.f32 %v552, 0.0
      %v585 = vmax.f32 %v553, 0.0
      %v586 = vmax.f32 %v554, 0.0
      %v587 = vmax.f32 %v555, 0.0
      %v588 = vmax.f32 %v556, 0.0
      %v589 = vmax.f32 %v557, 0.0
      %v590 = vmax.f32 %v558, 0.0
      %v591 = vmax.f32 %v559, 0.0
      %v592 = vmax.f32 %v560, 0.0
      %v593 = vmax.f32 %v561, 0.0
      %v594 = vpack.c.bf16 %v563, %v562
      %v595 = vpack.c.bf16 %v565, %v564
      %v596 = vpack.c.bf16 %v567, %v566
      %v597 = vpack.c.bf16 %v569, %v568
      %v598 = vpack.c.bf16 %v571, %v570
      %v599 = vpack.c.bf16 %v573, %v572
      %v600 = vpack.c.bf16 %v575, %v574
      %v601 = vpack.c.bf16 %v577, %v576
      %v602 = vpack.c.bf16 %v579, %v578
      %v603 = vpack.c.bf16 %v581, %v580
      %v604 = vpack.c.bf16 %v583, %v582
      %v605 = vpack.c.bf16 %v585, %v584
      %v606 = vpack.c.bf16 %v587, %v586
      %v607 = vpack.c.bf16 %v589, %v588
      %v608 = vpack.c.bf16 %v591, %v590
      %v609 = vpack.c.bf16 %v593, %v592
      %v610 = vld [vmem:[%s4 + $0x40] sm:$0xf]
      %v611 = vld [vmem:[%s4 + $0x44] sm:$0xf]
      %v612 = vld [vmem:[%s4 + $0x48] sm:$0xf]
      %v613 = vld [vmem:[%s4 + $0x4c] sm:$0xf]
      %v614 = vld [vmem:[%s4 + $0x50] sm:$0xf]
      %v615 = vld [vmem:[%s4 + $0x54] sm:$0xf]
      %v616 = vld [vmem:[%s4 + $0x58] sm:$0xf]
      %v617 = vld [vmem:[%s4 + $0x5c] sm:$0xf]
      %v618 = vld [vmem:[%s4 + $0x60] sm:$0xf]
      %v619 = vld [vmem:[%s4 + $0x64] sm:$0xf]
      %v620 = vld [vmem:[%s4 + $0x68] sm:$0xf]
      %v621 = vld [vmem:[%s4 + $0x6c] sm:$0xf]
      %v622 = vld [vmem:[%s4 + $0x70] sm:$0xf]
      %v623 = vld [vmem:[%s4 + $0x74] sm:$0xf]
      %v624 = vld [vmem:[%s4 + $0x78] sm:$0xf]
      %v625 = vld [vmem:[%s4 + $0x7c] sm:$0xf]
      %v642 = vunpack.c.l.b16 %v610
      %v643 = vunpack.c.l.b16 %v611
      %v644 = vunpack.c.l.b16 %v612
      %v645 = vunpack.c.l.b16 %v613
      %v646 = vunpack.c.l.b16 %v614
      %v647 = vunpack.c.l.b16 %v615
      %v648 = vunpack.c.l.b16 %v616
      %v649 = vunpack.c.l.b16 %v617
      %v650 = vunpack.c.l.b16 %v618
      %v651 = vunpack.c.l.b16 %v619
      %v652 = vunpack.c.l.b16 %v620
      %v653 = vunpack.c.l.b16 %v621
      %v654 = vunpack.c.l.b16 %v622
      %v655 = vunpack.c.l.b16 %v623
      %v656 = vunpack.c.l.b16 %v624
      %v657 = vunpack.c.l.b16 %v625
      %v658 = vpack.c.b16 %v643, %v642
      %v659 = vpack.c.b16 %v645, %v644
      %v660 = vpack.c.b16 %v647, %v646
      %v661 = vpack.c.b16 %v649, %v648
      %v662 = vpack.c.b16 %v651, %v650
      %v663 = vpack.c.b16 %v653, %v652
      %v664 = vpack.c.b16 %v655, %v654
      %v665 = vpack.c.b16 %v657, %v656
      %674 = vmatprep.subr.bf16.mxu0 0
      %675 = vmatpush1.bf16.msra.mxu0 %v658
      %676 = vmatprep.subr.bf16.mxu0 0
      %677 = vmatpush1.bf16.msra.mxu0 %v659
      %678 = vmatprep.subr.bf16.mxu0 0
      %679 = vmatpush1.bf16.msra.mxu0 %v660
      %680 = vmatprep.subr.bf16.mxu0 0
      %681 = vmatpush1.bf16.msra.mxu0 %v661
      %682 = vmatprep.subr.bf16.mxu0 0
      %683 = vmatpush1.bf16.msra.mxu0 %v662
      %684 = vmatprep.subr.bf16.mxu0 0
      %685 = vmatpush1.bf16.msra.mxu0 %v663
      %686 = vmatprep.subr.bf16.mxu0 0
      %687 = vmatpush1.bf16.msra.mxu0 %v664
      %688 = vmatprep.subr.bf16.mxu0 0
      %689 = vmatpush1.bf16.msra.mxu0 %v665
      %690 = vmatprep.subr.bf16.mxu0 0
      %691 = vmatpush1.bf16.msra.mxu0 0
      %692 = vmatprep.subr.bf16.mxu0 0
      %693 = vmatpush1.bf16.msra.mxu0 0
      %694 = vmatprep.subr.bf16.mxu0 0
      %695 = vmatpush1.bf16.msra.mxu0 0
      %696 = vmatprep.subr.bf16.mxu0 0
      %697 = vmatpush1.bf16.msra.mxu0 0
      %698 = vmatprep.subr.bf16.mxu0 0
      %699 = vmatpush1.bf16.msra.mxu0 0
      %700 = vmatprep.subr.bf16.mxu0 0
      %701 = vmatpush1.bf16.msra.mxu0 0
      %702 = vmatprep.subr.bf16.mxu0 0
      %703 = vmatpush1.bf16.msra.mxu0 0
      %704 = vmatprep.subr.bf16.mxu0 0
      %705 = vmatpush1.bf16.msra.mxu0 0
      %706 = vmatprep.mubr.bf16.mxu0 0
      %707 = vmatmul.mubr.bf16.gmra.mrb[0].mxu0 %v594
      %v708 = vpop.f32.mrb[0].mxu0
      %v709 = vadd.f32 0.0, %v708
      %v710 = vpop.f32.mrb[0].mxu0
      %v711 = vpop.f32.mrb[0].mxu0
      %v712 = vadd.f32 0.0, %v711
      %v713 = vpop.f32.mrb[0].mxu0
      %714 = vmatprep.mubr.bf16.mxu0 0
      %715 = vmatmul.mubr.bf16.gmra.mrb[0].mxu0 %v595
      %v716 = vpop.f32.mrb[0].mxu0
      %v717 = vadd.f32 0.0, %v716
      %v718 = vpop.f32.mrb[0].mxu0
      %v719 = vpop.f32.mrb[0].mxu0
      %v720 = vadd.f32 0.0, %v719
      %v721 = vpop.f32.mrb[0].mxu0
      %722 = vmatprep.mubr.bf16.mxu0 0
      %723 = vmatmul.mubr.bf16.gmra.mrb[0].mxu0 %v596
      %v724 = vpop.f32.mrb[0].mxu0
      %v725 = vadd.f32 0.0, %v724
      %v726 = vpop.f32.mrb[0].mxu0
      %v727 = vpop.f32.mrb[0].mxu0
      %v728 = vadd.f32 0.0, %v727
      %v729 = vpop.f32.mrb[0].mxu0
      %730 = vmatprep.mubr.bf16.mxu0 0
      %731 = vmatmul.mubr.bf16.gmra.mrb[0].mxu0 %v597
      %v732 = vpop.f32.mrb[0].mxu0
      %v733 = vadd.f32 0.0, %v732
      %v734 = vpop.f32.mrb[0].mxu0
      %v735 = vpop.f32.mrb[0].mxu0
      %v736 = vadd.f32 0.0, %v735
      %v737 = vpop.f32.mrb[0].mxu0
      %738 = vmatprep.mubr.bf16.mxu0 0
      %739 = vmatmul.mubr.bf16.gmra.mrb[0].mxu0 %v598
      %v740 = vpop.f32.mrb[0].mxu0
      %v741 = vadd.f32 0.0, %v740
      %v742 = vpop.f32.mrb[0].mxu0
      %v743 = vpop.f32.mrb[0].mxu0
      %v744 = vadd.f32 0.0, %v743
      %v745 = vpop.f32.mrb[0].mxu0
      %746 = vmatprep.mubr.bf16.mxu0 0
      %747 = vmatmul.mubr.bf16.gmra.mrb[0].mxu0 %v599
      %v748 = vpop.f32.mrb[0].mxu0
      %v749 = vadd.f32 0.0, %v748
      %v750 = vpop.f32.mrb[0].mxu0
      %v751 = vpop.f32.mrb[0].mxu0
      %v752 = vadd.f32 0.0, %v751
      %v753 = vpop.f32.mrb[0].mxu0
      %754 = vmatprep.mubr.bf16.mxu0 0
      %755 = vmatmul.mubr.bf16.gmra.mrb[0].mxu0 %v600
      %v756 = vpop.f32.mrb[0].mxu0
      %v757 = vadd.f32 0.0, %v756
      %v758 = vpop.f32.mrb[0].mxu0
      %v759 = vpop.f32.mrb[0].mxu0
      %v760 = vadd.f32 0.0, %v759
      %v761 = vpop.f32.mrb[0].mxu0
      %762 = vmatprep.mubr.bf16.mxu0 0
      %763 = vmatmul.mubr.bf16.gmra.mrb[0].mxu0 %v601
      %v764 = vpop.f32.mrb[0].mxu0
      %v765 = vadd.f32 0.0, %v764
      %v766 = vpop.f32.mrb[0].mxu0
      %v767 = vpop.f32.mrb[0].mxu0
      %v768 = vadd.f32 0.0, %v767
      %v769 = vpop.f32.mrb[0].mxu0
      %770 = vmatprep.mubr.bf16.mxu0 0
      %771 = vmatmul.mubr.bf16.gmra.mrb[0].mxu0 %v602
      %v772 = vpop.f32.mrb[0].mxu0
      %v773 = vadd.f32 0.0, %v772
      %v774 = vpop.f32.mrb[0].mxu0
      %v775 = vpop.f32.mrb[0].mxu0
      %v776 = vadd.f32 0.0, %v775
      %v777 = vpop.f32.mrb[0].mxu0
      %778 = vmatprep.mubr.bf16.mxu0 0
      %779 = vmatmul.mubr.bf16.gmra.mrb[0].mxu0 %v603
      %v780 = vpop.f32.mrb[0].mxu0
      %v781 = vadd.f32 0.0, %v780
      %v782 = vpop.f32.mrb[0].mxu0
      %v783 = vpop.f32.mrb[0].mxu0
      %v784 = vadd.f32 0.0, %v783
      %v785 = vpop.f32.mrb[0].mxu0
      %786 = vmatprep.mubr.bf16.mxu0 0
      %787 = vmatmul.mubr.bf16.gmra.mrb[0].mxu0 %v604
      %v788 = vpop.f32.mrb[0].mxu0
      %v789 = vadd.f32 0.0, %v788
      %v790 = vpop.f32.mrb[0].mxu0
      %v791 = vpop.f32.mrb[0].mxu0
      %v792 = vadd.f32 0.0, %v791
      %v793 = vpop.f32.mrb[0].mxu0
      %794 = vmatprep.mubr.bf16.mxu0 0
      %795 = vmatmul.mubr.bf16.gmra.mrb[0].mxu0 %v605
      %v796 = vpop.f32.mrb[0].mxu0
      %v797 = vadd.f32 0.0, %v796
      %v798 = vpop.f32.mrb[0].mxu0
      %v799 = vpop.f32.mrb[0].mxu0
      %v800 = vadd.f32 0.0, %v799
      %v801 = vpop.f32.mrb[0].mxu0
      %802 = vmatprep.mubr.bf16.mxu0 0
      %803 = vmatmul.mubr.bf16.gmra.mrb[0].mxu0 %v606
      %v804 = vpop.f32.mrb[0].mxu0
      %v805 = vadd.f32 0.0, %v804
      %v806 = vpop.f32.mrb[0].mxu0
      %v807 = vpop.f32.mrb[0].mxu0
      %v808 = vadd.f32 0.0, %v807
      %v809 = vpop.f32.mrb[0].mxu0
      %810 = vmatprep.mubr.bf16.mxu0 0
      %811 = vmatmul.mubr.bf16.gmra.mrb[0].mxu0 %v607
      %v812 = vpop.f32.mrb[0].mxu0
      %v813 = vadd.f32 0.0, %v812
      %v814 = vpop.f32.mrb[0].mxu0
      %v815 = vpop.f32.mrb[0].mxu0
      %v816 = vadd.f32 0.0, %v815
      %v817 = vpop.f32.mrb[0].mxu0
      %818 = vmatprep.mubr.bf16.mxu0 0
      %819 = vmatmul.mubr.bf16.gmra.mrb[0].mxu0 %v608
      %v820 = vpop.f32.mrb[0].mxu0
      %v821 = vadd.f32 0.0, %v820
      %v822 = vpop.f32.mrb[0].mxu0
      %v823 = vpop.f32.mrb[0].mxu0
      %v824 = vadd.f32 0.0, %v823
      %v825 = vpop.f32.mrb[0].mxu0
      %826 = vmatprep.mubr.bf16.mxu0 0
      %827 = vmatmul.mubr.bf16.gmra.mrb[0].mxu0 %v609
      %v828 = vpop.f32.mrb[0].mxu0
      %v829 = vadd.f32 0.0, %v828
      %v830 = vpop.f32.mrb[0].mxu0
      %v831 = vpop.f32.mrb[0].mxu0
      %v832 = vadd.f32 0.0, %v831
      %v833 = vpop.f32.mrb[0].mxu0
      %834 = vdwg.mxu0
      %v851 = vunpack.c.l.b16 %v436
      %v852 = vunpack.c.l.b16 %v437
      %v853 = vunpack.c.l.b16 %v438
      %v854 = vunpack.c.l.b16 %v439
      %v855 = vunpack.c.l.b16 %v440
      %v856 = vunpack.c.l.b16 %v441
      %v857 = vunpack.c.l.b16 %v442
      %v858 = vunpack.c.l.b16 %v443
      %v859 = vunpack.c.l.b16 %v444
      %v860 = vunpack.c.l.b16 %v445
      %v861 = vunpack.c.l.b16 %v446
      %v862 = vunpack.c.l.b16 %v447
      %v863 = vunpack.c.l.b16 %v448
      %v864 = vunpack.c.l.b16 %v449
      %v865 = vunpack.c.l.b16 %v450
      %v866 = vunpack.c.l.b16 %v451
      %v867 = vpack.c.b16 %v852, %v851
      %v868 = vpack.c.b16 %v854, %v853
      %v869 = vpack.c.b16 %v856, %v855
      %v870 = vpack.c.b16 %v858, %v857
      %v871 = vpack.c.b16 %v860, %v859
      %v872 = vpack.c.b16 %v862, %v861
      %v873 = vpack.c.b16 %v864, %v863
      %v874 = vpack.c.b16 %v866, %v865
      %883 = vmatprep.subr.bf16.mxu0 0
      %884 = vmatpush1.bf16.msra.mxu0 %v867
      %885 = vmatprep.subr.bf16.mxu0 0
      %886 = vmatpush1.bf16.msra.mxu0 %v868
      %887 = vmatprep.subr.bf16.mxu0 0
      %888 = vmatpush1.bf16.msra.mxu0 %v869
      %889 = vmatprep.subr.bf16.mxu0 0
      %890 = vmatpush1.bf16.msra.mxu0 %v870
      %891 = vmatprep.subr.bf16.mxu0 0
      %892 = vmatpush1.bf16.msra.mxu0 %v871
      %893 = vmatprep.subr.bf16.mxu0 0
      %894 = vmatpush1.bf16.msra.mxu0 %v872
      %895 = vmatprep.subr.bf16.mxu0 0
      %896 = vmatpush1.bf16.msra.mxu0 %v873
      %897 = vmatprep.subr.bf16.mxu0 0
      %898 = vmatpush1.bf16.msra.mxu0 %v874
      %899 = vmatprep.subr.bf16.mxu0 0
      %900 = vmatpush1.bf16.msra.mxu0 0
      %901 = vmatprep.subr.bf16.mxu0 0
      %902 = vmatpush1.bf16.msra.mxu0 0
      %903 = vmatprep.subr.bf16.mxu0 0
      %904 = vmatpush1.bf16.msra.mxu0 0
      %905 = vmatprep.subr.bf16.mxu0 0
      %906 = vmatpush1.bf16.msra.mxu0 0
      %907 = vmatprep.subr.bf16.mxu0 0
      %908 = vmatpush1.bf16.msra.mxu0 0
      %909 = vmatprep.subr.bf16.mxu0 0
      %910 = vmatpush1.bf16.msra.mxu0 0
      %911 = vmatprep.subr.bf16.mxu0 0
      %912 = vmatpush1.bf16.msra.mxu0 0
      %913 = vmatprep.subr.bf16.mxu0 0
      %914 = vmatpush1.bf16.msra.mxu0 0
      %915 = vmatprep.mubr.bf16.mxu0 0
      %916 = vmatmul.mubr.bf16.gmra.mrb[0].mxu0 %v420
      %v917 = vpop.f32.mrb[0].mxu0
      %v918 = vadd.f32 %v709, %v917
      %v919 = vpop.f32.mrb[0].mxu0
      %v920 = vpop.f32.mrb[0].mxu0
      %v921 = vadd.f32 %v712, %v920
      %v922 = vpop.f32.mrb[0].mxu0
      %923 = vmatprep.mubr.bf16.mxu0 0
      %924 = vmatmul.mubr.bf16.gmra.mrb[0].mxu0 %v421
      %v925 = vpop.f32.mrb[0].mxu0
      %v926 = vadd.f32 %v717, %v925
      %v927 = vpop.f32.mrb[0].mxu0
      %v928 = vpop.f32.mrb[0].mxu0
      %v929 = vadd.f32 %v720, %v928
      %v930 = vpop.f32.mrb[0].mxu0
      %931 = vmatprep.mubr.bf16.mxu0 0
      %932 = vmatmul.mubr.bf16.gmra.mrb[0].mxu0 %v422
      %v933 = vpop.f32.mrb[0].mxu0
      %v934 = vadd.f32 %v725, %v933
      %v935 = vpop.f32.mrb[0].mxu0
      %v936 = vpop.f32.mrb[0].mxu0
      %v937 = vadd.f32 %v728, %v936
      %v938 = vpop.f32.mrb[0].mxu0
      %939 = vmatprep.mubr.bf16.mxu0 0
      %940 = vmatmul.mubr.bf16.gmra.mrb[0].mxu0 %v423
      %v941 = vpop.f32.mrb[0].mxu0
      %v942 = vadd.f32 %v733, %v941
      %v943 = vpop.f32.mrb[0].mxu0
      %v944 = vpop.f32.mrb[0].mxu0
      %v945 = vadd.f32 %v736, %v944
      %v946 = vpop.f32.mrb[0].mxu0
      %947 = vmatprep.mubr.bf16.mxu0 0
      %948 = vmatmul.mubr.bf16.gmra.mrb[0].mxu0 %v424
      %v949 = vpop.f32.mrb[0].mxu0
      %v950 = vadd.f32 %v741, %v949
      %v951 = vpop.f32.mrb[0].mxu0
      %v952 = vpop.f32.mrb[0].mxu0
      %v953 = vadd.f32 %v744, %v952
      %v954 = vpop.f32.mrb[0].mxu0
      %955 = vmatprep.mubr.bf16.mxu0 0
      %956 = vmatmul.mubr.bf16.gmra.mrb[0].mxu0 %v425
      %v957 = vpop.f32.mrb[0].mxu0
      %v958 = vadd.f32 %v749, %v957
      %v959 = vpop.f32.mrb[0].mxu0
      %v960 = vpop.f32.mrb[0].mxu0
      %v961 = vadd.f32 %v752, %v960
      %v962 = vpop.f32.mrb[0].mxu0
      %963 = vmatprep.mubr.bf16.mxu0 0
      %964 = vmatmul.mubr.bf16.gmra.mrb[0].mxu0 %v426
      %v965 = vpop.f32.mrb[0].mxu0
      %v966 = vadd.f32 %v757, %v965
      %v967 = vpop.f32.mrb[0].mxu0
      %v968 = vpop.f32.mrb[0].mxu0
      %v969 = vadd.f32 %v760, %v968
      %v970 = vpop.f32.mrb[0].mxu0
      %971 = vmatprep.mubr.bf16.mxu0 0
      %972 = vmatmul.mubr.bf16.gmra.mrb[0].mxu0 %v427
      %v973 = vpop.f32.mrb[0].mxu0
      %v974 = vadd.f32 %v765, %v973
      %v975 = vpop.f32.mrb[0].mxu0
      %v976 = vpop.f32.mrb[0].mxu0
      %v977 = vadd.f32 %v768, %v976
      %v978 = vpop.f32.mrb[0].mxu0
      %979 = vmatprep.mubr.bf16.mxu0 0
      %980 = vmatmul.mubr.bf16.gmra.mrb[0].mxu0 %v428
      %v981 = vpop.f32.mrb[0].mxu0
      %v982 = vadd.f32 %v773, %v981
      %v983 = vpop.f32.mrb[0].mxu0
      %v984 = vpop.f32.mrb[0].mxu0
      %v985 = vadd.f32 %v776, %v984
      %v986 = vpop.f32.mrb[0].mxu0
      %987 = vmatprep.mubr.bf16.mxu0 0
      %988 = vmatmul.mubr.bf16.gmra.mrb[0].mxu0 %v429
      %v989 = vpop.f32.mrb[0].mxu0
      %v990 = vadd.f32 %v781, %v989
      %v991 = vpop.f32.mrb[0].mxu0
      %v992 = vpop.f32.mrb[0].mxu0
      %v993 = vadd.f32 %v784, %v992
      %v994 = vpop.f32.mrb[0].mxu0
      %995 = vmatprep.mubr.bf16.mxu0 0
      %996 = vmatmul.mubr.bf16.gmra.mrb[0].mxu0 %v430
      %v997 = vpop.f32.mrb[0].mxu0
      %v998 = vadd.f32 %v789, %v997
      %v999 = vpop.f32.mrb[0].mxu0
      %v1000 = vpop.f32.mrb[0].mxu0
      %v1001 = vadd.f32 %v792, %v1000
      %v1002 = vpop.f32.mrb[0].mxu0
      %1003 = vmatprep.mubr.bf16.mxu0 0
      %1004 = vmatmul.mubr.bf16.gmra.mrb[0].mxu0 %v431
      %v1005 = vpop.f32.mrb[0].mxu0
      %v1006 = vadd.f32 %v797, %v1005
      %v1007 = vpop.f32.mrb[0].mxu0
      %v1008 = vpop.f32.mrb[0].mxu0
      %v1009 = vadd.f32 %v800, %v1008
      %v1010 = vpop.f32.mrb[0].mxu0
      %1011 = vmatprep.mubr.bf16.mxu0 0
      %1012 = vmatmul.mubr.bf16.gmra.mrb[0].mxu0 %v432
      %v1013 = vpop.f32.mrb[0].mxu0
      %v1014 = vadd.f32 %v805, %v1013
      %v1015 = vpop.f32.mrb[0].mxu0
      %v1016 = vpop.f32.mrb[0].mxu0
      %v1017 = vadd.f32 %v808, %v1016
      %v1018 = vpop.f32.mrb[0].mxu0
      %1019 = vmatprep.mubr.bf16.mxu0 0
      %1020 = vmatmul.mubr.bf16.gmra.mrb[0].mxu0 %v433
      %v1021 = vpop.f32.mrb[0].mxu0
      %v1022 = vadd.f32 %v813, %v1021
      %v1023 = vpop.f32.mrb[0].mxu0
      %v1024 = vpop.f32.mrb[0].mxu0
      %v1025 = vadd.f32 %v816, %v1024
      %v1026 = vpop.f32.mrb[0].mxu0
      %1027 = vmatprep.mubr.bf16.mxu0 0
      %1028 = vmatmul.mubr.bf16.gmra.mrb[0].mxu0 %v434
      %v1029 = vpop.f32.mrb[0].mxu0
      %v1030 = vadd.f32 %v821, %v1029
      %v1031 = vpop.f32.mrb[0].mxu0
      %v1032 = vpop.f32.mrb[0].mxu0
      %v1033 = vadd.f32 %v824, %v1032
      %v1034 = vpop.f32.mrb[0].mxu0
      %1035 = vmatprep.mubr.bf16.mxu0 0
      %1036 = vmatmul.mubr.bf16.gmra.mrb[0].mxu0 %v435
      %v1037 = vpop.f32.mrb[0].mxu0
      %v1038 = vadd.f32 %v829, %v1037
      %v1039 = vpop.f32.mrb[0].mxu0
      %v1040 = vpop.f32.mrb[0].mxu0
      %v1041 = vadd.f32 %v832, %v1040
      %v1042 = vpop.f32.mrb[0].mxu0
      %1043 = vdwg.mxu0
      %v1044 = vld [vmem:[%s5] sm:$0x1]
      %v1046 = vlaneseq
      %v1047 = vshrl.u32 %v1046, 7
      %v1048 = vsub.s32 0, %v1047
      %v1049 = vrot.slane %v1044, %v1048
      %v1051 = vadd.f32 %v918, %v1049
      %v1052 = vadd.f32 %v921, %v1049
      %v1053 = vadd.f32 %v926, %v1049
      %v1054 = vadd.f32 %v929, %v1049
      %v1055 = vadd.f32 %v934, %v1049
      %v1056 = vadd.f32 %v937, %v1049
      %v1057 = vadd.f32 %v942, %v1049
      %v1058 = vadd.f32 %v945, %v1049
      %v1059 = vadd.f32 %v950, %v1049
      %v1060 = vadd.f32 %v953, %v1049
      %v1061 = vadd.f32 %v958, %v1049
      %v1062 = vadd.f32 %v961, %v1049
      %v1063 = vadd.f32 %v966, %v1049
      %v1064 = vadd.f32 %v969, %v1049
      %v1065 = vadd.f32 %v974, %v1049
      %v1066 = vadd.f32 %v977, %v1049
      %v1067 = vadd.f32 %v982, %v1049
      %v1068 = vadd.f32 %v985, %v1049
      %v1069 = vadd.f32 %v990, %v1049
      %v1070 = vadd.f32 %v993, %v1049
      %v1071 = vadd.f32 %v998, %v1049
      %v1072 = vadd.f32 %v1001, %v1049
      %v1073 = vadd.f32 %v1006, %v1049
      %v1074 = vadd.f32 %v1009, %v1049
      %v1075 = vadd.f32 %v1014, %v1049
      %v1076 = vadd.f32 %v1017, %v1049
      %v1077 = vadd.f32 %v1022, %v1049
      %v1078 = vadd.f32 %v1025, %v1049
      %v1079 = vadd.f32 %v1030, %v1049
      %v1080 = vadd.f32 %v1033, %v1049
      %v1081 = vadd.f32 %v1038, %v1049
      %v1082 = vadd.f32 %v1041, %v1049
      %v1083 = vmax.f32 %v1051, 0.0
      %v1084 = vmax.f32 %v1052, 0.0
      %v1085 = vmax.f32 %v1053, 0.0
      %v1086 = vmax.f32 %v1054, 0.0
      %v1087 = vmax.f32 %v1055, 0.0
      %v1088 = vmax.f32 %v1056, 0.0
      %v1089 = vmax.f32 %v1057, 0.0
      %v1090 = vmax.f32 %v1058, 0.0
      %v1091 = vmax.f32 %v1059, 0.0
      %v1092 = vmax.f32 %v1060, 0.0
      %v1093 = vmax.f32 %v1061, 0.0
      %v1094 = vmax.f32 %v1062, 0.0
      %v1095 = vmax.f32 %v1063, 0.0
      %v1096 = vmax.f32 %v1064, 0.0
      %v1097 = vmax.f32 %v1065, 0.0
      %v1098 = vmax.f32 %v1066, 0.0
      %v1099 = vmax.f32 %v1067, 0.0
      %v1100 = vmax.f32 %v1068, 0.0
      %v1101 = vmax.f32 %v1069, 0.0
      %v1102 = vmax.f32 %v1070, 0.0
      %v1103 = vmax.f32 %v1071, 0.0
      %v1104 = vmax.f32 %v1072, 0.0
      %v1105 = vmax.f32 %v1073, 0.0
      %v1106 = vmax.f32 %v1074, 0.0
      %v1107 = vmax.f32 %v1075, 0.0
      %v1108 = vmax.f32 %v1076, 0.0
      %v1109 = vmax.f32 %v1077, 0.0
      %v1110 = vmax.f32 %v1078, 0.0
      %v1111 = vmax.f32 %v1079, 0.0
      %v1112 = vmax.f32 %v1080, 0.0
      %v1113 = vmax.f32 %v1081, 0.0
      %v1114 = vmax.f32 %v1082, 0.0
      %1115 = vst [vmem:[%s275] sm:$0xff] %v1083
      %1116 = vst [vmem:[%s275 + $0x8] sm:$0xff] %v1084
      %1117 = vst [vmem:[%s275 + $0x10] sm:$0xff] %v1085
      %1118 = vst [vmem:[%s275 + $0x18] sm:$0xff] %v1086
      %1119 = vst [vmem:[%s275 + $0x20] sm:$0xff] %v1087
      %1120 = vst [vmem:[%s275 + $0x28] sm:$0xff] %v1088
      %1121 = vst [vmem:[%s275 + $0x30] sm:$0xff] %v1089
      %1122 = vst [vmem:[%s275 + $0x38] sm:$0xff] %v1090
      %1123 = vst [vmem:[%s275 + $0x40] sm:$0xff] %v1091
      %1124 = vst [vmem:[%s275 + $0x48] sm:$0xff] %v1092
      %1125 = vst [vmem:[%s275 + $0x50] sm:$0xff] %v1093
      %1126 = vst [vmem:[%s275 + $0x58] sm:$0xff] %v1094
      %1127 = vst [vmem:[%s275 + $0x60] sm:$0xff] %v1095
      %1128 = vst [vmem:[%s275 + $0x68] sm:$0xff] %v1096
      %1129 = vst [vmem:[%s275 + $0x70] sm:$0xff] %v1097
      %1130 = vst [vmem:[%s275 + $0x78] sm:$0xff] %v1098
      %1131 = vst [vmem:[%s275 + $0x80] sm:$0xff] %v1099
      %1132 = vst [vmem:[%s275 + $0x88] sm:$0xff] %v1100
      %1133 = vst [vmem:[%s275 + $0x90] sm:$0xff] %v1101
      %1134 = vst [vmem:[%s275 + $0x98] sm:$0xff] %v1102
      %1135 = vst [vmem:[%s275 + $0xa0] sm:$0xff] %v1103
      %1136 = vst [vmem:[%s275 + $0xa8] sm:$0xff] %v1104
      %1137 = vst [vmem:[%s275 + $0xb0] sm:$0xff] %v1105
      %1138 = vst [vmem:[%s275 + $0xb8] sm:$0xff] %v1106
      %1139 = vst [vmem:[%s275 + $0xc0] sm:$0xff] %v1107
      %1140 = vst [vmem:[%s275 + $0xc8] sm:$0xff] %v1108
      %1141 = vst [vmem:[%s275 + $0xd0] sm:$0xff] %v1109
      %1142 = vst [vmem:[%s275 + $0xd8] sm:$0xff] %v1110
      %1143 = vst [vmem:[%s275 + $0xe0] sm:$0xff] %v1111
      %1144 = vst [vmem:[%s275 + $0xe8] sm:$0xff] %v1112
      %1145 = vst [vmem:[%s275 + $0xf0] sm:$0xff] %v1113
      %1146 = vst [vmem:[%s275 + $0xf8] sm:$0xff] %v1114
      %s1147 = smul.u32 32, %s17
      %p1148 = scmp.lt.s32.totalorder %s1147, 63
      %s1149 = scalar_select %p1148, %s1147, 63
      %s1150 = smul.addr %s1149, 8
      %s1151 = scalar_lea.vmem %s6, %s1150
      // Predicated region
      $region45: #{dense_block_forward.6} parent=43 // pred_check
        %p1152 = pneg %p171
      $region46: #{dense_block_forward.6} parent=43 // pred_check_branch
        %1154 = sbr.rel (%p1152) target = $region48
      $region47: #{dense_block_forward.6} parent=43 // pred_region
        %s1155 = smul.u32 32, %s17
      $region48: #{dense_block_forward.6} parent=43 // pred_fallthru
        _
    $region44: #{dense_block_forward.6} parent=5 // pred_fallthru
      _
    %p1156 = scmp.le.s32.totalorder 2, %s12
    // Predicated region
    $region49: #{dense_block_forward.6} parent=5 // pred_check
      %p1157 = pneg %p1156
    $region50: #{dense_block_forward.6} parent=5 // pred_check_branch
      %1159 = sbr.rel (%p1157) target = $region52
    $region51: #{dense_block_forward.6} parent=5 // pred_region
      %s1160 = ssub.s32 %s12, 2
      // Predicated region
      $region53: #{dense_block_forward.6} parent=51 // pred_check
        %p1161 = pneg %p177
      $region54: #{dense_block_forward.6} parent=51 // pred_check_branch
        %1163 = sbr.rel (%p1161) target = $region56
      $region55: #{dense_block_forward.6} parent=51 // pred_region
        %s1164 = smul.u32 32, %s18
        %p1165 = scmp.lt.s32.totalorder %s1164, 63
        %s1166 = scalar_select %p1165, %s1164, 63
        %s1167 = smul.addr %s1166, 8
        %s1168 = scalar_lea.vmem %s6, %s1167
      $region56: #{dense_block_forward.6} parent=51 // pred_fallthru
        _
    $region52: #{dense_block_forward.6} parent=5 // pred_fallthru
      _
  $region6: #{dense_block_forward.6} parent=0 // loop_footer
    %s16 = sadd.s32 1, %s12
  $region7: #{dense_block_forward.6} parent=0 // loop_footer_branch
    %11 = sbr.rel target = $region3
  $region8: #{dense_block_forward.6} parent=0 // loop_exit
    _

// kernel: dense_block_forward.5
$region0: #{dense_block_forward.5}
  #allocation0 [shape = 'u32[]', space=smem, size = 0x4, offset = 0x4, fixed_abs, tag = 'smem constant byte address 0x4 - core index']
  #allocation1 [shape = 'u32[144,128]{1,0:T(1,128)}', space=vmem, size = 0x12000, scoped, tag = 'internal scratch']
  #allocation2 [shape = 'f32[78,128]{1,0:T(8,128)}', space=vmem, size = 0xa000, scoped, tag = 'scratch operand']
  %s0 = inlined_call_operand.vmem [shape: f32[2,6,100,128], index: 0, kind: input, shape index: {}, may-alias: {0,1,2}]
  %s1 = inlined_call_operand.vmem [shape: f32[2,6,100,128], index: 1, kind: input, shape index: {}, may-alias: {0,1,2}]
  %s2 = inlined_call_operand.vmem [shape: f32[2,6,100,128], index: 2, kind: input, shape index: {}, may-alias: {0,1,2}]
  %s3 = inlined_call_operand.vmem [shape: bf16[27,128,128], index: 3, kind: input, shape index: {}]
  %s4 = inlined_call_operand.vmem [shape: f32[2,4,8,8,128], index: 4, kind: output, shape index: {}]
  %s5 = sld [smem:[#allocation0]]
  $region49: #{dense_block_forward.5} parent=0
    _
  %s7 = ssub.s32 1, %s5
  %s8 = scalar_select 0, %s7, %s5
  loop: start=0, step=1, limit=10
  $region2: #{dense_block_forward.5} parent=0 // loop_pre_header
    _
  $region3: #{dense_block_forward.5} parent=0 // loop_header
    %s10 = sphi 0, %s14
    %p11 = scmp.ge.s32.totalorder %s10, 10
    %s17 = sphi 0, %s29
    %s18 = sphi 0, %s25
    %s19 = sphi 0, %s17
    %s20 = sphi 0, %s18
    %s21 = sphi 0, %s19
    %s22 = sphi 0, %s20
    %s34 = sphi 0, %s36
    %s37 = sphi 0, %s34
    %s38 = sphi 0, %s37
    %s54 = sphi 0, %s38
    %s64 = sphi 0, %s66
    %s67 = sphi 0, %s64
    %s68 = sphi 0, %s67
    %s84 = sphi 0, %s68
    %s94 = sphi 0, %s96
    %s97 = sphi 0, %s94
    %s98 = sphi 0, %s97
    %s114 = sphi 0, %s98
    %s118 = sphi 0, %s118
    %s120 = sphi 0, %s118
    %s121 = sphi 0, %s120
    %s135 = sphi 0, %s121
    %s143 = sphi 0, %s145
    %s146 = sphi 0, %s143
    %s147 = sphi 0, %s146
    %s163 = sphi 0, %s147
  $region4: #{dense_block_forward.5} parent=0 // loop_header_branch
    %13 = sbr.rel (%p11) target = $region8
  $region5: #{dense_block_forward.5} parent=0 // loop_body
    %s15 = ssub.s32 %s10, 1
    %s16 = ssub.s32 %s10, 2
    %s23 = sadd.s32 1, %s18
    %p24 = scmp.ge.s32.totalorder %s23, 4
    %s25 = scalar_select %p24, 0, %s23
    %s26 = sadd.s32 1, %s17
    %s27 = scalar_select %p24, %s26, %s17
    %p28 = scmp.ge.s32.totalorder %s27, 2
    %s29 = scalar_select %p28, 0, %s27
    %s30 = ssub.s32 %s17, %s29
    %s31 = ssub.s32 %s18, %s25
    %s32 = sor.u32 %s30, %s31
    %p33 = scmp.eq.s32.totalorder %s32, 0
    %s35 = sadd.s32 %s34, 1
    %s36 = scalar_select %p33, %s34, %s35
    %p39 = pneg %p33
    %p40 = scmp.eq.s32.totalorder %s10, 7
    %p41 = por %p39, %p40
    %p42 = scmp.ne.s32.totalorder %s34, %s37
    %p43 = scmp.eq.s32.totalorder %s10, 0
    %p44 = por %p42, %p43
    %p45 = scmp.ne.s32.totalorder %s34, %s37
    %p46 = scmp.eq.s32.totalorder %s15, 7
    %p47 = por %p45, %p46
    %p48 = scmp.ne.s32.totalorder %s37, %s38
    %p49 = scmp.eq.s32.totalorder %s15, 0
    %p50 = por %p48, %p49
    %p51 = scmp.ne.s32.totalorder %s37, %s38
    %p52 = scmp.eq.s32.totalorder %s16, 7
    %p53 = por %p51, %p52
    %p55 = scmp.ne.s32.totalorder %s38, %s54
    %p56 = scmp.eq.s32.totalorder %s16, 0
    %p57 = por %p55, %p56
    %s58 = sadd.s32 %s18, 1
    %s59 = sadd.s32 %s25, 1
    %s60 = ssub.s32 %s17, %s29
    %s61 = ssub.s32 %s58, %s59
    %s62 = sor.u32 %s60, %s61
    %p63 = scmp.eq.s32.totalorder %s62, 0
    %s65 = sadd.s32 %s64, 1
    %s66 = scalar_select %p63, %s64, %s65
    %p69 = pneg %p63
    %p70 = scmp.eq.s32.totalorder %s10, 7
    %p71 = por %p69, %p70
    %p72 = scmp.ne.s32.totalorder %s64, %s67
    %p73 = scmp.eq.s32.totalorder %s10, 0
    %p74 = por %p72, %p73
    %p75 = scmp.ne.s32.totalorder %s64, %s67
    %p76 = scmp.eq.s32.totalorder %s15, 7
    %p77 = por %p75, %p76
    %p78 = scmp.ne.s32.totalorder %s67, %s68
    %p79 = scmp.eq.s32.totalorder %s15, 0
    %p80 = por %p78, %p79
    %p81 = scmp.ne.s32.totalorder %s67, %s68
    %p82 = scmp.eq.s32.totalorder %s16, 7
    %p83 = por %p81, %p82
    %p85 = scmp.ne.s32.totalorder %s68, %s84
    %p86 = scmp.eq.s32.totalorder %s16, 0
    %p87 = por %p85, %p86
    %s88 = sadd.s32 %s18, 2
    %s89 = sadd.s32 %s25, 2
    %s90 = ssub.s32 %s17, %s29
    %s91 = ssub.s32 %s88, %s89
    %s92 = sor.u32 %s90, %s91
    %p93 = scmp.eq.s32.totalorder %s92, 0
    %s95 = sadd.s32 %s94, 1
    %s96 = scalar_select %p93, %s94, %s95
    %p99 = pneg %p93
    %p100 = scmp.eq.s32.totalorder %s10, 7
    %p101 = por %p99, %p100
    %p102 = scmp.ne.s32.totalorder %s94, %s97
    %p103 = scmp.eq.s32.totalorder %s10, 0
    %p104 = por %p102, %p103
    %p105 = scmp.ne.s32.totalorder %s94, %s97
    %p106 = scmp.eq.s32.totalorder %s15, 7
    %p107 = por %p105, %p106
    %p108 = scmp.ne.s32.totalorder %s97, %s98
    %p109 = scmp.eq.s32.totalorder %s15, 0
    %p110 = por %p108, %p109
    %p111 = scmp.ne.s32.totalorder %s97, %s98
    %p112 = scmp.eq.s32.totalorder %s16, 7
    %p113 = por %p111, %p112
    %p115 = scmp.ne.s32.totalorder %s98, %s114
    %p116 = scmp.eq.s32.totalorder %s16, 0
    %p117 = por %p115, %p116
    %s119 = sadd.s32 %s118, 1
    %p122 = scmp.eq.s32.totalorder %s10, 7
    %p123 = scmp.ne.s32.totalorder %s118, %s120
    %p124 = scmp.eq.s32.totalorder %s10, 0
    %p125 = por %p123, %p124
    %p126 = scmp.ne.s32.totalorder %s118, %s120
    %p127 = scmp.eq.s32.totalorder %s15, 7
    %p128 = por %p126, %p127
    %p129 = scmp.ne.s32.totalorder %s120, %s121
    %p130 = scmp.eq.s32.totalorder %s15, 0
    %p131 = por %p129, %p130
    %p132 = scmp.ne.s32.totalorder %s120, %s121
    %p133 = scmp.eq.s32.totalorder %s16, 7
    %p134 = por %p132, %p133
    %p136 = scmp.ne.s32.totalorder %s121, %s135
    %p137 = scmp.eq.s32.totalorder %s16, 0
    %p138 = por %p136, %p137
    %s139 = ssub.s32 %s17, %s29
    %s140 = ssub.s32 %s18, %s25
    %s141 = sor.u32 %s139, %s140
    %p142 = scmp.eq.s32.totalorder %s141, 0
    %s144 = sadd.s32 %s143, 1
    %s145 = scalar_select %p142, %s143, %s144
    %p148 = pneg %p142
    %p149 = scmp.eq.s32.totalorder %s10, 7
    %p150 = por %p148, %p149
    %p151 = scmp.ne.s32.totalorder %s143, %s146
    %p152 = scmp.eq.s32.totalorder %s10, 0
    %p153 = por %p151, %p152
    %p154 = scmp.ne.s32.totalorder %s143, %s146
    %p155 = scmp.eq.s32.totalorder %s15, 7
    %p156 = por %p154, %p155
    %p157 = scmp.ne.s32.totalorder %s146, %s147
    %p158 = scmp.eq.s32.totalorder %s15, 0
    %p159 = por %p157, %p158
    %p160 = scmp.ne.s32.totalorder %s146, %s147
    %p161 = scmp.eq.s32.totalorder %s16, 7
    %p162 = por %p160, %p161
    %p164 = scmp.ne.s32.totalorder %s147, %s163
    %p165 = scmp.eq.s32.totalorder %s16, 0
    %p166 = por %p164, %p165
    %p167 = scmp.le.s32.totalorder 1, %s10
    %p168 = scmp.lt.s32.totalorder %s10, 9
    %p169 = pnand %p167, %p168
    %p170 = pneg %p169
    // Predicated region
    $region9: #{dense_block_forward.5} parent=5 // pred_check
      _
    $region10: #{dense_block_forward.5} parent=5 // pred_check_branch
      %172 = sbr.rel (%p169) target = $region12
    $region11: #{dense_block_forward.5} parent=5 // pred_region
      %s173 = ssub.s32 %s10, 1
      // Predicated region
      $region13: #{dense_block_forward.5} parent=11 // pred_check
        %p174 = pneg %p131
      $region14: #{dense_block_forward.5} parent=11 // pred_check_branch
        %176 = sbr.rel (%p174) target = $region16
      $region15: #{dense_block_forward.5} parent=11 // pred_region
        _
      $region16: #{dense_block_forward.5} parent=11 // pred_fallthru
        _
    $region12: #{dense_block_forward.5} parent=5 // pred_fallthru
      _
    %p177 = scmp.lt.s32.totalorder %s10, 8
    // Predicated region
    $region17: #{dense_block_forward.5} parent=5 // pred_check
      %p178 = pneg %p177
    $region18: #{dense_block_forward.5} parent=5 // pred_check_branch
      %180 = sbr.rel (%p178) target = $region20
    $region19: #{dense_block_forward.5} parent=5 // pred_region
      // Predicated region
      $region21: #{dense_block_forward.5} parent=19 // pred_check
        %p181 = pneg %p44
      $region22: #{dense_block_forward.5} parent=19 // pred_check_branch
        %183 = sbr.rel (%p181) target = $region24
      $region23: #{dense_block_forward.5} parent=19 // pred_region
        %p184 = scmp.lt.s32.totalorder %s17, 1
        %s185 = scalar_select %p184, %s17, 1
        %p186 = scmp.lt.s32.totalorder %s18, 5
        %s187 = scalar_select %p186, %s18, 5
        %s188 = smul.addr %s187, 13
        %s189 = smul.addr %s185, 78
        %s190 = sadd.s32 %s188, %s189
        %s191 = smul.addr %s190, 8
        %s192 = scalar_lea.vmem %s0, %s191
      $region24: #{dense_block_forward.5} parent=19 // pred_fallthru
        _
      // Predicated region
      $region25: #{dense_block_forward.5} parent=19 // pred_check
        %p193 = pneg %p74
      $region26: #{dense_block_forward.5} parent=19 // pred_check_branch
        %195 = sbr.rel (%p193) target = $region28
      $region27: #{dense_block_forward.5} parent=19 // pred_region
        %s196 = sadd.s32 %s18, 1
        %p197 = scmp.lt.s32.totalorder %s17, 1
        %s198 = scalar_select %p197, %s17, 1
        %p199 = scmp.lt.s32.totalorder %s196, 5
        %s200 = scalar_select %p199, %s196, 5
        %s201 = smul.addr %s200, 13
        %s202 = smul.addr %s198, 78
        %s203 = sadd.s32 %s201, %s202
        %s204 = smul.addr %s203, 8
        %s205 = scalar_lea.vmem %s1, %s204
        %s206 = sadd.s32 %s18, 1
      $region28: #{dense_block_forward.5} parent=19 // pred_fallthru
        _
      // Predicated region
      $region29: #{dense_block_forward.5} parent=19 // pred_check
        %p207 = pneg %p104
      $region30: #{dense_block_forward.5} parent=19 // pred_check_branch
        %209 = sbr.rel (%p207) target = $region32
      $region31: #{dense_block_forward.5} parent=19 // pred_region
        %s210 = sadd.s32 %s18, 2
        %p211 = scmp.lt.s32.totalorder %s17, 1
        %s212 = scalar_select %p211, %s17, 1
        %p213 = scmp.lt.s32.totalorder %s210, 5
        %s214 = scalar_select %p213, %s210, 5
        %s215 = smul.addr %s214, 13
        %s216 = smul.addr %s212, 78
        %s217 = sadd.s32 %s215, %s216
        %s218 = smul.addr %s217, 8
        %s219 = scalar_lea.vmem %s2, %s218
        %s220 = sadd.s32 %s18, 2
      $region32: #{dense_block_forward.5} parent=19 // pred_fallthru
        _
    $region20: #{dense_block_forward.5} parent=5 // pred_fallthru
      _
    %p221 = scmp.le.s32.totalorder 1, %s10
    %p222 = scmp.lt.s32.totalorder %s10, 9
    %p223 = pnand %p221, %p222
    %p224 = pneg %p223
    // Predicated region
    $region33: #{dense_block_forward.5} parent=5 // pred_check
      _
    $region34: #{dense_block_forward.5} parent=5 // pred_check_branch
      %226 = sbr.rel (%p223) target = $region36
    $region35: #{dense_block_forward.5} parent=5 // pred_region
      %s227 = ssub.s32 %s10, 1
      %p228 = scmp.lt.s32.totalorder %s19, 1
      %s229 = scalar_select %p228, %s19, 1
      %p230 = scmp.lt.s32.totalorder %s20, 5
      %s231 = scalar_select %p230, %s20, 5
      %s232 = smul.addr %s231, 13
      %s233 = smul.addr %s229, 78
      %s234 = sadd.s32 %s232, %s233
      %s235 = smul.addr %s234, 8
      %s236 = scalar_lea.vmem %s0, %s235
      %p237 = pneg %p50
      %p238 = pneg %p47
      %s239 = sadd.s32 %s20, 1
      %p240 = scmp.lt.s32.totalorder %s19, 1
      %s241 = scalar_select %p240, %s19, 1
      %p242 = scmp.lt.s32.totalorder %s239, 5
      %s243 = scalar_select %p242, %s239, 5
      %s244 = smul.addr %s243, 13
      %s245 = smul.addr %s241, 78
      %s246 = sadd.s32 %s244, %s245
      %s247 = smul.addr %s246, 8
      %s248 = scalar_lea.vmem %s1, %s247
      %p249 = pneg %p80
      %p250 = pneg %p77
      %s251 = sadd.s32 %s20, 2
      %p252 = scmp.lt.s32.totalorder %s19, 1
      %s253 = scalar_select %p252, %s19, 1
      %p254 = scmp.lt.s32.totalorder %s251, 5
      %s255 = scalar_select %p254, %s251, 5
      %s256 = smul.addr %s255, 13
      %s257 = smul.addr %s253, 78
      %s258 = sadd.s32 %s256, %s257
      %s259 = smul.addr %s258, 8
      %s260 = scalar_lea.vmem %s2, %s259
      %p261 = pneg %p110
      %p262 = pneg %p107
      %p263 = pneg %p131
      %p264 = pneg %p128
      %p265 = pneg %p159
      %p266 = pneg %p156
      %p267 = scmp.lt.s32.totalorder %s19, 1
      %s268 = scalar_select %p267, %s19, 1
      %p269 = scmp.lt.s32.totalorder %s20, 3
      %s270 = scalar_select %p269, %s20, 3
      %s271 = smul.addr %s270, 8
      %s272 = smul.addr %s268, 32
      %s273 = sadd.s32 %s271, %s272
      %s274 = smul.addr %s273, 8
      %s275 = scalar_lea.vmem %s4, %s274
      %p276 = scmp.lt.s32.totalorder %s19, 1
      %s277 = scalar_select %p276, %s19, 1
      %p278 = scmp.lt.s32.totalorder %s20, 5
      %s279 = scalar_select %p278, %s20, 5
      %s280 = smul.addr %s279, 13
      %s281 = smul.addr %s277, 78
      %s282 = sadd.s32 %s280, %s281
      %s283 = smul.addr %s282, 8
      %s284 = scalar_lea.vmem %s0, %s283
      %s285 = sadd.s32 %s20, 1
      %p286 = scmp.lt.s32.totalorder %s19, 1
      %s287 = scalar_select %p286, %s19, 1
      %p288 = scmp.lt.s32.totalorder %s285, 5
      %s289 = scalar_select %p288, %s285, 5
      %s290 = smul.addr %s289, 13
      %s291 = smul.addr %s287, 78
      %s292 = sadd.s32 %s290, %s291
      %s293 = smul.addr %s292, 8
      %s294 = scalar_lea.vmem %s1, %s293
      %s295 = sadd.s32 %s20, 1
      %s296 = sadd.s32 %s20, 2
      %p297 = scmp.lt.s32.totalorder %s19, 1
      %s298 = scalar_select %p297, %s19, 1
      %p299 = scmp.lt.s32.totalorder %s296, 5
      %s300 = scalar_select %p299, %s296, 5
      %s301 = smul.addr %s300, 13
      %s302 = smul.addr %s298, 78
      %s303 = sadd.s32 %s301, %s302
      %s304 = smul.addr %s303, 8
      %s305 = scalar_lea.vmem %s2, %s304
      %s306 = sadd.s32 %s20, 2
      %p307 = scmp.lt.s32.totalorder %s19, 1
      %s308 = scalar_select %p307, %s19, 1
      %p309 = scmp.lt.s32.totalorder %s20, 3
      %s310 = scalar_select %p309, %s20, 3
      %s311 = smul.addr %s310, 8
      %s312 = smul.addr %s308, 32
      %s313 = sadd.s32 %s311, %s312
      %s314 = smul.addr %s313, 8
      %s315 = scalar_lea.vmem %s4, %s314
      %v317 = vld [vmem:[%s284] sm:$0xff]
      %v318 = vld [vmem:[%s284 + $0x8] sm:$0xff]
      %v319 = vld [vmem:[%s284 + $0x10] sm:$0xff]
      %v320 = vld [vmem:[%s284 + $0x18] sm:$0xff]
      %v321 = vld [vmem:[%s284 + $0x20] sm:$0xff]
      %v322 = vld [vmem:[%s284 + $0x28] sm:$0xff]
      %v323 = vld [vmem:[%s284 + $0x30] sm:$0xff]
      %v324 = vld [vmem:[%s284 + $0x38] sm:$0xff]
      %v325 = vld [vmem:[%s284 + $0x40] sm:$0xff]
      %v326 = vld [vmem:[%s284 + $0x48] sm:$0x3f]
      %v327 = vpack.c.bf16 %v318, %v317
      %v328 = vpack.c.bf16 %v320, %v319
      %v329 = vpack.c.bf16 %v322, %v321
      %v330 = vpack.c.bf16 %v324, %v323
      %v331 = vpack.c.bf16 %v326, %v325
      %v332 = vld [vmem:[%s3] sm:$0xf]
      %v333 = vld [vmem:[%s3 + $0x4] sm:$0xf]
      %v334 = vld [vmem:[%s3 + $0x8] sm:$0xf]
      %v335 = vld [vmem:[%s3 + $0xc] sm:$0xf]
      %v336 = vld [vmem:[%s3 + $0x10] sm:$0xf]
      %v337 = vld [vmem:[%s3 + $0x14] sm:$0xf]
      %v338 = vld [vmem:[%s3 + $0x18] sm:$0xf]
      %v339 = vld [vmem:[%s3 + $0x1c] sm:$0xf]
      %v340 = vld [vmem:[%s3 + $0x20] sm:$0xf]
      %v341 = vld [vmem:[%s3 + $0x24] sm:$0xf]
      %v342 = vld [vmem:[%s3 + $0x28] sm:$0xf]
      %v343 = vld [vmem:[%s3 + $0x2c] sm:$0xf]
      %v344 = vld [vmem:[%s3 + $0x30] sm:$0xf]
      %v345 = vld [vmem:[%s3 + $0x34] sm:$0xf]
      %v346 = vld [vmem:[%s3 + $0x38] sm:$0xf]
      %v347 = vld [vmem:[%s3 + $0x3c] sm:$0xf]
      %v348 = vld [vmem:[%s284 + $0x1] sm:$0xff]
      %v349 = vld [vmem:[%s284 + $0x9] sm:$0xff]
      %v350 = vld [vmem:[%s284 + $0x11] sm:$0xff]
      %v351 = vld [vmem:[%s284 + $0x19] sm:$0xff]
      %v352 = vld [vmem:[%s284 + $0x21] sm:$0xff]
      %v353 = vld [vmem:[%s284 + $0x29] sm:$0xff]
      %v354 = vld [vmem:[%s284 + $0x31] sm:$0xff]
      %v355 = vld [vmem:[%s284 + $0x39] sm:$0xff]
      %v356 = vld [vmem:[%s284 + $0x41] sm:$0xff]
      %v357 = vld [vmem:[%s284 + $0x49] sm:$0x3f]
      %v358 = vpack.c.bf16 %v349, %v348
      %v359 = vpack.c.bf16 %v351, %v350
      %v360 = vpack.c.bf16 %v353, %v352
      %v361 = vpack.c.bf16 %v355, %v354
      %v362 = vpack.c.bf16 %v357, %v356
      %s363 = scalar_lea.vmem %s3, 64
      %v364 = vld [vmem:[%s363] sm:$0xf]
      %v365 = vld [vmem:[%s363 + $0x4] sm:$0xf]
      %v366 = vld [vmem:[%s363 + $0x8] sm:$0xf]
      %v367 = vld [vmem:[%s363 + $0xc] sm:$0xf]
      %v368 = vld [vmem:[%s363 + $0x10] sm:$0xf]
      %v369 = vld [vmem:[%s363 + $0x14] sm:$0xf]
      %v370 = vld [vmem:[%s363 + $0x18] sm:$0xf]
      %v371 = vld [vmem:[%s363 + $0x1c] sm:$0xf]
      %v372 = vld [vmem:[%s363 + $0x20] sm:$0xf]
      %v373 = vld [vmem:[%s363 + $0x24] sm:$0xf]
      %v374 = vld [vmem:[%s363 + $0x28] sm:$0xf]
      %v375 = vld [vmem:[%s363 + $0x2c] sm:$0xf]
      %v376 = vld [vmem:[%s363 + $0x30] sm:$0xf]
      %v377 = vld [vmem:[%s363 + $0x34] sm:$0xf]
      %v378 = vld [vmem:[%s363 + $0x38] sm:$0xf]
      %v379 = vld [vmem:[%s363 + $0x3c] sm:$0xf]
      %v396 = vunpack.c.l.b16 %v364
      %v397 = vunpack.c.l.b16 %v365
      %v398 = vunpack.c.l.b16 %v366
      %v399 = vunpack.c.l.b16 %v367
      %v400 = vunpack.c.l.b16 %v368
      %v401 = vunpack.c.l.b16 %v369
      %v402 = vunpack.c.l.b16 %v370
      %v403 = vunpack.c.l.b16 %v371
      %v404 = vunpack.c.l.b16 %v372
      %v405 = vunpack.c.l.b16 %v373
      %v406 = vunpack.c.l.b16 %v374
      %v407 = vunpack.c.l.b16 %v375
      %v408 = vunpack.c.l.b16 %v376
      %v409 = vunpack.c.l.b16 %v377
      %v410 = vunpack.c.l.b16 %v378
      %v411 = vunpack.c.l.b16 %v379
      %v412 = vpack.c.b16 %v397, %v396
      %v413 = vpack.c.b16 %v399, %v398
      %v414 = vpack.c.b16 %v401, %v400
      %v415 = vpack.c.b16 %v403, %v402
      %v416 = vpack.c.b16 %v405, %v404
      %v417 = vpack.c.b16 %v407, %v406
      %v418 = vpack.c.b16 %v409, %v408
      %v419 = vpack.c.b16 %v411, %v410
      %428 = vmatprep.subr.bf16.mxu0 0
      %429 = vmatpush1.bf16.msra.mxu0 %v412
      %430 = vmatprep.subr.bf16.mxu0 0
      %431 = vmatpush1.bf16.msra.mxu0 %v413
      %432 = vmatprep.subr.bf16.mxu0 0
      %433 = vmatpush1.bf16.msra.mxu0 %v414
      %434 = vmatprep.subr.bf16.mxu0 0
      %435 = vmatpush1.bf16.msra.mxu0 %v415
      %436 = vmatprep.subr.bf16.mxu0 0
      %437 = vmatpush1.bf16.msra.mxu0 %v416
      %438 = vmatprep.subr.bf16.mxu0 0
      %439 = vmatpush1.bf16.msra.mxu0 %v417
      %440 = vmatprep.subr.bf16.mxu0 0
      %441 = vmatpush1.bf16.msra.mxu0 %v418
      %442 = vmatprep.subr.bf16.mxu0 0
      %443 = vmatpush1.bf16.msra.mxu0 %v419
      %444 = vmatprep.subr.bf16.mxu0 0
      %445 = vmatpush1.bf16.msra.mxu0 0
      %446 = vmatprep.subr.bf16.mxu0 0
      %447 = vmatpush1.bf16.msra.mxu0 0
      %448 = vmatprep.subr.bf16.mxu0 0
      %449 = vmatpush1.bf16.msra.mxu0 0
      %450 = vmatprep.subr.bf16.mxu0 0
      %451 = vmatpush1.bf16.msra.mxu0 0
      %452 = vmatprep.subr.bf16.mxu0 0
      %453 = vmatpush1.bf16.msra.mxu0 0
      %454 = vmatprep.subr.bf16.mxu0 0
      %455 = vmatpush1.bf16.msra.mxu0 0
      %456 = vmatprep.subr.bf16.mxu0 0
      %457 = vmatpush1.bf16.msra.mxu0 0
      %458 = vmatprep.subr.bf16.mxu0 0
      %459 = vmatpush1.bf16.msra.mxu0 0
      %460 = vmatprep.mubr.bf16.mxu0 0
      %461 = vmatmul.mubr.bf16.gmra.mrb[0].mxu0 %v358
      %v462 = vpop.f32.mrb[0].mxu0
      %v463 = vadd.f32 0.0, %v462
      %v464 = vpop.f32.mrb[0].mxu0
      %v465 = vpop.f32.mrb[0].mxu0
      %v466 = vadd.f32 0.0, %v465
      %v467 = vpop.f32.mrb[0].mxu0
      %468 = vmatprep.mubr.bf16.mxu0 0
      %469 = vmatmul.mubr.bf16.gmra.mrb[0].mxu0 %v359
      %v470 = vpop.f32.mrb[0].mxu0
      %v471 = vadd.f32 0.0, %v470
      %v472 = vpop.f32.mrb[0].mxu0
      %v473 = vpop.f32.mrb[0].mxu0
      %v474 = vadd.f32 0.0, %v473
      %v475 = vpop.f32.mrb[0].mxu0
      %476 = vmatprep.mubr.bf16.mxu0 0
      %477 = vmatmul.mubr.bf16.gmra.mrb[0].mxu0 %v360
      %v478 = vpop.f32.mrb[0].mxu0
      %v479 = vadd.f32 0.0, %v478
      %v480 = vpop.f32.mrb[0].mxu0
      %v481 = vpop.f32.mrb[0].mxu0
      %v482 = vadd.f32 0.0, %v481
      %v483 = vpop.f32.mrb[0].mxu0
      %484 = vmatprep.mubr.bf16.mxu0 0
      %485 = vmatmul.mubr.bf16.gmra.mrb[0].mxu0 %v361
      %v486 = vpop.f32.mrb[0].mxu0
      %v487 = vadd.f32 0.0, %v486
      %v488 = vpop.f32.mrb[0].mxu0
      %v489 = vpop.f32.mrb[0].mxu0
      %v490 = vadd.f32 0.0, %v489
      %v491 = vpop.f32.mrb[0].mxu0
      %492 = vmatprep.mubr.bf16.mxu0 0
      %493 = vmatmul.mubr.bf16.gmra.mrb[0].mxu0 %v362
      %v494 = vpop.f32.mrb[0].mxu0
      %v495 = vadd.f32 0.0, %v494
      %v496 = vpop.f32.mrb[0].mxu0
      %v497 = vpop.f32.mrb[0].mxu0
      %v498 = vadd.f32 0.0, %v497
      %v499 = vpop.f32.mrb[0].mxu0
      %500 = vdwg.mxu0
      %v517 = vunpack.c.l.b16 %v332
      %v518 = vunpack.c.l.b16 %v333
      %v519 = vunpack.c.l.b16 %v334
      %v520 = vunpack.c.l.b16 %v335
      %v521 = vunpack.c.l.b16 %v336
      %v522 = vunpack.c.l.b16 %v337
      %v523 = vunpack.c.l.b16 %v338
      %v524 = vunpack.c.l.b16 %v339
      %v525 = vunpack.c.l.b16 %v340
      %v526 = vunpack.c.l.b16 %v341
      %v527 = vunpack.c.l.b16 %v342
      %v528 = vunpack.c.l.b16 %v343
      %v529 = vunpack.c.l.b16 %v344
      %v530 = vunpack.c.l.b16 %v345
      %v531 = vunpack.c.l.b16 %v346
      %v532 = vunpack.c.l.b16 %v347
      %v533 = vpack.c.b16 %v518, %v517
      %v534 = vpack.c.b16 %v520, %v519
      %v535 = vpack.c.b16 %v522, %v521
      %v536 = vpack.c.b16 %v524, %v523
      %v537 = vpack.c.b16 %v526, %v525
      %v538 = vpack.c.b16 %v528, %v527
      %v539 = vpack.c.b16 %v530, %v529
      %v540 = vpack.c.b16 %v532, %v531
      %549 = vmatprep.subr.bf16.mxu0 0
      %550 = vmatpush1.bf16.msra.mxu0 %v533
      %551 = vmatprep.subr.bf16.mxu0 0
      %552 = vmatpush1.bf16.msra.mxu0 %v534
      %553 = vmatprep.subr.bf16.mxu0 0
      %554 = vmatpush1.bf16.msra.mxu0 %v535
      %555 = vmatprep.subr.bf16.mxu0 0
      %556 = vmatpush1.bf16.msra.mxu0 %v536
      %557 = vmatprep.subr.bf16.mxu0 0
      %558 = vmatpush1.bf16.msra.mxu0 %v537
      %559 = vmatprep.subr.bf16.mxu0 0
      %560 = vmatpush1.bf16.msra.mxu0 %v538
      %561 = vmatprep.subr.bf16.mxu0 0
      %562 = vmatpush1.bf16.msra.mxu0 %v539
      %563 = vmatprep.subr.bf16.mxu0 0
      %564 = vmatpush1.bf16.msra.mxu0 %v540
      %565 = vmatprep.subr.bf16.mxu0 0
      %566 = vmatpush1.bf16.msra.mxu0 0
      %567 = vmatprep.subr.bf16.mxu0 0
      %568 = vmatpush1.bf16.msra.mxu0 0
      %569 = vmatprep.subr.bf16.mxu0 0
      %570 = vmatpush1.bf16.msra.mxu0 0
      %571 = vmatprep.subr.bf16.mxu0 0
      %572 = vmatpush1.bf16.msra.mxu0 0
      %573 = vmatprep.subr.bf16.mxu0 0
      %574 = vmatpush1.bf16.msra.mxu0 0
      %575 = vmatprep.subr.bf16.mxu0 0
      %576 = vmatpush1.bf16.msra.mxu0 0
      %577 = vmatprep.subr.bf16.mxu0 0
      %578 = vmatpush1.bf16.msra.mxu0 0
      %579 = vmatprep.subr.bf16.mxu0 0
      %580 = vmatpush1.bf16.msra.mxu0 0
      %581 = vmatprep.mubr.bf16.mxu0 0
      %582 = vmatmul.mubr.bf16.gmra.mrb[0].mxu0 %v327
      %v583 = vpop.f32.mrb[0].mxu0
      %v584 = vadd.f32 %v463, %v583
      %v585 = vpop.f32.mrb[0].mxu0
      %v586 = vpop.f32.mrb[0].mxu0
      %v587 = vadd.f32 %v466, %v586
      %v588 = vpop.f32.mrb[0].mxu0
      %589 = vmatprep.mubr.bf16.mxu0 0
      %590 = vmatmul.mubr.bf16.gmra.mrb[0].mxu0 %v328
      %v591 = vpop.f32.mrb[0].mxu0
      %v592 = vadd.f32 %v471, %v591
      %v593 = vpop.f32.mrb[0].mxu0
      %v594 = vpop.f32.mrb[0].mxu0
      %v595 = vadd.f32 %v474, %v594
      %v596 = vpop.f32.mrb[0].mxu0
      %597 = vmatprep.mubr.bf16.mxu0 0
      %598 = vmatmul.mubr.bf16.gmra.mrb[0].mxu0 %v329
      %v599 = vpop.f32.mrb[0].mxu0
      %v600 = vadd.f32 %v479, %v599
      %v601 = vpop.f32.mrb[0].mxu0
      %v602 = vpop.f32.mrb[0].mxu0
      %v603 = vadd.f32 %v482, %v602
      %v604 = vpop.f32.mrb[0].mxu0
      %605 = vmatprep.mubr.bf16.mxu0 0
      %606 = vmatmul.mubr.bf16.gmra.mrb[0].mxu0 %v330
      %v607 = vpop.f32.mrb[0].mxu0
      %v608 = vadd.f32 %v487, %v607
      %v609 = vpop.f32.mrb[0].mxu0
      %v610 = vpop.f32.mrb[0].mxu0
      %v611 = vadd.f32 %v490, %v610
      %v612 = vpop.f32.mrb[0].mxu0
      %613 = vmatprep.mubr.bf16.mxu0 0
      %614 = vmatmul.mubr.bf16.gmra.mrb[0].mxu0 %v331
      %v615 = vpop.f32.mrb[0].mxu0
      %v616 = vadd.f32 %v495, %v615
      %v617 = vpop.f32.mrb[0].mxu0
      %v618 = vpop.f32.mrb[0].mxu0
      %v619 = vadd.f32 %v498, %v618
      %v620 = vpop.f32.mrb[0].mxu0
      %621 = vdwg.mxu0
      %v622 = vld [vmem:[%s284 + $0x2] sm:$0xff]
      %v623 = vld [vmem:[%s284 + $0xa] sm:$0xff]
      %v624 = vld [vmem:[%s284 + $0x12] sm:$0xff]
      %v625 = vld [vmem:[%s284 + $0x1a] sm:$0xff]
      %v626 = vld [vmem:[%s284 + $0x22] sm:$0xff]
      %v627 = vld [vmem:[%s284 + $0x2a] sm:$0xff]
      %v628 = vld [vmem:[%s284 + $0x32] sm:$0xff]
      %v629 = vld [vmem:[%s284 + $0x3a] sm:$0xff]
      %v630 = vld [vmem:[%s284 + $0x42] sm:$0xff]
      %v631 = vld [vmem:[%s284 + $0x4a] sm:$0x3f]
      %v632 = vpack.c.bf16 %v623, %v622
      %v633 = vpack.c.bf16 %v625, %v624
      %v634 = vpack.c.bf16 %v627, %v626
      %v635 = vpack.c.bf16 %v629, %v628
      %v636 = vpack.c.bf16 %v631, %v630
      %s637 = scalar_lea.vmem %s3, 128
      %v638 = vld [vmem:[%s637] sm:$0xf]
      %v639 = vld [vmem:[%s637 + $0x4] sm:$0xf]
      %v640 = vld [vmem:[%s637 + $0x8] sm:$0xf]
      %v641 = vld [vmem:[%s637 + $0xc] sm:$0xf]
      %v642 = vld [vmem:[%s637 + $0x10] sm:$0xf]
      %v643 = vld [vmem:[%s637 + $0x14] sm:$0xf]
      %v644 = vld [vmem:[%s637 + $0x18] sm:$0xf]
      %v645 = vld [vmem:[%s637 + $0x1c] sm:$0xf]
      %v646 = vld [vmem:[%s637 + $0x20] sm:$0xf]
      %v647 = vld [vmem:[%s637 + $0x24] sm:$0xf]
      %v648 = vld [vmem:[%s637 + $0x28] sm:$0xf]
      %v649 = vld [vmem:[%s637 + $0x2c] sm:$0xf]
      %v650 = vld [vmem:[%s637 + $0x30] sm:$0xf]
      %v651 = vld [vmem:[%s637 + $0x34] sm:$0xf]
      %v652 = vld [vmem:[%s637 + $0x38] sm:$0xf]
      %v653 = vld [vmem:[%s637 + $0x3c] sm:$0xf]
      %v670 = vunpack.c.l.b16 %v638
      %v671 = vunpack.c.l.b16 %v639
      %v672 = vunpack.c.l.b16 %v640
      %v673 = vunpack.c.l.b16 %v641
      %v674 = vunpack.c.l.b16 %v642
      %v675 = vunpack.c.l.b16 %v643
      %v676 = vunpack.c.l.b16 %v644
      %v677 = vunpack.c.l.b16 %v645
      %v678 = vunpack.c.l.b16 %v646
      %v679 = vunpack.c.l.b16 %v647
      %v680 = vunpack.c.l.b16 %v648
      %v681 = vunpack.c.l.b16 %v649
      %v682 = vunpack.c.l.b16 %v650
      %v683 = vunpack.c.l.b16 %v651
      %v684 = vunpack.c.l.b16 %v652
      %v685 = vunpack.c.l.b16 %v653
      %v686 = vpack.c.b16 %v671, %v670
      %v687 = vpack.c.b16 %v673, %v672
      %v688 = vpack.c.b16 %v675, %v674
      %v689 = vpack.c.b16 %v677, %v676
      %v690 = vpack.c.b16 %v679, %v678
      %v691 = vpack.c.b16 %v681, %v680
      %v692 = vpack.c.b16 %v683, %v682
      %v693 = vpack.c.b16 %v685, %v684
      %702 = vmatprep.subr.bf16.mxu0 0
      %703 = vmatpush1.bf16.msra.mxu0 %v686
      %704 = vmatprep.subr.bf16.mxu0 0
      %705 = vmatpush1.bf16.msra.mxu0 %v687
      %706 = vmatprep.subr.bf16.mxu0 0
      %707 = vmatpush1.bf16.msra.mxu0 %v688
      %708 = vmatprep.subr.bf16.mxu0 0
      %709 = vmatpush1.bf16.msra.mxu0 %v689
      %710 = vmatprep.subr.bf16.mxu0 0
      %711 = vmatpush1.bf16.msra.mxu0 %v690
      %712 = vmatprep.subr.bf16.mxu0 0
      %713 = vmatpush1.bf16.msra.mxu0 %v691
      %714 = vmatprep.subr.bf16.mxu0 0
      %715 = vmatpush1.bf16.msra.mxu0 %v692
      %716 = vmatprep.subr.bf16.mxu0 0
      %717 = vmatpush1.bf16.msra.mxu0 %v693
      %718 = vmatprep.subr.bf16.mxu0 0
      %719 = vmatpush1.bf16.msra.mxu0 0
      %720 = vmatprep.subr.bf16.mxu0 0
      %721 = vmatpush1.bf16.msra.mxu0 0
      %722 = vmatprep.subr.bf16.mxu0 0
      %723 = vmatpush1.bf16.msra.mxu0 0
      %724 = vmatprep.subr.bf16.mxu0 0
      %725 = vmatpush1.bf16.msra.mxu0 0
      %726 = vmatprep.subr.bf16.mxu0 0
      %727 = vmatpush1.bf16.msra.mxu0 0
      %728 = vmatprep.subr.bf16.mxu0 0
      %729 = vmatpush1.bf16.msra.mxu0 0
      %730 = vmatprep.subr.bf16.mxu0 0
      %731 = vmatpush1.bf16.msra.mxu0 0
      %732 = vmatprep.subr.bf16.mxu0 0
      %733 = vmatpush1.bf16.msra.mxu0 0
      %734 = vmatprep.mubr.bf16.mxu0 0
      %735 = vmatmul.mubr.bf16.gmra.mrb[0].mxu0 %v632
      %v736 = vpop.f32.mrb[0].mxu0
      %v737 = vadd.f32 0.0, %v736
      %v738 = vpop.f32.mrb[0].mxu0
      %v739 = vpop.f32.mrb[0].mxu0
      %v740 = vadd.f32 0.0, %v739
      %v741 = vpop.f32.mrb[0].mxu0
      %742 = vmatprep.mubr.bf16.mxu0 0
      %743 = vmatmul.mubr.bf16.gmra.mrb[0].mxu0 %v633
      %v744 = vpop.f32.mrb[0].mxu0
      %v745 = vadd.f32 0.0, %v744
      %v746 = vpop.f32.mrb[0].mxu0
      %v747 = vpop.f32.mrb[0].mxu0
      %v748 = vadd.f32 0.0, %v747
      %v749 = vpop.f32.mrb[0].mxu0
      %750 = vmatprep.mubr.bf16.mxu0 0
      %751 = vmatmul.mubr.bf16.gmra.mrb[0].mxu0 %v634
      %v752 = vpop.f32.mrb[0].mxu0
      %v753 = vadd.f32 0.0, %v752
      %v754 = vpop.f32.mrb[0].mxu0
      %v755 = vpop.f32.mrb[0].mxu0
      %v756 = vadd.f32 0.0, %v755
      %v757 = vpop.f32.mrb[0].mxu0
      %758 = vmatprep.mubr.bf16.mxu0 0
      %759 = vmatmul.mubr.bf16.gmra.mrb[0].mxu0 %v635
      %v760 = vpop.f32.mrb[0].mxu0
      %v761 = vadd.f32 0.0, %v760
      %v762 = vpop.f32.mrb[0].mxu0
      %v763 = vpop.f32.mrb[0].mxu0
      %v764 = vadd.f32 0.0, %v763
      %v765 = vpop.f32.mrb[0].mxu0
      %766 = vmatprep.mubr.bf16.mxu0 0
      %767 = vmatmul.mubr.bf16.gmra.mrb[0].mxu0 %v636
      %v768 = vpop.f32.mrb[0].mxu0
      %v769 = vadd.f32 0.0, %v768
      %v770 = vpop.f32.mrb[0].mxu0
      %v771 = vpop.f32.mrb[0].mxu0
      %v772 = vadd.f32 0.0, %v771
      %v773 = vpop.f32.mrb[0].mxu0
      %774 = vdwg.mxu0
      %v775 = vadd.f32 %v584, %v737
      %v776 = vadd.f32 %v587, %v740
      %v777 = vadd.f32 %v592, %v745
      %v778 = vadd.f32 %v595, %v748
      %v779 = vadd.f32 %v600, %v753
      %v780 = vadd.f32 %v603, %v756
      %v781 = vadd.f32 %v608, %v761
      %v782 = vadd.f32 %v611, %v764
      %v783 = vadd.f32 %v616, %v769
      %v784 = vadd.f32 %v619, %v772
      %v785 = vld [vmem:[%s284 + $0xa] sm:$0xff]
      %v786 = vld [vmem:[%s284 + $0x12] sm:$0xff]
      %v787 = vld [vmem:[%s284 + $0x1a] sm:$0xff]
      %v788 = vld [vmem:[%s284 + $0x22] sm:$0xff]
      %v789 = vld [vmem:[%s284 + $0x2a] sm:$0xff]
      %v790 = vld [vmem:[%s284 + $0x32] sm:$0xff]
      %v791 = vld [vmem:[%s284 + $0x3a] sm:$0xff]
      %v792 = vld [vmem:[%s284 + $0x42] sm:$0xff]
      %v793 = vld [vmem:[%s284 + $0x4a] sm:$0xff]
      %v794 = vld [vmem:[%s284 + $0x52] sm:$0x3f]
      %v795 = vpack.c.bf16 %v786, %v785
      %v796 = vpack.c.bf16 %v788, %v787
      %v797 = vpack.c.bf16 %v790, %v789
      %v798 = vpack.c.bf16 %v792, %v791
      %v799 = vpack.c.bf16 %v794, %v793
      %s800 = scalar_lea.vmem %s3, 192
      %v801 = vld [vmem:[%s800] sm:$0xf]
      %v802 = vld [vmem:[%s800 + $0x4] sm:$0xf]
      %v803 = vld [vmem:[%s800 + $0x8] sm:$0xf]
      %v804 = vld [vmem:[%s800 + $0xc] sm:$0xf]
      %v805 = vld [vmem:[%s800 + $0x10] sm:$0xf]
      %v806 = vld [vmem:[%s800 + $0x14] sm:$0xf]
      %v807 = vld [vmem:[%s800 + $0x18] sm:$0xf]
      %v808 = vld [vmem:[%s800 + $0x1c] sm:$0xf]
      %v809 = vld [vmem:[%s800 + $0x20] sm:$0xf]
      %v810 = vld [vmem:[%s800 + $0x24] sm:$0xf]
      %v811 = vld [vmem:[%s800 + $0x28] sm:$0xf]
      %v812 = vld [vmem:[%s800 + $0x2c] sm:$0xf]
      %v813 = vld [vmem:[%s800 + $0x30] sm:$0xf]
      %v814 = vld [vmem:[%s800 + $0x34] sm:$0xf]
      %v815 = vld [vmem:[%s800 + $0x38] sm:$0xf]
      %v816 = vld [vmem:[%s800 + $0x3c] sm:$0xf]
      %v833 = vunpack.c.l.b16 %v801
      %v834 = vunpack.c.l.b16 %v802
      %v835 = vunpack.c.l.b16 %v803
      %v836 = vunpack.c.l.b16 %v804
      %v837 = vunpack.c.l.b16 %v805
      %v838 = vunpack.c.l.b16 %v806
      %v839 = vunpack.c.l.b16 %v807
      %v840 = vunpack.c.l.b16 %v808
      %v841 = vunpack.c.l.b16 %v809
      %v842 = vunpack.c.l.b16 %v810
      %v843 = vunpack.c.l.b16 %v811
      %v844 = vunpack.c.l.b16 %v812
      %v845 = vunpack.c.l.b16 %v813
      %v846 = vunpack.c.l.b16 %v814
      %v847 = vunpack.c.l.b16 %v815
      %v848 = vunpack.c.l.b16 %v816
      %v849 = vpack.c.b16 %v834, %v833
      %v850 = vpack.c.b16 %v836, %v835
      %v851 = vpack.c.b16 %v838, %v837
      %v852 = vpack.c.b16 %v840, %v839
      %v853 = vpack.c.b16 %v842, %v841
      %v854 = vpack.c.b16 %v844, %v843
      %v855 = vpack.c.b16 %v846, %v845
      %v856 = vpack.c.b16 %v848, %v847
      %865 = vmatprep.subr.bf16.mxu0 0
      %866 = vmatpush1.bf16.msra.mxu0 %v849
      %867 = vmatprep.subr.bf16.mxu0 0
      %868 = vmatpush1.bf16.msra.mxu0 %v850
      %869 = vmatprep.subr.bf16.mxu0 0
      %870 = vmatpush1.bf16.msra.mxu0 %v851
      %871 = vmatprep.subr.bf16.mxu0 0
      %872 = vmatpush1.bf16.msra.mxu0 %v852
      %873 = vmatprep.subr.bf16.mxu0 0
      %874 = vmatpush1.bf16.msra.mxu0 %v853
      %875 = vmatprep.subr.bf16.mxu0 0
      %876 = vmatpush1.bf16.msra.mxu0 %v854
      %877 = vmatprep.subr.bf16.mxu0 0
      %878 = vmatpush1.bf16.msra.mxu0 %v855
      %879 = vmatprep.subr.bf16.mxu0 0
      %880 = vmatpush1.bf16.msra.mxu0 %v856
      %881 = vmatprep.subr.bf16.mxu0 0
      %882 = vmatpush1.bf16.msra.mxu0 0
      %883 = vmatprep.subr.bf16.mxu0 0
      %884 = vmatpush1.bf16.msra.mxu0 0
      %885 = vmatprep.subr.bf16.mxu0 0
      %886 = vmatpush1.bf16.msra.mxu0 0
      %887 = vmatprep.subr.bf16.mxu0 0
      %888 = vmatpush1.bf16.msra.mxu0 0
      %889 = vmatprep.subr.bf16.mxu0 0
      %890 = vmatpush1.bf16.msra.mxu0 0
      %891 = vmatprep.subr.bf16.mxu0 0
      %892 = vmatpush1.bf16.msra.mxu0 0
      %893 = vmatprep.subr.bf16.mxu0 0
      %894 = vmatpush1.bf16.msra.mxu0 0
      %895 = vmatprep.subr.bf16.mxu0 0
      %896 = vmatpush1.bf16.msra.mxu0 0
      %897 = vmatprep.mubr.bf16.mxu0 0
      %898 = vmatmul.mubr.bf16.gmra.mrb[0].mxu0 %v795
      %v899 = vpop.f32.mrb[0].mxu0
      %v900 = vadd.f32 0.0, %v899
      %v901 = vpop.f32.mrb[0].mxu0
      %v902 = vpop.f32.mrb[0].mxu0
      %v903 = vadd.f32 0.0, %v902
      %v904 = vpop.f32.mrb[0].mxu0
      %905 = vmatprep.mubr.bf16.mxu0 0
      %906 = vmatmul.mubr.bf16.gmra.mrb[0].mxu0 %v796
      %v907 = vpop.f32.mrb[0].mxu0
      %v908 = vadd.f32 0.0, %v907
      %v909 = vpop.f32.mrb[0].mxu0
      %v910 = vpop.f32.mrb[0].mxu0
      %v911 = vadd.f32 0.0, %v910
      %v912 = vpop.f32.mrb[0].mxu0
      %913 = vmatprep.mubr.bf16.mxu0 0
      %914 = vmatmul.mubr.bf16.gmra.mrb[0].mxu0 %v797
      %v915 = vpop.f32.mrb[0].mxu0
      %v916 = vadd.f32 0.0, %v915
      %v917 = vpop.f32.mrb[0].mxu0
      %v918 = vpop.f32.mrb[0].mxu0
      %v919 = vadd.f32 0.0, %v918
      %v920 = vpop.f32.mrb[0].mxu0
      %921 = vmatprep.mubr.bf16.mxu0 0
      %922 = vmatmul.mubr.bf16.gmra.mrb[0].mxu0 %v798
      %v923 = vpop.f32.mrb[0].mxu0
      %v924 = vadd.f32 0.0, %v923
      %v925 = vpop.f32.mrb[0].mxu0
      %v926 = vpop.f32.mrb[0].mxu0
      %v927 = vadd.f32 0.0, %v926
      %v928 = vpop.f32.mrb[0].mxu0
      %929 = vmatprep.mubr.bf16.mxu0 0
      %930 = vmatmul.mubr.bf16.gmra.mrb[0].mxu0 %v799
      %v931 = vpop.f32.mrb[0].mxu0
      %v932 = vadd.f32 0.0, %v931
      %v933 = vpop.f32.mrb[0].mxu0
      %v934 = vpop.f32.mrb[0].mxu0
      %v935 = vadd.f32 0.0, %v934
      %v936 = vpop.f32.mrb[0].mxu0
      %937 = vdwg.mxu0
      %v938 = vadd.f32 %v775, %v900
      %v939 = vadd.f32 %v776, %v903
      %v940 = vadd.f32 %v777, %v908
      %v941 = vadd.f32 %v778, %v911
      %v942 = vadd.f32 %v779, %v916
      %v943 = vadd.f32 %v780, %v919
      %v944 = vadd.f32 %v781, %v924
      %v945 = vadd.f32 %v782, %v927
      %v946 = vadd.f32 %v783, %v932
      %v947 = vadd.f32 %v784, %v935
      %v948 = vld [vmem:[%s284 + $0xb] sm:$0xff]
      %v949 = vld [vmem:[%s284 + $0x13] sm:$0xff]
      %v950 = vld [vmem:[%s284 + $0x1b] sm:$0xff]
      %v951 = vld [vmem:[%s284 + $0x23] sm:$0xff]
      %v952 = vld [vmem:[%s284 + $0x2b] sm:$0xff]
      %v953 = vld [vmem:[%s284 + $0x33] sm:$0xff]
      %v954 = vld [vmem:[%s284 + $0x3b] sm:$0xff]
      %v955 = vld [vmem:[%s284 + $0x43] sm:$0xff]
      %v956 = vld [vmem:[%s284 + $0x4b] sm:$0xff]
      %v957 = vld [vmem:[%s284 + $0x53] sm:$0x3f]
      %v958 = vpack.c.bf16 %v949, %v948
      %v959 = vpack.c.bf16 %v951, %v950
      %v960 = vpack.c.bf16 %v953, %v952
      %v961 = vpack.c.bf16 %v955, %v954
      %v962 = vpack.c.bf16 %v957, %v956
      %s963 = scalar_lea.vmem %s3, 256
      %v964 = vld [vmem:[%s963] sm:$0xf]
      %v965 = vld [vmem:[%s963 + $0x4] sm:$0xf]
      %v966 = vld [vmem:[%s963 + $0x8] sm:$0xf]
      %v967 = vld [vmem:[%s963 + $0xc] sm:$0xf]
      %v968 = vld [vmem:[%s963 + $0x10] sm:$0xf]
      %v969 = vld [vmem:[%s963 + $0x14] sm:$0xf]
      %v970 = vld [vmem:[%s963 + $0x18] sm:$0xf]
      %v971 = vld [vmem:[%s963 + $0x1c] sm:$0xf]
      %v972 = vld [vmem:[%s963 + $0x20] sm:$0xf]
      %v973 = vld [vmem:[%s963 + $0x24] sm:$0xf]
      %v974 = vld [vmem:[%s963 + $0x28] sm:$0xf]
      %v975 = vld [vmem:[%s963 + $0x2c] sm:$0xf]
      %v976 = vld [vmem:[%s963 + $0x30] sm:$0xf]
      %v977 = vld [vmem:[%s963 + $0x34] sm:$0xf]
      %v978 = vld [vmem:[%s963 + $0x38] sm:$0xf]
      %v979 = vld [vmem:[%s963 + $0x3c] sm:$0xf]
      %v996 = vunpack.c.l.b16 %v964
      %v997 = vunpack.c.l.b16 %v965
      %v998 = vunpack.c.l.b16 %v966
      %v999 = vunpack.c.l.b16 %v967
      %v1000 = vunpack.c.l.b16 %v968
      %v1001 = vunpack.c.l.b16 %v969
      %v1002 = vunpack.c.l.b16 %v970
      %v1003 = vunpack.c.l.b16 %v971
      %v1004 = vunpack.c.l.b16 %v972
      %v1005 = vunpack.c.l.b16 %v973
      %v1006 = vunpack.c.l.b16 %v974
      %v1007 = vunpack.c.l.b16 %v975
      %v1008 = vunpack.c.l.b16 %v976
      %v1009 = vunpack.c.l.b16 %v977
      %v1010 = vunpack.c.l.b16 %v978
      %v1011 = vunpack.c.l.b16 %v979
      %v1012 = vpack.c.b16 %v997, %v996
      %v1013 = vpack.c.b16 %v999, %v998
      %v1014 = vpack.c.b16 %v1001, %v1000
      %v1015 = vpack.c.b16 %v1003, %v1002
      %v1016 = vpack.c.b16 %v1005, %v1004
      %v1017 = vpack.c.b16 %v1007, %v1006
      %v1018 = vpack.c.b16 %v1009, %v1008
      %v1019 = vpack.c.b16 %v1011, %v1010
      %1028 = vmatprep.subr.bf16.mxu0 0
      %1029 = vmatpush1.bf16.msra.mxu0 %v1012
      %1030 = vmatprep.subr.bf16.mxu0 0
      %1031 = vmatpush1.bf16.msra.mxu0 %v1013
      %1032 = vmatprep.subr.bf16.mxu0 0
      %1033 = vmatpush1.bf16.msra.mxu0 %v1014
      %1034 = vmatprep.subr.bf16.mxu0 0
      %1035 = vmatpush1.bf16.msra.mxu0 %v1015
      %1036 = vmatprep.subr.bf16.mxu0 0
      %1037 = vmatpush1.bf16.msra.mxu0 %v1016
      %1038 = vmatprep.subr.bf16.mxu0 0
      %1039 = vmatpush1.bf16.msra.mxu0 %v1017
      %1040 = vmatprep.subr.bf16.mxu0 0
      %1041 = vmatpush1.bf16.msra.mxu0 %v1018
      %1042 = vmatprep.subr.bf16.mxu0 0
      %1043 = vmatpush1.bf16.msra.mxu0 %v1019
      %1044 = vmatprep.subr.bf16.mxu0 0
      %1045 = vmatpush1.bf16.msra.mxu0 0
      %1046 = vmatprep.subr.bf16.mxu0 0
      %1047 = vmatpush1.bf16.msra.mxu0 0
      %1048 = vmatprep.subr.bf16.mxu0 0
      %1049 = vmatpush1.bf16.msra.mxu0 0
      %1050 = vmatprep.subr.bf16.mxu0 0
      %1051 = vmatpush1.bf16.msra.mxu0 0
      %1052 = vmatprep.subr.bf16.mxu0 0
      %1053 = vmatpush1.bf16.msra.mxu0 0
      %1054 = vmatprep.subr.bf16.mxu0 0
      %1055 = vmatpush1.bf16.msra.mxu0 0
      %1056 = vmatprep.subr.bf16.mxu0 0
      %1057 = vmatpush1.bf16.msra.mxu0 0
      %1058 = vmatprep.subr.bf16.mxu0 0
      %1059 = vmatpush1.bf16.msra.mxu0 0
      %1060 = vmatprep.mubr.bf16.mxu0 0
      %1061 = vmatmul.mubr.bf16.gmra.mrb[0].mxu0 %v958
      %v1062 = vpop.f32.mrb[0].mxu0
      %v1063 = vadd.f32 0.0, %v1062
      %v1064 = vpop.f32.mrb[0].mxu0
      %v1065 = vpop.f32.mrb[0].mxu0
      %v1066 = vadd.f32 0.0, %v1065
      %v1067 = vpop.f32.mrb[0].mxu0
      %1068 = vmatprep.mubr.bf16.mxu0 0
      %1069 = vmatmul.mubr.bf16.gmra.mrb[0].mxu0 %v959
      %v1070 = vpop.f32.mrb[0].mxu0
      %v1071 = vadd.f32 0.0, %v1070
      %v1072 = vpop.f32.mrb[0].mxu0
      %v1073 = vpop.f32.mrb[0].mxu0
      %v1074 = vadd.f32 0.0, %v1073
      %v1075 = vpop.f32.mrb[0].mxu0
      %1076 = vmatprep.mubr.bf16.mxu0 0
      %1077 = vmatmul.mubr.bf16.gmra.mrb[0].mxu0 %v960
      %v1078 = vpop.f32.mrb[0].mxu0
      %v1079 = vadd.f32 0.0, %v1078
      %v1080 = vpop.f32.mrb[0].mxu0
      %v1081 = vpop.f32.mrb[0].mxu0
      %v1082 = vadd.f32 0.0, %v1081
      %v1083 = vpop.f32.mrb[0].mxu0
      %1084 = vmatprep.mubr.bf16.mxu0 0
      %1085 = vmatmul.mubr.bf16.gmra.mrb[0].mxu0 %v961
      %v1086 = vpop.f32.mrb[0].mxu0
      %v1087 = vadd.f32 0.0, %v1086
      %v1088 = vpop.f32.mrb[0].mxu0
      %v1089 = vpop.f32.mrb[0].mxu0
      %v1090 = vadd.f32 0.0, %v1089
      %v1091 = vpop.f32.mrb[0].mxu0
      %1092 = vmatprep.mubr.bf16.mxu0 0
      %1093 = vmatmul.mubr.bf16.gmra.mrb[0].mxu0 %v962
      %v1094 = vpop.f32.mrb[0].mxu0
      %v1095 = vadd.f32 0.0, %v1094
      %v1096 = vpop.f32.mrb[0].mxu0
      %v1097 = vpop.f32.mrb[0].mxu0
      %v1098 = vadd.f32 0.0, %v1097
      %v1099 = vpop.f32.mrb[0].mxu0
      %1100 = vdwg.mxu0
      %v1101 = vadd.f32 %v938, %v1063
      %v1102 = vadd.f32 %v939, %v1066
      %v1103 = vadd.f32 %v940, %v1071
      %v1104 = vadd.f32 %v941, %v1074
      %v1105 = vadd.f32 %v942, %v1079
      %v1106 = vadd.f32 %v943, %v1082
      %v1107 = vadd.f32 %v944, %v1087
      %v1108 = vadd.f32 %v945, %v1090
      %v1109 = vadd.f32 %v946, %v1095
      %v1110 = vadd.f32 %v947, %v1098
      %v1111 = vld [vmem:[%s284 + $0xc] sm:$0xff]
      %v1112 = vld [vmem:[%s284 + $0x14] sm:$0xff]
      %v1113 = vld [vmem:[%s284 + $0x1c] sm:$0xff]
      %v1114 = vld [vmem:[%s284 + $0x24] sm:$0xff]
      %v1115 = vld [vmem:[%s284 + $0x2c] sm:$0xff]
      %v1116 = vld [vmem:[%s284 + $0x34] sm:$0xff]
      %v1117 = vld [vmem:[%s284 + $0x3c] sm:$0xff]
      %v1118 = vld [vmem:[%s284 + $0x44] sm:$0xff]
      %v1119 = vld [vmem:[%s284 + $0x4c] sm:$0xff]
      %v1120 = vld [vmem:[%s284 + $0x54] sm:$0x3f]
      %v1121 = vpack.c.bf16 %v1112, %v1111
      %v1122 = vpack.c.bf16 %v1114, %v1113
      %v1123 = vpack.c.bf16 %v1116, %v1115
      %v1124 = vpack.c.bf16 %v1118, %v1117
      %v1125 = vpack.c.bf16 %v1120, %v1119
      %s1126 = scalar_lea.vmem %s3, 320
      %v1127 = vld [vmem:[%s1126] sm:$0xf]
      %v1128 = vld [vmem:[%s1126 + $0x4] sm:$0xf]
      %v1129 = vld [vmem:[%s1126 + $0x8] sm:$0xf]
      %v1130 = vld [vmem:[%s1126 + $0xc] sm:$0xf]
      %v1131 = vld [vmem:[%s1126 + $0x10] sm:$0xf]
      %v1132 = vld [vmem:[%s1126 + $0x14] sm:$0xf]
      %v1133 = vld [vmem:[%s1126 + $0x18] sm:$0xf]
      %v1134 = vld [vmem:[%s1126 + $0x1c] sm:$0xf]
      %v1135 = vld [vmem:[%s1126 + $0x20] sm:$0xf]
      %v1136 = vld [vmem:[%s1126 + $0x24] sm:$0xf]
      %v1137 = vld [vmem:[%s1126 + $0x28] sm:$0xf]
      %v1138 = vld [vmem:[%s1126 + $0x2c] sm:$0xf]
      %v1139 = vld [vmem:[%s1126 + $0x30] sm:$0xf]
      %v1140 = vld [vmem:[%s1126 + $0x34] sm:$0xf]
      %v1141 = vld [vmem:[%s1126 + $0x38] sm:$0xf]
      %v1142 = vld [vmem:[%s1126 + $0x3c] sm:$0xf]
      %v1159 = vunpack.c.l.b16 %v1127
      %v1160 = vunpack.c.l.b16 %v1128
      %v1161 = vunpack.c.l.b16 %v1129
      %v1162 = vunpack.c.l.b16 %v1130
      %v1163 = vunpack.c.l.b16 %v1131
      %v1164 = vunpack.c.l.b16 %v1132
      %v1165 = vunpack.c.l.b16 %v1133
      %v1166 = vunpack.c.l.b16 %v1134
      %v1167 = vunpack.c.l.b16 %v1135
      %v1168 = vunpack.c.l.b16 %v1136
      %v1169 = vunpack.c.l.b16 %v1137
      %v1170 = vunpack.c.l.b16 %v1138
      %v1171 = vunpack.c.l.b16 %v1139
      %v1172 = vunpack.c.l.b16 %v1140
      %v1173 = vunpack.c.l.b16 %v1141
      %v1174 = vunpack.c.l.b16 %v1142
      %v1175 = vpack.c.b16 %v1160, %v1159
      %v1176 = vpack.c.b16 %v1162, %v1161
      %v1177 = vpack.c.b16 %v1164, %v1163
      %v1178 = vpack.c.b16 %v1166, %v1165
      %v1179 = vpack.c.b16 %v1168, %v1167
      %v1180 = vpack.c.b16 %v1170, %v1169
      %v1181 = vpack.c.b16 %v1172, %v1171
      %v1182 = vpack.c.b16 %v1174, %v1173
      %1191 = vmatprep.subr.bf16.mxu0 0
      %1192 = vmatpush1.bf16.msra.mxu0 %v1175
      %1193 = vmatprep.subr.bf16.mxu0 0
      %1194 = vmatpush1.bf16.msra.mxu0 %v1176
      %1195 = vmatprep.subr.bf16.mxu0 0
      %1196 = vmatpush1.bf16.msra.mxu0 %v1177
      %1197 = vmatprep.subr.bf16.mxu0 0
      %1198 = vmatpush1.bf16.msra.mxu0 %v1178
      %1199 = vmatprep.subr.bf16.mxu0 0
      %1200 = vmatpush1.bf16.msra.mxu0 %v1179
      %1201 = vmatprep.subr.bf16.mxu0 0
      %1202 = vmatpush1.bf16.msra.mxu0 %v1180
      %1203 = vmatprep.subr.bf16.mxu0 0
      %1204 = vmatpush1.bf16.msra.mxu0 %v1181
      %1205 = vmatprep.subr.bf16.mxu0 0
      %1206 = vmatpush1.bf16.msra.mxu0 %v1182
      %1207 = vmatprep.subr.bf16.mxu0 0
      %1208 = vmatpush1.bf16.msra.mxu0 0
      %1209 = vmatprep.subr.bf16.mxu0 0
      %1210 = vmatpush1.bf16.msra.mxu0 0
      %1211 = vmatprep.subr.bf16.mxu0 0
      %1212 = vmatpush1.bf16.msra.mxu0 0
      %1213 = vmatprep.subr.bf16.mxu0 0
      %1214 = vmatpush1.bf16.msra.mxu0 0
      %1215 = vmatprep.subr.bf16.mxu0 0
      %1216 = vmatpush1.bf16.msra.mxu0 0
      %1217 = vmatprep.subr.bf16.mxu0 0
      %1218 = vmatpush1.bf16.msra.mxu0 0
      %1219 = vmatprep.subr.bf16.mxu0 0
      %1220 = vmatpush1.bf16.msra.mxu0 0
      %1221 = vmatprep.subr.bf16.mxu0 0
      %1222 = vmatpush1.bf16.msra.mxu0 0
      %1223 = vmatprep.mubr.bf16.mxu0 0
      %1224 = vmatmul.mubr.bf16.gmra.mrb[0].mxu0 %v1121
      %v1225 = vpop.f32.mrb[0].mxu0
      %v1226 = vadd.f32 0.0, %v1225
      %v1227 = vpop.f32.mrb[0].mxu0
      %v1228 = vpop.f32.mrb[0].mxu0
      %v1229 = vadd.f32 0.0, %v1228
      %v1230 = vpop.f32.mrb[0].mxu0
      %1231 = vmatprep.mubr.bf16.mxu0 0
      %1232 = vmatmul.mubr.bf16.gmra.mrb[0].mxu0 %v1122
      %v1233 = vpop.f32.mrb[0].mxu0
      %v1234 = vadd.f32 0.0, %v1233
      %v1235 = vpop.f32.mrb[0].mxu0
      %v1236 = vpop.f32.mrb[0].mxu0
      %v1237 = vadd.f32 0.0, %v1236
      %v1238 = vpop.f32.mrb[0].mxu0
      %1239 = vmatprep.mubr.bf16.mxu0 0
      %1240 = vmatmul.mubr.bf16.gmra.mrb[0].mxu0 %v1123
      %v1241 = vpop.f32.mrb[0].mxu0
      %v1242 = vadd.f32 0.0, %v1241
      %v1243 = vpop.f32.mrb[0].mxu0
      %v1244 = vpop.f32.mrb[0].mxu0
      %v1245 = vadd.f32 0.0, %v1244
      %v1246 = vpop.f32.mrb[0].mxu0
      %1247 = vmatprep.mubr.bf16.mxu0 0
      %1248 = vmatmul.mubr.bf16.gmra.mrb[0].mxu0 %v1124
      %v1249 = vpop.f32.mrb[0].mxu0
      %v1250 = vadd.f32 0.0, %v1249
      %v1251 = vpop.f32.mrb[0].mxu0
      %v1252 = vpop.f32.mrb[0].mxu0
      %v1253 = vadd.f32 0.0, %v1252
      %v1254 = vpop.f32.mrb[0].mxu0
      %1255 = vmatprep.mubr.bf16.mxu0 0
      %1256 = vmatmul.mubr.bf16.gmra.mrb[0].mxu0 %v1125
      %v1257 = vpop.f32.mrb[0].mxu0
      %v1258 = vadd.f32 0.0, %v1257
      %v1259 = vpop.f32.mrb[0].mxu0
      %v1260 = vpop.f32.mrb[0].mxu0
      %v1261 = vadd.f32 0.0, %v1260
      %v1262 = vpop.f32.mrb[0].mxu0
      %1263 = vdwg.mxu0
      %v1264 = vadd.f32 %v1101, %v1226
      %v1265 = vadd.f32 %v1102, %v1229
      %v1266 = vadd.f32 %v1103, %v1234
      %v1267 = vadd.f32 %v1104, %v1237
      %v1268 = vadd.f32 %v1105, %v1242
      %v1269 = vadd.f32 %v1106, %v1245
      %v1270 = vadd.f32 %v1107, %v1250
      %v1271 = vadd.f32 %v1108, %v1253
      %v1272 = vadd.f32 %v1109, %v1258
      %v1273 = vadd.f32 %v1110, %v1261
      %v1274 = vld [vmem:[%s284 + $0x14] sm:$0xff]
      %v1275 = vld [vmem:[%s284 + $0x1c] sm:$0xff]
      %v1276 = vld [vmem:[%s284 + $0x24] sm:$0xff]
      %v1277 = vld [vmem:[%s284 + $0x2c] sm:$0xff]
      %v1278 = vld [vmem:[%s284 + $0x34] sm:$0xff]
      %v1279 = vld [vmem:[%s284 + $0x3c] sm:$0xff]
      %v1280 = vld [vmem:[%s284 + $0x44] sm:$0xff]
      %v1281 = vld [vmem:[%s284 + $0x4c] sm:$0xff]
      %v1282 = vld [vmem:[%s284 + $0x54] sm:$0xff]
      %v1283 = vld [vmem:[%s284 + $0x5c] sm:$0x3f]
      %v1284 = vpack.c.bf16 %v1275, %v1274
      %v1285 = vpack.c.bf16 %v1277, %v1276
      %v1286 = vpack.c.bf16 %v1279, %v1278
      %v1287 = vpack.c.bf16 %v1281, %v1280
      %v1288 = vpack.c.bf16 %v1283, %v1282
      %s1289 = scalar_lea.vmem %s3, 384
      %v1290 = vld [vmem:[%s1289] sm:$0xf]
      %v1291 = vld [vmem:[%s1289 + $0x4] sm:$0xf]
      %v1292 = vld [vmem:[%s1289 + $0x8] sm:$0xf]
      %v1293 = vld [vmem:[%s1289 + $0xc] sm:$0xf]
      %v1294 = vld [vmem:[%s1289 + $0x10] sm:$0xf]
      %v1295 = vld [vmem:[%s1289 + $0x14] sm:$0xf]
      %v1296 = vld [vmem:[%s1289 + $0x18] sm:$0xf]
      %v1297 = vld [vmem:[%s1289 + $0x1c] sm:$0xf]
      %v1298 = vld [vmem:[%s1289 + $0x20] sm:$0xf]
      %v1299 = vld [vmem:[%s1289 + $0x24] sm:$0xf]
      %v1300 = vld [vmem:[%s1289 + $0x28] sm:$0xf]
      %v1301 = vld [vmem:[%s1289 + $0x2c] sm:$0xf]
      %v1302 = vld [vmem:[%s1289 + $0x30] sm:$0xf]
      %v1303 = vld [vmem:[%s1289 + $0x34] sm:$0xf]
      %v1304 = vld [vmem:[%s1289 + $0x38] sm:$0xf]
      %v1305 = vld [vmem:[%s1289 + $0x3c] sm:$0xf]
      %v1322 = vunpack.c.l.b16 %v1290
      %v1323 = vunpack.c.l.b16 %v1291
      %v1324 = vunpack.c.l.b16 %v1292
      %v1325 = vunpack.c.l.b16 %v1293
      %v1326 = vunpack.c.l.b16 %v1294
      %v1327 = vunpack.c.l.b16 %v1295
      %v1328 = vunpack.c.l.b16 %v1296
      %v1329 = vunpack.c.l.b16 %v1297
      %v1330 = vunpack.c.l.b16 %v1298
      %v1331 = vunpack.c.l.b16 %v1299
      %v1332 = vunpack.c.l.b16 %v1300
      %v1333 = vunpack.c.l.b16 %v1301
      %v1334 = vunpack.c.l.b16 %v1302
      %v1335 = vunpack.c.l.b16 %v1303
      %v1336 = vunpack.c.l.b16 %v1304
      %v1337 = vunpack.c.l.b16 %v1305
      %v1338 = vpack.c.b16 %v1323, %v1322
      %v1339 = vpack.c.b16 %v1325, %v1324
      %v1340 = vpack.c.b16 %v1327, %v1326
      %v1341 = vpack.c.b16 %v1329, %v1328
      %v1342 = vpack.c.b16 %v1331, %v1330
      %v1343 = vpack.c.b16 %v1333, %v1332
      %v1344 = vpack.c.b16 %v1335, %v1334
      %v1345 = vpack.c.b16 %v1337, %v1336
      %1354 = vmatprep.subr.bf16.mxu0 0
      %1355 = vmatpush1.bf16.msra.mxu0 %v1338
      %1356 = vmatprep.subr.bf16.mxu0 0
      %1357 = vmatpush1.bf16.msra.mxu0 %v1339
      %1358 = vmatprep.subr.bf16.mxu0 0
      %1359 = vmatpush1.bf16.msra.mxu0 %v1340
      %1360 = vmatprep.subr.bf16.mxu0 0
      %1361 = vmatpush1.bf16.msra.mxu0 %v1341
      %1362 = vmatprep.subr.bf16.mxu0 0
      %1363 = vmatpush1.bf16.msra.mxu0 %v1342
      %1364 = vmatprep.subr.bf16.mxu0 0
      %1365 = vmatpush1.bf16.msra.mxu0 %v1343
      %1366 = vmatprep.subr.bf16.mxu0 0
      %1367 = vmatpush1.bf16.msra.mxu0 %v1344
      %1368 = vmatprep.subr.bf16.mxu0 0
      %1369 = vmatpush1.bf16.msra.mxu0 %v1345
      %1370 = vmatprep.subr.bf16.mxu0 0
      %1371 = vmatpush1.bf16.msra.mxu0 0
      %1372 = vmatprep.subr.bf16.mxu0 0
      %1373 = vmatpush1.bf16.msra.mxu0 0
      %1374 = vmatprep.subr.bf16.mxu0 0
      %1375 = vmatpush1.bf16.msra.mxu0 0
      %1376 = vmatprep.subr.bf16.mxu0 0
      %1377 = vmatpush1.bf16.msra.mxu0 0
      %1378 = vmatprep.subr.bf16.mxu0 0
      %1379 = vmatpush1.bf16.msra.mxu0 0
      %1380 = vmatprep.subr.bf16.mxu0 0
      %1381 = vmatpush1.bf16.msra.mxu0 0
      %1382 = vmatprep.subr.bf16.mxu0 0
      %1383 = vmatpush1.bf16.msra.mxu0 0
      %1384 = vmatprep.subr.bf16.mxu0 0
      %1385 = vmatpush1.bf16.msra.mxu0 0
      %1386 = vmatprep.mubr.bf16.mxu0 0
      %1387 = vmatmul.mubr.bf16.gmra.mrb[0].mxu0 %v1284
      %v1388 = vpop.f32.mrb[0].mxu0
      %v1389 = vadd.f32 0.0, %v1388
      %v1390 = vpop.f32.mrb[0].mxu0
      %v1391 = vpop.f32.mrb[0].mxu0
      %v1392 = vadd.f32 0.0, %v1391
      %v1393 = vpop.f32.mrb[0].mxu0
      %1394 = vmatprep.mubr.bf16.mxu0 0
      %1395 = vmatmul.mubr.bf16.gmra.mrb[0].mxu0 %v1285
      %v1396 = vpop.f32.mrb[0].mxu0
      %v1397 = vadd.f32 0.0, %v1396
      %v1398 = vpop.f32.mrb[0].mxu0
      %v1399 = vpop.f32.mrb[0].mxu0
      %v1400 = vadd.f32 0.0, %v1399
      %v1401 = vpop.f32.mrb[0].mxu0
      %1402 = vmatprep.mubr.bf16.mxu0 0
      %1403 = vmatmul.mubr.bf16.gmra.mrb[0].mxu0 %v1286
      %v1404 = vpop.f32.mrb[0].mxu0
      %v1405 = vadd.f32 0.0, %v1404
      %v1406 = vpop.f32.mrb[0].mxu0
      %v1407 = vpop.f32.mrb[0].mxu0
      %v1408 = vadd.f32 0.0, %v1407
      %v1409 = vpop.f32.mrb[0].mxu0
      %1410 = vmatprep.mubr.bf16.mxu0 0
      %1411 = vmatmul.mubr.bf16.gmra.mrb[0].mxu0 %v1287
      %v1412 = vpop.f32.mrb[0].mxu0
      %v1413 = vadd.f32 0.0, %v1412
      %v1414 = vpop.f32.mrb[0].mxu0
      %v1415 = vpop.f32.mrb[0].mxu0
      %v1416 = vadd.f32 0.0, %v1415
      %v1417 = vpop.f32.mrb[0].mxu0
      %1418 = vmatprep.mubr.bf16.mxu0 0
      %1419 = vmatmul.mubr.bf16.gmra.mrb[0].mxu0 %v1288
      %v1420 = vpop.f32.mrb[0].mxu0
      %v1421 = vadd.f32 0.0, %v1420
      %v1422 = vpop.f32.mrb[0].mxu0
      %v1423 = vpop.f32.mrb[0].mxu0
      %v1424 = vadd.f32 0.0, %v1423
      %v1425 = vpop.f32.mrb[0].mxu0
      %1426 = vdwg.mxu0
      %v1427 = vadd.f32 %v1264, %v1389
      %v1428 = vadd.f32 %v1265, %v1392
      %v1429 = vadd.f32 %v1266, %v1397
      %v1430 = vadd.f32 %v1267, %v1400
      %v1431 = vadd.f32 %v1268, %v1405
      %v1432 = vadd.f32 %v1269, %v1408
      %v1433 = vadd.f32 %v1270, %v1413
      %v1434 = vadd.f32 %v1271, %v1416
      %v1435 = vadd.f32 %v1272, %v1421
      %v1436 = vadd.f32 %v1273, %v1424
      %v1437 = vld [vmem:[%s284 + $0x15] sm:$0xff]
      %v1438 = vld [vmem:[%s284 + $0x1d] sm:$0xff]
      %v1439 = vld [vmem:[%s284 + $0x25] sm:$0xff]
      %v1440 = vld [vmem:[%s284 + $0x2d] sm:$0xff]
      %v1441 = vld [vmem:[%s284 + $0x35] sm:$0xff]
      %v1442 = vld [vmem:[%s284 + $0x3d] sm:$0xff]
      %v1443 = vld [vmem:[%s284 + $0x45] sm:$0xff]
      %v1444 = vld [vmem:[%s284 + $0x4d] sm:$0xff]
      %v1445 = vld [vmem:[%s284 + $0x55] sm:$0xff]
      %v1446 = vld [vmem:[%s284 + $0x5d] sm:$0x3f]
      %v1447 = vpack.c.bf16 %v1438, %v1437
      %v1448 = vpack.c.bf16 %v1440, %v1439
      %v1449 = vpack.c.bf16 %v1442, %v1441
      %v1450 = vpack.c.bf16 %v1444, %v1443
      %v1451 = vpack.c.bf16 %v1446, %v1445
      %s1452 = scalar_lea.vmem %s3, 448
      %v1453 = vld [vmem:[%s1452] sm:$0xf]
      %v1454 = vld [vmem:[%s1452 + $0x4] sm:$0xf]
      %v1455 = vld [vmem:[%s1452 + $0x8] sm:$0xf]
      %v1456 = vld [vmem:[%s1452 + $0xc] sm:$0xf]
      %v1457 = vld [vmem:[%s1452 + $0x10] sm:$0xf]
      %v1458 = vld [vmem:[%s1452 + $0x14] sm:$0xf]
      %v1459 = vld [vmem:[%s1452 + $0x18] sm:$0xf]
      %v1460 = vld [vmem:[%s1452 + $0x1c] sm:$0xf]
      %v1461 = vld [vmem:[%s1452 + $0x20] sm:$0xf]
      %v1462 = vld [vmem:[%s1452 + $0x24] sm:$0xf]
      %v1463 = vld [vmem:[%s1452 + $0x28] sm:$0xf]
      %v1464 = vld [vmem:[%s1452 + $0x2c] sm:$0xf]
      %v1465 = vld [vmem:[%s1452 + $0x30] sm:$0xf]
      %v1466 = vld [vmem:[%s1452 + $0x34] sm:$0xf]
      %v1467 = vld [vmem:[%s1452 + $0x38] sm:$0xf]
      %v1468 = vld [vmem:[%s1452 + $0x3c] sm:$0xf]
      %v1485 = vunpack.c.l.b16 %v1453
      %v1486 = vunpack.c.l.b16 %v1454
      %v1487 = vunpack.c.l.b16 %v1455
      %v1488 = vunpack.c.l.b16 %v1456
      %v1489 = vunpack.c.l.b16 %v1457
      %v1490 = vunpack.c.l.b16 %v1458
      %v1491 = vunpack.c.l.b16 %v1459
      %v1492 = vunpack.c.l.b16 %v1460
      %v1493 = vunpack.c.l.b16 %v1461
      %v1494 = vunpack.c.l.b16 %v1462
      %v1495 = vunpack.c.l.b16 %v1463
      %v1496 = vunpack.c.l.b16 %v1464
      %v1497 = vunpack.c.l.b16 %v1465
      %v1498 = vunpack.c.l.b16 %v1466
      %v1499 = vunpack.c.l.b16 %v1467
      %v1500 = vunpack.c.l.b16 %v1468
      %v1501 = vpack.c.b16 %v1486, %v1485
      %v1502 = vpack.c.b16 %v1488, %v1487
      %v1503 = vpack.c.b16 %v1490, %v1489
      %v1504 = vpack.c.b16 %v1492, %v1491
      %v1505 = vpack.c.b16 %v1494, %v1493
      %v1506 = vpack.c.b16 %v1496, %v1495
      %v1507 = vpack.c.b16 %v1498, %v1497
      %v1508 = vpack.c.b16 %v1500, %v1499
      %1517 = vmatprep.subr.bf16.mxu0 0
      %1518 = vmatpush1.bf16.msra.mxu0 %v1501
      %1519 = vmatprep.subr.bf16.mxu0 0
      %1520 = vmatpush1.bf16.msra.mxu0 %v1502
      %1521 = vmatprep.subr.bf16.mxu0 0
      %1522 = vmatpush1.bf16.msra.mxu0 %v1503
      %1523 = vmatprep.subr.bf16.mxu0 0
      %1524 = vmatpush1.bf16.msra.mxu0 %v1504
      %1525 = vmatprep.subr.bf16.mxu0 0
      %1526 = vmatpush1.bf16.msra.mxu0 %v1505
      %1527 = vmatprep.subr.bf16.mxu0 0
      %1528 = vmatpush1.bf16.msra.mxu0 %v1506
      %1529 = vmatprep.subr.bf16.mxu0 0
      %1530 = vmatpush1.bf16.msra.mxu0 %v1507
      %1531 = vmatprep.subr.bf16.mxu0 0
      %1532 = vmatpush1.bf16.msra.mxu0 %v1508
      %1533 = vmatprep.subr.bf16.mxu0 0
      %1534 = vmatpush1.bf16.msra.mxu0 0
      %1535 = vmatprep.subr.bf16.mxu0 0
      %1536 = vmatpush1.bf16.msra.mxu0 0
      %1537 = vmatprep.subr.bf16.mxu0 0
      %1538 = vmatpush1.bf16.msra.mxu0 0
      %1539 = vmatprep.subr.bf16.mxu0 0
      %1540 = vmatpush1.bf16.msra.mxu0 0
      %1541 = vmatprep.subr.bf16.mxu0 0
      %1542 = vmatpush1.bf16.msra.mxu0 0
      %1543 = vmatprep.subr.bf16.mxu0 0
      %1544 = vmatpush1.bf16.msra.mxu0 0
      %1545 = vmatprep.subr.bf16.mxu0 0
      %1546 = vmatpush1.bf16.msra.mxu0 0
      %1547 = vmatprep.subr.bf16.mxu0 0
      %1548 = vmatpush1.bf16.msra.mxu0 0
      %1549 = vmatprep.mubr.bf16.mxu0 0
      %1550 = vmatmul.mubr.bf16.gmra.mrb[0].mxu0 %v1447
      %v1551 = vpop.f32.mrb[0].mxu0
      %v1552 = vadd.f32 0.0, %v1551
      %v1553 = vpop.f32.mrb[0].mxu0
      %v1554 = vpop.f32.mrb[0].mxu0
      %v1555 = vadd.f32 0.0, %v1554
      %v1556 = vpop.f32.mrb[0].mxu0
      %1557 = vmatprep.mubr.bf16.mxu0 0
      %1558 = vmatmul.mubr.bf16.gmra.mrb[0].mxu0 %v1448
      %v1559 = vpop.f32.mrb[0].mxu0
      %v1560 = vadd.f32 0.0, %v1559
      %v1561 = vpop.f32.mrb[0].mxu0
      %v1562 = vpop.f32.mrb[0].mxu0
      %v1563 = vadd.f32 0.0, %v1562
      %v1564 = vpop.f32.mrb[0].mxu0
      %1565 = vmatprep.mubr.bf16.mxu0 0
      %1566 = vmatmul.mubr.bf16.gmra.mrb[0].mxu0 %v1449
      %v1567 = vpop.f32.mrb[0].mxu0
      %v1568 = vadd.f32 0.0, %v1567
      %v1569 = vpop.f32.mrb[0].mxu0
      %v1570 = vpop.f32.mrb[0].mxu0
      %v1571 = vadd.f32 0.0, %v1570
      %v1572 = vpop.f32.mrb[0].mxu0
      %1573 = vmatprep.mubr.bf16.mxu0 0
      %1574 = vmatmul.mubr.bf16.gmra.mrb[0].mxu0 %v1450
      %v1575 = vpop.f32.mrb[0].mxu0
      %v1576 = vadd.f32 0.0, %v1575
      %v1577 = vpop.f32.mrb[0].mxu0
      %v1578 = vpop.f32.mrb[0].mxu0
      %v1579 = vadd.f32 0.0, %v1578
      %v1580 = vpop.f32.mrb[0].mxu0
      %1581 = vmatprep.mubr.bf16.mxu0 0
      %1582 = vmatmul.mubr.bf16.gmra.mrb[0].mxu0 %v1451
      %v1583 = vpop.f32.mrb[0].mxu0
      %v1584 = vadd.f32 0.0, %v1583
      %v1585 = vpop.f32.mrb[0].mxu0
      %v1586 = vpop.f32.mrb[0].mxu0
      %v1587 = vadd.f32 0.0, %v1586
      %v1588 = vpop.f32.mrb[0].mxu0
      %1589 = vdwg.mxu0
      %v1590 = vadd.f32 %v1427, %v1552
      %v1591 = vadd.f32 %v1428, %v1555
      %v1592 = vadd.f32 %v1429, %v1560
      %v1593 = vadd.f32 %v1430, %v1563
      %v1594 = vadd.f32 %v1431, %v1568
      %v1595 = vadd.f32 %v1432, %v1571
      %v1596 = vadd.f32 %v1433, %v1576
      %v1597 = vadd.f32 %v1434, %v1579
      %v1598 = vadd.f32 %v1435, %v1584
      %v1599 = vadd.f32 %v1436, %v1587
      %v1600 = vld [vmem:[%s284 + $0x16] sm:$0xff]
      %v1601 = vld [vmem:[%s284 + $0x1e] sm:$0xff]
      %v1602 = vld [vmem:[%s284 + $0x26] sm:$0xff]
      %v1603 = vld [vmem:[%s284 + $0x2e] sm:$0xff]
      %v1604 = vld [vmem:[%s284 + $0x36] sm:$0xff]
      %v1605 = vld [vmem:[%s284 + $0x3e] sm:$0xff]
      %v1606 = vld [vmem:[%s284 + $0x46] sm:$0xff]
      %v1607 = vld [vmem:[%s284 + $0x4e] sm:$0xff]
      %v1608 = vld [vmem:[%s284 + $0x56] sm:$0xff]
      %v1609 = vld [vmem:[%s284 + $0x5e] sm:$0x3f]
      %v1610 = vpack.c.bf16 %v1601, %v1600
      %v1611 = vpack.c.bf16 %v1603, %v1602
      %v1612 = vpack.c.bf16 %v1605, %v1604
      %v1613 = vpack.c.bf16 %v1607, %v1606
      %v1614 = vpack.c.bf16 %v1609, %v1608
      %s1615 = scalar_lea.vmem %s3, 512
      %v1616 = vld [vmem:[%s1615] sm:$0xf]
      %v1617 = vld [vmem:[%s1615 + $0x4] sm:$0xf]
      %v1618 = vld [vmem:[%s1615 + $0x8] sm:$0xf]
      %v1619 = vld [vmem:[%s1615 + $0xc] sm:$0xf]
      %v1620 = vld [vmem:[%s1615 + $0x10] sm:$0xf]
      %v1621 = vld [vmem:[%s1615 + $0x14] sm:$0xf]
      %v1622 = vld [vmem:[%s1615 + $0x18] sm:$0xf]
      %v1623 = vld [vmem:[%s1615 + $0x1c] sm:$0xf]
      %v1624 = vld [vmem:[%s1615 + $0x20] sm:$0xf]
      %v1625 = vld [vmem:[%s1615 + $0x24] sm:$0xf]
      %v1626 = vld [vmem:[%s1615 + $0x28] sm:$0xf]
      %v1627 = vld [vmem:[%s1615 + $0x2c] sm:$0xf]
      %v1628 = vld [vmem:[%s1615 + $0x30] sm:$0xf]
      %v1629 = vld [vmem:[%s1615 + $0x34] sm:$0xf]
      %v1630 = vld [vmem:[%s1615 + $0x38] sm:$0xf]
      %v1631 = vld [vmem:[%s1615 + $0x3c] sm:$0xf]
      %v1648 = vunpack.c.l.b16 %v1616
      %v1649 = vunpack.c.l.b16 %v1617
      %v1650 = vunpack.c.l.b16 %v1618
      %v1651 = vunpack.c.l.b16 %v1619
      %v1652 = vunpack.c.l.b16 %v1620
      %v1653 = vunpack.c.l.b16 %v1621
      %v1654 = vunpack.c.l.b16 %v1622
      %v1655 = vunpack.c.l.b16 %v1623
      %v1656 = vunpack.c.l.b16 %v1624
      %v1657 = vunpack.c.l.b16 %v1625
      %v1658 = vunpack.c.l.b16 %v1626
      %v1659 = vunpack.c.l.b16 %v1627
      %v1660 = vunpack.c.l.b16 %v1628
      %v1661 = vunpack.c.l.b16 %v1629
      %v1662 = vunpack.c.l.b16 %v1630
      %v1663 = vunpack.c.l.b16 %v1631
      %v1664 = vpack.c.b16 %v1649, %v1648
      %v1665 = vpack.c.b16 %v1651, %v1650
      %v1666 = vpack.c.b16 %v1653, %v1652
      %v1667 = vpack.c.b16 %v1655, %v1654
      %v1668 = vpack.c.b16 %v1657, %v1656
      %v1669 = vpack.c.b16 %v1659, %v1658
      %v1670 = vpack.c.b16 %v1661, %v1660
      %v1671 = vpack.c.b16 %v1663, %v1662
      %1680 = vmatprep.subr.bf16.mxu0 0
      %1681 = vmatpush1.bf16.msra.mxu0 %v1664
      %1682 = vmatprep.subr.bf16.mxu0 0
      %1683 = vmatpush1.bf16.msra.mxu0 %v1665
      %1684 = vmatprep.subr.bf16.mxu0 0
      %1685 = vmatpush1.bf16.msra.mxu0 %v1666
      %1686 = vmatprep.subr.bf16.mxu0 0
      %1687 = vmatpush1.bf16.msra.mxu0 %v1667
      %1688 = vmatprep.subr.bf16.mxu0 0
      %1689 = vmatpush1.bf16.msra.mxu0 %v1668
      %1690 = vmatprep.subr.bf16.mxu0 0
      %1691 = vmatpush1.bf16.msra.mxu0 %v1669
      %1692 = vmatprep.subr.bf16.mxu0 0
      %1693 = vmatpush1.bf16.msra.mxu0 %v1670
      %1694 = vmatprep.subr.bf16.mxu0 0
      %1695 = vmatpush1.bf16.msra.mxu0 %v1671
      %1696 = vmatprep.subr.bf16.mxu0 0
      %1697 = vmatpush1.bf16.msra.mxu0 0
      %1698 = vmatprep.subr.bf16.mxu0 0
      %1699 = vmatpush1.bf16.msra.mxu0 0
      %1700 = vmatprep.subr.bf16.mxu0 0
      %1701 = vmatpush1.bf16.msra.mxu0 0
      %1702 = vmatprep.subr.bf16.mxu0 0
      %1703 = vmatpush1.bf16.msra.mxu0 0
      %1704 = vmatprep.subr.bf16.mxu0 0
      %1705 = vmatpush1.bf16.msra.mxu0 0
      %1706 = vmatprep.subr.bf16.mxu0 0
      %1707 = vmatpush1.bf16.msra.mxu0 0
      %1708 = vmatprep.subr.bf16.mxu0 0
      %1709 = vmatpush1.bf16.msra.mxu0 0
      %1710 = vmatprep.subr.bf16.mxu0 0
      %1711 = vmatpush1.bf16.msra.mxu0 0
      %1712 = vmatprep.mubr.bf16.mxu0 0
      %1713 = vmatmul.mubr.bf16.gmra.mrb[0].mxu0 %v1610
      %v1714 = vpop.f32.mrb[0].mxu0
      %v1715 = vadd.f32 0.0, %v1714
      %v1716 = vpop.f32.mrb[0].mxu0
      %v1717 = vpop.f32.mrb[0].mxu0
      %v1718 = vadd.f32 0.0, %v1717
      %v1719 = vpop.f32.mrb[0].mxu0
      %1720 = vmatprep.mubr.bf16.mxu0 0
      %1721 = vmatmul.mubr.bf16.gmra.mrb[0].mxu0 %v1611
      %v1722 = vpop.f32.mrb[0].mxu0
      %v1723 = vadd.f32 0.0, %v1722
      %v1724 = vpop.f32.mrb[0].mxu0
      %v1725 = vpop.f32.mrb[0].mxu0
      %v1726 = vadd.f32 0.0, %v1725
      %v1727 = vpop.f32.mrb[0].mxu0
      %1728 = vmatprep.mubr.bf16.mxu0 0
      %1729 = vmatmul.mubr.bf16.gmra.mrb[0].mxu0 %v1612
      %v1730 = vpop.f32.mrb[0].mxu0
      %v1731 = vadd.f32 0.0, %v1730
      %v1732 = vpop.f32.mrb[0].mxu0
      %v1733 = vpop.f32.mrb[0].mxu0
      %v1734 = vadd.f32 0.0, %v1733
      %v1735 = vpop.f32.mrb[0].mxu0
      %1736 = vmatprep.mubr.bf16.mxu0 0
      %1737 = vmatmul.mubr.bf16.gmra.mrb[0].mxu0 %v1613
      %v1738 = vpop.f32.mrb[0].mxu0
      %v1739 = vadd.f32 0.0, %v1738
      %v1740 = vpop.f32.mrb[0].mxu0
      %v1741 = vpop.f32.mrb[0].mxu0
      %v1742 = vadd.f32 0.0, %v1741
      %v1743 = vpop.f32.mrb[0].mxu0
      %1744 = vmatprep.mubr.bf16.mxu0 0
      %1745 = vmatmul.mubr.bf16.gmra.mrb[0].mxu0 %v1614
      %v1746 = vpop.f32.mrb[0].mxu0
      %v1747 = vadd.f32 0.0, %v1746
      %v1748 = vpop.f32.mrb[0].mxu0
      %v1749 = vpop.f32.mrb[0].mxu0
      %v1750 = vadd.f32 0.0, %v1749
      %v1751 = vpop.f32.mrb[0].mxu0
      %1752 = vdwg.mxu0
      %v1753 = vadd.f32 %v1590, %v1715
      %v1754 = vadd.f32 %v1591, %v1718
      %v1755 = vadd.f32 %v1592, %v1723
      %v1756 = vadd.f32 %v1593, %v1726
      %v1757 = vadd.f32 %v1594, %v1731
      %v1758 = vadd.f32 %v1595, %v1734
      %v1759 = vadd.f32 %v1596, %v1739
      %v1760 = vadd.f32 %v1597, %v1742
      %v1761 = vadd.f32 %v1598, %v1747
      %v1762 = vadd.f32 %v1599, %v1750
      %v1763 = vld [vmem:[%s294] sm:$0xff]
      %v1764 = vld [vmem:[%s294 + $0x8] sm:$0xff]
      %v1765 = vld [vmem:[%s294 + $0x10] sm:$0xff]
      %v1766 = vld [vmem:[%s294 + $0x18] sm:$0xff]
      %v1767 = vld [vmem:[%s294 + $0x20] sm:$0xff]
      %v1768 = vld [vmem:[%s294 + $0x28] sm:$0xff]
      %v1769 = vld [vmem:[%s294 + $0x30] sm:$0xff]
      %v1770 = vld [vmem:[%s294 + $0x38] sm:$0xff]
      %v1771 = vld [vmem:[%s294 + $0x40] sm:$0xff]
      %v1772 = vld [vmem:[%s294 + $0x48] sm:$0x3f]
      %v1773 = vpack.c.bf16 %v1764, %v1763
      %v1774 = vpack.c.bf16 %v1766, %v1765
      %v1775 = vpack.c.bf16 %v1768, %v1767
      %v1776 = vpack.c.bf16 %v1770, %v1769
      %v1777 = vpack.c.bf16 %v1772, %v1771
      %s1778 = scalar_lea.vmem %s3, 576
      %v1779 = vld [vmem:[%s1778] sm:$0xf]
      %v1780 = vld [vmem:[%s1778 + $0x4] sm:$0xf]
      %v1781 = vld [vmem:[%s1778 + $0x8] sm:$0xf]
      %v1782 = vld [vmem:[%s1778 + $0xc] sm:$0xf]
      %v1783 = vld [vmem:[%s1778 + $0x10] sm:$0xf]
      %v1784 = vld [vmem:[%s1778 + $0x14] sm:$0xf]
      %v1785 = vld [vmem:[%s1778 + $0x18] sm:$0xf]
      %v1786 = vld [vmem:[%s1778 + $0x1c] sm:$0xf]
      %v1787 = vld [vmem:[%s1778 + $0x20] sm:$0xf]
      %v1788 = vld [vmem:[%s1778 + $0x24] sm:$0xf]
      %v1789 = vld [vmem:[%s1778 + $0x28] sm:$0xf]
      %v1790 = vld [vmem:[%s1778 + $0x2c] sm:$0xf]
      %v1791 = vld [vmem:[%s1778 + $0x30] sm:$0xf]
      %v1792 = vld [vmem:[%s1778 + $0x34] sm:$0xf]
      %v1793 = vld [vmem:[%s1778 + $0x38] sm:$0xf]
      %v1794 = vld [vmem:[%s1778 + $0x3c] sm:$0xf]
      %v1811 = vunpack.c.l.b16 %v1779
      %v1812 = vunpack.c.l.b16 %v1780
      %v1813 = vunpack.c.l.b16 %v1781
      %v1814 = vunpack.c.l.b16 %v1782
      %v1815 = vunpack.c.l.b16 %v1783
      %v1816 = vunpack.c.l.b16 %v1784
      %v1817 = vunpack.c.l.b16 %v1785
      %v1818 = vunpack.c.l.b16 %v1786
      %v1819 = vunpack.c.l.b16 %v1787
      %v1820 = vunpack.c.l.b16 %v1788
      %v1821 = vunpack.c.l.b16 %v1789
      %v1822 = vunpack.c.l.b16 %v1790
      %v1823 = vunpack.c.l.b16 %v1791
      %v1824 = vunpack.c.l.b16 %v1792
      %v1825 = vunpack.c.l.b16 %v1793
      %v1826 = vunpack.c.l.b16 %v1794
      %v1827 = vpack.c.b16 %v1812, %v1811
      %v1828 = vpack.c.b16 %v1814, %v1813
      %v1829 = vpack.c.b16 %v1816, %v1815
      %v1830 = vpack.c.b16 %v1818, %v1817
      %v1831 = vpack.c.b16 %v1820, %v1819
      %v1832 = vpack.c.b16 %v1822, %v1821
      %v1833 = vpack.c.b16 %v1824, %v1823
      %v1834 = vpack.c.b16 %v1826, %v1825
      %1843 = vmatprep.subr.bf16.mxu0 0
      %1844 = vmatpush1.bf16.msra.mxu0 %v1827
      %1845 = vmatprep.subr.bf16.mxu0 0
      %1846 = vmatpush1.bf16.msra.mxu0 %v1828
      %1847 = vmatprep.subr.bf16.mxu0 0
      %1848 = vmatpush1.bf16.msra.mxu0 %v1829
      %1849 = vmatprep.subr.bf16.mxu0 0
      %1850 = vmatpush1.bf16.msra.mxu0 %v1830
      %1851 = vmatprep.subr.bf16.mxu0 0
      %1852 = vmatpush1.bf16.msra.mxu0 %v1831
      %1853 = vmatprep.subr.bf16.mxu0 0
      %1854 = vmatpush1.bf16.msra.mxu0 %v1832
      %1855 = vmatprep.subr.bf16.mxu0 0
      %1856 = vmatpush1.bf16.msra.mxu0 %v1833
      %1857 = vmatprep.subr.bf16.mxu0 0
      %1858 = vmatpush1.bf16.msra.mxu0 %v1834
      %1859 = vmatprep.subr.bf16.mxu0 0
      %1860 = vmatpush1.bf16.msra.mxu0 0
      %1861 = vmatprep.subr.bf16.mxu0 0
      %1862 = vmatpush1.bf16.msra.mxu0 0
      %1863 = vmatprep.subr.bf16.mxu0 0
      %1864 = vmatpush1.bf16.msra.mxu0 0
      %1865 = vmatprep.subr.bf16.mxu0 0
      %1866 = vmatpush1.bf16.msra.mxu0 0
      %1867 = vmatprep.subr.bf16.mxu0 0
      %1868 = vmatpush1.bf16.msra.mxu0 0
      %1869 = vmatprep.subr.bf16.mxu0 0
      %1870 = vmatpush1.bf16.msra.mxu0 0
      %1871 = vmatprep.subr.bf16.mxu0 0
      %1872 = vmatpush1.bf16.msra.mxu0 0
      %1873 = vmatprep.subr.bf16.mxu0 0
      %1874 = vmatpush1.bf16.msra.mxu0 0
      %1875 = vmatprep.mubr.bf16.mxu0 0
      %1876 = vmatmul.mubr.bf16.gmra.mrb[0].mxu0 %v1773
      %v1877 = vpop.f32.mrb[0].mxu0
      %v1878 = vadd.f32 0.0, %v1877
      %v1879 = vpop.f32.mrb[0].mxu0
      %v1880 = vpop.f32.mrb[0].mxu0
      %v1881 = vadd.f32 0.0, %v1880
      %v1882 = vpop.f32.mrb[0].mxu0
      %1883 = vmatprep.mubr.bf16.mxu0 0
      %1884 = vmatmul.mubr.bf16.gmra.mrb[0].mxu0 %v1774
      %v1885 = vpop.f32.mrb[0].mxu0
      %v1886 = vadd.f32 0.0, %v1885
      %v1887 = vpop.f32.mrb[0].mxu0
      %v1888 = vpop.f32.mrb[0].mxu0
      %v1889 = vadd.f32 0.0, %v1888
      %v1890 = vpop.f32.mrb[0].mxu0
      %1891 = vmatprep.mubr.bf16.mxu0 0
      %1892 = vmatmul.mubr.bf16.gmra.mrb[0].mxu0 %v1775
      %v1893 = vpop.f32.mrb[0].mxu0
      %v1894 = vadd.f32 0.0, %v1893
      %v1895 = vpop.f32.mrb[0].mxu0
      %v1896 = vpop.f32.mrb[0].mxu0
      %v1897 = vadd.f32 0.0, %v1896
      %v1898 = vpop.f32.mrb[0].mxu0
      %1899 = vmatprep.mubr.bf16.mxu0 0
      %1900 = vmatmul.mubr.bf16.gmra.mrb[0].mxu0 %v1776
      %v1901 = vpop.f32.mrb[0].mxu0
      %v1902 = vadd.f32 0.0, %v1901
      %v1903 = vpop.f32.mrb[0].mxu0
      %v1904 = vpop.f32.mrb[0].mxu0
      %v1905 = vadd.f32 0.0, %v1904
      %v1906 = vpop.f32.mrb[0].mxu0
      %1907 = vmatprep.mubr.bf16.mxu0 0
      %1908 = vmatmul.mubr.bf16.gmra.mrb[0].mxu0 %v1777
      %v1909 = vpop.f32.mrb[0].mxu0
      %v1910 = vadd.f32 0.0, %v1909
      %v1911 = vpop.f32.mrb[0].mxu0
      %v1912 = vpop.f32.mrb[0].mxu0
      %v1913 = vadd.f32 0.0, %v1912
      %v1914 = vpop.f32.mrb[0].mxu0
      %1915 = vdwg.mxu0
      %v1916 = vadd.f32 %v1753, %v1878
      %v1917 = vadd.f32 %v1754, %v1881
      %v1918 = vadd.f32 %v1755, %v1886
      %v1919 = vadd.f32 %v1756, %v1889
      %v1920 = vadd.f32 %v1757, %v1894
      %v1921 = vadd.f32 %v1758, %v1897
      %v1922 = vadd.f32 %v1759, %v1902
      %v1923 = vadd.f32 %v1760, %v1905
      %v1924 = vadd.f32 %v1761, %v1910
      %v1925 = vadd.f32 %v1762, %v1913
      %v1926 = vld [vmem:[%s294 + $0x1] sm:$0xff]
      %v1927 = vld [vmem:[%s294 + $0x9] sm:$0xff]
      %v1928 = vld [vmem:[%s294 + $0x11] sm:$0xff]
      %v1929 = vld [vmem:[%s294 + $0x19] sm:$0xff]
      %v1930 = vld [vmem:[%s294 + $0x21] sm:$0xff]
      %v1931 = vld [vmem:[%s294 + $0x29] sm:$0xff]
      %v1932 = vld [vmem:[%s294 + $0x31] sm:$0xff]
      %v1933 = vld [vmem:[%s294 + $0x39] sm:$0xff]
      %v1934 = vld [vmem:[%s294 + $0x41] sm:$0xff]
      %v1935 = vld [vmem:[%s294 + $0x49] sm:$0x3f]
      %v1936 = vpack.c.bf16 %v1927, %v1926
      %v1937 = vpack.c.bf16 %v1929, %v1928
      %v1938 = vpack.c.bf16 %v1931, %v1930
      %v1939 = vpack.c.bf16 %v1933, %v1932
      %v1940 = vpack.c.bf16 %v1935, %v1934
      %s1941 = scalar_lea.vmem %s3, 640
      %v1942 = vld [vmem:[%s1941] sm:$0xf]
      %v1943 = vld [vmem:[%s1941 + $0x4] sm:$0xf]
      %v1944 = vld [vmem:[%s1941 + $0x8] sm:$0xf]
      %v1945 = vld [vmem:[%s1941 + $0xc] sm:$0xf]
      %v1946 = vld [vmem:[%s1941 + $0x10] sm:$0xf]
      %v1947 = vld [vmem:[%s1941 + $0x14] sm:$0xf]
      %v1948 = vld [vmem:[%s1941 + $0x18] sm:$0xf]
      %v1949 = vld [vmem:[%s1941 + $0x1c] sm:$0xf]
      %v1950 = vld [vmem:[%s1941 + $0x20] sm:$0xf]
      %v1951 = vld [vmem:[%s1941 + $0x24] sm:$0xf]
      %v1952 = vld [vmem:[%s1941 + $0x28] sm:$0xf]
      %v1953 = vld [vmem:[%s1941 + $0x2c] sm:$0xf]
      %v1954 = vld [vmem:[%s1941 + $0x30] sm:$0xf]
      %v1955 = vld [vmem:[%s1941 + $0x34] sm:$0xf]
      %v1956 = vld [vmem:[%s1941 + $0x38] sm:$0xf]
      %v1957 = vld [vmem:[%s1941 + $0x3c] sm:$0xf]
      %v1974 = vunpack.c.l.b16 %v1942
      %v1975 = vunpack.c.l.b16 %v1943
      %v1976 = vunpack.c.l.b16 %v1944
      %v1977 = vunpack.c.l.b16 %v1945
      %v1978 = vunpack.c.l.b16 %v1946
      %v1979 = vunpack.c.l.b16 %v1947
      %v1980 = vunpack.c.l.b16 %v1948
      %v1981 = vunpack.c.l.b16 %v1949
      %v1982 = vunpack.c.l.b16 %v1950
      %v1983 = vunpack.c.l.b16 %v1951
      %v1984 = vunpack.c.l.b16 %v1952
      %v1985 = vunpack.c.l.b16 %v1953
      %v1986 = vunpack.c.l.b16 %v1954
      %v1987 = vunpack.c.l.b16 %v1955
      %v1988 = vunpack.c.l.b16 %v1956
      %v1989 = vunpack.c.l.b16 %v1957
      %v1990 = vpack.c.b16 %v1975, %v1974
      %v1991 = vpack.c.b16 %v1977, %v1976
      %v1992 = vpack.c.b16 %v1979, %v1978
      %v1993 = vpack.c.b16 %v1981, %v1980
      %v1994 = vpack.c.b16 %v1983, %v1982
      %v1995 = vpack.c.b16 %v1985, %v1984
      %v1996 = vpack.c.b16 %v1987, %v1986
      %v1997 = vpack.c.b16 %v1989, %v1988
      %2006 = vmatprep.subr.bf16.mxu0 0
      %2007 = vmatpush1.bf16.msra.mxu0 %v1990
      %2008 = vmatprep.subr.bf16.mxu0 0
      %2009 = vmatpush1.bf16.msra.mxu0 %v1991
      %2010 = vmatprep.subr.bf16.mxu0 0
      %2011 = vmatpush1.bf16.msra.mxu0 %v1992
      %2012 = vmatprep.subr.bf16.mxu0 0
      %2013 = vmatpush1.bf16.msra.mxu0 %v1993
      %2014 = vmatprep.subr.bf16.mxu0 0
      %2015 = vmatpush1.bf16.msra.mxu0 %v1994
      %2016 = vmatprep.subr.bf16.mxu0 0
      %2017 = vmatpush1.bf16.msra.mxu0 %v1995
      %2018 = vmatprep.subr.bf16.mxu0 0
      %2019 = vmatpush1.bf16.msra.mxu0 %v1996
      %2020 = vmatprep.subr.bf16.mxu0 0
      %2021 = vmatpush1.bf16.msra.mxu0 %v1997
      %2022 = vmatprep.subr.bf16.mxu0 0
      %2023 = vmatpush1.bf16.msra.mxu0 0
      %2024 = vmatprep.subr.bf16.mxu0 0
      %2025 = vmatpush1.bf16.msra.mxu0 0
      %2026 = vmatprep.subr.bf16.mxu0 0
      %2027 = vmatpush1.bf16.msra.mxu0 0
      %2028 = vmatprep.subr.bf16.mxu0 0
      %2029 = vmatpush1.bf16.msra.mxu0 0
      %2030 = vmatprep.subr.bf16.mxu0 0
      %2031 = vmatpush1.bf16.msra.mxu0 0
      %2032 = vmatprep.subr.bf16.mxu0 0
      %2033 = vmatpush1.bf16.msra.mxu0 0
      %2034 = vmatprep.subr.bf16.mxu0 0
      %2035 = vmatpush1.bf16.msra.mxu0 0
      %2036 = vmatprep.subr.bf16.mxu0 0
      %2037 = vmatpush1.bf16.msra.mxu0 0
      %2038 = vmatprep.mubr.bf16.mxu0 0
      %2039 = vmatmul.mubr.bf16.gmra.mrb[0].mxu0 %v1936
      %v2040 = vpop.f32.mrb[0].mxu0
      %v2041 = vadd.f32 0.0, %v2040
      %v2042 = vpop.f32.mrb[0].mxu0
      %v2043 = vpop.f32.mrb[0].mxu0
      %v2044 = vadd.f32 0.0, %v2043
      %v2045 = vpop.f32.mrb[0].mxu0
      %2046 = vmatprep.mubr.bf16.mxu0 0
      %2047 = vmatmul.mubr.bf16.gmra.mrb[0].mxu0 %v1937
      %v2048 = vpop.f32.mrb[0].mxu0
      %v2049 = vadd.f32 0.0, %v2048
      %v2050 = vpop.f32.mrb[0].mxu0
      %v2051 = vpop.f32.mrb[0].mxu0
      %v2052 = vadd.f32 0.0, %v2051
      %v2053 = vpop.f32.mrb[0].mxu0
      %2054 = vmatprep.mubr.bf16.mxu0 0
      %2055 = vmatmul.mubr.bf16.gmra.mrb[0].mxu0 %v1938
      %v2056 = vpop.f32.mrb[0].mxu0
      %v2057 = vadd.f32 0.0, %v2056
      %v2058 = vpop.f32.mrb[0].mxu0
      %v2059 = vpop.f32.mrb[0].mxu0
      %v2060 = vadd.f32 0.0, %v2059
      %v2061 = vpop.f32.mrb[0].mxu0
      %2062 = vmatprep.mubr.bf16.mxu0 0
      %2063 = vmatmul.mubr.bf16.gmra.mrb[0].mxu0 %v1939
      %v2064 = vpop.f32.mrb[0].mxu0
      %v2065 = vadd.f32 0.0, %v2064
      %v2066 = vpop.f32.mrb[0].mxu0
      %v2067 = vpop.f32.mrb[0].mxu0
      %v2068 = vadd.f32 0.0, %v2067
      %v2069 = vpop.f32.mrb[0].mxu0
      %2070 = vmatprep.mubr.bf16.mxu0 0
      %2071 = vmatmul.mubr.bf16.gmra.mrb[0].mxu0 %v1940
      %v2072 = vpop.f32.mrb[0].mxu0
      %v2073 = vadd.f32 0.0, %v2072
      %v2074 = vpop.f32.mrb[0].mxu0
      %v2075 = vpop.f32.mrb[0].mxu0
      %v2076 = vadd.f32 0.0, %v2075
      %v2077 = vpop.f32.mrb[0].mxu0
      %2078 = vdwg.mxu0
      %v2079 = vadd.f32 %v1916, %v2041
      %v2080 = vadd.f32 %v1917, %v2044
      %v2081 = vadd.f32 %v1918, %v2049
      %v2082 = vadd.f32 %v1919, %v2052
      %v2083 = vadd.f32 %v1920, %v2057
      %v2084 = vadd.f32 %v1921, %v2060
      %v2085 = vadd.f32 %v1922, %v2065
      %v2086 = vadd.f32 %v1923, %v2068
      %v2087 = vadd.f32 %v1924, %v2073
      %v2088 = vadd.f32 %v1925, %v2076
      %v2089 = vld [vmem:[%s294 + $0x2] sm:$0xff]
      %v2090 = vld [vmem:[%s294 + $0xa] sm:$0xff]
      %v2091 = vld [vmem:[%s294 + $0x12] sm:$0xff]
      %v2092 = vld [vmem:[%s294 + $0x1a] sm:$0xff]
      %v2093 = vld [vmem:[%s294 + $0x22] sm:$0xff]
      %v2094 = vld [vmem:[%s294 + $0x2a] sm:$0xff]
      %v2095 = vld [vmem:[%s294 + $0x32] sm:$0xff]
      %v2096 = vld [vmem:[%s294 + $0x3a] sm:$0xff]
      %v2097 = vld [vmem:[%s294 + $0x42] sm:$0xff]
      %v2098 = vld [vmem:[%s294 + $0x4a] sm:$0x3f]
      %v2099 = vpack.c.bf16 %v2090, %v2089
      %v2100 = vpack.c.bf16 %v2092, %v2091
      %v2101 = vpack.c.bf16 %v2094, %v2093
      %v2102 = vpack.c.bf16 %v2096, %v2095
      %v2103 = vpack.c.bf16 %v2098, %v2097
      %s2104 = scalar_lea.vmem %s3, 704
      %v2105 = vld [vmem:[%s2104] sm:$0xf]
      %v2106 = vld [vmem:[%s2104 + $0x4] sm:$0xf]
      %v2107 = vld [vmem:[%s2104 + $0x8] sm:$0xf]
      %v2108 = vld [vmem:[%s2104 + $0xc] sm:$0xf]
      %v2109 = vld [vmem:[%s2104 + $0x10] sm:$0xf]
      %v2110 = vld [vmem:[%s2104 + $0x14] sm:$0xf]
      %v2111 = vld [vmem:[%s2104 + $0x18] sm:$0xf]
      %v2112 = vld [vmem:[%s2104 + $0x1c] sm:$0xf]
      %v2113 = vld [vmem:[%s2104 + $0x20] sm:$0xf]
      %v2114 = vld [vmem:[%s2104 + $0x24] sm:$0xf]
      %v2115 = vld [vmem:[%s2104 + $0x28] sm:$0xf]
      %v2116 = vld [vmem:[%s2104 + $0x2c] sm:$0xf]
      %v2117 = vld [vmem:[%s2104 + $0x30] sm:$0xf]
      %v2118 = vld [vmem:[%s2104 + $0x34] sm:$0xf]
      %v2119 = vld [vmem:[%s2104 + $0x38] sm:$0xf]
      %v2120 = vld [vmem:[%s2104 + $0x3c] sm:$0xf]
      %v2137 = vunpack.c.l.b16 %v2105
      %v2138 = vunpack.c.l.b16 %v2106
      %v2139 = vunpack.c.l.b16 %v2107
      %v2140 = vunpack.c.l.b16 %v2108
      %v2141 = vunpack.c.l.b16 %v2109
      %v2142 = vunpack.c.l.b16 %v2110
      %v2143 = vunpack.c.l.b16 %v2111
      %v2144 = vunpack.c.l.b16 %v2112
      %v2145 = vunpack.c.l.b16 %v2113
      %v2146 = vunpack.c.l.b16 %v2114
      %v2147 = vunpack.c.l.b16 %v2115
      %v2148 = vunpack.c.l.b16 %v2116
      %v2149 = vunpack.c.l.b16 %v2117
      %v2150 = vunpack.c.l.b16 %v2118
      %v2151 = vunpack.c.l.b16 %v2119
      %v2152 = vunpack.c.l.b16 %v2120
      %v2153 = vpack.c.b16 %v2138, %v2137
      %v2154 = vpack.c.b16 %v2140, %v2139
      %v2155 = vpack.c.b16 %v2142, %v2141
      %v2156 = vpack.c.b16 %v2144, %v2143
      %v2157 = vpack.c.b16 %v2146, %v2145
      %v2158 = vpack.c.b16 %v2148, %v2147
      %v2159 = vpack.c.b16 %v2150, %v2149
      %v2160 = vpack.c.b16 %v2152, %v2151
      %2169 = vmatprep.subr.bf16.mxu0 0
      %2170 = vmatpush1.bf16.msra.mxu0 %v2153
      %2171 = vmatprep.subr.bf16.mxu0 0
      %2172 = vmatpush1.bf16.msra.mxu0 %v2154
      %2173 = vmatprep.subr.bf16.mxu0 0
      %2174 = vmatpush1.bf16.msra.mxu0 %v2155
      %2175 = vmatprep.subr.bf16.mxu0 0
      %2176 = vmatpush1.bf16.msra.mxu0 %v2156
      %2177 = vmatprep.subr.bf16.mxu0 0
      %2178 = vmatpush1.bf16.msra.mxu0 %v2157
      %2179 = vmatprep.subr.bf16.mxu0 0
      %2180 = vmatpush1.bf16.msra.mxu0 %v2158
      %2181 = vmatprep.subr.bf16.mxu0 0
      %2182 = vmatpush1.bf16.msra.mxu0 %v2159
      %2183 = vmatprep.subr.bf16.mxu0 0
      %2184 = vmatpush1.bf16.msra.mxu0 %v2160
      %2185 = vmatprep.subr.bf16.mxu0 0
      %2186 = vmatpush1.bf16.msra.mxu0 0
      %2187 = vmatprep.subr.bf16.mxu0 0
      %2188 = vmatpush1.bf16.msra.mxu0 0
      %2189 = vmatprep.subr.bf16.mxu0 0
      %2190 = vmatpush1.bf16.msra.mxu0 0
      %2191 = vmatprep.subr.bf16.mxu0 0
      %2192 = vmatpush1.bf16.msra.mxu0 0
      %2193 = vmatprep.subr.bf16.mxu0 0
      %2194 = vmatpush1.bf16.msra.mxu0 0
      %2195 = vmatprep.subr.bf16.mxu0 0
      %2196 = vmatpush1.bf16.msra.mxu0 0
      %2197 = vmatprep.subr.bf16.mxu0 0
      %2198 = vmatpush1.bf16.msra.mxu0 0
      %2199 = vmatprep.subr.bf16.mxu0 0
      %2200 = vmatpush1.bf16.msra.mxu0 0
      %2201 = vmatprep.mubr.bf16.mxu0 0
      %2202 = vmatmul.mubr.bf16.gmra.mrb[0].mxu0 %v2099
      %v2203 = vpop.f32.mrb[0].mxu0
      %v2204 = vadd.f32 0.0, %v2203
      %v2205 = vpop.f32.mrb[0].mxu0
      %v2206 = vpop.f32.mrb[0].mxu0
      %v2207 = vadd.f32 0.0, %v2206
      %v2208 = vpop.f32.mrb[0].mxu0
      %2209 = vmatprep.mubr.bf16.mxu0 0
      %2210 = vmatmul.mubr.bf16.gmra.mrb[0].mxu0 %v2100
      %v2211 = vpop.f32.mrb[0].mxu0
      %v2212 = vadd.f32 0.0, %v2211
      %v2213 = vpop.f32.mrb[0].mxu0
      %v2214 = vpop.f32.mrb[0].mxu0
      %v2215 = vadd.f32 0.0, %v2214
      %v2216 = vpop.f32.mrb[0].mxu0
      %2217 = vmatprep.mubr.bf16.mxu0 0
      %2218 = vmatmul.mubr.bf16.gmra.mrb[0].mxu0 %v2101
      %v2219 = vpop.f32.mrb[0].mxu0
      %v2220 = vadd.f32 0.0, %v2219
      %v2221 = vpop.f32.mrb[0].mxu0
      %v2222 = vpop.f32.mrb[0].mxu0
      %v2223 = vadd.f32 0.0, %v2222
      %v2224 = vpop.f32.mrb[0].mxu0
      %2225 = vmatprep.mubr.bf16.mxu0 0
      %2226 = vmatmul.mubr.bf16.gmra.mrb[0].mxu0 %v2102
      %v2227 = vpop.f32.mrb[0].mxu0
      %v2228 = vadd.f32 0.0, %v2227
      %v2229 = vpop.f32.mrb[0].mxu0
      %v2230 = vpop.f32.mrb[0].mxu0
      %v2231 = vadd.f32 0.0, %v2230
      %v2232 = vpop.f32.mrb[0].mxu0
      %2233 = vmatprep.mubr.bf16.mxu0 0
      %2234 = vmatmul.mubr.bf16.gmra.mrb[0].mxu0 %v2103
      %v2235 = vpop.f32.mrb[0].mxu0
      %v2236 = vadd.f32 0.0, %v2235
      %v2237 = vpop.f32.mrb[0].mxu0
      %v2238 = vpop.f32.mrb[0].mxu0
      %v2239 = vadd.f32 0.0, %v2238
      %v2240 = vpop.f32.mrb[0].mxu0
      %2241 = vdwg.mxu0
      %v2242 = vadd.f32 %v2079, %v2204
      %v2243 = vadd.f32 %v2080, %v2207
      %v2244 = vadd.f32 %v2081, %v2212
      %v2245 = vadd.f32 %v2082, %v2215
      %v2246 = vadd.f32 %v2083, %v2220
      %v2247 = vadd.f32 %v2084, %v2223
      %v2248 = vadd.f32 %v2085, %v2228
      %v2249 = vadd.f32 %v2086, %v2231
      %v2250 = vadd.f32 %v2087, %v2236
      %v2251 = vadd.f32 %v2088, %v2239
      %v2252 = vld [vmem:[%s294 + $0xa] sm:$0xff]
      %v2253 = vld [vmem:[%s294 + $0x12] sm:$0xff]
      %v2254 = vld [vmem:[%s294 + $0x1a] sm:$0xff]
      %v2255 = vld [vmem:[%s294 + $0x22] sm:$0xff]
      %v2256 = vld [vmem:[%s294 + $0x2a] sm:$0xff]
      %v2257 = vld [vmem:[%s294 + $0x32] sm:$0xff]
      %v2258 = vld [vmem:[%s294 + $0x3a] sm:$0xff]
      %v2259 = vld [vmem:[%s294 + $0x42] sm:$0xff]
      %v2260 = vld [vmem:[%s294 + $0x4a] sm:$0xff]
      %v2261 = vld [vmem:[%s294 + $0x52] sm:$0x3f]
      %v2262 = vpack.c.bf16 %v2253, %v2252
      %v2263 = vpack.c.bf16 %v2255, %v2254
      %v2264 = vpack.c.bf16 %v2257, %v2256
      %v2265 = vpack.c.bf16 %v2259, %v2258
      %v2266 = vpack.c.bf16 %v2261, %v2260
      %s2267 = scalar_lea.vmem %s3, 768
      %v2268 = vld [vmem:[%s2267] sm:$0xf]
      %v2269 = vld [vmem:[%s2267 + $0x4] sm:$0xf]
      %v2270 = vld [vmem:[%s2267 + $0x8] sm:$0xf]
      %v2271 = vld [vmem:[%s2267 + $0xc] sm:$0xf]
      %v2272 = vld [vmem:[%s2267 + $0x10] sm:$0xf]
      %v2273 = vld [vmem:[%s2267 + $0x14] sm:$0xf]
      %v2274 = vld [vmem:[%s2267 + $0x18] sm:$0xf]
      %v2275 = vld [vmem:[%s2267 + $0x1c] sm:$0xf]
      %v2276 = vld [vmem:[%s2267 + $0x20] sm:$0xf]
      %v2277 = vld [vmem:[%s2267 + $0x24] sm:$0xf]
      %v2278 = vld [vmem:[%s2267 + $0x28] sm:$0xf]
      %v2279 = vld [vmem:[%s2267 + $0x2c] sm:$0xf]
      %v2280 = vld [vmem:[%s2267 + $0x30] sm:$0xf]
      %v2281 = vld [vmem:[%s2267 + $0x34] sm:$0xf]
      %v2282 = vld [vmem:[%s2267 + $0x38] sm:$0xf]
      %v2283 = vld [vmem:[%s2267 + $0x3c] sm:$0xf]
      %v2300 = vunpack.c.l.b16 %v2268
      %v2301 = vunpack.c.l.b16 %v2269
      %v2302 = vunpack.c.l.b16 %v2270
      %v2303 = vunpack.c.l.b16 %v2271
      %v2304 = vunpack.c.l.b16 %v2272
      %v2305 = vunpack.c.l.b16 %v2273
      %v2306 = vunpack.c.l.b16 %v2274
      %v2307 = vunpack.c.l.b16 %v2275
      %v2308 = vunpack.c.l.b16 %v2276
      %v2309 = vunpack.c.l.b16 %v2277
      %v2310 = vunpack.c.l.b16 %v2278
      %v2311 = vunpack.c.l.b16 %v2279
      %v2312 = vunpack.c.l.b16 %v2280
      %v2313 = vunpack.c.l.b16 %v2281
      %v2314 = vunpack.c.l.b16 %v2282
      %v2315 = vunpack.c.l.b16 %v2283
      %v2316 = vpack.c.b16 %v2301, %v2300
      %v2317 = vpack.c.b16 %v2303, %v2302
      %v2318 = vpack.c.b16 %v2305, %v2304
      %v2319 = vpack.c.b16 %v2307, %v2306
      %v2320 = vpack.c.b16 %v2309, %v2308
      %v2321 = vpack.c.b16 %v2311, %v2310
      %v2322 = vpack.c.b16 %v2313, %v2312
      %v2323 = vpack.c.b16 %v2315, %v2314
      %2332 = vmatprep.subr.bf16.mxu0 0
      %2333 = vmatpush1.bf16.msra.mxu0 %v2316
      %2334 = vmatprep.subr.bf16.mxu0 0
      %2335 = vmatpush1.bf16.msra.mxu0 %v2317
      %2336 = vmatprep.subr.bf16.mxu0 0
      %2337 = vmatpush1.bf16.msra.mxu0 %v2318
      %2338 = vmatprep.subr.bf16.mxu0 0
      %2339 = vmatpush1.bf16.msra.mxu0 %v2319
      %2340 = vmatprep.subr.bf16.mxu0 0
      %2341 = vmatpush1.bf16.msra.mxu0 %v2320
      %2342 = vmatprep.subr.bf16.mxu0 0
      %2343 = vmatpush1.bf16.msra.mxu0 %v2321
      %2344 = vmatprep.subr.bf16.mxu0 0
      %2345 = vmatpush1.bf16.msra.mxu0 %v2322
      %2346 = vmatprep.subr.bf16.mxu0 0
      %2347 = vmatpush1.bf16.msra.mxu0 %v2323
      %2348 = vmatprep.subr.bf16.mxu0 0
      %2349 = vmatpush1.bf16.msra.mxu0 0
      %2350 = vmatprep.subr.bf16.mxu0 0
      %2351 = vmatpush1.bf16.msra.mxu0 0
      %2352 = vmatprep.subr.bf16.mxu0 0
      %2353 = vmatpush1.bf16.msra.mxu0 0
      %2354 = vmatprep.subr.bf16.mxu0 0
      %2355 = vmatpush1.bf16.msra.mxu0 0
      %2356 = vmatprep.subr.bf16.mxu0 0
      %2357 = vmatpush1.bf16.msra.mxu0 0
      %2358 = vmatprep.subr.bf16.mxu0 0
      %2359 = vmatpush1.bf16.msra.mxu0 0
      %2360 = vmatprep.subr.bf16.mxu0 0
      %2361 = vmatpush1.bf16.msra.mxu0 0
      %2362 = vmatprep.subr.bf16.mxu0 0
      %2363 = vmatpush1.bf16.msra.mxu0 0
      %2364 = vmatprep.mubr.bf16.mxu0 0
      %2365 = vmatmul.mubr.bf16.gmra.mrb[0].mxu0 %v2262
      %v2366 = vpop.f32.mrb[0].mxu0
      %v2367 = vadd.f32 0.0, %v2366
      %v2368 = vpop.f32.mrb[0].mxu0
      %v2369 = vpop.f32.mrb[0].mxu0
      %v2370 = vadd.f32 0.0, %v2369
      %v2371 = vpop.f32.mrb[0].mxu0
      %2372 = vmatprep.mubr.bf16.mxu0 0
      %2373 = vmatmul.mubr.bf16.gmra.mrb[0].mxu0 %v2263
      %v2374 = vpop.f32.mrb[0].mxu0
      %v2375 = vadd.f32 0.0, %v2374
      %v2376 = vpop.f32.mrb[0].mxu0
      %v2377 = vpop.f32.mrb[0].mxu0
      %v2378 = vadd.f32 0.0, %v2377
      %v2379 = vpop.f32.mrb[0].mxu0
      %2380 = vmatprep.mubr.bf16.mxu0 0
      %2381 = vmatmul.mubr.bf16.gmra.mrb[0].mxu0 %v2264
      %v2382 = vpop.f32.mrb[0].mxu0
      %v2383 = vadd.f32 0.0, %v2382
      %v2384 = vpop.f32.mrb[0].mxu0
      %v2385 = vpop.f32.mrb[0].mxu0
      %v2386 = vadd.f32 0.0, %v2385
      %v2387 = vpop.f32.mrb[0].mxu0
      %2388 = vmatprep.mubr.bf16.mxu0 0
      %2389 = vmatmul.mubr.bf16.gmra.mrb[0].mxu0 %v2265
      %v2390 = vpop.f32.mrb[0].mxu0
      %v2391 = vadd.f32 0.0, %v2390
      %v2392 = vpop.f32.mrb[0].mxu0
      %v2393 = vpop.f32.mrb[0].mxu0
      %v2394 = vadd.f32 0.0, %v2393
      %v2395 = vpop.f32.mrb[0].mxu0
      %2396 = vmatprep.mubr.bf16.mxu0 0
      %2397 = vmatmul.mubr.bf16.gmra.mrb[0].mxu0 %v2266
      %v2398 = vpop.f32.mrb[0].mxu0
      %v2399 = vadd.f32 0.0, %v2398
      %v2400 = vpop.f32.mrb[0].mxu0
      %v2401 = vpop.f32.mrb[0].mxu0
      %v2402 = vadd.f32 0.0, %v2401
      %v2403 = vpop.f32.mrb[0].mxu0
      %2404 = vdwg.mxu0
      %v2405 = vadd.f32 %v2242, %v2367
      %v2406 = vadd.f32 %v2243, %v2370
      %v2407 = vadd.f32 %v2244, %v2375
      %v2408 = vadd.f32 %v2245, %v2378
      %v2409 = vadd.f32 %v2246, %v2383
      %v2410 = vadd.f32 %v2247, %v2386
      %v2411 = vadd.f32 %v2248, %v2391
      %v2412 = vadd.f32 %v2249, %v2394
      %v2413 = vadd.f32 %v2250, %v2399
      %v2414 = vadd.f32 %v2251, %v2402
      %v2415 = vld [vmem:[%s294 + $0xb] sm:$0xff]
      %v2416 = vld [vmem:[%s294 + $0x13] sm:$0xff]
      %v2417 = vld [vmem:[%s294 + $0x1b] sm:$0xff]
      %v2418 = vld [vmem:[%s294 + $0x23] sm:$0xff]
      %v2419 = vld [vmem:[%s294 + $0x2b] sm:$0xff]
      %v2420 = vld [vmem:[%s294 + $0x33] sm:$0xff]
      %v2421 = vld [vmem:[%s294 + $0x3b] sm:$0xff]
      %v2422 = vld [vmem:[%s294 + $0x43] sm:$0xff]
      %v2423 = vld [vmem:[%s294 + $0x4b] sm:$0xff]
      %v2424 = vld [vmem:[%s294 + $0x53] sm:$0x3f]
      %v2425 = vpack.c.bf16 %v2416, %v2415
      %v2426 = vpack.c.bf16 %v2418, %v2417
      %v2427 = vpack.c.bf16 %v2420, %v2419
      %v2428 = vpack.c.bf16 %v2422, %v2421
      %v2429 = vpack.c.bf16 %v2424, %v2423
      %s2430 = scalar_lea.vmem %s3, 832
      %v2431 = vld [vmem:[%s2430] sm:$0xf]
      %v2432 = vld [vmem:[%s2430 + $0x4] sm:$0xf]
      %v2433 = vld [vmem:[%s2430 + $0x8] sm:$0xf]
      %v2434 = vld [vmem:[%s2430 + $0xc] sm:$0xf]
      %v2435 = vld [vmem:[%s2430 + $0x10] sm:$0xf]
      %v2436 = vld [vmem:[%s2430 + $0x14] sm:$0xf]
      %v2437 = vld [vmem:[%s2430 + $0x18] sm:$0xf]
      %v2438 = vld [vmem:[%s2430 + $0x1c] sm:$0xf]
      %v2439 = vld [vmem:[%s2430 + $0x20] sm:$0xf]
      %v2440 = vld [vmem:[%s2430 + $0x24] sm:$0xf]
      %v2441 = vld [vmem:[%s2430 + $0x28] sm:$0xf]
      %v2442 = vld [vmem:[%s2430 + $0x2c] sm:$0xf]
      %v2443 = vld [vmem:[%s2430 + $0x30] sm:$0xf]
      %v2444 = vld [vmem:[%s2430 + $0x34] sm:$0xf]
      %v2445 = vld [vmem:[%s2430 + $0x38] sm:$0xf]
      %v2446 = vld [vmem:[%s2430 + $0x3c] sm:$0xf]
      %v2463 = vunpack.c.l.b16 %v2431
      %v2464 = vunpack.c.l.b16 %v2432
      %v2465 = vunpack.c.l.b16 %v2433
      %v2466 = vunpack.c.l.b16 %v2434
      %v2467 = vunpack.c.l.b16 %v2435
      %v2468 = vunpack.c.l.b16 %v2436
      %v2469 = vunpack.c.l.b16 %v2437
      %v2470 = vunpack.c.l.b16 %v2438
      %v2471 = vunpack.c.l.b16 %v2439
      %v2472 = vunpack.c.l.b16 %v2440
      %v2473 = vunpack.c.l.b16 %v2441
      %v2474 = vunpack.c.l.b16 %v2442
      %v2475 = vunpack.c.l.b16 %v2443
      %v2476 = vunpack.c.l.b16 %v2444
      %v2477 = vunpack.c.l.b16 %v2445
      %v2478 = vunpack.c.l.b16 %v2446
      %v2479 = vpack.c.b16 %v2464, %v2463
      %v2480 = vpack.c.b16 %v2466, %v2465
      %v2481 = vpack.c.b16 %v2468, %v2467
      %v2482 = vpack.c.b16 %v2470, %v2469
      %v2483 = vpack.c.b16 %v2472, %v2471
      %v2484 = vpack.c.b16 %v2474, %v2473
      %v2485 = vpack.c.b16 %v2476, %v2475
      %v2486 = vpack.c.b16 %v2478, %v2477
      %2495 = vmatprep.subr.bf16.mxu0 0
      %2496 = vmatpush1.bf16.msra.mxu0 %v2479
      %2497 = vmatprep.subr.bf16.mxu0 0
      %2498 = vmatpush1.bf16.msra.mxu0 %v2480
      %2499 = vmatprep.subr.bf16.mxu0 0
      %2500 = vmatpush1.bf16.msra.mxu0 %v2481
      %2501 = vmatprep.subr.bf16.mxu0 0
      %2502 = vmatpush1.bf16.msra.mxu0 %v2482
      %2503 = vmatprep.subr.bf16.mxu0 0
      %2504 = vmatpush1.bf16.msra.mxu0 %v2483
      %2505 = vmatprep.subr.bf16.mxu0 0
      %2506 = vmatpush1.bf16.msra.mxu0 %v2484
      %2507 = vmatprep.subr.bf16.mxu0 0
      %2508 = vmatpush1.bf16.msra.mxu0 %v2485
      %2509 = vmatprep.subr.bf16.mxu0 0
      %2510 = vmatpush1.bf16.msra.mxu0 %v2486
      %2511 = vmatprep.subr.bf16.mxu0 0
      %2512 = vmatpush1.bf16.msra.mxu0 0
      %2513 = vmatprep.subr.bf16.mxu0 0
      %2514 = vmatpush1.bf16.msra.mxu0 0
      %2515 = vmatprep.subr.bf16.mxu0 0
      %2516 = vmatpush1.bf16.msra.mxu0 0
      %2517 = vmatprep.subr.bf16.mxu0 0
      %2518 = vmatpush1.bf16.msra.mxu0 0
      %2519 = vmatprep.subr.bf16.mxu0 0
      %2520 = vmatpush1.bf16.msra.mxu0 0
      %2521 = vmatprep.subr.bf16.mxu0 0
      %2522 = vmatpush1.bf16.msra.mxu0 0
      %2523 = vmatprep.subr.bf16.mxu0 0
      %2524 = vmatpush1.bf16.msra.mxu0 0
      %2525 = vmatprep.subr.bf16.mxu0 0
      %2526 = vmatpush1.bf16.msra.mxu0 0
      %2527 = vmatprep.mubr.bf16.mxu0 0
      %2528 = vmatmul.mubr.bf16.gmra.mrb[0].mxu0 %v2425
      %v2529 = vpop.f32.mrb[0].mxu0
      %v2530 = vadd.f32 0.0, %v2529
      %v2531 = vpop.f32.mrb[0].mxu0
      %v2532 = vpop.f32.mrb[0].mxu0
      %v2533 = vadd.f32 0.0, %v2532
      %v2534 = vpop.f32.mrb[0].mxu0
      %2535 = vmatprep.mubr.bf16.mxu0 0
      %2536 = vmatmul.mubr.bf16.gmra.mrb[0].mxu0 %v2426
      %v2537 = vpop.f32.mrb[0].mxu0
      %v2538 = vadd.f32 0.0, %v2537
      %v2539 = vpop.f32.mrb[0].mxu0
      %v2540 = vpop.f32.mrb[0].mxu0
      %v2541 = vadd.f32 0.0, %v2540
      %v2542 = vpop.f32.mrb[0].mxu0
      %2543 = vmatprep.mubr.bf16.mxu0 0
      %2544 = vmatmul.mubr.bf16.gmra.mrb[0].mxu0 %v2427
      %v2545 = vpop.f32.mrb[0].mxu0
      %v2546 = vadd.f32 0.0, %v2545
      %v2547 = vpop.f32.mrb[0].mxu0
      %v2548 = vpop.f32.mrb[0].mxu0
      %v2549 = vadd.f32 0.0, %v2548
      %v2550 = vpop.f32.mrb[0].mxu0
      %2551 = vmatprep.mubr.bf16.mxu0 0
      %2552 = vmatmul.mubr.bf16.gmra.mrb[0].mxu0 %v2428
      %v2553 = vpop.f32.mrb[0].mxu0
      %v2554 = vadd.f32 0.0, %v2553
      %v2555 = vpop.f32.mrb[0].mxu0
      %v2556 = vpop.f32.mrb[0].mxu0
      %v2557 = vadd.f32 0.0, %v2556
      %v2558 = vpop.f32.mrb[0].mxu0
      %2559 = vmatprep.mubr.bf16.mxu0 0
      %2560 = vmatmul.mubr.bf16.gmra.mrb[0].mxu0 %v2429
      %v2561 = vpop.f32.mrb[0].mxu0
      %v2562 = vadd.f32 0.0, %v2561
      %v2563 = vpop.f32.mrb[0].mxu0
      %v2564 = vpop.f32.mrb[0].mxu0
      %v2565 = vadd.f32 0.0, %v2564
      %v2566 = vpop.f32.mrb[0].mxu0
      %2567 = vdwg.mxu0
      %v2568 = vadd.f32 %v2405, %v2530
      %v2569 = vadd.f32 %v2406, %v2533
      %v2570 = vadd.f32 %v2407, %v2538
      %v2571 = vadd.f32 %v2408, %v2541
      %v2572 = vadd.f32 %v2409, %v2546
      %v2573 = vadd.f32 %v2410, %v2549
      %v2574 = vadd.f32 %v2411, %v2554
      %v2575 = vadd.f32 %v2412, %v2557
      %v2576 = vadd.f32 %v2413, %v2562
      %v2577 = vadd.f32 %v2414, %v2565
      %v2578 = vld [vmem:[%s294 + $0xc] sm:$0xff]
      %v2579 = vld [vmem:[%s294 + $0x14] sm:$0xff]
      %v2580 = vld [vmem:[%s294 + $0x1c] sm:$0xff]
      %v2581 = vld [vmem:[%s294 + $0x24] sm:$0xff]
      %v2582 = vld [vmem:[%s294 + $0x2c] sm:$0xff]
      %v2583 = vld [vmem:[%s294 + $0x34] sm:$0xff]
      %v2584 = vld [vmem:[%s294 + $0x3c] sm:$0xff]
      %v2585 = vld [vmem:[%s294 + $0x44] sm:$0xff]
      %v2586 = vld [vmem:[%s294 + $0x4c] sm:$0xff]
      %v2587 = vld [vmem:[%s294 + $0x54] sm:$0x3f]
      %v2588 = vpack.c.bf16 %v2579, %v2578
      %v2589 = vpack.c.bf16 %v2581, %v2580
      %v2590 = vpack.c.bf16 %v2583, %v2582
      %v2591 = vpack.c.bf16 %v2585, %v2584
      %v2592 = vpack.c.bf16 %v2587, %v2586
      %s2593 = scalar_lea.vmem %s3, 896
      %v2594 = vld [vmem:[%s2593] sm:$0xf]
      %v2595 = vld [vmem:[%s2593 + $0x4] sm:$0xf]
      %v2596 = vld [vmem:[%s2593 + $0x8] sm:$0xf]
      %v2597 = vld [vmem:[%s2593 + $0xc] sm:$0xf]
      %v2598 = vld [vmem:[%s2593 + $0x10] sm:$0xf]
      %v2599 = vld [vmem:[%s2593 + $0x14] sm:$0xf]
      %v2600 = vld [vmem:[%s2593 + $0x18] sm:$0xf]
      %v2601 = vld [vmem:[%s2593 + $0x1c] sm:$0xf]
      %v2602 = vld [vmem:[%s2593 + $0x20] sm:$0xf]
      %v2603 = vld [vmem:[%s2593 + $0x24] sm:$0xf]
      %v2604 = vld [vmem:[%s2593 + $0x28] sm:$0xf]
      %v2605 = vld [vmem:[%s2593 + $0x2c] sm:$0xf]
      %v2606 = vld [vmem:[%s2593 + $0x30] sm:$0xf]
      %v2607 = vld [vmem:[%s2593 + $0x34] sm:$0xf]
      %v2608 = vld [vmem:[%s2593 + $0x38] sm:$0xf]
      %v2609 = vld [vmem:[%s2593 + $0x3c] sm:$0xf]
      %v2626 = vunpack.c.l.b16 %v2594
      %v2627 = vunpack.c.l.b16 %v2595
      %v2628 = vunpack.c.l.b16 %v2596
      %v2629 = vunpack.c.l.b16 %v2597
      %v2630 = vunpack.c.l.b16 %v2598
      %v2631 = vunpack.c.l.b16 %v2599
      %v2632 = vunpack.c.l.b16 %v2600
      %v2633 = vunpack.c.l.b16 %v2601
      %v2634 = vunpack.c.l.b16 %v2602
      %v2635 = vunpack.c.l.b16 %v2603
      %v2636 = vunpack.c.l.b16 %v2604
      %v2637 = vunpack.c.l.b16 %v2605
      %v2638 = vunpack.c.l.b16 %v2606
      %v2639 = vunpack.c.l.b16 %v2607
      %v2640 = vunpack.c.l.b16 %v2608
      %v2641 = vunpack.c.l.b16 %v2609
      %v2642 = vpack.c.b16 %v2627, %v2626
      %v2643 = vpack.c.b16 %v2629, %v2628
      %v2644 = vpack.c.b16 %v2631, %v2630
      %v2645 = vpack.c.b16 %v2633, %v2632
      %v2646 = vpack.c.b16 %v2635, %v2634
      %v2647 = vpack.c.b16 %v2637, %v2636
      %v2648 = vpack.c.b16 %v2639, %v2638
      %v2649 = vpack.c.b16 %v2641, %v2640
      %2658 = vmatprep.subr.bf16.mxu0 0
      %2659 = vmatpush1.bf16.msra.mxu0 %v2642
      %2660 = vmatprep.subr.bf16.mxu0 0
      %2661 = vmatpush1.bf16.msra.mxu0 %v2643
      %2662 = vmatprep.subr.bf16.mxu0 0
      %2663 = vmatpush1.bf16.msra.mxu0 %v2644
      %2664 = vmatprep.subr.bf16.mxu0 0
      %2665 = vmatpush1.bf16.msra.mxu0 %v2645
      %2666 = vmatprep.subr.bf16.mxu0 0
      %2667 = vmatpush1.bf16.msra.mxu0 %v2646
      %2668 = vmatprep.subr.bf16.mxu0 0
      %2669 = vmatpush1.bf16.msra.mxu0 %v2647
      %2670 = vmatprep.subr.bf16.mxu0 0
      %2671 = vmatpush1.bf16.msra.mxu0 %v2648
      %2672 = vmatprep.subr.bf16.mxu0 0
      %2673 = vmatpush1.bf16.msra.mxu0 %v2649
      %2674 = vmatprep.subr.bf16.mxu0 0
      %2675 = vmatpush1.bf16.msra.mxu0 0
      %2676 = vmatprep.subr.bf16.mxu0 0
      %2677 = vmatpush1.bf16.msra.mxu0 0
      %2678 = vmatprep.subr.bf16.mxu0 0
      %2679 = vmatpush1.bf16.msra.mxu0 0
      %2680 = vmatprep.subr.bf16.mxu0 0
      %2681 = vmatpush1.bf16.msra.mxu0 0
      %2682 = vmatprep.subr.bf16.mxu0 0
      %2683 = vmatpush1.bf16.msra.mxu0 0
      %2684 = vmatprep.subr.bf16.mxu0 0
      %2685 = vmatpush1.bf16.msra.mxu0 0
      %2686 = vmatprep.subr.bf16.mxu0 0
      %2687 = vmatpush1.bf16.msra.mxu0 0
      %2688 = vmatprep.subr.bf16.mxu0 0
      %2689 = vmatpush1.bf16.msra.mxu0 0
      %2690 = vmatprep.mubr.bf16.mxu0 0
      %2691 = vmatmul.mubr.bf16.gmra.mrb[0].mxu0 %v2588
      %v2692 = vpop.f32.mrb[0].mxu0
      %v2693 = vadd.f32 0.0, %v2692
      %v2694 = vpop.f32.mrb[0].mxu0
      %v2695 = vpop.f32.mrb[0].mxu0
      %v2696 = vadd.f32 0.0, %v2695
      %v2697 = vpop.f32.mrb[0].mxu0
      %2698 = vmatprep.mubr.bf16.mxu0 0
      %2699 = vmatmul.mubr.bf16.gmra.mrb[0].mxu0 %v2589
      %v2700 = vpop.f32.mrb[0].mxu0
      %v2701 = vadd.f32 0.0, %v2700
      %v2702 = vpop.f32.mrb[0].mxu0
      %v2703 = vpop.f32.mrb[0].mxu0
      %v2704 = vadd.f32 0.0, %v2703
      %v2705 = vpop.f32.mrb[0].mxu0
      %2706 = vmatprep.mubr.bf16.mxu0 0
      %2707 = vmatmul.mubr.bf16.gmra.mrb[0].mxu0 %v2590
      %v2708 = vpop.f32.mrb[0].mxu0
      %v2709 = vadd.f32 0.0, %v2708
      %v2710 = vpop.f32.mrb[0].mxu0
      %v2711 = vpop.f32.mrb[0].mxu0
      %v2712 = vadd.f32 0.0, %v2711
      %v2713 = vpop.f32.mrb[0].mxu0
      %2714 = vmatprep.mubr.bf16.mxu0 0
      %2715 = vmatmul.mubr.bf16.gmra.mrb[0].mxu0 %v2591
      %v2716 = vpop.f32.mrb[0].mxu0
      %v2717 = vadd.f32 0.0, %v2716
      %v2718 = vpop.f32.mrb[0].mxu0
      %v2719 = vpop.f32.mrb[0].mxu0
      %v2720 = vadd.f32 0.0, %v2719
      %v2721 = vpop.f32.mrb[0].mxu0
      %2722 = vmatprep.mubr.bf16.mxu0 0
      %2723 = vmatmul.mubr.bf16.gmra.mrb[0].mxu0 %v2592
      %v2724 = vpop.f32.mrb[0].mxu0
      %v2725 = vadd.f32 0.0, %v2724
      %v2726 = vpop.f32.mrb[0].mxu0
      %v2727 = vpop.f32.mrb[0].mxu0
      %v2728 = vadd.f32 0.0, %v2727
      %v2729 = vpop.f32.mrb[0].mxu0
      %2730 = vdwg.mxu0
      %v2731 = vadd.f32 %v2568, %v2693
      %v2732 = vadd.f32 %v2569, %v2696
      %v2733 = vadd.f32 %v2570, %v2701
      %v2734 = vadd.f32 %v2571, %v2704
      %v2735 = vadd.f32 %v2572, %v2709
      %v2736 = vadd.f32 %v2573, %v2712
      %v2737 = vadd.f32 %v2574, %v2717
      %v2738 = vadd.f32 %v2575, %v2720
      %v2739 = vadd.f32 %v2576, %v2725
      %v2740 = vadd.f32 %v2577, %v2728
      %v2741 = vld [vmem:[%s294 + $0x14] sm:$0xff]
      %v2742 = vld [vmem:[%s294 + $0x1c] sm:$0xff]
      %v2743 = vld [vmem:[%s294 + $0x24] sm:$0xff]
      %v2744 = vld [vmem:[%s294 + $0x2c] sm:$0xff]
      %v2745 = vld [vmem:[%s294 + $0x34] sm:$0xff]
      %v2746 = vld [vmem:[%s294 + $0x3c] sm:$0xff]
      %v2747 = vld [vmem:[%s294 + $0x44] sm:$0xff]
      %v2748 = vld [vmem:[%s294 + $0x4c] sm:$0xff]
      %v2749 = vld [vmem:[%s294 + $0x54] sm:$0xff]
      %v2750 = vld [vmem:[%s294 + $0x5c] sm:$0x3f]
      %v2751 = vpack.c.bf16 %v2742, %v2741
      %v2752 = vpack.c.bf16 %v2744, %v2743
      %v2753 = vpack.c.bf16 %v2746, %v2745
      %v2754 = vpack.c.bf16 %v2748, %v2747
      %v2755 = vpack.c.bf16 %v2750, %v2749
      %s2756 = scalar_lea.vmem %s3, 960
      %v2757 = vld [vmem:[%s2756] sm:$0xf]
      %v2758 = vld [vmem:[%s2756 + $0x4] sm:$0xf]
      %v2759 = vld [vmem:[%s2756 + $0x8] sm:$0xf]
      %v2760 = vld [vmem:[%s2756 + $0xc] sm:$0xf]
      %v2761 = vld [vmem:[%s2756 + $0x10] sm:$0xf]
      %v2762 = vld [vmem:[%s2756 + $0x14] sm:$0xf]
      %v2763 = vld [vmem:[%s2756 + $0x18] sm:$0xf]
      %v2764 = vld [vmem:[%s2756 + $0x1c] sm:$0xf]
      %v2765 = vld [vmem:[%s2756 + $0x20] sm:$0xf]
      %v2766 = vld [vmem:[%s2756 + $0x24] sm:$0xf]
      %v2767 = vld [vmem:[%s2756 + $0x28] sm:$0xf]
      %v2768 = vld [vmem:[%s2756 + $0x2c] sm:$0xf]
      %v2769 = vld [vmem:[%s2756 + $0x30] sm:$0xf]
      %v2770 = vld [vmem:[%s2756 + $0x34] sm:$0xf]
      %v2771 = vld [vmem:[%s2756 + $0x38] sm:$0xf]
      %v2772 = vld [vmem:[%s2756 + $0x3c] sm:$0xf]
      %v2789 = vunpack.c.l.b16 %v2757
      %v2790 = vunpack.c.l.b16 %v2758
      %v2791 = vunpack.c.l.b16 %v2759
      %v2792 = vunpack.c.l.b16 %v2760
      %v2793 = vunpack.c.l.b16 %v2761
      %v2794 = vunpack.c.l.b16 %v2762
      %v2795 = vunpack.c.l.b16 %v2763
      %v2796 = vunpack.c.l.b16 %v2764
      %v2797 = vunpack.c.l.b16 %v2765
      %v2798 = vunpack.c.l.b16 %v2766
      %v2799 = vunpack.c.l.b16 %v2767
      %v2800 = vunpack.c.l.b16 %v2768
      %v2801 = vunpack.c.l.b16 %v2769
      %v2802 = vunpack.c.l.b16 %v2770
      %v2803 = vunpack.c.l.b16 %v2771
      %v2804 = vunpack.c.l.b16 %v2772
      %v2805 = vpack.c.b16 %v2790, %v2789
      %v2806 = vpack.c.b16 %v2792, %v2791
      %v2807 = vpack.c.b16 %v2794, %v2793
      %v2808 = vpack.c.b16 %v2796, %v2795
      %v2809 = vpack.c.b16 %v2798, %v2797
      %v2810 = vpack.c.b16 %v2800, %v2799
      %v2811 = vpack.c.b16 %v2802, %v2801
      %v2812 = vpack.c.b16 %v2804, %v2803
      %2821 = vmatprep.subr.bf16.mxu0 0
      %2822 = vmatpush1.bf16.msra.mxu0 %v2805
      %2823 = vmatprep.subr.bf16.mxu0 0
      %2824 = vmatpush1.bf16.msra.mxu0 %v2806
      %2825 = vmatprep.subr.bf16.mxu0 0
      %2826 = vmatpush1.bf16.msra.mxu0 %v2807
      %2827 = vmatprep.subr.bf16.mxu0 0
      %2828 = vmatpush1.bf16.msra.mxu0 %v2808
      %2829 = vmatprep.subr.bf16.mxu0 0
      %2830 = vmatpush1.bf16.msra.mxu0 %v2809
      %2831 = vmatprep.subr.bf16.mxu0 0
      %2832 = vmatpush1.bf16.msra.mxu0 %v2810
      %2833 = vmatprep.subr.bf16.mxu0 0
      %2834 = vmatpush1.bf16.msra.mxu0 %v2811
      %2835 = vmatprep.subr.bf16.mxu0 0
      %2836 = vmatpush1.bf16.msra.mxu0 %v2812
      %2837 = vmatprep.subr.bf16.mxu0 0
      %2838 = vmatpush1.bf16.msra.mxu0 0
      %2839 = vmatprep.subr.bf16.mxu0 0
      %2840 = vmatpush1.bf16.msra.mxu0 0
      %2841 = vmatprep.subr.bf16.mxu0 0
      %2842 = vmatpush1.bf16.msra.mxu0 0
      %2843 = vmatprep.subr.bf16.mxu0 0
      %2844 = vmatpush1.bf16.msra.mxu0 0
      %2845 = vmatprep.subr.bf16.mxu0 0
      %2846 = vmatpush1.bf16.msra.mxu0 0
      %2847 = vmatprep.subr.bf16.mxu0 0
      %2848 = vmatpush1.bf16.msra.mxu0 0
      %2849 = vmatprep.subr.bf16.mxu0 0
      %2850 = vmatpush1.bf16.msra.mxu0 0
      %2851 = vmatprep.subr.bf16.mxu0 0
      %2852 = vmatpush1.bf16.msra.mxu0 0
      %2853 = vmatprep.mubr.bf16.mxu0 0
      %2854 = vmatmul.mubr.bf16.gmra.mrb[0].mxu0 %v2751
      %v2855 = vpop.f32.mrb[0].mxu0
      %v2856 = vadd.f32 0.0, %v2855
      %v2857 = vpop.f32.mrb[0].mxu0
      %v2858 = vpop.f32.mrb[0].mxu0
      %v2859 = vadd.f32 0.0, %v2858
      %v2860 = vpop.f32.mrb[0].mxu0
      %2861 = vmatprep.mubr.bf16.mxu0 0
      %2862 = vmatmul.mubr.bf16.gmra.mrb[0].mxu0 %v2752
      %v2863 = vpop.f32.mrb[0].mxu0
      %v2864 = vadd.f32 0.0, %v2863
      %v2865 = vpop.f32.mrb[0].mxu0
      %v2866 = vpop.f32.mrb[0].mxu0
      %v2867 = vadd.f32 0.0, %v2866
      %v2868 = vpop.f32.mrb[0].mxu0
      %2869 = vmatprep.mubr.bf16.mxu0 0
      %2870 = vmatmul.mubr.bf16.gmra.mrb[0].mxu0 %v2753
      %v2871 = vpop.f32.mrb[0].mxu0
      %v2872 = vadd.f32 0.0, %v2871
      %v2873 = vpop.f32.mrb[0].mxu0
      %v2874 = vpop.f32.mrb[0].mxu0
      %v2875 = vadd.f32 0.0, %v2874
      %v2876 = vpop.f32.mrb[0].mxu0
      %2877 = vmatprep.mubr.bf16.mxu0 0
      %2878 = vmatmul.mubr.bf16.gmra.mrb[0].mxu0 %v2754
      %v2879 = vpop.f32.mrb[0].mxu0
      %v2880 = vadd.f32 0.0, %v2879
      %v2881 = vpop.f32.mrb[0].mxu0
      %v2882 = vpop.f32.mrb[0].mxu0
      %v2883 = vadd.f32 0.0, %v2882
      %v2884 = vpop.f32.mrb[0].mxu0
      %2885 = vmatprep.mubr.bf16.mxu0 0
      %2886 = vmatmul.mubr.bf16.gmra.mrb[0].mxu0 %v2755
      %v2887 = vpop.f32.mrb[0].mxu0
      %v2888 = vadd.f32 0.0, %v2887
      %v2889 = vpop.f32.mrb[0].mxu0
      %v2890 = vpop.f32.mrb[0].mxu0
      %v2891 = vadd.f32 0.0, %v2890
      %v2892 = vpop.f32.mrb[0].mxu0
      %2893 = vdwg.mxu0
      %v2894 = vadd.f32 %v2731, %v2856
      %v2895 = vadd.f32 %v2732, %v2859
      %v2896 = vadd.f32 %v2733, %v2864
      %v2897 = vadd.f32 %v2734, %v2867
      %v2898 = vadd.f32 %v2735, %v2872
      %v2899 = vadd.f32 %v2736, %v2875
      %v2900 = vadd.f32 %v2737, %v2880
      %v2901 = vadd.f32 %v2738, %v2883
      %v2902 = vadd.f32 %v2739, %v2888
      %v2903 = vadd.f32 %v2740, %v2891
      %v2904 = vld [vmem:[%s294 + $0x15] sm:$0xff]
      %v2905 = vld [vmem:[%s294 + $0x1d] sm:$0xff]
      %v2906 = vld [vmem:[%s294 + $0x25] sm:$0xff]
      %v2907 = vld [vmem:[%s294 + $0x2d] sm:$0xff]
      %v2908 = vld [vmem:[%s294 + $0x35] sm:$0xff]
      %v2909 = vld [vmem:[%s294 + $0x3d] sm:$0xff]
      %v2910 = vld [vmem:[%s294 + $0x45] sm:$0xff]
      %v2911 = vld [vmem:[%s294 + $0x4d] sm:$0xff]
      %v2912 = vld [vmem:[%s294 + $0x55] sm:$0xff]
      %v2913 = vld [vmem:[%s294 + $0x5d] sm:$0x3f]
      %v2914 = vpack.c.bf16 %v2905, %v2904
      %v2915 = vpack.c.bf16 %v2907, %v2906
      %v2916 = vpack.c.bf16 %v2909, %v2908
      %v2917 = vpack.c.bf16 %v2911, %v2910
      %v2918 = vpack.c.bf16 %v2913, %v2912
      %s2919 = scalar_lea.vmem %s3, 1024
      %v2920 = vld [vmem:[%s2919] sm:$0xf]
      %v2921 = vld [vmem:[%s2919 + $0x4] sm:$0xf]
      %v2922 = vld [vmem:[%s2919 + $0x8] sm:$0xf]
      %v2923 = vld [vmem:[%s2919 + $0xc] sm:$0xf]
      %v2924 = vld [vmem:[%s2919 + $0x10] sm:$0xf]
      %v2925 = vld [vmem:[%s2919 + $0x14] sm:$0xf]
      %v2926 = vld [vmem:[%s2919 + $0x18] sm:$0xf]
      %v2927 = vld [vmem:[%s2919 + $0x1c] sm:$0xf]
      %v2928 = vld [vmem:[%s2919 + $0x20] sm:$0xf]
      %v2929 = vld [vmem:[%s2919 + $0x24] sm:$0xf]
      %v2930 = vld [vmem:[%s2919 + $0x28] sm:$0xf]
      %v2931 = vld [vmem:[%s2919 + $0x2c] sm:$0xf]
      %v2932 = vld [vmem:[%s2919 + $0x30] sm:$0xf]
      %v2933 = vld [vmem:[%s2919 + $0x34] sm:$0xf]
      %v2934 = vld [vmem:[%s2919 + $0x38] sm:$0xf]
      %v2935 = vld [vmem:[%s2919 + $0x3c] sm:$0xf]
      %v2952 = vunpack.c.l.b16 %v2920
      %v2953 = vunpack.c.l.b16 %v2921
      %v2954 = vunpack.c.l.b16 %v2922
      %v2955 = vunpack.c.l.b16 %v2923
      %v2956 = vunpack.c.l.b16 %v2924
      %v2957 = vunpack.c.l.b16 %v2925
      %v2958 = vunpack.c.l.b16 %v2926
      %v2959 = vunpack.c.l.b16 %v2927
      %v2960 = vunpack.c.l.b16 %v2928
      %v2961 = vunpack.c.l.b16 %v2929
      %v2962 = vunpack.c.l.b16 %v2930
      %v2963 = vunpack.c.l.b16 %v2931
      %v2964 = vunpack.c.l.b16 %v2932
      %v2965 = vunpack.c.l.b16 %v2933
      %v2966 = vunpack.c.l.b16 %v2934
      %v2967 = vunpack.c.l.b16 %v2935
      %v2968 = vpack.c.b16 %v2953, %v2952
      %v2969 = vpack.c.b16 %v2955, %v2954
      %v2970 = vpack.c.b16 %v2957, %v2956
      %v2971 = vpack.c.b16 %v2959, %v2958
      %v2972 = vpack.c.b16 %v2961, %v2960
      %v2973 = vpack.c.b16 %v2963, %v2962
      %v2974 = vpack.c.b16 %v2965, %v2964
      %v2975 = vpack.c.b16 %v2967, %v2966
      %2984 = vmatprep.subr.bf16.mxu0 0
      %2985 = vmatpush1.bf16.msra.mxu0 %v2968
      %2986 = vmatprep.subr.bf16.mxu0 0
      %2987 = vmatpush1.bf16.msra.mxu0 %v2969
      %2988 = vmatprep.subr.bf16.mxu0 0
      %2989 = vmatpush1.bf16.msra.mxu0 %v2970
      %2990 = vmatprep.subr.bf16.mxu0 0
      %2991 = vmatpush1.bf16.msra.mxu0 %v2971
      %2992 = vmatprep.subr.bf16.mxu0 0
      %2993 = vmatpush1.bf16.msra.mxu0 %v2972
      %2994 = vmatprep.subr.bf16.mxu0 0
      %2995 = vmatpush1.bf16.msra.mxu0 %v2973
      %2996 = vmatprep.subr.bf16.mxu0 0
      %2997 = vmatpush1.bf16.msra.mxu0 %v2974
      %2998 = vmatprep.subr.bf16.mxu0 0
      %2999 = vmatpush1.bf16.msra.mxu0 %v2975
      %3000 = vmatprep.subr.bf16.mxu0 0
      %3001 = vmatpush1.bf16.msra.mxu0 0
      %3002 = vmatprep.subr.bf16.mxu0 0
      %3003 = vmatpush1.bf16.msra.mxu0 0
      %3004 = vmatprep.subr.bf16.mxu0 0
      %3005 = vmatpush1.bf16.msra.mxu0 0
      %3006 = vmatprep.subr.bf16.mxu0 0
      %3007 = vmatpush1.bf16.msra.mxu0 0
      %3008 = vmatprep.subr.bf16.mxu0 0
      %3009 = vmatpush1.bf16.msra.mxu0 0
      %3010 = vmatprep.subr.bf16.mxu0 0
      %3011 = vmatpush1.bf16.msra.mxu0 0
      %3012 = vmatprep.subr.bf16.mxu0 0
      %3013 = vmatpush1.bf16.msra.mxu0 0
      %3014 = vmatprep.subr.bf16.mxu0 0
      %3015 = vmatpush1.bf16.msra.mxu0 0
      %3016 = vmatprep.mubr.bf16.mxu0 0
      %3017 = vmatmul.mubr.bf16.gmra.mrb[0].mxu0 %v2914
      %v3018 = vpop.f32.mrb[0].mxu0
      %v3019 = vadd.f32 0.0, %v3018
      %v3020 = vpop.f32.mrb[0].mxu0
      %v3021 = vpop.f32.mrb[0].mxu0
      %v3022 = vadd.f32 0.0, %v3021
      %v3023 = vpop.f32.mrb[0].mxu0
      %3024 = vmatprep.mubr.bf16.mxu0 0
      %3025 = vmatmul.mubr.bf16.gmra.mrb[0].mxu0 %v2915
      %v3026 = vpop.f32.mrb[0].mxu0
      %v3027 = vadd.f32 0.0, %v3026
      %v3028 = vpop.f32.mrb[0].mxu0
      %v3029 = vpop.f32.mrb[0].mxu0
      %v3030 = vadd.f32 0.0, %v3029
      %v3031 = vpop.f32.mrb[0].mxu0
      %3032 = vmatprep.mubr.bf16.mxu0 0
      %3033 = vmatmul.mubr.bf16.gmra.mrb[0].mxu0 %v2916
      %v3034 = vpop.f32.mrb[0].mxu0
      %v3035 = vadd.f32 0.0, %v3034
      %v3036 = vpop.f32.mrb[0].mxu0
      %v3037 = vpop.f32.mrb[0].mxu0
      %v3038 = vadd.f32 0.0, %v3037
      %v3039 = vpop.f32.mrb[0].mxu0
      %3040 = vmatprep.mubr.bf16.mxu0 0
      %3041 = vmatmul.mubr.bf16.gmra.mrb[0].mxu0 %v2917
      %v3042 = vpop.f32.mrb[0].mxu0
      %v3043 = vadd.f32 0.0, %v3042
      %v3044 = vpop.f32.mrb[0].mxu0
      %v3045 = vpop.f32.mrb[0].mxu0
      %v3046 = vadd.f32 0.0, %v3045
      %v3047 = vpop.f32.mrb[0].mxu0
      %3048 = vmatprep.mubr.bf16.mxu0 0
      %3049 = vmatmul.mubr.bf16.gmra.mrb[0].mxu0 %v2918
      %v3050 = vpop.f32.mrb[0].mxu0
      %v3051 = vadd.f32 0.0, %v3050
      %v3052 = vpop.f32.mrb[0].mxu0
      %v3053 = vpop.f32.mrb[0].mxu0
      %v3054 = vadd.f32 0.0, %v3053
      %v3055 = vpop.f32.mrb[0].mxu0
      %3056 = vdwg.mxu0
      %v3057 = vadd.f32 %v2894, %v3019
      %v3058 = vadd.f32 %v2895, %v3022
      %v3059 = vadd.f32 %v2896, %v3027
      %v3060 = vadd.f32 %v2897, %v3030
      %v3061 = vadd.f32 %v2898, %v3035
      %v3062 = vadd.f32 %v2899, %v3038
      %v3063 = vadd.f32 %v2900, %v3043
      %v3064 = vadd.f32 %v2901, %v3046
      %v3065 = vadd.f32 %v2902, %v3051
      %v3066 = vadd.f32 %v2903, %v3054
      %v3067 = vld [vmem:[%s294 + $0x16] sm:$0xff]
      %v3068 = vld [vmem:[%s294 + $0x1e] sm:$0xff]
      %v3069 = vld [vmem:[%s294 + $0x26] sm:$0xff]
      %v3070 = vld [vmem:[%s294 + $0x2e] sm:$0xff]
      %v3071 = vld [vmem:[%s294 + $0x36] sm:$0xff]
      %v3072 = vld [vmem:[%s294 + $0x3e] sm:$0xff]
      %v3073 = vld [vmem:[%s294 + $0x46] sm:$0xff]
      %v3074 = vld [vmem:[%s294 + $0x4e] sm:$0xff]
      %v3075 = vld [vmem:[%s294 + $0x56] sm:$0xff]
      %v3076 = vld [vmem:[%s294 + $0x5e] sm:$0x3f]
      %v3077 = vpack.c.bf16 %v3068, %v3067
      %v3078 = vpack.c.bf16 %v3070, %v3069
      %v3079 = vpack.c.bf16 %v3072, %v3071
      %v3080 = vpack.c.bf16 %v3074, %v3073
      %v3081 = vpack.c.bf16 %v3076, %v3075
      %s3082 = scalar_lea.vmem %s3, 1088
      %v3083 = vld [vmem:[%s3082] sm:$0xf]
      %v3084 = vld [vmem:[%s3082 + $0x4] sm:$0xf]
      %v3085 = vld [vmem:[%s3082 + $0x8] sm:$0xf]
      %v3086 = vld [vmem:[%s3082 + $0xc] sm:$0xf]
      %v3087 = vld [vmem:[%s3082 + $0x10] sm:$0xf]
      %v3088 = vld [vmem:[%s3082 + $0x14] sm:$0xf]
      %v3089 = vld [vmem:[%s3082 + $0x18] sm:$0xf]
      %v3090 = vld [vmem:[%s3082 + $0x1c] sm:$0xf]
      %v3091 = vld [vmem:[%s3082 + $0x20] sm:$0xf]
      %v3092 = vld [vmem:[%s3082 + $0x24] sm:$0xf]
      %v3093 = vld [vmem:[%s3082 + $0x28] sm:$0xf]
      %v3094 = vld [vmem:[%s3082 + $0x2c] sm:$0xf]
      %v3095 = vld [vmem:[%s3082 + $0x30] sm:$0xf]
      %v3096 = vld [vmem:[%s3082 + $0x34] sm:$0xf]
      %v3097 = vld [vmem:[%s3082 + $0x38] sm:$0xf]
      %v3098 = vld [vmem:[%s3082 + $0x3c] sm:$0xf]
      %v3115 = vunpack.c.l.b16 %v3083
      %v3116 = vunpack.c.l.b16 %v3084
      %v3117 = vunpack.c.l.b16 %v3085
      %v3118 = vunpack.c.l.b16 %v3086
      %v3119 = vunpack.c.l.b16 %v3087
      %v3120 = vunpack.c.l.b16 %v3088
      %v3121 = vunpack.c.l.b16 %v3089
      %v3122 = vunpack.c.l.b16 %v3090
      %v3123 = vunpack.c.l.b16 %v3091
      %v3124 = vunpack.c.l.b16 %v3092
      %v3125 = vunpack.c.l.b16 %v3093
      %v3126 = vunpack.c.l.b16 %v3094
      %v3127 = vunpack.c.l.b16 %v3095
      %v3128 = vunpack.c.l.b16 %v3096
      %v3129 = vunpack.c.l.b16 %v3097
      %v3130 = vunpack.c.l.b16 %v3098
      %v3131 = vpack.c.b16 %v3116, %v3115
      %v3132 = vpack.c.b16 %v3118, %v3117
      %v3133 = vpack.c.b16 %v3120, %v3119
      %v3134 = vpack.c.b16 %v3122, %v3121
      %v3135 = vpack.c.b16 %v3124, %v3123
      %v3136 = vpack.c.b16 %v3126, %v3125
      %v3137 = vpack.c.b16 %v3128, %v3127
      %v3138 = vpack.c.b16 %v3130, %v3129
      %3147 = vmatprep.subr.bf16.mxu0 0
      %3148 = vmatpush1.bf16.msra.mxu0 %v3131
      %3149 = vmatprep.subr.bf16.mxu0 0
      %3150 = vmatpush1.bf16.msra.mxu0 %v3132
      %3151 = vmatprep.subr.bf16.mxu0 0
      %3152 = vmatpush1.bf16.msra.mxu0 %v3133
      %3153 = vmatprep.subr.bf16.mxu0 0
      %3154 = vmatpush1.bf16.msra.mxu0 %v3134
      %3155 = vmatprep.subr.bf16.mxu0 0
      %3156 = vmatpush1.bf16.msra.mxu0 %v3135
      %3157 = vmatprep.subr.bf16.mxu0 0
      %3158 = vmatpush1.bf16.msra.mxu0 %v3136
      %3159 = vmatprep.subr.bf16.mxu0 0
      %3160 = vmatpush1.bf16.msra.mxu0 %v3137
      %3161 = vmatprep.subr.bf16.mxu0 0
      %3162 = vmatpush1.bf16.msra.mxu0 %v3138
      %3163 = vmatprep.subr.bf16.mxu0 0
      %3164 = vmatpush1.bf16.msra.mxu0 0
      %3165 = vmatprep.subr.bf16.mxu0 0
      %3166 = vmatpush1.bf16.msra.mxu0 0
      %3167 = vmatprep.subr.bf16.mxu0 0
      %3168 = vmatpush1.bf16.msra.mxu0 0
      %3169 = vmatprep.subr.bf16.mxu0 0
      %3170 = vmatpush1.bf16.msra.mxu0 0
      %3171 = vmatprep.subr.bf16.mxu0 0
      %3172 = vmatpush1.bf16.msra.mxu0 0
      %3173 = vmatprep.subr.bf16.mxu0 0
      %3174 = vmatpush1.bf16.msra.mxu0 0
      %3175 = vmatprep.subr.bf16.mxu0 0
      %3176 = vmatpush1.bf16.msra.mxu0 0
      %3177 = vmatprep.subr.bf16.mxu0 0
      %3178 = vmatpush1.bf16.msra.mxu0 0
      %3179 = vmatprep.mubr.bf16.mxu0 0
      %3180 = vmatmul.mubr.bf16.gmra.mrb[0].mxu0 %v3077
      %v3181 = vpop.f32.mrb[0].mxu0
      %v3182 = vadd.f32 0.0, %v3181
      %v3183 = vpop.f32.mrb[0].mxu0
      %v3184 = vpop.f32.mrb[0].mxu0
      %v3185 = vadd.f32 0.0, %v3184
      %v3186 = vpop.f32.mrb[0].mxu0
      %3187 = vmatprep.mubr.bf16.mxu0 0
      %3188 = vmatmul.mubr.bf16.gmra.mrb[0].mxu0 %v3078
      %v3189 = vpop.f32.mrb[0].mxu0
      %v3190 = vadd.f32 0.0, %v3189
      %v3191 = vpop.f32.mrb[0].mxu0
      %v3192 = vpop.f32.mrb[0].mxu0
      %v3193 = vadd.f32 0.0, %v3192
      %v3194 = vpop.f32.mrb[0].mxu0
      %3195 = vmatprep.mubr.bf16.mxu0 0
      %3196 = vmatmul.mubr.bf16.gmra.mrb[0].mxu0 %v3079
      %v3197 = vpop.f32.mrb[0].mxu0
      %v3198 = vadd.f32 0.0, %v3197
      %v3199 = vpop.f32.mrb[0].mxu0
      %v3200 = vpop.f32.mrb[0].mxu0
      %v3201 = vadd.f32 0.0, %v3200
      %v3202 = vpop.f32.mrb[0].mxu0
      %3203 = vmatprep.mubr.bf16.mxu0 0
      %3204 = vmatmul.mubr.bf16.gmra.mrb[0].mxu0 %v3080
      %v3205 = vpop.f32.mrb[0].mxu0
      %v3206 = vadd.f32 0.0, %v3205
      %v3207 = vpop.f32.mrb[0].mxu0
      %v3208 = vpop.f32.mrb[0].mxu0
      %v3209 = vadd.f32 0.0, %v3208
      %v3210 = vpop.f32.mrb[0].mxu0
      %3211 = vmatprep.mubr.bf16.mxu0 0
      %3212 = vmatmul.mubr.bf16.gmra.mrb[0].mxu0 %v3081
      %v3213 = vpop.f32.mrb[0].mxu0
      %v3214 = vadd.f32 0.0, %v3213
      %v3215 = vpop.f32.mrb[0].mxu0
      %v3216 = vpop.f32.mrb[0].mxu0
      %v3217 = vadd.f32 0.0, %v3216
      %v3218 = vpop.f32.mrb[0].mxu0
      %3219 = vdwg.mxu0
      %v3220 = vadd.f32 %v3057, %v3182
      %v3221 = vadd.f32 %v3058, %v3185
      %v3222 = vadd.f32 %v3059, %v3190
      %v3223 = vadd.f32 %v3060, %v3193
      %v3224 = vadd.f32 %v3061, %v3198
      %v3225 = vadd.f32 %v3062, %v3201
      %v3226 = vadd.f32 %v3063, %v3206
      %v3227 = vadd.f32 %v3064, %v3209
      %v3228 = vadd.f32 %v3065, %v3214
      %v3229 = vadd.f32 %v3066, %v3217
      %v3230 = vld [vmem:[%s305] sm:$0xff]
      %v3231 = vld [vmem:[%s305 + $0x8] sm:$0xff]
      %v3232 = vld [vmem:[%s305 + $0x10] sm:$0xff]
      %v3233 = vld [vmem:[%s305 + $0x18] sm:$0xff]
      %v3234 = vld [vmem:[%s305 + $0x20] sm:$0xff]
      %v3235 = vld [vmem:[%s305 + $0x28] sm:$0xff]
      %v3236 = vld [vmem:[%s305 + $0x30] sm:$0xff]
      %v3237 = vld [vmem:[%s305 + $0x38] sm:$0xff]
      %v3238 = vld [vmem:[%s305 + $0x40] sm:$0xff]
      %v3239 = vld [vmem:[%s305 + $0x48] sm:$0x3f]
      %v3240 = vpack.c.bf16 %v3231, %v3230
      %v3241 = vpack.c.bf16 %v3233, %v3232
      %v3242 = vpack.c.bf16 %v3235, %v3234
      %v3243 = vpack.c.bf16 %v3237, %v3236
      %v3244 = vpack.c.bf16 %v3239, %v3238
      %s3245 = scalar_lea.vmem %s3, 1152
      %v3246 = vld [vmem:[%s3245] sm:$0xf]
      %v3247 = vld [vmem:[%s3245 + $0x4] sm:$0xf]
      %v3248 = vld [vmem:[%s3245 + $0x8] sm:$0xf]
      %v3249 = vld [vmem:[%s3245 + $0xc] sm:$0xf]
      %v3250 = vld [vmem:[%s3245 + $0x10] sm:$0xf]
      %v3251 = vld [vmem:[%s3245 + $0x14] sm:$0xf]
      %v3252 = vld [vmem:[%s3245 + $0x18] sm:$0xf]
      %v3253 = vld [vmem:[%s3245 + $0x1c] sm:$0xf]
      %v3254 = vld [vmem:[%s3245 + $0x20] sm:$0xf]
      %v3255 = vld [vmem:[%s3245 + $0x24] sm:$0xf]
      %v3256 = vld [vmem:[%s3245 + $0x28] sm:$0xf]
      %v3257 = vld [vmem:[%s3245 + $0x2c] sm:$0xf]
      %v3258 = vld [vmem:[%s3245 + $0x30] sm:$0xf]
      %v3259 = vld [vmem:[%s3245 + $0x34] sm:$0xf]
      %v3260 = vld [vmem:[%s3245 + $0x38] sm:$0xf]
      %v3261 = vld [vmem:[%s3245 + $0x3c] sm:$0xf]
      %v3278 = vunpack.c.l.b16 %v3246
      %v3279 = vunpack.c.l.b16 %v3247
      %v3280 = vunpack.c.l.b16 %v3248
      %v3281 = vunpack.c.l.b16 %v3249
      %v3282 = vunpack.c.l.b16 %v3250
      %v3283 = vunpack.c.l.b16 %v3251
      %v3284 = vunpack.c.l.b16 %v3252
      %v3285 = vunpack.c.l.b16 %v3253
      %v3286 = vunpack.c.l.b16 %v3254
      %v3287 = vunpack.c.l.b16 %v3255
      %v3288 = vunpack.c.l.b16 %v3256
      %v3289 = vunpack.c.l.b16 %v3257
      %v3290 = vunpack.c.l.b16 %v3258
      %v3291 = vunpack.c.l.b16 %v3259
      %v3292 = vunpack.c.l.b16 %v3260
      %v3293 = vunpack.c.l.b16 %v3261
      %v3294 = vpack.c.b16 %v3279, %v3278
      %v3295 = vpack.c.b16 %v3281, %v3280
      %v3296 = vpack.c.b16 %v3283, %v3282
      %v3297 = vpack.c.b16 %v3285, %v3284
      %v3298 = vpack.c.b16 %v3287, %v3286
      %v3299 = vpack.c.b16 %v3289, %v3288
      %v3300 = vpack.c.b16 %v3291, %v3290
      %v3301 = vpack.c.b16 %v3293, %v3292
      %3310 = vmatprep.subr.bf16.mxu0 0
      %3311 = vmatpush1.bf16.msra.mxu0 %v3294
      %3312 = vmatprep.subr.bf16.mxu0 0
      %3313 = vmatpush1.bf16.msra.mxu0 %v3295
      %3314 = vmatprep.subr.bf16.mxu0 0
      %3315 = vmatpush1.bf16.msra.mxu0 %v3296
      %3316 = vmatprep.subr.bf16.mxu0 0
      %3317 = vmatpush1.bf16.msra.mxu0 %v3297
      %3318 = vmatprep.subr.bf16.mxu0 0
      %3319 = vmatpush1.bf16.msra.mxu0 %v3298
      %3320 = vmatprep.subr.bf16.mxu0 0
      %3321 = vmatpush1.bf16.msra.mxu0 %v3299
      %3322 = vmatprep.subr.bf16.mxu0 0
      %3323 = vmatpush1.bf16.msra.mxu0 %v3300
      %3324 = vmatprep.subr.bf16.mxu0 0
      %3325 = vmatpush1.bf16.msra.mxu0 %v3301
      %3326 = vmatprep.subr.bf16.mxu0 0
      %3327 = vmatpush1.bf16.msra.mxu0 0
      %3328 = vmatprep.subr.bf16.mxu0 0
      %3329 = vmatpush1.bf16.msra.mxu0 0
      %3330 = vmatprep.subr.bf16.mxu0 0
      %3331 = vmatpush1.bf16.msra.mxu0 0
      %3332 = vmatprep.subr.bf16.mxu0 0
      %3333 = vmatpush1.bf16.msra.mxu0 0
      %3334 = vmatprep.subr.bf16.mxu0 0
      %3335 = vmatpush1.bf16.msra.mxu0 0
      %3336 = vmatprep.subr.bf16.mxu0 0
      %3337 = vmatpush1.bf16.msra.mxu0 0
      %3338 = vmatprep.subr.bf16.mxu0 0
      %3339 = vmatpush1.bf16.msra.mxu0 0
      %3340 = vmatprep.subr.bf16.mxu0 0
      %3341 = vmatpush1.bf16.msra.mxu0 0
      %3342 = vmatprep.mubr.bf16.mxu0 0
      %3343 = vmatmul.mubr.bf16.gmra.mrb[0].mxu0 %v3240
      %v3344 = vpop.f32.mrb[0].mxu0
      %v3345 = vadd.f32 0.0, %v3344
      %v3346 = vpop.f32.mrb[0].mxu0
      %v3347 = vpop.f32.mrb[0].mxu0
      %v3348 = vadd.f32 0.0, %v3347
      %v3349 = vpop.f32.mrb[0].mxu0
      %3350 = vmatprep.mubr.bf16.mxu0 0
      %3351 = vmatmul.mubr.bf16.gmra.mrb[0].mxu0 %v3241
      %v3352 = vpop.f32.mrb[0].mxu0
      %v3353 = vadd.f32 0.0, %v3352
      %v3354 = vpop.f32.mrb[0].mxu0
      %v3355 = vpop.f32.mrb[0].mxu0
      %v3356 = vadd.f32 0.0, %v3355
      %v3357 = vpop.f32.mrb[0].mxu0
      %3358 = vmatprep.mubr.bf16.mxu0 0
      %3359 = vmatmul.mubr.bf16.gmra.mrb[0].mxu0 %v3242
      %v3360 = vpop.f32.mrb[0].mxu0
      %v3361 = vadd.f32 0.0, %v3360
      %v3362 = vpop.f32.mrb[0].mxu0
      %v3363 = vpop.f32.mrb[0].mxu0
      %v3364 = vadd.f32 0.0, %v3363
      %v3365 = vpop.f32.mrb[0].mxu0
      %3366 = vmatprep.mubr.bf16.mxu0 0
      %3367 = vmatmul.mubr.bf16.gmra.mrb[0].mxu0 %v3243
      %v3368 = vpop.f32.mrb[0].mxu0
      %v3369 = vadd.f32 0.0, %v3368
      %v3370 = vpop.f32.mrb[0].mxu0
      %v3371 = vpop.f32.mrb[0].mxu0
      %v3372 = vadd.f32 0.0, %v3371
      %v3373 = vpop.f32.mrb[0].mxu0
      %3374 = vmatprep.mubr.bf16.mxu0 0
      %3375 = vmatmul.mubr.bf16.gmra.mrb[0].mxu0 %v3244
      %v3376 = vpop.f32.mrb[0].mxu0
      %v3377 = vadd.f32 0.0, %v3376
      %v3378 = vpop.f32.mrb[0].mxu0
      %v3379 = vpop.f32.mrb[0].mxu0
      %v3380 = vadd.f32 0.0, %v3379
      %v3381 = vpop.f32.mrb[0].mxu0
      %3382 = vdwg.mxu0
      %v3383 = vadd.f32 %v3220, %v3345
      %v3384 = vadd.f32 %v3221, %v3348
      %v3385 = vadd.f32 %v3222, %v3353
      %v3386 = vadd.f32 %v3223, %v3356
      %v3387 = vadd.f32 %v3224, %v3361
      %v3388 = vadd.f32 %v3225, %v3364
      %v3389 = vadd.f32 %v3226, %v3369
      %v3390 = vadd.f32 %v3227, %v3372
      %v3391 = vadd.f32 %v3228, %v3377
      %v3392 = vadd.f32 %v3229, %v3380
      %v3393 = vld [vmem:[%s305 + $0x1] sm:$0xff]
      %v3394 = vld [vmem:[%s305 + $0x9] sm:$0xff]
      %v3395 = vld [vmem:[%s305 + $0x11] sm:$0xff]
      %v3396 = vld [vmem:[%s305 + $0x19] sm:$0xff]
      %v3397 = vld [vmem:[%s305 + $0x21] sm:$0xff]
      %v3398 = vld [vmem:[%s305 + $0x29] sm:$0xff]
      %v3399 = vld [vmem:[%s305 + $0x31] sm:$0xff]
      %v3400 = vld [vmem:[%s305 + $0x39] sm:$0xff]
      %v3401 = vld [vmem:[%s305 + $0x41] sm:$0xff]
      %v3402 = vld [vmem:[%s305 + $0x49] sm:$0x3f]
      %v3403 = vpack.c.bf16 %v3394, %v3393
      %v3404 = vpack.c.bf16 %v3396, %v3395
      %v3405 = vpack.c.bf16 %v3398, %v3397
      %v3406 = vpack.c.bf16 %v3400, %v3399
      %v3407 = vpack.c.bf16 %v3402, %v3401
      %s3408 = scalar_lea.vmem %s3, 1216
      %v3409 = vld [vmem:[%s3408] sm:$0xf]
      %v3410 = vld [vmem:[%s3408 + $0x4] sm:$0xf]
      %v3411 = vld [vmem:[%s3408 + $0x8] sm:$0xf]
      %v3412 = vld [vmem:[%s3408 + $0xc] sm:$0xf]
      %v3413 = vld [vmem:[%s3408 + $0x10] sm:$0xf]
      %v3414 = vld [vmem:[%s3408 + $0x14] sm:$0xf]
      %v3415 = vld [vmem:[%s3408 + $0x18] sm:$0xf]
      %v3416 = vld [vmem:[%s3408 + $0x1c] sm:$0xf]
      %v3417 = vld [vmem:[%s3408 + $0x20] sm:$0xf]
      %v3418 = vld [vmem:[%s3408 + $0x24] sm:$0xf]
      %v3419 = vld [vmem:[%s3408 + $0x28] sm:$0xf]
      %v3420 = vld [vmem:[%s3408 + $0x2c] sm:$0xf]
      %v3421 = vld [vmem:[%s3408 + $0x30] sm:$0xf]
      %v3422 = vld [vmem:[%s3408 + $0x34] sm:$0xf]
      %v3423 = vld [vmem:[%s3408 + $0x38] sm:$0xf]
      %v3424 = vld [vmem:[%s3408 + $0x3c] sm:$0xf]
      %v3441 = vunpack.c.l.b16 %v3409
      %v3442 = vunpack.c.l.b16 %v3410
      %v3443 = vunpack.c.l.b16 %v3411
      %v3444 = vunpack.c.l.b16 %v3412
      %v3445 = vunpack.c.l.b16 %v3413
      %v3446 = vunpack.c.l.b16 %v3414
      %v3447 = vunpack.c.l.b16 %v3415
      %v3448 = vunpack.c.l.b16 %v3416
      %v3449 = vunpack.c.l.b16 %v3417
      %v3450 = vunpack.c.l.b16 %v3418
      %v3451 = vunpack.c.l.b16 %v3419
      %v3452 = vunpack.c.l.b16 %v3420
      %v3453 = vunpack.c.l.b16 %v3421
      %v3454 = vunpack.c.l.b16 %v3422
      %v3455 = vunpack.c.l.b16 %v3423
      %v3456 = vunpack.c.l.b16 %v3424
      %v3457 = vpack.c.b16 %v3442, %v3441
      %v3458 = vpack.c.b16 %v3444, %v3443
      %v3459 = vpack.c.b16 %v3446, %v3445
      %v3460 = vpack.c.b16 %v3448, %v3447
      %v3461 = vpack.c.b16 %v3450, %v3449
      %v3462 = vpack.c.b16 %v3452, %v3451
      %v3463 = vpack.c.b16 %v3454, %v3453
      %v3464 = vpack.c.b16 %v3456, %v3455
      %3473 = vmatprep.subr.bf16.mxu0 0
      %3474 = vmatpush1.bf16.msra.mxu0 %v3457
      %3475 = vmatprep.subr.bf16.mxu0 0
      %3476 = vmatpush1.bf16.msra.mxu0 %v3458
      %3477 = vmatprep.subr.bf16.mxu0 0
      %3478 = vmatpush1.bf16.msra.mxu0 %v3459
      %3479 = vmatprep.subr.bf16.mxu0 0
      %3480 = vmatpush1.bf16.msra.mxu0 %v3460
      %3481 = vmatprep.subr.bf16.mxu0 0
      %3482 = vmatpush1.bf16.msra.mxu0 %v3461
      %3483 = vmatprep.subr.bf16.mxu0 0
      %3484 = vmatpush1.bf16.msra.mxu0 %v3462
      %3485 = vmatprep.subr.bf16.mxu0 0
      %3486 = vmatpush1.bf16.msra.mxu0 %v3463
      %3487 = vmatprep.subr.bf16.mxu0 0
      %3488 = vmatpush1.bf16.msra.mxu0 %v3464
      %3489 = vmatprep.subr.bf16.mxu0 0
      %3490 = vmatpush1.bf16.msra.mxu0 0
      %3491 = vmatprep.subr.bf16.mxu0 0
      %3492 = vmatpush1.bf16.msra.mxu0 0
      %3493 = vmatprep.subr.bf16.mxu0 0
      %3494 = vmatpush1.bf16.msra.mxu0 0
      %3495 = vmatprep.subr.bf16.mxu0 0
      %3496 = vmatpush1.bf16.msra.mxu0 0
      %3497 = vmatprep.subr.bf16.mxu0 0
      %3498 = vmatpush1.bf16.msra.mxu0 0
      %3499 = vmatprep.subr.bf16.mxu0 0
      %3500 = vmatpush1.bf16.msra.mxu0 0
      %3501 = vmatprep.subr.bf16.mxu0 0
      %3502 = vmatpush1.bf16.msra.mxu0 0
      %3503 = vmatprep.subr.bf16.mxu0 0
      %3504 = vmatpush1.bf16.msra.mxu0 0
      %3505 = vmatprep.mubr.bf16.mxu0 0
      %3506 = vmatmul.mubr.bf16.gmra.mrb[0].mxu0 %v3403
      %v3507 = vpop.f32.mrb[0].mxu0
      %v3508 = vadd.f32 0.0, %v3507
      %v3509 = vpop.f32.mrb[0].mxu0
      %v3510 = vpop.f32.mrb[0].mxu0
      %v3511 = vadd.f32 0.0, %v3510
      %v3512 = vpop.f32.mrb[0].mxu0
      %3513 = vmatprep.mubr.bf16.mxu0 0
      %3514 = vmatmul.mubr.bf16.gmra.mrb[0].mxu0 %v3404
      %v3515 = vpop.f32.mrb[0].mxu0
      %v3516 = vadd.f32 0.0, %v3515
      %v3517 = vpop.f32.mrb[0].mxu0
      %v3518 = vpop.f32.mrb[0].mxu0
      %v3519 = vadd.f32 0.0, %v3518
      %v3520 = vpop.f32.mrb[0].mxu0
      %3521 = vmatprep.mubr.bf16.mxu0 0
      %3522 = vmatmul.mubr.bf16.gmra.mrb[0].mxu0 %v3405
      %v3523 = vpop.f32.mrb[0].mxu0
      %v3524 = vadd.f32 0.0, %v3523
      %v3525 = vpop.f32.mrb[0].mxu0
      %v3526 = vpop.f32.mrb[0].mxu0
      %v3527 = vadd.f32 0.0, %v3526
      %v3528 = vpop.f32.mrb[0].mxu0
      %3529 = vmatprep.mubr.bf16.mxu0 0
      %3530 = vmatmul.mubr.bf16.gmra.mrb[0].mxu0 %v3406
      %v3531 = vpop.f32.mrb[0].mxu0
      %v3532 = vadd.f32 0.0, %v3531
      %v3533 = vpop.f32.mrb[0].mxu0
      %v3534 = vpop.f32.mrb[0].mxu0
      %v3535 = vadd.f32 0.0, %v3534
      %v3536 = vpop.f32.mrb[0].mxu0
      %3537 = vmatprep.mubr.bf16.mxu0 0
      %3538 = vmatmul.mubr.bf16.gmra.mrb[0].mxu0 %v3407
      %v3539 = vpop.f32.mrb[0].mxu0
      %v3540 = vadd.f32 0.0, %v3539
      %v3541 = vpop.f32.mrb[0].mxu0
      %v3542 = vpop.f32.mrb[0].mxu0
      %v3543 = vadd.f32 0.0, %v3542
      %v3544 = vpop.f32.mrb[0].mxu0
      %3545 = vdwg.mxu0
      %v3546 = vadd.f32 %v3383, %v3508
      %v3547 = vadd.f32 %v3384, %v3511
      %v3548 = vadd.f32 %v3385, %v3516
      %v3549 = vadd.f32 %v3386, %v3519
      %v3550 = vadd.f32 %v3387, %v3524
      %v3551 = vadd.f32 %v3388, %v3527
      %v3552 = vadd.f32 %v3389, %v3532
      %v3553 = vadd.f32 %v3390, %v3535
      %v3554 = vadd.f32 %v3391, %v3540
      %v3555 = vadd.f32 %v3392, %v3543
      %v3556 = vld [vmem:[%s305 + $0x2] sm:$0xff]
      %v3557 = vld [vmem:[%s305 + $0xa] sm:$0xff]
      %v3558 = vld [vmem:[%s305 + $0x12] sm:$0xff]
      %v3559 = vld [vmem:[%s305 + $0x1a] sm:$0xff]
      %v3560 = vld [vmem:[%s305 + $0x22] sm:$0xff]
      %v3561 = vld [vmem:[%s305 + $0x2a] sm:$0xff]
      %v3562 = vld [vmem:[%s305 + $0x32] sm:$0xff]
      %v3563 = vld [vmem:[%s305 + $0x3a] sm:$0xff]
      %v3564 = vld [vmem:[%s305 + $0x42] sm:$0xff]
      %v3565 = vld [vmem:[%s305 + $0x4a] sm:$0x3f]
      %v3566 = vpack.c.bf16 %v3557, %v3556
      %v3567 = vpack.c.bf16 %v3559, %v3558
      %v3568 = vpack.c.bf16 %v3561, %v3560
      %v3569 = vpack.c.bf16 %v3563, %v3562
      %v3570 = vpack.c.bf16 %v3565, %v3564
      %s3571 = scalar_lea.vmem %s3, 1280
      %v3572 = vld [vmem:[%s3571] sm:$0xf]
      %v3573 = vld [vmem:[%s3571 + $0x4] sm:$0xf]
      %v3574 = vld [vmem:[%s3571 + $0x8] sm:$0xf]
      %v3575 = vld [vmem:[%s3571 + $0xc] sm:$0xf]
      %v3576 = vld [vmem:[%s3571 + $0x10] sm:$0xf]
      %v3577 = vld [vmem:[%s3571 + $0x14] sm:$0xf]
      %v3578 = vld [vmem:[%s3571 + $0x18] sm:$0xf]
      %v3579 = vld [vmem:[%s3571 + $0x1c] sm:$0xf]
      %v3580 = vld [vmem:[%s3571 + $0x20] sm:$0xf]
      %v3581 = vld [vmem:[%s3571 + $0x24] sm:$0xf]
      %v3582 = vld [vmem:[%s3571 + $0x28] sm:$0xf]
      %v3583 = vld [vmem:[%s3571 + $0x2c] sm:$0xf]
      %v3584 = vld [vmem:[%s3571 + $0x30] sm:$0xf]
      %v3585 = vld [vmem:[%s3571 + $0x34] sm:$0xf]
      %v3586 = vld [vmem:[%s3571 + $0x38] sm:$0xf]
      %v3587 = vld [vmem:[%s3571 + $0x3c] sm:$0xf]
      %v3604 = vunpack.c.l.b16 %v3572
      %v3605 = vunpack.c.l.b16 %v3573
      %v3606 = vunpack.c.l.b16 %v3574
      %v3607 = vunpack.c.l.b16 %v3575
      %v3608 = vunpack.c.l.b16 %v3576
      %v3609 = vunpack.c.l.b16 %v3577
      %v3610 = vunpack.c.l.b16 %v3578
      %v3611 = vunpack.c.l.b16 %v3579
      %v3612 = vunpack.c.l.b16 %v3580
      %v3613 = vunpack.c.l.b16 %v3581
      %v3614 = vunpack.c.l.b16 %v3582
      %v3615 = vunpack.c.l.b16 %v3583
      %v3616 = vunpack.c.l.b16 %v3584
      %v3617 = vunpack.c.l.b16 %v3585
      %v3618 = vunpack.c.l.b16 %v3586
      %v3619 = vunpack.c.l.b16 %v3587
      %v3620 = vpack.c.b16 %v3605, %v3604
      %v3621 = vpack.c.b16 %v3607, %v3606
      %v3622 = vpack.c.b16 %v3609, %v3608
      %v3623 = vpack.c.b16 %v3611, %v3610
      %v3624 = vpack.c.b16 %v3613, %v3612
      %v3625 = vpack.c.b16 %v3615, %v3614
      %v3626 = vpack.c.b16 %v3617, %v3616
      %v3627 = vpack.c.b16 %v3619, %v3618
      %3636 = vmatprep.subr.bf16.mxu0 0
      %3637 = vmatpush1.bf16.msra.mxu0 %v3620
      %3638 = vmatprep.subr.bf16.mxu0 0
      %3639 = vmatpush1.bf16.msra.mxu0 %v3621
      %3640 = vmatprep.subr.bf16.mxu0 0
      %3641 = vmatpush1.bf16.msra.mxu0 %v3622
      %3642 = vmatprep.subr.bf16.mxu0 0
      %3643 = vmatpush1.bf16.msra.mxu0 %v3623
      %3644 = vmatprep.subr.bf16.mxu0 0
      %3645 = vmatpush1.bf16.msra.mxu0 %v3624
      %3646 = vmatprep.subr.bf16.mxu0 0
      %3647 = vmatpush1.bf16.msra.mxu0 %v3625
      %3648 = vmatprep.subr.bf16.mxu0 0
      %3649 = vmatpush1.bf16.msra.mxu0 %v3626
      %3650 = vmatprep.subr.bf16.mxu0 0
      %3651 = vmatpush1.bf16.msra.mxu0 %v3627
      %3652 = vmatprep.subr.bf16.mxu0 0
      %3653 = vmatpush1.bf16.msra.mxu0 0
      %3654 = vmatprep.subr.bf16.mxu0 0
      %3655 = vmatpush1.bf16.msra.mxu0 0
      %3656 = vmatprep.subr.bf16.mxu0 0
      %3657 = vmatpush1.bf16.msra.mxu0 0
      %3658 = vmatprep.subr.bf16.mxu0 0
      %3659 = vmatpush1.bf16.msra.mxu0 0
      %3660 = vmatprep.subr.bf16.mxu0 0
      %3661 = vmatpush1.bf16.msra.mxu0 0
      %3662 = vmatprep.subr.bf16.mxu0 0
      %3663 = vmatpush1.bf16.msra.mxu0 0
      %3664 = vmatprep.subr.bf16.mxu0 0
      %3665 = vmatpush1.bf16.msra.mxu0 0
      %3666 = vmatprep.subr.bf16.mxu0 0
      %3667 = vmatpush1.bf16.msra.mxu0 0
      %3668 = vmatprep.mubr.bf16.mxu0 0
      %3669 = vmatmul.mubr.bf16.gmra.mrb[0].mxu0 %v3566
      %v3670 = vpop.f32.mrb[0].mxu0
      %v3671 = vadd.f32 0.0, %v3670
      %v3672 = vpop.f32.mrb[0].mxu0
      %v3673 = vpop.f32.mrb[0].mxu0
      %v3674 = vadd.f32 0.0, %v3673
      %v3675 = vpop.f32.mrb[0].mxu0
      %3676 = vmatprep.mubr.bf16.mxu0 0
      %3677 = vmatmul.mubr.bf16.gmra.mrb[0].mxu0 %v3567
      %v3678 = vpop.f32.mrb[0].mxu0
      %v3679 = vadd.f32 0.0, %v3678
      %v3680 = vpop.f32.mrb[0].mxu0
      %v3681 = vpop.f32.mrb[0].mxu0
      %v3682 = vadd.f32 0.0, %v3681
      %v3683 = vpop.f32.mrb[0].mxu0
      %3684 = vmatprep.mubr.bf16.mxu0 0
      %3685 = vmatmul.mubr.bf16.gmra.mrb[0].mxu0 %v3568
      %v3686 = vpop.f32.mrb[0].mxu0
      %v3687 = vadd.f32 0.0, %v3686
      %v3688 = vpop.f32.mrb[0].mxu0
      %v3689 = vpop.f32.mrb[0].mxu0
      %v3690 = vadd.f32 0.0, %v3689
      %v3691 = vpop.f32.mrb[0].mxu0
      %3692 = vmatprep.mubr.bf16.mxu0 0
      %3693 = vmatmul.mubr.bf16.gmra.mrb[0].mxu0 %v3569
      %v3694 = vpop.f32.mrb[0].mxu0
      %v3695 = vadd.f32 0.0, %v3694
      %v3696 = vpop.f32.mrb[0].mxu0
      %v3697 = vpop.f32.mrb[0].mxu0
      %v3698 = vadd.f32 0.0, %v3697
      %v3699 = vpop.f32.mrb[0].mxu0
      %3700 = vmatprep.mubr.bf16.mxu0 0
      %3701 = vmatmul.mubr.bf16.gmra.mrb[0].mxu0 %v3570
      %v3702 = vpop.f32.mrb[0].mxu0
      %v3703 = vadd.f32 0.0, %v3702
      %v3704 = vpop.f32.mrb[0].mxu0
      %v3705 = vpop.f32.mrb[0].mxu0
      %v3706 = vadd.f32 0.0, %v3705
      %v3707 = vpop.f32.mrb[0].mxu0
      %3708 = vdwg.mxu0
      %v3709 = vadd.f32 %v3546, %v3671
      %v3710 = vadd.f32 %v3547, %v3674
      %v3711 = vadd.f32 %v3548, %v3679
      %v3712 = vadd.f32 %v3549, %v3682
      %v3713 = vadd.f32 %v3550, %v3687
      %v3714 = vadd.f32 %v3551, %v3690
      %v3715 = vadd.f32 %v3552, %v3695
      %v3716 = vadd.f32 %v3553, %v3698
      %v3717 = vadd.f32 %v3554, %v3703
      %v3718 = vadd.f32 %v3555, %v3706
      %v3719 = vld [vmem:[%s305 + $0xa] sm:$0xff]
      %v3720 = vld [vmem:[%s305 + $0x12] sm:$0xff]
      %v3721 = vld [vmem:[%s305 + $0x1a] sm:$0xff]
      %v3722 = vld [vmem:[%s305 + $0x22] sm:$0xff]
      %v3723 = vld [vmem:[%s305 + $0x2a] sm:$0xff]
      %v3724 = vld [vmem:[%s305 + $0x32] sm:$0xff]
      %v3725 = vld [vmem:[%s305 + $0x3a] sm:$0xff]
      %v3726 = vld [vmem:[%s305 + $0x42] sm:$0xff]
      %v3727 = vld [vmem:[%s305 + $0x4a] sm:$0xff]
      %v3728 = vld [vmem:[%s305 + $0x52] sm:$0x3f]
      %v3729 = vpack.c.bf16 %v3720, %v3719
      %v3730 = vpack.c.bf16 %v3722, %v3721
      %v3731 = vpack.c.bf16 %v3724, %v3723
      %v3732 = vpack.c.bf16 %v3726, %v3725
      %v3733 = vpack.c.bf16 %v3728, %v3727
      %s3734 = scalar_lea.vmem %s3, 1344
      %v3735 = vld [vmem:[%s3734] sm:$0xf]
      %v3736 = vld [vmem:[%s3734 + $0x4] sm:$0xf]
      %v3737 = vld [vmem:[%s3734 + $0x8] sm:$0xf]
      %v3738 = vld [vmem:[%s3734 + $0xc] sm:$0xf]
      %v3739 = vld [vmem:[%s3734 + $0x10] sm:$0xf]
      %v3740 = vld [vmem:[%s3734 + $0x14] sm:$0xf]
      %v3741 = vld [vmem:[%s3734 + $0x18] sm:$0xf]
      %v3742 = vld [vmem:[%s3734 + $0x1c] sm:$0xf]
      %v3743 = vld [vmem:[%s3734 + $0x20] sm:$0xf]
      %v3744 = vld [vmem:[%s3734 + $0x24] sm:$0xf]
      %v3745 = vld [vmem:[%s3734 + $0x28] sm:$0xf]
      %v3746 = vld [vmem:[%s3734 + $0x2c] sm:$0xf]
      %v3747 = vld [vmem:[%s3734 + $0x30] sm:$0xf]
      %v3748 = vld [vmem:[%s3734 + $0x34] sm:$0xf]
      %v3749 = vld [vmem:[%s3734 + $0x38] sm:$0xf]
      %v3750 = vld [vmem:[%s3734 + $0x3c] sm:$0xf]
      %v3767 = vunpack.c.l.b16 %v3735
      %v3768 = vunpack.c.l.b16 %v3736
      %v3769 = vunpack.c.l.b16 %v3737
      %v3770 = vunpack.c.l.b16 %v3738
      %v3771 = vunpack.c.l.b16 %v3739
      %v3772 = vunpack.c.l.b16 %v3740
      %v3773 = vunpack.c.l.b16 %v3741
      %v3774 = vunpack.c.l.b16 %v3742
      %v3775 = vunpack.c.l.b16 %v3743
      %v3776 = vunpack.c.l.b16 %v3744
      %v3777 = vunpack.c.l.b16 %v3745
      %v3778 = vunpack.c.l.b16 %v3746
      %v3779 = vunpack.c.l.b16 %v3747
      %v3780 = vunpack.c.l.b16 %v3748
      %v3781 = vunpack.c.l.b16 %v3749
      %v3782 = vunpack.c.l.b16 %v3750
      %v3783 = vpack.c.b16 %v3768, %v3767
      %v3784 = vpack.c.b16 %v3770, %v3769
      %v3785 = vpack.c.b16 %v3772, %v3771
      %v3786 = vpack.c.b16 %v3774, %v3773
      %v3787 = vpack.c.b16 %v3776, %v3775
      %v3788 = vpack.c.b16 %v3778, %v3777
      %v3789 = vpack.c.b16 %v3780, %v3779
      %v3790 = vpack.c.b16 %v3782, %v3781
      %3799 = vmatprep.subr.bf16.mxu0 0
      %3800 = vmatpush1.bf16.msra.mxu0 %v3783
      %3801 = vmatprep.subr.bf16.mxu0 0
      %3802 = vmatpush1.bf16.msra.mxu0 %v3784
      %3803 = vmatprep.subr.bf16.mxu0 0
      %3804 = vmatpush1.bf16.msra.mxu0 %v3785
      %3805 = vmatprep.subr.bf16.mxu0 0
      %3806 = vmatpush1.bf16.msra.mxu0 %v3786
      %3807 = vmatprep.subr.bf16.mxu0 0
      %3808 = vmatpush1.bf16.msra.mxu0 %v3787
      %3809 = vmatprep.subr.bf16.mxu0 0
      %3810 = vmatpush1.bf16.msra.mxu0 %v3788
      %3811 = vmatprep.subr.bf16.mxu0 0
      %3812 = vmatpush1.bf16.msra.mxu0 %v3789
      %3813 = vmatprep.subr.bf16.mxu0 0
      %3814 = vmatpush1.bf16.msra.mxu0 %v3790
      %3815 = vmatprep.subr.bf16.mxu0 0
      %3816 = vmatpush1.bf16.msra.mxu0 0
      %3817 = vmatprep.subr.bf16.mxu0 0
      %3818 = vmatpush1.bf16.msra.mxu0 0
      %3819 = vmatprep.subr.bf16.mxu0 0
      %3820 = vmatpush1.bf16.msra.mxu0 0
      %3821 = vmatprep.subr.bf16.mxu0 0
      %3822 = vmatpush1.bf16.msra.mxu0 0
      %3823 = vmatprep.subr.bf16.mxu0 0
      %3824 = vmatpush1.bf16.msra.mxu0 0
      %3825 = vmatprep.subr.bf16.mxu0 0
      %3826 = vmatpush1.bf16.msra.mxu0 0
      %3827 = vmatprep.subr.bf16.mxu0 0
      %3828 = vmatpush1.bf16.msra.mxu0 0
      %3829 = vmatprep.subr.bf16.mxu0 0
      %3830 = vmatpush1.bf16.msra.mxu0 0
      %3831 = vmatprep.mubr.bf16.mxu0 0
      %3832 = vmatmul.mubr.bf16.gmra.mrb[0].mxu0 %v3729
      %v3833 = vpop.f32.mrb[0].mxu0
      %v3834 = vadd.f32 0.0, %v3833
      %v3835 = vpop.f32.mrb[0].mxu0
      %v3836 = vpop.f32.mrb[0].mxu0
      %v3837 = vadd.f32 0.0, %v3836
      %v3838 = vpop.f32.mrb[0].mxu0
      %3839 = vmatprep.mubr.bf16.mxu0 0
      %3840 = vmatmul.mubr.bf16.gmra.mrb[0].mxu0 %v3730
      %v3841 = vpop.f32.mrb[0].mxu0
      %v3842 = vadd.f32 0.0, %v3841
      %v3843 = vpop.f32.mrb[0].mxu0
      %v3844 = vpop.f32.mrb[0].mxu0
      %v3845 = vadd.f32 0.0, %v3844
      %v3846 = vpop.f32.mrb[0].mxu0
      %3847 = vmatprep.mubr.bf16.mxu0 0
      %3848 = vmatmul.mubr.bf16.gmra.mrb[0].mxu0 %v3731
      %v3849 = vpop.f32.mrb[0].mxu0
      %v3850 = vadd.f32 0.0, %v3849
      %v3851 = vpop.f32.mrb[0].mxu0
      %v3852 = vpop.f32.mrb[0].mxu0
      %v3853 = vadd.f32 0.0, %v3852
      %v3854 = vpop.f32.mrb[0].mxu0
      %3855 = vmatprep.mubr.bf16.mxu0 0
      %3856 = vmatmul.mubr.bf16.gmra.mrb[0].mxu0 %v3732
      %v3857 = vpop.f32.mrb[0].mxu0
      %v3858 = vadd.f32 0.0, %v3857
      %v3859 = vpop.f32.mrb[0].mxu0
      %v3860 = vpop.f32.mrb[0].mxu0
      %v3861 = vadd.f32 0.0, %v3860
      %v3862 = vpop.f32.mrb[0].mxu0
      %3863 = vmatprep.mubr.bf16.mxu0 0
      %3864 = vmatmul.mubr.bf16.gmra.mrb[0].mxu0 %v3733
      %v3865 = vpop.f32.mrb[0].mxu0
      %v3866 = vadd.f32 0.0, %v3865
      %v3867 = vpop.f32.mrb[0].mxu0
      %v3868 = vpop.f32.mrb[0].mxu0
      %v3869 = vadd.f32 0.0, %v3868
      %v3870 = vpop.f32.mrb[0].mxu0
      %3871 = vdwg.mxu0
      %v3872 = vadd.f32 %v3709, %v3834
      %v3873 = vadd.f32 %v3710, %v3837
      %v3874 = vadd.f32 %v3711, %v3842
      %v3875 = vadd.f32 %v3712, %v3845
      %v3876 = vadd.f32 %v3713, %v3850
      %v3877 = vadd.f32 %v3714, %v3853
      %v3878 = vadd.f32 %v3715, %v3858
      %v3879 = vadd.f32 %v3716, %v3861
      %v3880 = vadd.f32 %v3717, %v3866
      %v3881 = vadd.f32 %v3718, %v3869
      %v3882 = vld [vmem:[%s305 + $0xb] sm:$0xff]
      %v3883 = vld [vmem:[%s305 + $0x13] sm:$0xff]
      %v3884 = vld [vmem:[%s305 + $0x1b] sm:$0xff]
      %v3885 = vld [vmem:[%s305 + $0x23] sm:$0xff]
      %v3886 = vld [vmem:[%s305 + $0x2b] sm:$0xff]
      %v3887 = vld [vmem:[%s305 + $0x33] sm:$0xff]
      %v3888 = vld [vmem:[%s305 + $0x3b] sm:$0xff]
      %v3889 = vld [vmem:[%s305 + $0x43] sm:$0xff]
      %v3890 = vld [vmem:[%s305 + $0x4b] sm:$0xff]
      %v3891 = vld [vmem:[%s305 + $0x53] sm:$0x3f]
      %v3892 = vpack.c.bf16 %v3883, %v3882
      %v3893 = vpack.c.bf16 %v3885, %v3884
      %v3894 = vpack.c.bf16 %v3887, %v3886
      %v3895 = vpack.c.bf16 %v3889, %v3888
      %v3896 = vpack.c.bf16 %v3891, %v3890
      %s3897 = scalar_lea.vmem %s3, 1408
      %v3898 = vld [vmem:[%s3897] sm:$0xf]
      %v3899 = vld [vmem:[%s3897 + $0x4] sm:$0xf]
      %v3900 = vld [vmem:[%s3897 + $0x8] sm:$0xf]
      %v3901 = vld [vmem:[%s3897 + $0xc] sm:$0xf]
      %v3902 = vld [vmem:[%s3897 + $0x10] sm:$0xf]
      %v3903 = vld [vmem:[%s3897 + $0x14] sm:$0xf]
      %v3904 = vld [vmem:[%s3897 + $0x18] sm:$0xf]
      %v3905 = vld [vmem:[%s3897 + $0x1c] sm:$0xf]
      %v3906 = vld [vmem:[%s3897 + $0x20] sm:$0xf]
      %v3907 = vld [vmem:[%s3897 + $0x24] sm:$0xf]
      %v3908 = vld [vmem:[%s3897 + $0x28] sm:$0xf]
      %v3909 = vld [vmem:[%s3897 + $0x2c] sm:$0xf]
      %v3910 = vld [vmem:[%s3897 + $0x30] sm:$0xf]
      %v3911 = vld [vmem:[%s3897 + $0x34] sm:$0xf]
      %v3912 = vld [vmem:[%s3897 + $0x38] sm:$0xf]
      %v3913 = vld [vmem:[%s3897 + $0x3c] sm:$0xf]
      %v3930 = vunpack.c.l.b16 %v3898
      %v3931 = vunpack.c.l.b16 %v3899
      %v3932 = vunpack.c.l.b16 %v3900
      %v3933 = vunpack.c.l.b16 %v3901
      %v3934 = vunpack.c.l.b16 %v3902
      %v3935 = vunpack.c.l.b16 %v3903
      %v3936 = vunpack.c.l.b16 %v3904
      %v3937 = vunpack.c.l.b16 %v3905
      %v3938 = vunpack.c.l.b16 %v3906
      %v3939 = vunpack.c.l.b16 %v3907
      %v3940 = vunpack.c.l.b16 %v3908
      %v3941 = vunpack.c.l.b16 %v3909
      %v3942 = vunpack.c.l.b16 %v3910
      %v3943 = vunpack.c.l.b16 %v3911
      %v3944 = vunpack.c.l.b16 %v3912
      %v3945 = vunpack.c.l.b16 %v3913
      %v3946 = vpack.c.b16 %v3931, %v3930
      %v3947 = vpack.c.b16 %v3933, %v3932
      %v3948 = vpack.c.b16 %v3935, %v3934
      %v3949 = vpack.c.b16 %v3937, %v3936
      %v3950 = vpack.c.b16 %v3939, %v3938
      %v3951 = vpack.c.b16 %v3941, %v3940
      %v3952 = vpack.c.b16 %v3943, %v3942
      %v3953 = vpack.c.b16 %v3945, %v3944
      %3962 = vmatprep.subr.bf16.mxu0 0
      %3963 = vmatpush1.bf16.msra.mxu0 %v3946
      %3964 = vmatprep.subr.bf16.mxu0 0
      %3965 = vmatpush1.bf16.msra.mxu0 %v3947
      %3966 = vmatprep.subr.bf16.mxu0 0
      %3967 = vmatpush1.bf16.msra.mxu0 %v3948
      %3968 = vmatprep.subr.bf16.mxu0 0
      %3969 = vmatpush1.bf16.msra.mxu0 %v3949
      %3970 = vmatprep.subr.bf16.mxu0 0
      %3971 = vmatpush1.bf16.msra.mxu0 %v3950
      %3972 = vmatprep.subr.bf16.mxu0 0
      %3973 = vmatpush1.bf16.msra.mxu0 %v3951
      %3974 = vmatprep.subr.bf16.mxu0 0
      %3975 = vmatpush1.bf16.msra.mxu0 %v3952
      %3976 = vmatprep.subr.bf16.mxu0 0
      %3977 = vmatpush1.bf16.msra.mxu0 %v3953
      %3978 = vmatprep.subr.bf16.mxu0 0
      %3979 = vmatpush1.bf16.msra.mxu0 0
      %3980 = vmatprep.subr.bf16.mxu0 0
      %3981 = vmatpush1.bf16.msra.mxu0 0
      %3982 = vmatprep.subr.bf16.mxu0 0
      %3983 = vmatpush1.bf16.msra.mxu0 0
      %3984 = vmatprep.subr.bf16.mxu0 0
      %3985 = vmatpush1.bf16.msra.mxu0 0
      %3986 = vmatprep.subr.bf16.mxu0 0
      %3987 = vmatpush1.bf16.msra.mxu0 0
      %3988 = vmatprep.subr.bf16.mxu0 0
      %3989 = vmatpush1.bf16.msra.mxu0 0
      %3990 = vmatprep.subr.bf16.mxu0 0
      %3991 = vmatpush1.bf16.msra.mxu0 0
      %3992 = vmatprep.subr.bf16.mxu0 0
      %3993 = vmatpush1.bf16.msra.mxu0 0
      %3994 = vmatprep.mubr.bf16.mxu0 0
      %3995 = vmatmul.mubr.bf16.gmra.mrb[0].mxu0 %v3892
      %v3996 = vpop.f32.mrb[0].mxu0
      %v3997 = vadd.f32 0.0, %v3996
      %v3998 = vpop.f32.mrb[0].mxu0
      %v3999 = vpop.f32.mrb[0].mxu0
      %v4000 = vadd.f32 0.0, %v3999
      %v4001 = vpop.f32.mrb[0].mxu0
      %4002 = vmatprep.mubr.bf16.mxu0 0
      %4003 = vmatmul.mubr.bf16.gmra.mrb[0].mxu0 %v3893
      %v4004 = vpop.f32.mrb[0].mxu0
      %v4005 = vadd.f32 0.0, %v4004
      %v4006 = vpop.f32.mrb[0].mxu0
      %v4007 = vpop.f32.mrb[0].mxu0
      %v4008 = vadd.f32 0.0, %v4007
      %v4009 = vpop.f32.mrb[0].mxu0
      %4010 = vmatprep.mubr.bf16.mxu0 0
      %4011 = vmatmul.mubr.bf16.gmra.mrb[0].mxu0 %v3894
      %v4012 = vpop.f32.mrb[0].mxu0
      %v4013 = vadd.f32 0.0, %v4012
      %v4014 = vpop.f32.mrb[0].mxu0
      %v4015 = vpop.f32.mrb[0].mxu0
      %v4016 = vadd.f32 0.0, %v4015
      %v4017 = vpop.f32.mrb[0].mxu0
      %4018 = vmatprep.mubr.bf16.mxu0 0
      %4019 = vmatmul.mubr.bf16.gmra.mrb[0].mxu0 %v3895
      %v4020 = vpop.f32.mrb[0].mxu0
      %v4021 = vadd.f32 0.0, %v4020
      %v4022 = vpop.f32.mrb[0].mxu0
      %v4023 = vpop.f32.mrb[0].mxu0
      %v4024 = vadd.f32 0.0, %v4023
      %v4025 = vpop.f32.mrb[0].mxu0
      %4026 = vmatprep.mubr.bf16.mxu0 0
      %4027 = vmatmul.mubr.bf16.gmra.mrb[0].mxu0 %v3896
      %v4028 = vpop.f32.mrb[0].mxu0
      %v4029 = vadd.f32 0.0, %v4028
      %v4030 = vpop.f32.mrb[0].mxu0
      %v4031 = vpop.f32.mrb[0].mxu0
      %v4032 = vadd.f32 0.0, %v4031
      %v4033 = vpop.f32.mrb[0].mxu0
      %4034 = vdwg.mxu0
      %v4035 = vadd.f32 %v3872, %v3997
      %v4036 = vadd.f32 %v3873, %v4000
      %v4037 = vadd.f32 %v3874, %v4005
      %v4038 = vadd.f32 %v3875, %v4008
      %v4039 = vadd.f32 %v3876, %v4013
      %v4040 = vadd.f32 %v3877, %v4016
      %v4041 = vadd.f32 %v3878, %v4021
      %v4042 = vadd.f32 %v3879, %v4024
      %v4043 = vadd.f32 %v3880, %v4029
      %v4044 = vadd.f32 %v3881, %v4032
      %v4045 = vld [vmem:[%s305 + $0xc] sm:$0xff]
      %v4046 = vld [vmem:[%s305 + $0x14] sm:$0xff]
      %v4047 = vld [vmem:[%s305 + $0x1c] sm:$0xff]
      %v4048 = vld [vmem:[%s305 + $0x24] sm:$0xff]
      %v4049 = vld [vmem:[%s305 + $0x2c] sm:$0xff]
      %v4050 = vld [vmem:[%s305 + $0x34] sm:$0xff]
      %v4051 = vld [vmem:[%s305 + $0x3c] sm:$0xff]
      %v4052 = vld [vmem:[%s305 + $0x44] sm:$0xff]
      %v4053 = vld [vmem:[%s305 + $0x4c] sm:$0xff]
      %v4054 = vld [vmem:[%s305 + $0x54] sm:$0x3f]
      %v4055 = vpack.c.bf16 %v4046, %v4045
      %v4056 = vpack.c.bf16 %v4048, %v4047
      %v4057 = vpack.c.bf16 %v4050, %v4049
      %v4058 = vpack.c.bf16 %v4052, %v4051
      %v4059 = vpack.c.bf16 %v4054, %v4053
      %s4060 = scalar_lea.vmem %s3, 1472
      %v4061 = vld [vmem:[%s4060] sm:$0xf]
      %v4062 = vld [vmem:[%s4060 + $0x4] sm:$0xf]
      %v4063 = vld [vmem:[%s4060 + $0x8] sm:$0xf]
      %v4064 = vld [vmem:[%s4060 + $0xc] sm:$0xf]
      %v4065 = vld [vmem:[%s4060 + $0x10] sm:$0xf]
      %v4066 = vld [vmem:[%s4060 + $0x14] sm:$0xf]
      %v4067 = vld [vmem:[%s4060 + $0x18] sm:$0xf]
      %v4068 = vld [vmem:[%s4060 + $0x1c] sm:$0xf]
      %v4069 = vld [vmem:[%s4060 + $0x20] sm:$0xf]
      %v4070 = vld [vmem:[%s4060 + $0x24] sm:$0xf]
      %v4071 = vld [vmem:[%s4060 + $0x28] sm:$0xf]
      %v4072 = vld [vmem:[%s4060 + $0x2c] sm:$0xf]
      %v4073 = vld [vmem:[%s4060 + $0x30] sm:$0xf]
      %v4074 = vld [vmem:[%s4060 + $0x34] sm:$0xf]
      %v4075 = vld [vmem:[%s4060 + $0x38] sm:$0xf]
      %v4076 = vld [vmem:[%s4060 + $0x3c] sm:$0xf]
      %v4093 = vunpack.c.l.b16 %v4061
      %v4094 = vunpack.c.l.b16 %v4062
      %v4095 = vunpack.c.l.b16 %v4063
      %v4096 = vunpack.c.l.b16 %v4064
      %v4097 = vunpack.c.l.b16 %v4065
      %v4098 = vunpack.c.l.b16 %v4066
      %v4099 = vunpack.c.l.b16 %v4067
      %v4100 = vunpack.c.l.b16 %v4068
      %v4101 = vunpack.c.l.b16 %v4069
      %v4102 = vunpack.c.l.b16 %v4070
      %v4103 = vunpack.c.l.b16 %v4071
      %v4104 = vunpack.c.l.b16 %v4072
      %v4105 = vunpack.c.l.b16 %v4073
      %v4106 = vunpack.c.l.b16 %v4074
      %v4107 = vunpack.c.l.b16 %v4075
      %v4108 = vunpack.c.l.b16 %v4076
      %v4109 = vpack.c.b16 %v4094, %v4093
      %v4110 = vpack.c.b16 %v4096, %v4095
      %v4111 = vpack.c.b16 %v4098, %v4097
      %v4112 = vpack.c.b16 %v4100, %v4099
      %v4113 = vpack.c.b16 %v4102, %v4101
      %v4114 = vpack.c.b16 %v4104, %v4103
      %v4115 = vpack.c.b16 %v4106, %v4105
      %v4116 = vpack.c.b16 %v4108, %v4107
      %4125 = vmatprep.subr.bf16.mxu0 0
      %4126 = vmatpush1.bf16.msra.mxu0 %v4109
      %4127 = vmatprep.subr.bf16.mxu0 0
      %4128 = vmatpush1.bf16.msra.mxu0 %v4110
      %4129 = vmatprep.subr.bf16.mxu0 0
      %4130 = vmatpush1.bf16.msra.mxu0 %v4111
      %4131 = vmatprep.subr.bf16.mxu0 0
      %4132 = vmatpush1.bf16.msra.mxu0 %v4112
      %4133 = vmatprep.subr.bf16.mxu0 0
      %4134 = vmatpush1.bf16.msra.mxu0 %v4113
      %4135 = vmatprep.subr.bf16.mxu0 0
      %4136 = vmatpush1.bf16.msra.mxu0 %v4114
      %4137 = vmatprep.subr.bf16.mxu0 0
      %4138 = vmatpush1.bf16.msra.mxu0 %v4115
      %4139 = vmatprep.subr.bf16.mxu0 0
      %4140 = vmatpush1.bf16.msra.mxu0 %v4116
      %4141 = vmatprep.subr.bf16.mxu0 0
      %4142 = vmatpush1.bf16.msra.mxu0 0
      %4143 = vmatprep.subr.bf16.mxu0 0
      %4144 = vmatpush1.bf16.msra.mxu0 0
      %4145 = vmatprep.subr.bf16.mxu0 0
      %4146 = vmatpush1.bf16.msra.mxu0 0
      %4147 = vmatprep.subr.bf16.mxu0 0
      %4148 = vmatpush1.bf16.msra.mxu0 0
      %4149 = vmatprep.subr.bf16.mxu0 0
      %4150 = vmatpush1.bf16.msra.mxu0 0
      %4151 = vmatprep.subr.bf16.mxu0 0
      %4152 = vmatpush1.bf16.msra.mxu0 0
      %4153 = vmatprep.subr.bf16.mxu0 0
      %4154 = vmatpush1.bf16.msra.mxu0 0
      %4155 = vmatprep.subr.bf16.mxu0 0
      %4156 = vmatpush1.bf16.msra.mxu0 0
      %4157 = vmatprep.mubr.bf16.mxu0 0
      %4158 = vmatmul.mubr.bf16.gmra.mrb[0].mxu0 %v4055
      %v4159 = vpop.f32.mrb[0].mxu0
      %v4160 = vadd.f32 0.0, %v4159
      %v4161 = vpop.f32.mrb[0].mxu0
      %v4162 = vpop.f32.mrb[0].mxu0
      %v4163 = vadd.f32 0.0, %v4162
      %v4164 = vpop.f32.mrb[0].mxu0
      %4165 = vmatprep.mubr.bf16.mxu0 0
      %4166 = vmatmul.mubr.bf16.gmra.mrb[0].mxu0 %v4056
      %v4167 = vpop.f32.mrb[0].mxu0
      %v4168 = vadd.f32 0.0, %v4167
      %v4169 = vpop.f32.mrb[0].mxu0
      %v4170 = vpop.f32.mrb[0].mxu0
      %v4171 = vadd.f32 0.0, %v4170
      %v4172 = vpop.f32.mrb[0].mxu0
      %4173 = vmatprep.mubr.bf16.mxu0 0
      %4174 = vmatmul.mubr.bf16.gmra.mrb[0].mxu0 %v4057
      %v4175 = vpop.f32.mrb[0].mxu0
      %v4176 = vadd.f32 0.0, %v4175
      %v4177 = vpop.f32.mrb[0].mxu0
      %v4178 = vpop.f32.mrb[0].mxu0
      %v4179 = vadd.f32 0.0, %v4178
      %v4180 = vpop.f32.mrb[0].mxu0
      %4181 = vmatprep.mubr.bf16.mxu0 0
      %4182 = vmatmul.mubr.bf16.gmra.mrb[0].mxu0 %v4058
      %v4183 = vpop.f32.mrb[0].mxu0
      %v4184 = vadd.f32 0.0, %v4183
      %v4185 = vpop.f32.mrb[0].mxu0
      %v4186 = vpop.f32.mrb[0].mxu0
      %v4187 = vadd.f32 0.0, %v4186
      %v4188 = vpop.f32.mrb[0].mxu0
      %4189 = vmatprep.mubr.bf16.mxu0 0
      %4190 = vmatmul.mubr.bf16.gmra.mrb[0].mxu0 %v4059
      %v4191 = vpop.f32.mrb[0].mxu0
      %v4192 = vadd.f32 0.0, %v4191
      %v4193 = vpop.f32.mrb[0].mxu0
      %v4194 = vpop.f32.mrb[0].mxu0
      %v4195 = vadd.f32 0.0, %v4194
      %v4196 = vpop.f32.mrb[0].mxu0
      %4197 = vdwg.mxu0
      %v4198 = vadd.f32 %v4035, %v4160
      %v4199 = vadd.f32 %v4036, %v4163
      %v4200 = vadd.f32 %v4037, %v4168
      %v4201 = vadd.f32 %v4038, %v4171
      %v4202 = vadd.f32 %v4039, %v4176
      %v4203 = vadd.f32 %v4040, %v4179
      %v4204 = vadd.f32 %v4041, %v4184
      %v4205 = vadd.f32 %v4042, %v4187
      %v4206 = vadd.f32 %v4043, %v4192
      %v4207 = vadd.f32 %v4044, %v4195
      %v4208 = vld [vmem:[%s305 + $0x14] sm:$0xff]
      %v4209 = vld [vmem:[%s305 + $0x1c] sm:$0xff]
      %v4210 = vld [vmem:[%s305 + $0x24] sm:$0xff]
      %v4211 = vld [vmem:[%s305 + $0x2c] sm:$0xff]
      %v4212 = vld [vmem:[%s305 + $0x34] sm:$0xff]
      %v4213 = vld [vmem:[%s305 + $0x3c] sm:$0xff]
      %v4214 = vld [vmem:[%s305 + $0x44] sm:$0xff]
      %v4215 = vld [vmem:[%s305 + $0x4c] sm:$0xff]
      %v4216 = vld [vmem:[%s305 + $0x54] sm:$0xff]
      %v4217 = vld [vmem:[%s305 + $0x5c] sm:$0x3f]
      %v4218 = vpack.c.bf16 %v4209, %v4208
      %v4219 = vpack.c.bf16 %v4211, %v4210
      %v4220 = vpack.c.bf16 %v4213, %v4212
      %v4221 = vpack.c.bf16 %v4215, %v4214
      %v4222 = vpack.c.bf16 %v4217, %v4216
      %s4223 = scalar_lea.vmem %s3, 1536
      %v4224 = vld [vmem:[%s4223] sm:$0xf]
      %v4225 = vld [vmem:[%s4223 + $0x4] sm:$0xf]
      %v4226 = vld [vmem:[%s4223 + $0x8] sm:$0xf]
      %v4227 = vld [vmem:[%s4223 + $0xc] sm:$0xf]
      %v4228 = vld [vmem:[%s4223 + $0x10] sm:$0xf]
      %v4229 = vld [vmem:[%s4223 + $0x14] sm:$0xf]
      %v4230 = vld [vmem:[%s4223 + $0x18] sm:$0xf]
      %v4231 = vld [vmem:[%s4223 + $0x1c] sm:$0xf]
      %v4232 = vld [vmem:[%s4223 + $0x20] sm:$0xf]
      %v4233 = vld [vmem:[%s4223 + $0x24] sm:$0xf]
      %v4234 = vld [vmem:[%s4223 + $0x28] sm:$0xf]
      %v4235 = vld [vmem:[%s4223 + $0x2c] sm:$0xf]
      %v4236 = vld [vmem:[%s4223 + $0x30] sm:$0xf]
      %v4237 = vld [vmem:[%s4223 + $0x34] sm:$0xf]
      %v4238 = vld [vmem:[%s4223 + $0x38] sm:$0xf]
      %v4239 = vld [vmem:[%s4223 + $0x3c] sm:$0xf]
      %v4256 = vunpack.c.l.b16 %v4224
      %v4257 = vunpack.c.l.b16 %v4225
      %v4258 = vunpack.c.l.b16 %v4226
      %v4259 = vunpack.c.l.b16 %v4227
      %v4260 = vunpack.c.l.b16 %v4228
      %v4261 = vunpack.c.l.b16 %v4229
      %v4262 = vunpack.c.l.b16 %v4230
      %v4263 = vunpack.c.l.b16 %v4231
      %v4264 = vunpack.c.l.b16 %v4232
      %v4265 = vunpack.c.l.b16 %v4233
      %v4266 = vunpack.c.l.b16 %v4234
      %v4267 = vunpack.c.l.b16 %v4235
      %v4268 = vunpack.c.l.b16 %v4236
      %v4269 = vunpack.c.l.b16 %v4237
      %v4270 = vunpack.c.l.b16 %v4238
      %v4271 = vunpack.c.l.b16 %v4239
      %v4272 = vpack.c.b16 %v4257, %v4256
      %v4273 = vpack.c.b16 %v4259, %v4258
      %v4274 = vpack.c.b16 %v4261, %v4260
      %v4275 = vpack.c.b16 %v4263, %v4262
      %v4276 = vpack.c.b16 %v4265, %v4264
      %v4277 = vpack.c.b16 %v4267, %v4266
      %v4278 = vpack.c.b16 %v4269, %v4268
      %v4279 = vpack.c.b16 %v4271, %v4270
      %4288 = vmatprep.subr.bf16.mxu0 0
      %4289 = vmatpush1.bf16.msra.mxu0 %v4272
      %4290 = vmatprep.subr.bf16.mxu0 0
      %4291 = vmatpush1.bf16.msra.mxu0 %v4273
      %4292 = vmatprep.subr.bf16.mxu0 0
      %4293 = vmatpush1.bf16.msra.mxu0 %v4274
      %4294 = vmatprep.subr.bf16.mxu0 0
      %4295 = vmatpush1.bf16.msra.mxu0 %v4275
      %4296 = vmatprep.subr.bf16.mxu0 0
      %4297 = vmatpush1.bf16.msra.mxu0 %v4276
      %4298 = vmatprep.subr.bf16.mxu0 0
      %4299 = vmatpush1.bf16.msra.mxu0 %v4277
      %4300 = vmatprep.subr.bf16.mxu0 0
      %4301 = vmatpush1.bf16.msra.mxu0 %v4278
      %4302 = vmatprep.subr.bf16.mxu0 0
      %4303 = vmatpush1.bf16.msra.mxu0 %v4279
      %4304 = vmatprep.subr.bf16.mxu0 0
      %4305 = vmatpush1.bf16.msra.mxu0 0
      %4306 = vmatprep.subr.bf16.mxu0 0
      %4307 = vmatpush1.bf16.msra.mxu0 0
      %4308 = vmatprep.subr.bf16.mxu0 0
      %4309 = vmatpush1.bf16.msra.mxu0 0
      %4310 = vmatprep.subr.bf16.mxu0 0
      %4311 = vmatpush1.bf16.msra.mxu0 0
      %4312 = vmatprep.subr.bf16.mxu0 0
      %4313 = vmatpush1.bf16.msra.mxu0 0
      %4314 = vmatprep.subr.bf16.mxu0 0
      %4315 = vmatpush1.bf16.msra.mxu0 0
      %4316 = vmatprep.subr.bf16.mxu0 0
      %4317 = vmatpush1.bf16.msra.mxu0 0
      %4318 = vmatprep.subr.bf16.mxu0 0
      %4319 = vmatpush1.bf16.msra.mxu0 0
      %4320 = vmatprep.mubr.bf16.mxu0 0
      %4321 = vmatmul.mubr.bf16.gmra.mrb[0].mxu0 %v4218
      %v4322 = vpop.f32.mrb[0].mxu0
      %v4323 = vadd.f32 0.0, %v4322
      %v4324 = vpop.f32.mrb[0].mxu0
      %v4325 = vpop.f32.mrb[0].mxu0
      %v4326 = vadd.f32 0.0, %v4325
      %v4327 = vpop.f32.mrb[0].mxu0
      %4328 = vmatprep.mubr.bf16.mxu0 0
      %4329 = vmatmul.mubr.bf16.gmra.mrb[0].mxu0 %v4219
      %v4330 = vpop.f32.mrb[0].mxu0
      %v4331 = vadd.f32 0.0, %v4330
      %v4332 = vpop.f32.mrb[0].mxu0
      %v4333 = vpop.f32.mrb[0].mxu0
      %v4334 = vadd.f32 0.0, %v4333
      %v4335 = vpop.f32.mrb[0].mxu0
      %4336 = vmatprep.mubr.bf16.mxu0 0
      %4337 = vmatmul.mubr.bf16.gmra.mrb[0].mxu0 %v4220
      %v4338 = vpop.f32.mrb[0].mxu0
      %v4339 = vadd.f32 0.0, %v4338
      %v4340 = vpop.f32.mrb[0].mxu0
      %v4341 = vpop.f32.mrb[0].mxu0
      %v4342 = vadd.f32 0.0, %v4341
      %v4343 = vpop.f32.mrb[0].mxu0
      %4344 = vmatprep.mubr.bf16.mxu0 0
      %4345 = vmatmul.mubr.bf16.gmra.mrb[0].mxu0 %v4221
      %v4346 = vpop.f32.mrb[0].mxu0
      %v4347 = vadd.f32 0.0, %v4346
      %v4348 = vpop.f32.mrb[0].mxu0
      %v4349 = vpop.f32.mrb[0].mxu0
      %v4350 = vadd.f32 0.0, %v4349
      %v4351 = vpop.f32.mrb[0].mxu0
      %4352 = vmatprep.mubr.bf16.mxu0 0
      %4353 = vmatmul.mubr.bf16.gmra.mrb[0].mxu0 %v4222
      %v4354 = vpop.f32.mrb[0].mxu0
      %v4355 = vadd.f32 0.0, %v4354
      %v4356 = vpop.f32.mrb[0].mxu0
      %v4357 = vpop.f32.mrb[0].mxu0
      %v4358 = vadd.f32 0.0, %v4357
      %v4359 = vpop.f32.mrb[0].mxu0
      %4360 = vdwg.mxu0
      %v4361 = vadd.f32 %v4198, %v4323
      %v4362 = vadd.f32 %v4199, %v4326
      %v4363 = vadd.f32 %v4200, %v4331
      %v4364 = vadd.f32 %v4201, %v4334
      %v4365 = vadd.f32 %v4202, %v4339
      %v4366 = vadd.f32 %v4203, %v4342
      %v4367 = vadd.f32 %v4204, %v4347
      %v4368 = vadd.f32 %v4205, %v4350
      %v4369 = vadd.f32 %v4206, %v4355
      %v4370 = vadd.f32 %v4207, %v4358
      %v4371 = vld [vmem:[%s305 + $0x15] sm:$0xff]
      %v4372 = vld [vmem:[%s305 + $0x1d] sm:$0xff]
      %v4373 = vld [vmem:[%s305 + $0x25] sm:$0xff]
      %v4374 = vld [vmem:[%s305 + $0x2d] sm:$0xff]
      %v4375 = vld [vmem:[%s305 + $0x35] sm:$0xff]
      %v4376 = vld [vmem:[%s305 + $0x3d] sm:$0xff]
      %v4377 = vld [vmem:[%s305 + $0x45] sm:$0xff]
      %v4378 = vld [vmem:[%s305 + $0x4d] sm:$0xff]
      %v4379 = vld [vmem:[%s305 + $0x55] sm:$0xff]
      %v4380 = vld [vmem:[%s305 + $0x5d] sm:$0x3f]
      %v4381 = vpack.c.bf16 %v4372, %v4371
      %v4382 = vpack.c.bf16 %v4374, %v4373
      %v4383 = vpack.c.bf16 %v4376, %v4375
      %v4384 = vpack.c.bf16 %v4378, %v4377
      %v4385 = vpack.c.bf16 %v4380, %v4379
      %s4386 = scalar_lea.vmem %s3, 1600
      %v4387 = vld [vmem:[%s4386] sm:$0xf]
      %v4388 = vld [vmem:[%s4386 + $0x4] sm:$0xf]
      %v4389 = vld [vmem:[%s4386 + $0x8] sm:$0xf]
      %v4390 = vld [vmem:[%s4386 + $0xc] sm:$0xf]
      %v4391 = vld [vmem:[%s4386 + $0x10] sm:$0xf]
      %v4392 = vld [vmem:[%s4386 + $0x14] sm:$0xf]
      %v4393 = vld [vmem:[%s4386 + $0x18] sm:$0xf]
      %v4394 = vld [vmem:[%s4386 + $0x1c] sm:$0xf]
      %v4395 = vld [vmem:[%s4386 + $0x20] sm:$0xf]
      %v4396 = vld [vmem:[%s4386 + $0x24] sm:$0xf]
      %v4397 = vld [vmem:[%s4386 + $0x28] sm:$0xf]
      %v4398 = vld [vmem:[%s4386 + $0x2c] sm:$0xf]
      %v4399 = vld [vmem:[%s4386 + $0x30] sm:$0xf]
      %v4400 = vld [vmem:[%s4386 + $0x34] sm:$0xf]
      %v4401 = vld [vmem:[%s4386 + $0x38] sm:$0xf]
      %v4402 = vld [vmem:[%s4386 + $0x3c] sm:$0xf]
      %v4419 = vunpack.c.l.b16 %v4387
      %v4420 = vunpack.c.l.b16 %v4388
      %v4421 = vunpack.c.l.b16 %v4389
      %v4422 = vunpack.c.l.b16 %v4390
      %v4423 = vunpack.c.l.b16 %v4391
      %v4424 = vunpack.c.l.b16 %v4392
      %v4425 = vunpack.c.l.b16 %v4393
      %v4426 = vunpack.c.l.b16 %v4394
      %v4427 = vunpack.c.l.b16 %v4395
      %v4428 = vunpack.c.l.b16 %v4396
      %v4429 = vunpack.c.l.b16 %v4397
      %v4430 = vunpack.c.l.b16 %v4398
      %v4431 = vunpack.c.l.b16 %v4399
      %v4432 = vunpack.c.l.b16 %v4400
      %v4433 = vunpack.c.l.b16 %v4401
      %v4434 = vunpack.c.l.b16 %v4402
      %v4435 = vpack.c.b16 %v4420, %v4419
      %v4436 = vpack.c.b16 %v4422, %v4421
      %v4437 = vpack.c.b16 %v4424, %v4423
      %v4438 = vpack.c.b16 %v4426, %v4425
      %v4439 = vpack.c.b16 %v4428, %v4427
      %v4440 = vpack.c.b16 %v4430, %v4429
      %v4441 = vpack.c.b16 %v4432, %v4431
      %v4442 = vpack.c.b16 %v4434, %v4433
      %4451 = vmatprep.subr.bf16.mxu0 0
      %4452 = vmatpush1.bf16.msra.mxu0 %v4435
      %4453 = vmatprep.subr.bf16.mxu0 0
      %4454 = vmatpush1.bf16.msra.mxu0 %v4436
      %4455 = vmatprep.subr.bf16.mxu0 0
      %4456 = vmatpush1.bf16.msra.mxu0 %v4437
      %4457 = vmatprep.subr.bf16.mxu0 0
      %4458 = vmatpush1.bf16.msra.mxu0 %v4438
      %4459 = vmatprep.subr.bf16.mxu0 0
      %4460 = vmatpush1.bf16.msra.mxu0 %v4439
      %4461 = vmatprep.subr.bf16.mxu0 0
      %4462 = vmatpush1.bf16.msra.mxu0 %v4440
      %4463 = vmatprep.subr.bf16.mxu0 0
      %4464 = vmatpush1.bf16.msra.mxu0 %v4441
      %4465 = vmatprep.subr.bf16.mxu0 0
      %4466 = vmatpush1.bf16.msra.mxu0 %v4442
      %4467 = vmatprep.subr.bf16.mxu0 0
      %4468 = vmatpush1.bf16.msra.mxu0 0
      %4469 = vmatprep.subr.bf16.mxu0 0
      %4470 = vmatpush1.bf16.msra.mxu0 0
      %4471 = vmatprep.subr.bf16.mxu0 0
      %4472 = vmatpush1.bf16.msra.mxu0 0
      %4473 = vmatprep.subr.bf16.mxu0 0
      %4474 = vmatpush1.bf16.msra.mxu0 0
      %4475 = vmatprep.subr.bf16.mxu0 0
      %4476 = vmatpush1.bf16.msra.mxu0 0
      %4477 = vmatprep.subr.bf16.mxu0 0
      %4478 = vmatpush1.bf16.msra.mxu0 0
      %4479 = vmatprep.subr.bf16.mxu0 0
      %4480 = vmatpush1.bf16.msra.mxu0 0
      %4481 = vmatprep.subr.bf16.mxu0 0
      %4482 = vmatpush1.bf16.msra.mxu0 0
      %4483 = vmatprep.mubr.bf16.mxu0 0
      %4484 = vmatmul.mubr.bf16.gmra.mrb[0].mxu0 %v4381
      %v4485 = vpop.f32.mrb[0].mxu0
      %v4486 = vadd.f32 0.0, %v4485
      %v4487 = vpop.f32.mrb[0].mxu0
      %v4488 = vpop.f32.mrb[0].mxu0
      %v4489 = vadd.f32 0.0, %v4488
      %v4490 = vpop.f32.mrb[0].mxu0
      %4491 = vmatprep.mubr.bf16.mxu0 0
      %4492 = vmatmul.mubr.bf16.gmra.mrb[0].mxu0 %v4382
      %v4493 = vpop.f32.mrb[0].mxu0
      %v4494 = vadd.f32 0.0, %v4493
      %v4495 = vpop.f32.mrb[0].mxu0
      %v4496 = vpop.f32.mrb[0].mxu0
      %v4497 = vadd.f32 0.0, %v4496
      %v4498 = vpop.f32.mrb[0].mxu0
      %4499 = vmatprep.mubr.bf16.mxu0 0
      %4500 = vmatmul.mubr.bf16.gmra.mrb[0].mxu0 %v4383
      %v4501 = vpop.f32.mrb[0].mxu0
      %v4502 = vadd.f32 0.0, %v4501
      %v4503 = vpop.f32.mrb[0].mxu0
      %v4504 = vpop.f32.mrb[0].mxu0
      %v4505 = vadd.f32 0.0, %v4504
      %v4506 = vpop.f32.mrb[0].mxu0
      %4507 = vmatprep.mubr.bf16.mxu0 0
      %4508 = vmatmul.mubr.bf16.gmra.mrb[0].mxu0 %v4384
      %v4509 = vpop.f32.mrb[0].mxu0
      %v4510 = vadd.f32 0.0, %v4509
      %v4511 = vpop.f32.mrb[0].mxu0
      %v4512 = vpop.f32.mrb[0].mxu0
      %v4513 = vadd.f32 0.0, %v4512
      %v4514 = vpop.f32.mrb[0].mxu0
      %4515 = vmatprep.mubr.bf16.mxu0 0
      %4516 = vmatmul.mubr.bf16.gmra.mrb[0].mxu0 %v4385
      %v4517 = vpop.f32.mrb[0].mxu0
      %v4518 = vadd.f32 0.0, %v4517
      %v4519 = vpop.f32.mrb[0].mxu0
      %v4520 = vpop.f32.mrb[0].mxu0
      %v4521 = vadd.f32 0.0, %v4520
      %v4522 = vpop.f32.mrb[0].mxu0
      %4523 = vdwg.mxu0
      %v4524 = vadd.f32 %v4361, %v4486
      %v4525 = vadd.f32 %v4362, %v4489
      %v4526 = vadd.f32 %v4363, %v4494
      %v4527 = vadd.f32 %v4364, %v4497
      %v4528 = vadd.f32 %v4365, %v4502
      %v4529 = vadd.f32 %v4366, %v4505
      %v4530 = vadd.f32 %v4367, %v4510
      %v4531 = vadd.f32 %v4368, %v4513
      %v4532 = vadd.f32 %v4369, %v4518
      %v4533 = vadd.f32 %v4370, %v4521
      %v4534 = vld [vmem:[%s305 + $0x16] sm:$0xff]
      %v4535 = vld [vmem:[%s305 + $0x1e] sm:$0xff]
      %v4536 = vld [vmem:[%s305 + $0x26] sm:$0xff]
      %v4537 = vld [vmem:[%s305 + $0x2e] sm:$0xff]
      %v4538 = vld [vmem:[%s305 + $0x36] sm:$0xff]
      %v4539 = vld [vmem:[%s305 + $0x3e] sm:$0xff]
      %v4540 = vld [vmem:[%s305 + $0x46] sm:$0xff]
      %v4541 = vld [vmem:[%s305 + $0x4e] sm:$0xff]
      %v4542 = vld [vmem:[%s305 + $0x56] sm:$0xff]
      %v4543 = vld [vmem:[%s305 + $0x5e] sm:$0x3f]
      %v4544 = vpack.c.bf16 %v4535, %v4534
      %v4545 = vpack.c.bf16 %v4537, %v4536
      %v4546 = vpack.c.bf16 %v4539, %v4538
      %v4547 = vpack.c.bf16 %v4541, %v4540
      %v4548 = vpack.c.bf16 %v4543, %v4542
      %s4549 = scalar_lea.vmem %s3, 1664
      %v4550 = vld [vmem:[%s4549] sm:$0xf]
      %v4551 = vld [vmem:[%s4549 + $0x4] sm:$0xf]
      %v4552 = vld [vmem:[%s4549 + $0x8] sm:$0xf]
      %v4553 = vld [vmem:[%s4549 + $0xc] sm:$0xf]
      %v4554 = vld [vmem:[%s4549 + $0x10] sm:$0xf]
      %v4555 = vld [vmem:[%s4549 + $0x14] sm:$0xf]
      %v4556 = vld [vmem:[%s4549 + $0x18] sm:$0xf]
      %v4557 = vld [vmem:[%s4549 + $0x1c] sm:$0xf]
      %v4558 = vld [vmem:[%s4549 + $0x20] sm:$0xf]
      %v4559 = vld [vmem:[%s4549 + $0x24] sm:$0xf]
      %v4560 = vld [vmem:[%s4549 + $0x28] sm:$0xf]
      %v4561 = vld [vmem:[%s4549 + $0x2c] sm:$0xf]
      %v4562 = vld [vmem:[%s4549 + $0x30] sm:$0xf]
      %v4563 = vld [vmem:[%s4549 + $0x34] sm:$0xf]
      %v4564 = vld [vmem:[%s4549 + $0x38] sm:$0xf]
      %v4565 = vld [vmem:[%s4549 + $0x3c] sm:$0xf]
      %v4582 = vunpack.c.l.b16 %v4550
      %v4583 = vunpack.c.l.b16 %v4551
      %v4584 = vunpack.c.l.b16 %v4552
      %v4585 = vunpack.c.l.b16 %v4553
      %v4586 = vunpack.c.l.b16 %v4554
      %v4587 = vunpack.c.l.b16 %v4555
      %v4588 = vunpack.c.l.b16 %v4556
      %v4589 = vunpack.c.l.b16 %v4557
      %v4590 = vunpack.c.l.b16 %v4558
      %v4591 = vunpack.c.l.b16 %v4559
      %v4592 = vunpack.c.l.b16 %v4560
      %v4593 = vunpack.c.l.b16 %v4561
      %v4594 = vunpack.c.l.b16 %v4562
      %v4595 = vunpack.c.l.b16 %v4563
      %v4596 = vunpack.c.l.b16 %v4564
      %v4597 = vunpack.c.l.b16 %v4565
      %v4598 = vpack.c.b16 %v4583, %v4582
      %v4599 = vpack.c.b16 %v4585, %v4584
      %v4600 = vpack.c.b16 %v4587, %v4586
      %v4601 = vpack.c.b16 %v4589, %v4588
      %v4602 = vpack.c.b16 %v4591, %v4590
      %v4603 = vpack.c.b16 %v4593, %v4592
      %v4604 = vpack.c.b16 %v4595, %v4594
      %v4605 = vpack.c.b16 %v4597, %v4596
      %4614 = vmatprep.subr.bf16.mxu0 0
      %4615 = vmatpush1.bf16.msra.mxu0 %v4598
      %4616 = vmatprep.subr.bf16.mxu0 0
      %4617 = vmatpush1.bf16.msra.mxu0 %v4599
      %4618 = vmatprep.subr.bf16.mxu0 0
      %4619 = vmatpush1.bf16.msra.mxu0 %v4600
      %4620 = vmatprep.subr.bf16.mxu0 0
      %4621 = vmatpush1.bf16.msra.mxu0 %v4601
      %4622 = vmatprep.subr.bf16.mxu0 0
      %4623 = vmatpush1.bf16.msra.mxu0 %v4602
      %4624 = vmatprep.subr.bf16.mxu0 0
      %4625 = vmatpush1.bf16.msra.mxu0 %v4603
      %4626 = vmatprep.subr.bf16.mxu0 0
      %4627 = vmatpush1.bf16.msra.mxu0 %v4604
      %4628 = vmatprep.subr.bf16.mxu0 0
      %4629 = vmatpush1.bf16.msra.mxu0 %v4605
      %4630 = vmatprep.subr.bf16.mxu0 0
      %4631 = vmatpush1.bf16.msra.mxu0 0
      %4632 = vmatprep.subr.bf16.mxu0 0
      %4633 = vmatpush1.bf16.msra.mxu0 0
      %4634 = vmatprep.subr.bf16.mxu0 0
      %4635 = vmatpush1.bf16.msra.mxu0 0
      %4636 = vmatprep.subr.bf16.mxu0 0
      %4637 = vmatpush1.bf16.msra.mxu0 0
      %4638 = vmatprep.subr.bf16.mxu0 0
      %4639 = vmatpush1.bf16.msra.mxu0 0
      %4640 = vmatprep.subr.bf16.mxu0 0
      %4641 = vmatpush1.bf16.msra.mxu0 0
      %4642 = vmatprep.subr.bf16.mxu0 0
      %4643 = vmatpush1.bf16.msra.mxu0 0
      %4644 = vmatprep.subr.bf16.mxu0 0
      %4645 = vmatpush1.bf16.msra.mxu0 0
      %4646 = vmatprep.mubr.bf16.mxu0 0
      %4647 = vmatmul.mubr.bf16.gmra.mrb[0].mxu0 %v4544
      %v4648 = vpop.f32.mrb[0].mxu0
      %v4649 = vadd.f32 0.0, %v4648
      %v4650 = vpop.f32.mrb[0].mxu0
      %v4651 = vpop.f32.mrb[0].mxu0
      %v4652 = vadd.f32 0.0, %v4651
      %v4653 = vpop.f32.mrb[0].mxu0
      %4654 = vmatprep.mubr.bf16.mxu0 0
      %4655 = vmatmul.mubr.bf16.gmra.mrb[0].mxu0 %v4545
      %v4656 = vpop.f32.mrb[0].mxu0
      %v4657 = vadd.f32 0.0, %v4656
      %v4658 = vpop.f32.mrb[0].mxu0
      %v4659 = vpop.f32.mrb[0].mxu0
      %v4660 = vadd.f32 0.0, %v4659
      %v4661 = vpop.f32.mrb[0].mxu0
      %4662 = vmatprep.mubr.bf16.mxu0 0
      %4663 = vmatmul.mubr.bf16.gmra.mrb[0].mxu0 %v4546
      %v4664 = vpop.f32.mrb[0].mxu0
      %v4665 = vadd.f32 0.0, %v4664
      %v4666 = vpop.f32.mrb[0].mxu0
      %v4667 = vpop.f32.mrb[0].mxu0
      %v4668 = vadd.f32 0.0, %v4667
      %v4669 = vpop.f32.mrb[0].mxu0
      %4670 = vmatprep.mubr.bf16.mxu0 0
      %4671 = vmatmul.mubr.bf16.gmra.mrb[0].mxu0 %v4547
      %v4672 = vpop.f32.mrb[0].mxu0
      %v4673 = vadd.f32 0.0, %v4672
      %v4674 = vpop.f32.mrb[0].mxu0
      %v4675 = vpop.f32.mrb[0].mxu0
      %v4676 = vadd.f32 0.0, %v4675
      %v4677 = vpop.f32.mrb[0].mxu0
      %4678 = vmatprep.mubr.bf16.mxu0 0
      %4679 = vmatmul.mubr.bf16.gmra.mrb[0].mxu0 %v4548
      %v4680 = vpop.f32.mrb[0].mxu0
      %v4681 = vadd.f32 0.0, %v4680
      %v4682 = vpop.f32.mrb[0].mxu0
      %v4683 = vpop.f32.mrb[0].mxu0
      %v4684 = vadd.f32 0.0, %v4683
      %v4685 = vpop.f32.mrb[0].mxu0
      %4686 = vdwg.mxu0
      %v4687 = vadd.f32 %v4524, %v4649
      %v4688 = vadd.f32 %v4525, %v4652
      %v4689 = vadd.f32 %v4526, %v4657
      %v4690 = vadd.f32 %v4527, %v4660
      %v4691 = vadd.f32 %v4528, %v4665
      %v4692 = vadd.f32 %v4529, %v4668
      %v4693 = vadd.f32 %v4530, %v4673
      %v4694 = vadd.f32 %v4531, %v4676
      %v4695 = vadd.f32 %v4532, %v4681
      %v4696 = vadd.f32 %v4533, %v4684
      %4697 = vst [vmem:[#allocation2] sm:$0xff] %v4687
      %4698 = vst [vmem:[#allocation2 + $0x8] sm:$0xff] %v4688
      %4699 = vst [vmem:[#allocation2 + $0x10] sm:$0xff] %v4689
      %4700 = vst [vmem:[#allocation2 + $0x18] sm:$0xff] %v4690
      %4701 = vst [vmem:[#allocation2 + $0x20] sm:$0xff] %v4691
      %4702 = vst [vmem:[#allocation2 + $0x28] sm:$0xff] %v4692
      %4703 = vst [vmem:[#allocation2 + $0x30] sm:$0xff] %v4693
      %4704 = vst [vmem:[#allocation2 + $0x38] sm:$0xff] %v4694
      %4705 = vst [vmem:[#allocation2 + $0x40] sm:$0xff] %v4695
      %4706 = vst [vmem:[#allocation2 + $0x48] sm:$0x3f] %v4696
      %v4707 = vld [vmem:[#allocation2] sm:$0xff]
      %4708 = vst [vmem:[%s315] sm:$0xff] %v4707
      %v4709 = vld [vmem:[#allocation2 + $0xa] sm:$0xff]
      %s4710 = scalar_lea.vmem %s315, 8
      %4711 = vst [vmem:[%s4710] sm:$0xff] %v4709
      %v4712 = vld [vmem:[#allocation2 + $0x14] sm:$0xff]
      %s4713 = scalar_lea.vmem %s315, 16
      %4714 = vst [vmem:[%s4713] sm:$0xff] %v4712
      %v4715 = vld [vmem:[#allocation2 + $0x1e] sm:$0xff]
      %s4716 = scalar_lea.vmem %s315, 24
      %4717 = vst [vmem:[%s4716] sm:$0xff] %v4715
      %v4718 = vld [vmem:[#allocation2 + $0x28] sm:$0xff]
      %s4719 = scalar_lea.vmem %s315, 32
      %4720 = vst [vmem:[%s4719] sm:$0xff] %v4718
      %v4721 = vld [vmem:[#allocation2 + $0x32] sm:$0xff]
      %s4722 = scalar_lea.vmem %s315, 40
      %4723 = vst [vmem:[%s4722] sm:$0xff] %v4721
      %v4724 = vld [vmem:[#allocation2 + $0x3c] sm:$0xff]
      %s4725 = scalar_lea.vmem %s315, 48
      %4726 = vst [vmem:[%s4725] sm:$0xff] %v4724
      %v4727 = vld [vmem:[#allocation2 + $0x46] sm:$0xff]
      %s4728 = scalar_lea.vmem %s315, 56
      %4729 = vst [vmem:[%s4728] sm:$0xff] %v4727
      %p4730 = scmp.lt.s32.totalorder %s19, 1
      %s4731 = scalar_select %p4730, %s19, 1
      %p4732 = scmp.lt.s32.totalorder %s20, 3
      %s4733 = scalar_select %p4732, %s20, 3
      %s4734 = smul.addr %s4733, 8
      %s4735 = smul.addr %s4731, 32
      %s4736 = sadd.s32 %s4734, %s4735
      %s4737 = smul.addr %s4736, 8
      %s4738 = scalar_lea.vmem %s4, %s4737
      // Predicated region
      $region37: #{dense_block_forward.5} parent=35 // pred_check
        %p4739 = pneg %p156
      $region38: #{dense_block_forward.5} parent=35 // pred_check_branch
        %4741 = sbr.rel (%p4739) target = $region40
      $region39: #{dense_block_forward.5} parent=35 // pred_region
        _
      $region40: #{dense_block_forward.5} parent=35 // pred_fallthru
        _
    $region36: #{dense_block_forward.5} parent=5 // pred_fallthru
      _
    %p4742 = scmp.le.s32.totalorder 2, %s10
    // Predicated region
    $region41: #{dense_block_forward.5} parent=5 // pred_check
      %p4743 = pneg %p4742
    $region42: #{dense_block_forward.5} parent=5 // pred_check_branch
      %4745 = sbr.rel (%p4743) target = $region44
    $region43: #{dense_block_forward.5} parent=5 // pred_region
      %s4746 = ssub.s32 %s10, 2
      // Predicated region
      $region45: #{dense_block_forward.5} parent=43 // pred_check
        %p4747 = pneg %p162
      $region46: #{dense_block_forward.5} parent=43 // pred_check_branch
        %4749 = sbr.rel (%p4747) target = $region48
      $region47: #{dense_block_forward.5} parent=43 // pred_region
        %p4750 = scmp.lt.s32.totalorder %s21, 1
        %s4751 = scalar_select %p4750, %s21, 1
        %p4752 = scmp.lt.s32.totalorder %s22, 3
        %s4753 = scalar_select %p4752, %s22, 3
        %s4754 = smul.addr %s4753, 8
        %s4755 = smul.addr %s4751, 32
        %s4756 = sadd.s32 %s4754, %s4755
        %s4757 = smul.addr %s4756, 8
        %s4758 = scalar_lea.vmem %s4, %s4757
      $region48: #{dense_block_forward.5} parent=43 // pred_fallthru
        _
    $region44: #{dense_block_forward.5} parent=5 // pred_fallthru
      _
  $region6: #{dense_block_forward.5} parent=0 // loop_footer
    %s14 = sadd.s32 1, %s10
  $region7: #{dense_block_forward.5} parent=0 // loop_footer_branch
    %9 = sbr.rel target = $region3
  $region8: #{dense_block_forward.5} parent=0 // loop_exit
    _

</llo_original>
